<compile_context>
chip_gen: v7x
topology: tpu7x:2x2x1
jax: 0.10.0
libtpu: 0.0.40
codegen_flags: <defaults>
</compile_context>

<pallas_src>
import math
import numpy as np
import jax
import jax.numpy as jnp
from jax import lax
from jax.experimental import pallas as pl
from jax.experimental.pallas import tpu as pltpu

D_K = 32
D_V = 32
D_MODEL = 116
N_HEADS = 4
D_FF = 116
SEQ = 116                     # dense_1 expects 13456 = 116 * 116 flattened feats
N_LAYERS = 2
DENSE1_OUT = 4096
DENSE2_OUT = 2

DP = 128                      # lane-padded feature width (116 -> 128)
OUT_PAD = 128                 # lane-dense output slab for the 2 logits
LN_EPS = 1e-5


# ---------------------------------------------------------------------------
# Fused kernel: 2 encoder layers + folded dense head, one batch element / step
# ---------------------------------------------------------------------------

def aufa_kernel(x_ref,
                wq_ref, bq_ref, wk_ref, bk_ref, wv_ref, bv_ref,
                wo_ref, bo_ref, g1_ref, be1_ref,
                wf1_ref, bf1_ref, wf2_ref, bf2_ref, g2_ref, be2_ref,
                weff_ref, beff_ref,
                out_ref):
    y = x_ref[0]                                            # (S, DP), pad lanes = 0
    scale = 1.0 / math.sqrt(D_K)
    inv_d = 1.0 / D_MODEL
    # mask of the 116 real lanes (pad lanes 116..127 are zero everywhere)
    mask = (lax.broadcasted_iota(jnp.int32, (1, DP), 1) < D_MODEL).astype(jnp.float32)

    def layer_norm(z, gamma, beta):
        # z has zero pad lanes, so sum over all 128 lanes == sum over 116 lanes.
        mu = jnp.sum(z, axis=-1, keepdims=True) * inv_d
        c = (z - mu) * mask
        var = jnp.sum(c * c, axis=-1, keepdims=True) * inv_d
        # gamma/beta are zero in pad lanes -> output pad lanes stay exactly 0.
        return c * lax.rsqrt(var + LN_EPS) * gamma + beta

    for l in range(N_LAYERS):                               # static unroll (2)
        wq = wq_ref[l]
        wk = wk_ref[l]
        wv = wv_ref[l]
        wo = wo_ref[l]

        # Fused-head projections: lane-dense (116,128)@(128,128) MXU matmuls.
        q = jnp.dot(y, wq, preferred_element_type=jnp.float32) + bq_ref[l]
        k = jnp.dot(y, wk, preferred_element_type=jnp.float32) + bk_ref[l]
        v = jnp.dot(y, wv, preferred_element_type=jnp.float32) + bv_ref[l]

        # Per-head scaled dot-product attention; accumulate the output
        # projection per head instead of concatenating context lanes.
        attn_acc = None
        for h in range(N_HEADS):                            # static unroll (4)
            sl = slice(h * D_K, (h + 1) * D_K)
            qh, kh, vh = q[:, sl], k[:, sl], v[:, sl]
            s = lax.dot_general(qh, kh, (((1,), (1,)), ((), ())),
                                preferred_element_type=jnp.float32) * scale
            s = s - jnp.max(s, axis=-1, keepdims=True)
            e = jnp.exp(s)
            denom = jnp.sum(e, axis=-1, keepdims=True)
            p = e * pl.reciprocal(denom, approx=True)        # EUP slot
            ctx_h = jnp.dot(p, vh, preferred_element_type=jnp.float32)
            part = jnp.dot(ctx_h, wo[sl, :], preferred_element_type=jnp.float32)
            attn_acc = part if attn_acc is None else attn_acc + part
        attn_out = attn_acc + bo_ref[l]

        # Residual + LayerNorm (MultiHeadAttention epilogue)
        y1 = layer_norm(attn_out + y, g1_ref[l], be1_ref[l])

        # PoswiseFeedForwardNet: Conv1d(k=1) == per-position linear
        h1 = jnp.maximum(
            jnp.dot(y1, wf1_ref[l], preferred_element_type=jnp.float32) + bf1_ref[l],
            0.0)
        h2 = jnp.dot(h1, wf2_ref[l], preferred_element_type=jnp.float32) + bf2_ref[l]
        y = layer_norm(h2 + y1, g2_ref[l], be2_ref[l])

    # Folded dense head: x2[o] = sum_{s,d} y[s,d] * w_eff[s,d,o] + b_eff[o].
    # Only 2 outputs -> cheap elementwise multiply + reductions (VPU/XLU).
    def full_sum(a):                                         # (S, DP) -> (1, 1)
        r = jnp.sum(a, axis=1, keepdims=True)                # lane reduce
        return jnp.sum(r, axis=0, keepdims=True)             # sublane reduce

    o0 = full_sum(y * weff_ref[0])
    o1 = full_sum(y * weff_ref[1])
    lane = lax.broadcasted_iota(jnp.int32, (1, OUT_PAD), 1)
    out_ref[0] = (jnp.where(lane == 0, o0, 0.0)
                  + jnp.where(lane == 1, o1, 0.0)
                  + beff_ref[...])


# ---------------------------------------------------------------------------
# Wrapper
# ---------------------------------------------------------------------------

_WEIGHT_ORDER = ("wq", "bq", "wk", "bk", "wv", "bv", "wo", "bo",
                 "g1", "be1", "wf1", "bf1", "wf2", "bf2", "g2", "be2",
                 "weff", "beff")


def aufa_forward(prepared, enc_inputs, enc_inputs2):
    # Eval mode: enc_inputs2 unused, no perturbation, dropout = identity.
    B, S, D = enc_inputs.shape

    # Lane-pad the (tiny) activation once per call: (B, 116, 116) -> (B, 116, 128).
    x_p = jnp.zeros((B, S, DP), jnp.float32).at[:, :, :D].set(enc_inputs)

    weights = [prepared[k] for k in _WEIGHT_ORDER]

    def full_spec(arr):
        nd = arr.ndim
        return pl.BlockSpec(arr.shape, lambda b, _nd=nd: (0,) * _nd)

    out = pl.pallas_call(
        aufa_kernel,
        out_shape=jax.ShapeDtypeStruct((B, 1, OUT_PAD), jnp.float32),
        grid_spec=pltpu.PrefetchScalarGridSpec(
            num_scalar_prefetch=0,
            grid=(B,),
            in_specs=[pl.BlockSpec((1, S, DP), lambda b: (b, 0, 0))] +
                     [full_spec(w) for w in weights],
            out_specs=pl.BlockSpec((1, 1, OUT_PAD), lambda b: (b, 0, 0)),
        ),
        compiler_params=pltpu.CompilerParams(
            dimension_semantics=("parallel",)),   # batch shards across TCs (v7x)
    )(x_p, *weights)

    x2 = out[:, 0, :DENSE2_OUT]
    mmd_loss = jnp.float32(0.0)                   # training-only in torch
    return x2, mmd_loss


def prepare_params(params):
    """One-time (init-time) weight prep for the fused kernel:
      * lane-pad every encoder weight/bias/LN param 116 -> 128 (zeros in pad),
        stacked across the 2 layers (leading dim = layer),
      * fold dense_1/dense_2 into w_eff = w_d1 @ w_d2 and
        b_eff = b_d1 @ w_d2 + b_d2 (exact for the eval path: no nonlinearity
        between the two linears), reshaped to per-position planes (2, S, 128)."""
    def pad2(w, r, c):
        out = jnp.zeros((r, c), jnp.float32)
        return out.at[:w.shape[0], :w.shape[1]].set(w)

    stacks = {k: [] for k in _WEIGHT_ORDER[:16]}
    for lp in params["layers"]:
        stacks["wq"].append(pad2(lp["wq"], DP, DP))
        stacks["bq"].append(pad2(lp["bq"], 1, DP))
        stacks["wk"].append(pad2(lp["wk"], DP, DP))
        stacks["bk"].append(pad2(lp["bk"], 1, DP))
        stacks["wv"].append(pad2(lp["wv"], DP, DP))
        stacks["bv"].append(pad2(lp["bv"], 1, DP))
        stacks["wo"].append(pad2(lp["wo"], DP, DP))
        stacks["bo"].append(pad2(lp["bo"], 1, DP))
        stacks["g1"].append(pad2(lp["g1"], 1, DP))    # pad lanes 0 -> LN output 0
        stacks["be1"].append(pad2(lp["be1"], 1, DP))
        stacks["wf1"].append(pad2(lp["wf1"], DP, DP))
        stacks["bf1"].append(pad2(lp["bf1"], 1, DP))
        stacks["wf2"].append(pad2(lp["wf2"], DP, DP))
        stacks["bf2"].append(pad2(lp["bf2"], 1, DP))
        stacks["g2"].append(pad2(lp["g2"], 1, DP))
        stacks["be2"].append(pad2(lp["be2"], 1, DP))
    prepared = {k: jnp.stack(v) for k, v in stacks.items()}

    # Fold the dense head (exact w.r.t. the eval-mode reference).
    w_eff = params["w_d1"] @ params["w_d2"]                      # (13456, 2)
    b_eff = params["b_d1"] @ params["w_d2"] + params["b_d2"]     # (1, 2)
    w_eff = jnp.transpose(w_eff.reshape(SEQ, D_MODEL, DENSE2_OUT), (2, 0, 1))
    prepared["weff"] = jnp.zeros((DENSE2_OUT, SEQ, DP),
                                 jnp.float32).at[:, :, :D_MODEL].set(w_eff)
    prepared["beff"] = jnp.zeros((1, OUT_PAD),
                                 jnp.float32).at[:, :DENSE2_OUT].set(b_eff)
    return prepared


# ---------------------------------------------------------------------------
# Deterministic parameter init + pure-JAX reference
# ---------------------------------------------------------------------------

def init_params(key):
    keys = iter(jax.random.split(key, 64))

    def nrm(shape, scale):
        return scale * jax.random.normal(next(keys), shape, dtype=jnp.float32)

    layers = []
    for _ in range(N_LAYERS):
        layers.append(dict(
            # Fused-head layout: head h occupies columns [h*D_K:(h+1)*D_K],
            # matching PyTorch's view(B, -1, n_heads, d_k).
            wq=nrm((D_MODEL, N_HEADS * D_K), 0.05), bq=nrm((1, N_HEADS * D_K), 0.05),
            wk=nrm((D_MODEL, N_HEADS * D_K), 0.05), bk=nrm((1, N_HEADS * D_K), 0.05),
            wv=nrm((D_MODEL, N_HEADS * D_V), 0.05), bv=nrm((1, N_HEADS * D_V), 0.05),
            wo=nrm((N_HEADS * D_V, D_MODEL), 0.05), bo=nrm((1, D_MODEL), 0.05),
            g1=jnp.ones((1, D_MODEL), jnp.float32),
            be1=jnp.zeros((1, D_MODEL), jnp.float32),
            wf1=nrm((D_MODEL, D_FF), 0.05), bf1=nrm((1, D_FF), 0.05),
            wf2=nrm((D_FF, D_MODEL), 0.05), bf2=nrm((1, D_MODEL), 0.05),
            g2=jnp.ones((1, D_MODEL), jnp.float32),
            be2=jnp.zeros((1, D_MODEL), jnp.float32),
        ))
    return dict(
        layers=layers,
        w_d1=nrm((SEQ * D_MODEL, DENSE1_OUT), 0.01),
        b_d1=nrm((1, DENSE1_OUT), 0.01),
        w_d2=nrm((DENSE1_OUT, DENSE2_OUT), 0.02),
        b_d2=nrm((1, DENSE2_OUT), 0.02),
    )


def reference_forward(params, x):
    def ln(z, g, b):
        mu = z.mean(-1, keepdims=True)
        var = ((z - mu) ** 2).mean(-1, keepdims=True)
        return (z - mu) / jnp.sqrt(var + LN_EPS) * g + b

    B, S, _ = x.shape
    y = x
    for p in params["layers"]:
        q = (y @ p["wq"] + p["bq"]).reshape(B, S, N_HEADS, D_K)
        k = (y @ p["wk"] + p["bk"]).reshape(B, S, N_HEADS, D_K)
        v = (y @ p["wv"] + p["bv"]).reshape(B, S, N_HEADS, D_V)
        scores = jnp.einsum('bqhe,bkhe->bhqk', q, k) / math.sqrt(D_K)
        attn = jax.nn.softmax(scores, axis=-1)
        ctx = jnp.einsum('bhqk,bkhe->bqhe', attn, v).reshape(B, S, N_HEADS * D_V)
        out = ctx @ p["wo"] + p["bo"]
        y = ln(out + y, p["g1"], p["be1"])
        h1 = jax.nn.relu(y @ p["wf1"] + p["bf1"])
        h2 = h1 @ p["wf2"] + p["bf2"]
        y = ln(h2 + y, p["g2"], p["be2"])
    xf = y.reshape(B, -1)
    x1 = xf @ params["w_d1"] + params["b_d1"]          # unfused reference head
    x2 = x1 @ params["w_d2"] + params["b_d2"]
    return x2


if __name__ == "__main__":
    key = jax.random.PRNGKey(0)
    kp, k1, k2 = jax.random.split(key, 3)
    params = init_params(kp)
    prepared = prepare_params(params)       # one-time weight prep (pad + fold)

    B = 2
    enc_inputs = jax.random.normal(k1, (B, SEQ, D_MODEL), dtype=jnp.float32)
    enc_inputs2 = jax.random.normal(k2, (B, SEQ, D_MODEL), dtype=jnp.float32)

    x2, mmd = aufa_forward(prepared, enc_inputs, enc_inputs2)
    x2 = jax.block_until_ready(x2)

    ref = reference_forward(params, enc_inputs)
    np.testing.assert_allclose(np.asarray(x2), np.asarray(ref), rtol=5e-2, atol=5e-2)
    assert float(mmd) == 0.0

    print("KERNEL_OK")
</pallas_src>

<mosaic_0001>
module attributes {stable_mosaic.version = 11 : i64} {
  func.func @aufa_kernel(%arg0: i32, %arg1: memref<1x116x128xf32, #tpu.memory_space<vmem>>, %arg2: memref<2x128x128xf32, #tpu.memory_space<vmem>>, %arg3: memref<2x1x128xf32, #tpu.memory_space<vmem>>, %arg4: memref<2x128x128xf32, #tpu.memory_space<vmem>>, %arg5: memref<2x1x128xf32, #tpu.memory_space<vmem>>, %arg6: memref<2x128x128xf32, #tpu.memory_space<vmem>>, %arg7: memref<2x1x128xf32, #tpu.memory_space<vmem>>, %arg8: memref<2x128x128xf32, #tpu.memory_space<vmem>>, %arg9: memref<2x1x128xf32, #tpu.memory_space<vmem>>, %arg10: memref<2x1x128xf32, #tpu.memory_space<vmem>>, %arg11: memref<2x1x128xf32, #tpu.memory_space<vmem>>, %arg12: memref<2x128x128xf32, #tpu.memory_space<vmem>>, %arg13: memref<2x1x128xf32, #tpu.memory_space<vmem>>, %arg14: memref<2x128x128xf32, #tpu.memory_space<vmem>>, %arg15: memref<2x1x128xf32, #tpu.memory_space<vmem>>, %arg16: memref<2x1x128xf32, #tpu.memory_space<vmem>>, %arg17: memref<2x1x128xf32, #tpu.memory_space<vmem>>, %arg18: memref<2x116x128xf32, #tpu.memory_space<vmem>>, %arg19: memref<1x128xf32, #tpu.memory_space<vmem>>, %arg20: memref<1x1x128xf32, #tpu.memory_space<vmem>>) attributes {dimension_semantics = [#tpu.dimension_semantics<parallel>], iteration_bounds = array<i64: 2>, scalar_prefetch = 0 : i64, scratch_operands = 0 : i64, tpu.core_type = #tpu.core_type<tc>, window_params = [{transform_indices = @transform_0, window_bounds = array<i64: 1, 116, 128>}, {pipeline_mode = #tpu.pipeline_mode<synchronous>, transform_indices = @transform_1, window_bounds = array<i64: 2, 128, 128>}, {pipeline_mode = #tpu.pipeline_mode<synchronous>, transform_indices = @transform_2, window_bounds = array<i64: 2, 1, 128>}, {pipeline_mode = #tpu.pipeline_mode<synchronous>, transform_indices = @transform_3, window_bounds = array<i64: 2, 128, 128>}, {pipeline_mode = #tpu.pipeline_mode<synchronous>, transform_indices = @transform_4, window_bounds = array<i64: 2, 1, 128>}, {pipeline_mode = #tpu.pipeline_mode<synchronous>, transform_indices = @transform_5, window_bounds = array<i64: 2, 128, 128>}, {pipeline_mode = #tpu.pipeline_mode<synchronous>, transform_indices = @transform_6, window_bounds = array<i64: 2, 1, 128>}, {pipeline_mode = #tpu.pipeline_mode<synchronous>, transform_indices = @transform_7, window_bounds = array<i64: 2, 128, 128>}, {pipeline_mode = #tpu.pipeline_mode<synchronous>, transform_indices = @transform_8, window_bounds = array<i64: 2, 1, 128>}, {pipeline_mode = #tpu.pipeline_mode<synchronous>, transform_indices = @transform_9, window_bounds = array<i64: 2, 1, 128>}, {pipeline_mode = #tpu.pipeline_mode<synchronous>, transform_indices = @transform_10, window_bounds = array<i64: 2, 1, 128>}, {pipeline_mode = #tpu.pipeline_mode<synchronous>, transform_indices = @transform_11, window_bounds = array<i64: 2, 128, 128>}, {pipeline_mode = #tpu.pipeline_mode<synchronous>, transform_indices = @transform_12, window_bounds = array<i64: 2, 1, 128>}, {pipeline_mode = #tpu.pipeline_mode<synchronous>, transform_indices = @transform_13, window_bounds = array<i64: 2, 128, 128>}, {pipeline_mode = #tpu.pipeline_mode<synchronous>, transform_indices = @transform_14, window_bounds = array<i64: 2, 1, 128>}, {pipeline_mode = #tpu.pipeline_mode<synchronous>, transform_indices = @transform_15, window_bounds = array<i64: 2, 1, 128>}, {pipeline_mode = #tpu.pipeline_mode<synchronous>, transform_indices = @transform_16, window_bounds = array<i64: 2, 1, 128>}, {pipeline_mode = #tpu.pipeline_mode<synchronous>, transform_indices = @transform_17, window_bounds = array<i64: 2, 116, 128>}, {pipeline_mode = #tpu.pipeline_mode<synchronous>, transform_indices = @transform_18, window_bounds = array<i64: 1, 128>}, {transform_indices = @transform_19, window_bounds = array<i64: 1, 1, 128>}]} {
    %c0 = arith.constant 0 : index
    %c0_0 = arith.constant 0 : index
    %c0_1 = arith.constant 0 : index
    %0 = vector.load %arg1[%c0, %c0_0, %c0_1] : memref<1x116x128xf32, #tpu.memory_space<vmem>>, vector<1x116x128xf32>
    %1 = vector.shape_cast %0 : vector<1x116x128xf32> to vector<116x128xf32>
    %2 = tpu.iota {dimensions = array<i32: 1>} : vector<1x128xi32>
    %c116_i32 = arith.constant 116 : i32
    %3 = vector.broadcast %c116_i32 : i32 to vector<1x128xi32>
    %4 = arith.cmpi slt, %2, %3 : vector<1x128xi32>
    %5 = arith.extui %4 : vector<1x128xi1> to vector<1x128xi32>
    %6 = arith.sitofp %5 : vector<1x128xi32> to vector<1x128xf32>
    %c0_2 = arith.constant 0 : index
    %c0_3 = arith.constant 0 : index
    %c0_4 = arith.constant 0 : index
    %7 = vector.load %arg2[%c0_2, %c0_3, %c0_4] : memref<2x128x128xf32, #tpu.memory_space<vmem>>, vector<1x128x128xf32>
    %8 = vector.shape_cast %7 : vector<1x128x128xf32> to vector<128x128xf32>
    %c0_5 = arith.constant 0 : index
    %c0_6 = arith.constant 0 : index
    %c0_7 = arith.constant 0 : index
    %9 = vector.load %arg4[%c0_5, %c0_6, %c0_7] : memref<2x128x128xf32, #tpu.memory_space<vmem>>, vector<1x128x128xf32>
    %10 = vector.shape_cast %9 : vector<1x128x128xf32> to vector<128x128xf32>
    %c0_8 = arith.constant 0 : index
    %c0_9 = arith.constant 0 : index
    %c0_10 = arith.constant 0 : index
    %11 = vector.load %arg6[%c0_8, %c0_9, %c0_10] : memref<2x128x128xf32, #tpu.memory_space<vmem>>, vector<1x128x128xf32>
    %12 = vector.shape_cast %11 : vector<1x128x128xf32> to vector<128x128xf32>
    %c0_11 = arith.constant 0 : index
    %c0_12 = arith.constant 0 : index
    %c0_13 = arith.constant 0 : index
    %13 = vector.load %arg8[%c0_11, %c0_12, %c0_13] : memref<2x128x128xf32, #tpu.memory_space<vmem>>, vector<1x128x128xf32>
    %14 = vector.shape_cast %13 : vector<1x128x128xf32> to vector<128x128xf32>
    %cst = arith.constant dense<0.000000e+00> : vector<116x128xf32>
    %15 = tpu.matmul %1, %8, %cst {dimension_numbers = #tpu.dot_dimension_numbers<[1], [0], [0], [1], [0, 0, 1, 1], [], []>} : vector<116x128xf32>, vector<128x128xf32>, vector<116x128xf32> -> vector<116x128xf32>
    %c0_14 = arith.constant 0 : index
    %c0_15 = arith.constant 0 : index
    %c0_16 = arith.constant 0 : index
    %16 = vector.load %arg3[%c0_14, %c0_15, %c0_16] : memref<2x1x128xf32, #tpu.memory_space<vmem>>, vector<1x1x128xf32>
    %17 = vector.shape_cast %16 : vector<1x1x128xf32> to vector<1x128xf32>
    %18 = vector.broadcast %17 : vector<1x128xf32> to vector<116x128xf32>
    %19 = arith.addf %15, %18 : vector<116x128xf32>
    %cst_17 = arith.constant dense<0.000000e+00> : vector<116x128xf32>
    %20 = tpu.matmul %1, %10, %cst_17 {dimension_numbers = #tpu.dot_dimension_numbers<[1], [0], [0], [1], [0, 0, 1, 1], [], []>} : vector<116x128xf32>, vector<128x128xf32>, vector<116x128xf32> -> vector<116x128xf32>
    %c0_18 = arith.constant 0 : index
    %c0_19 = arith.constant 0 : index
    %c0_20 = arith.constant 0 : index
    %21 = vector.load %arg5[%c0_18, %c0_19, %c0_20] : memref<2x1x128xf32, #tpu.memory_space<vmem>>, vector<1x1x128xf32>
    %22 = vector.shape_cast %21 : vector<1x1x128xf32> to vector<1x128xf32>
    %23 = vector.broadcast %22 : vector<1x128xf32> to vector<116x128xf32>
    %24 = arith.addf %20, %23 : vector<116x128xf32>
    %cst_21 = arith.constant dense<0.000000e+00> : vector<116x128xf32>
    %25 = tpu.matmul %1, %12, %cst_21 {dimension_numbers = #tpu.dot_dimension_numbers<[1], [0], [0], [1], [0, 0, 1, 1], [], []>} : vector<116x128xf32>, vector<128x128xf32>, vector<116x128xf32> -> vector<116x128xf32>
    %c0_22 = arith.constant 0 : index
    %c0_23 = arith.constant 0 : index
    %c0_24 = arith.constant 0 : index
    %26 = vector.load %arg7[%c0_22, %c0_23, %c0_24] : memref<2x1x128xf32, #tpu.memory_space<vmem>>, vector<1x1x128xf32>
    %27 = vector.shape_cast %26 : vector<1x1x128xf32> to vector<1x128xf32>
    %28 = vector.broadcast %27 : vector<1x128xf32> to vector<116x128xf32>
    %29 = arith.addf %25, %28 : vector<116x128xf32>
    %30 = vector.extract_strided_slice %19 {offsets = [0, 0], sizes = [116, 32], strides = [1, 1]} : vector<116x128xf32> to vector<116x32xf32>
    %31 = vector.extract_strided_slice %24 {offsets = [0, 0], sizes = [116, 32], strides = [1, 1]} : vector<116x128xf32> to vector<116x32xf32>
    %32 = vector.extract_strided_slice %29 {offsets = [0, 0], sizes = [116, 32], strides = [1, 1]} : vector<116x128xf32> to vector<116x32xf32>
    %cst_25 = arith.constant dense<0.000000e+00> : vector<116x116xf32>
    %33 = tpu.matmul %30, %31, %cst_25 {dimension_numbers = #tpu.dot_dimension_numbers<[1], [1], [0], [0], [0, 0, 1, 0], [], []>} : vector<116x32xf32>, vector<116x32xf32>, vector<116x116xf32> -> vector<116x116xf32>
    %cst_26 = arith.constant 0.176776692 : f32
    %34 = vector.broadcast %cst_26 : f32 to vector<116x116xf32>
    %35 = arith.mulf %33, %34 : vector<116x116xf32>
    %cst_27 = arith.constant dense<0xFF800000> : vector<116xf32>
    %36 = vector.multi_reduction <maximumf>, %35, %cst_27 [1] : vector<116x116xf32> to vector<116xf32>
    %37 = vector.shape_cast %36 : vector<116xf32> to vector<116x1xf32>
    %38 = vector.broadcast %37 : vector<116x1xf32> to vector<116x116xf32>
    %39 = arith.subf %35, %38 : vector<116x116xf32>
    %40 = math.exp %39 : vector<116x116xf32>
    %cst_28 = arith.constant dense<0.000000e+00> : vector<116xf32>
    %41 = vector.multi_reduction <add>, %40, %cst_28 [1] : vector<116x116xf32> to vector<116xf32>
    %42 = vector.shape_cast %41 : vector<116xf32> to vector<116x1xf32>
    %43 = tpu.reciprocal %42 {approx = true} : vector<116x1xf32> -> vector<116x1xf32>
    %44 = vector.broadcast %43 : vector<116x1xf32> to vector<116x116xf32>
    %45 = arith.mulf %40, %44 : vector<116x116xf32>
    %cst_29 = arith.constant dense<0.000000e+00> : vector<116x32xf32>
    %46 = tpu.matmul %45, %32, %cst_29 {dimension_numbers = #tpu.dot_dimension_numbers<[1], [0], [0], [1], [0, 0, 1, 1], [], []>} : vector<116x116xf32>, vector<116x32xf32>, vector<116x32xf32> -> vector<116x32xf32>
    %47 = vector.extract_strided_slice %14 {offsets = [0, 0], sizes = [32, 128], strides = [1, 1]} : vector<128x128xf32> to vector<32x128xf32>
    %cst_30 = arith.constant dense<0.000000e+00> : vector<116x128xf32>
    %48 = tpu.matmul %46, %47, %cst_30 {dimension_numbers = #tpu.dot_dimension_numbers<[1], [0], [0], [1], [0, 0, 1, 1], [], []>} : vector<116x32xf32>, vector<32x128xf32>, vector<116x128xf32> -> vector<116x128xf32>
    %49 = vector.extract_strided_slice %19 {offsets = [0, 32], sizes = [116, 32], strides = [1, 1]} : vector<116x128xf32> to vector<116x32xf32>
    %50 = vector.extract_strided_slice %24 {offsets = [0, 32], sizes = [116, 32], strides = [1, 1]} : vector<116x128xf32> to vector<116x32xf32>
    %51 = vector.extract_strided_slice %29 {offsets = [0, 32], sizes = [116, 32], strides = [1, 1]} : vector<116x128xf32> to vector<116x32xf32>
    %cst_31 = arith.constant dense<0.000000e+00> : vector<116x116xf32>
    %52 = tpu.matmul %49, %50, %cst_31 {dimension_numbers = #tpu.dot_dimension_numbers<[1], [1], [0], [0], [0, 0, 1, 0], [], []>} : vector<116x32xf32>, vector<116x32xf32>, vector<116x116xf32> -> vector<116x116xf32>
    %cst_32 = arith.constant 0.176776692 : f32
    %53 = vector.broadcast %cst_32 : f32 to vector<116x116xf32>
    %54 = arith.mulf %52, %53 : vector<116x116xf32>
    %cst_33 = arith.constant dense<0xFF800000> : vector<116xf32>
    %55 = vector.multi_reduction <maximumf>, %54, %cst_33 [1] : vector<116x116xf32> to vector<116xf32>
    %56 = vector.shape_cast %55 : vector<116xf32> to vector<116x1xf32>
    %57 = vector.broadcast %56 : vector<116x1xf32> to vector<116x116xf32>
    %58 = arith.subf %54, %57 : vector<116x116xf32>
    %59 = math.exp %58 : vector<116x116xf32>
    %cst_34 = arith.constant dense<0.000000e+00> : vector<116xf32>
    %60 = vector.multi_reduction <add>, %59, %cst_34 [1] : vector<116x116xf32> to vector<116xf32>
    %61 = vector.shape_cast %60 : vector<116xf32> to vector<116x1xf32>
    %62 = tpu.reciprocal %61 {approx = true} : vector<116x1xf32> -> vector<116x1xf32>
    %63 = vector.broadcast %62 : vector<116x1xf32> to vector<116x116xf32>
    %64 = arith.mulf %59, %63 : vector<116x116xf32>
    %cst_35 = arith.constant dense<0.000000e+00> : vector<116x32xf32>
    %65 = tpu.matmul %64, %51, %cst_35 {dimension_numbers = #tpu.dot_dimension_numbers<[1], [0], [0], [1], [0, 0, 1, 1], [], []>} : vector<116x116xf32>, vector<116x32xf32>, vector<116x32xf32> -> vector<116x32xf32>
    %66 = vector.extract_strided_slice %14 {offsets = [32, 0], sizes = [32, 128], strides = [1, 1]} : vector<128x128xf32> to vector<32x128xf32>
    %cst_36 = arith.constant dense<0.000000e+00> : vector<116x128xf32>
    %67 = tpu.matmul %65, %66, %cst_36 {dimension_numbers = #tpu.dot_dimension_numbers<[1], [0], [0], [1], [0, 0, 1, 1], [], []>} : vector<116x32xf32>, vector<32x128xf32>, vector<116x128xf32> -> vector<116x128xf32>
    %68 = arith.addf %48, %67 : vector<116x128xf32>
    %69 = vector.extract_strided_slice %19 {offsets = [0, 64], sizes = [116, 32], strides = [1, 1]} : vector<116x128xf32> to vector<116x32xf32>
    %70 = vector.extract_strided_slice %24 {offsets = [0, 64], sizes = [116, 32], strides = [1, 1]} : vector<116x128xf32> to vector<116x32xf32>
    %71 = vector.extract_strided_slice %29 {offsets = [0, 64], sizes = [116, 32], strides = [1, 1]} : vector<116x128xf32> to vector<116x32xf32>
    %cst_37 = arith.constant dense<0.000000e+00> : vector<116x116xf32>
    %72 = tpu.matmul %69, %70, %cst_37 {dimension_numbers = #tpu.dot_dimension_numbers<[1], [1], [0], [0], [0, 0, 1, 0], [], []>} : vector<116x32xf32>, vector<116x32xf32>, vector<116x116xf32> -> vector<116x116xf32>
    %cst_38 = arith.constant 0.176776692 : f32
    %73 = vector.broadcast %cst_38 : f32 to vector<116x116xf32>
    %74 = arith.mulf %72, %73 : vector<116x116xf32>
    %cst_39 = arith.constant dense<0xFF800000> : vector<116xf32>
    %75 = vector.multi_reduction <maximumf>, %74, %cst_39 [1] : vector<116x116xf32> to vector<116xf32>
    %76 = vector.shape_cast %75 : vector<116xf32> to vector<116x1xf32>
    %77 = vector.broadcast %76 : vector<116x1xf32> to vector<116x116xf32>
    %78 = arith.subf %74, %77 : vector<116x116xf32>
    %79 = math.exp %78 : vector<116x116xf32>
    %cst_40 = arith.constant dense<0.000000e+00> : vector<116xf32>
    %80 = vector.multi_reduction <add>, %79, %cst_40 [1] : vector<116x116xf32> to vector<116xf32>
    %81 = vector.shape_cast %80 : vector<116xf32> to vector<116x1xf32>
    %82 = tpu.reciprocal %81 {approx = true} : vector<116x1xf32> -> vector<116x1xf32>
    %83 = vector.broadcast %82 : vector<116x1xf32> to vector<116x116xf32>
    %84 = arith.mulf %79, %83 : vector<116x116xf32>
    %cst_41 = arith.constant dense<0.000000e+00> : vector<116x32xf32>
    %85 = tpu.matmul %84, %71, %cst_41 {dimension_numbers = #tpu.dot_dimension_numbers<[1], [0], [0], [1], [0, 0, 1, 1], [], []>} : vector<116x116xf32>, vector<116x32xf32>, vector<116x32xf32> -> vector<116x32xf32>
    %86 = vector.extract_strided_slice %14 {offsets = [64, 0], sizes = [32, 128], strides = [1, 1]} : vector<128x128xf32> to vector<32x128xf32>
    %cst_42 = arith.constant dense<0.000000e+00> : vector<116x128xf32>
    %87 = tpu.matmul %85, %86, %cst_42 {dimension_numbers = #tpu.dot_dimension_numbers<[1], [0], [0], [1], [0, 0, 1, 1], [], []>} : vector<116x32xf32>, vector<32x128xf32>, vector<116x128xf32> -> vector<116x128xf32>
    %88 = arith.addf %68, %87 : vector<116x128xf32>
    %89 = vector.extract_strided_slice %19 {offsets = [0, 96], sizes = [116, 32], strides = [1, 1]} : vector<116x128xf32> to vector<116x32xf32>
    %90 = vector.extract_strided_slice %24 {offsets = [0, 96], sizes = [116, 32], strides = [1, 1]} : vector<116x128xf32> to vector<116x32xf32>
    %91 = vector.extract_strided_slice %29 {offsets = [0, 96], sizes = [116, 32], strides = [1, 1]} : vector<116x128xf32> to vector<116x32xf32>
    %cst_43 = arith.constant dense<0.000000e+00> : vector<116x116xf32>
    %92 = tpu.matmul %89, %90, %cst_43 {dimension_numbers = #tpu.dot_dimension_numbers<[1], [1], [0], [0], [0, 0, 1, 0], [], []>} : vector<116x32xf32>, vector<116x32xf32>, vector<116x116xf32> -> vector<116x116xf32>
    %cst_44 = arith.constant 0.176776692 : f32
    %93 = vector.broadcast %cst_44 : f32 to vector<116x116xf32>
    %94 = arith.mulf %92, %93 : vector<116x116xf32>
    %cst_45 = arith.constant dense<0xFF800000> : vector<116xf32>
    %95 = vector.multi_reduction <maximumf>, %94, %cst_45 [1] : vector<116x116xf32> to vector<116xf32>
    %96 = vector.shape_cast %95 : vector<116xf32> to vector<116x1xf32>
    %97 = vector.broadcast %96 : vector<116x1xf32> to vector<116x116xf32>
    %98 = arith.subf %94, %97 : vector<116x116xf32>
    %99 = math.exp %98 : vector<116x116xf32>
    %cst_46 = arith.constant dense<0.000000e+00> : vector<116xf32>
    %100 = vector.multi_reduction <add>, %99, %cst_46 [1] : vector<116x116xf32> to vector<116xf32>
    %101 = vector.shape_cast %100 : vector<116xf32> to vector<116x1xf32>
    %102 = tpu.reciprocal %101 {approx = true} : vector<116x1xf32> -> vector<116x1xf32>
    %103 = vector.broadcast %102 : vector<116x1xf32> to vector<116x116xf32>
    %104 = arith.mulf %99, %103 : vector<116x116xf32>
    %cst_47 = arith.constant dense<0.000000e+00> : vector<116x32xf32>
    %105 = tpu.matmul %104, %91, %cst_47 {dimension_numbers = #tpu.dot_dimension_numbers<[1], [0], [0], [1], [0, 0, 1, 1], [], []>} : vector<116x116xf32>, vector<116x32xf32>, vector<116x32xf32> -> vector<116x32xf32>
    %106 = vector.extract_strided_slice %14 {offsets = [96, 0], sizes = [32, 128], strides = [1, 1]} : vector<128x128xf32> to vector<32x128xf32>
    %cst_48 = arith.constant dense<0.000000e+00> : vector<116x128xf32>
    %107 = tpu.matmul %105, %106, %cst_48 {dimension_numbers = #tpu.dot_dimension_numbers<[1], [0], [0], [1], [0, 0, 1, 1], [], []>} : vector<116x32xf32>, vector<32x128xf32>, vector<116x128xf32> -> vector<116x128xf32>
    %108 = arith.addf %88, %107 : vector<116x128xf32>
    %c0_49 = arith.constant 0 : index
    %c0_50 = arith.constant 0 : index
    %c0_51 = arith.constant 0 : index
    %109 = vector.load %arg9[%c0_49, %c0_50, %c0_51] : memref<2x1x128xf32, #tpu.memory_space<vmem>>, vector<1x1x128xf32>
    %110 = vector.shape_cast %109 : vector<1x1x128xf32> to vector<1x128xf32>
    %111 = vector.broadcast %110 : vector<1x128xf32> to vector<116x128xf32>
    %112 = arith.addf %108, %111 : vector<116x128xf32>
    %113 = arith.addf %112, %1 : vector<116x128xf32>
    %c0_52 = arith.constant 0 : index
    %c0_53 = arith.constant 0 : index
    %c0_54 = arith.constant 0 : index
    %114 = vector.load %arg10[%c0_52, %c0_53, %c0_54] : memref<2x1x128xf32, #tpu.memory_space<vmem>>, vector<1x1x128xf32>
    %115 = vector.shape_cast %114 : vector<1x1x128xf32> to vector<1x128xf32>
    %c0_55 = arith.constant 0 : index
    %c0_56 = arith.constant 0 : index
    %c0_57 = arith.constant 0 : index
    %116 = vector.load %arg11[%c0_55, %c0_56, %c0_57] : memref<2x1x128xf32, #tpu.memory_space<vmem>>, vector<1x1x128xf32>
    %117 = vector.shape_cast %116 : vector<1x1x128xf32> to vector<1x128xf32>
    %cst_58 = arith.constant dense<0.000000e+00> : vector<116xf32>
    %118 = vector.multi_reduction <add>, %113, %cst_58 [1] : vector<116x128xf32> to vector<116xf32>
    %119 = vector.shape_cast %118 : vector<116xf32> to vector<116x1xf32>
    %cst_59 = arith.constant 8.620690e-03 : f32
    %120 = vector.broadcast %cst_59 : f32 to vector<116x1xf32>
    %121 = arith.mulf %119, %120 : vector<116x1xf32>
    %122 = vector.broadcast %121 : vector<116x1xf32> to vector<116x128xf32>
    %123 = arith.subf %113, %122 : vector<116x128xf32>
    %124 = vector.broadcast %6 : vector<1x128xf32> to vector<116x128xf32>
    %125 = arith.mulf %123, %124 : vector<116x128xf32>
    %126 = arith.mulf %125, %125 : vector<116x128xf32>
    %cst_60 = arith.constant dense<0.000000e+00> : vector<116xf32>
    %127 = vector.multi_reduction <add>, %126, %cst_60 [1] : vector<116x128xf32> to vector<116xf32>
    %128 = vector.shape_cast %127 : vector<116xf32> to vector<116x1xf32>
    %cst_61 = arith.constant 8.620690e-03 : f32
    %129 = vector.broadcast %cst_61 : f32 to vector<116x1xf32>
    %130 = arith.mulf %128, %129 : vector<116x1xf32>
    %cst_62 = arith.constant 9.99999974E-6 : f32
    %131 = vector.broadcast %cst_62 : f32 to vector<116x1xf32>
    %132 = arith.addf %130, %131 : vector<116x1xf32>
    %133 = math.rsqrt %132 : vector<116x1xf32>
    %134 = vector.broadcast %133 : vector<116x1xf32> to vector<116x128xf32>
    %135 = arith.mulf %125, %134 : vector<116x128xf32>
    %136 = vector.broadcast %115 : vector<1x128xf32> to vector<116x128xf32>
    %137 = arith.mulf %135, %136 : vector<116x128xf32>
    %138 = vector.broadcast %117 : vector<1x128xf32> to vector<116x128xf32>
    %139 = arith.addf %137, %138 : vector<116x128xf32>
    %c0_63 = arith.constant 0 : index
    %c0_64 = arith.constant 0 : index
    %c0_65 = arith.constant 0 : index
    %140 = vector.load %arg12[%c0_63, %c0_64, %c0_65] : memref<2x128x128xf32, #tpu.memory_space<vmem>>, vector<1x128x128xf32>
    %141 = vector.shape_cast %140 : vector<1x128x128xf32> to vector<128x128xf32>
    %cst_66 = arith.constant dense<0.000000e+00> : vector<116x128xf32>
    %142 = tpu.matmul %139, %141, %cst_66 {dimension_numbers = #tpu.dot_dimension_numbers<[1], [0], [0], [1], [0, 0, 1, 1], [], []>} : vector<116x128xf32>, vector<128x128xf32>, vector<116x128xf32> -> vector<116x128xf32>
    %c0_67 = arith.constant 0 : index
    %c0_68 = arith.constant 0 : index
    %c0_69 = arith.constant 0 : index
    %143 = vector.load %arg13[%c0_67, %c0_68, %c0_69] : memref<2x1x128xf32, #tpu.memory_space<vmem>>, vector<1x1x128xf32>
    %144 = vector.shape_cast %143 : vector<1x1x128xf32> to vector<1x128xf32>
    %145 = vector.broadcast %144 : vector<1x128xf32> to vector<116x128xf32>
    %146 = arith.addf %142, %145 : vector<116x128xf32>
    %cst_70 = arith.constant 0.000000e+00 : f32
    %147 = vector.broadcast %cst_70 : f32 to vector<116x128xf32>
    %148 = arith.maximumf %146, %147 : vector<116x128xf32>
    %c0_71 = arith.constant 0 : index
    %c0_72 = arith.constant 0 : index
    %c0_73 = arith.constant 0 : index
    %149 = vector.load %arg14[%c0_71, %c0_72, %c0_73] : memref<2x128x128xf32, #tpu.memory_space<vmem>>, vector<1x128x128xf32>
    %150 = vector.shape_cast %149 : vector<1x128x128xf32> to vector<128x128xf32>
    %cst_74 = arith.constant dense<0.000000e+00> : vector<116x128xf32>
    %151 = tpu.matmul %148, %150, %cst_74 {dimension_numbers = #tpu.dot_dimension_numbers<[1], [0], [0], [1], [0, 0, 1, 1], [], []>} : vector<116x128xf32>, vector<128x128xf32>, vector<116x128xf32> -> vector<116x128xf32>
    %c0_75 = arith.constant 0 : index
    %c0_76 = arith.constant 0 : index
    %c0_77 = arith.constant 0 : index
    %152 = vector.load %arg15[%c0_75, %c0_76, %c0_77] : memref<2x1x128xf32, #tpu.memory_space<vmem>>, vector<1x1x128xf32>
    %153 = vector.shape_cast %152 : vector<1x1x128xf32> to vector<1x128xf32>
    %154 = vector.broadcast %153 : vector<1x128xf32> to vector<116x128xf32>
    %155 = arith.addf %151, %154 : vector<116x128xf32>
    %156 = arith.addf %155, %139 : vector<116x128xf32>
    %c0_78 = arith.constant 0 : index
    %c0_79 = arith.constant 0 : index
    %c0_80 = arith.constant 0 : index
    %157 = vector.load %arg16[%c0_78, %c0_79, %c0_80] : memref<2x1x128xf32, #tpu.memory_space<vmem>>, vector<1x1x128xf32>
    %158 = vector.shape_cast %157 : vector<1x1x128xf32> to vector<1x128xf32>
    %c0_81 = arith.constant 0 : index
    %c0_82 = arith.constant 0 : index
    %c0_83 = arith.constant 0 : index
    %159 = vector.load %arg17[%c0_81, %c0_82, %c0_83] : memref<2x1x128xf32, #tpu.memory_space<vmem>>, vector<1x1x128xf32>
    %160 = vector.shape_cast %159 : vector<1x1x128xf32> to vector<1x128xf32>
    %cst_84 = arith.constant dense<0.000000e+00> : vector<116xf32>
    %161 = vector.multi_reduction <add>, %156, %cst_84 [1] : vector<116x128xf32> to vector<116xf32>
    %162 = vector.shape_cast %161 : vector<116xf32> to vector<116x1xf32>
    %cst_85 = arith.constant 8.620690e-03 : f32
    %163 = vector.broadcast %cst_85 : f32 to vector<116x1xf32>
    %164 = arith.mulf %162, %163 : vector<116x1xf32>
    %165 = vector.broadcast %164 : vector<116x1xf32> to vector<116x128xf32>
    %166 = arith.subf %156, %165 : vector<116x128xf32>
    %167 = vector.broadcast %6 : vector<1x128xf32> to vector<116x128xf32>
    %168 = arith.mulf %166, %167 : vector<116x128xf32>
    %169 = arith.mulf %168, %168 : vector<116x128xf32>
    %cst_86 = arith.constant dense<0.000000e+00> : vector<116xf32>
    %170 = vector.multi_reduction <add>, %169, %cst_86 [1] : vector<116x128xf32> to vector<116xf32>
    %171 = vector.shape_cast %170 : vector<116xf32> to vector<116x1xf32>
    %cst_87 = arith.constant 8.620690e-03 : f32
    %172 = vector.broadcast %cst_87 : f32 to vector<116x1xf32>
    %173 = arith.mulf %171, %172 : vector<116x1xf32>
    %cst_88 = arith.constant 9.99999974E-6 : f32
    %174 = vector.broadcast %cst_88 : f32 to vector<116x1xf32>
    %175 = arith.addf %173, %174 : vector<116x1xf32>
    %176 = math.rsqrt %175 : vector<116x1xf32>
    %177 = vector.broadcast %176 : vector<116x1xf32> to vector<116x128xf32>
    %178 = arith.mulf %168, %177 : vector<116x128xf32>
    %179 = vector.broadcast %158 : vector<1x128xf32> to vector<116x128xf32>
    %180 = arith.mulf %178, %179 : vector<116x128xf32>
    %181 = vector.broadcast %160 : vector<1x128xf32> to vector<116x128xf32>
    %182 = arith.addf %180, %181 : vector<116x128xf32>
    %c1 = arith.constant 1 : index
    %c0_89 = arith.constant 0 : index
    %c0_90 = arith.constant 0 : index
    %183 = vector.load %arg2[%c1, %c0_89, %c0_90] : memref<2x128x128xf32, #tpu.memory_space<vmem>>, vector<1x128x128xf32>
    %184 = vector.shape_cast %183 : vector<1x128x128xf32> to vector<128x128xf32>
    %c1_91 = arith.constant 1 : index
    %c0_92 = arith.constant 0 : index
    %c0_93 = arith.constant 0 : index
    %185 = vector.load %arg4[%c1_91, %c0_92, %c0_93] : memref<2x128x128xf32, #tpu.memory_space<vmem>>, vector<1x128x128xf32>
    %186 = vector.shape_cast %185 : vector<1x128x128xf32> to vector<128x128xf32>
    %c1_94 = arith.constant 1 : index
    %c0_95 = arith.constant 0 : index
    %c0_96 = arith.constant 0 : index
    %187 = vector.load %arg6[%c1_94, %c0_95, %c0_96] : memref<2x128x128xf32, #tpu.memory_space<vmem>>, vector<1x128x128xf32>
    %188 = vector.shape_cast %187 : vector<1x128x128xf32> to vector<128x128xf32>
    %c1_97 = arith.constant 1 : index
    %c0_98 = arith.constant 0 : index
    %c0_99 = arith.constant 0 : index
    %189 = vector.load %arg8[%c1_97, %c0_98, %c0_99] : memref<2x128x128xf32, #tpu.memory_space<vmem>>, vector<1x128x128xf32>
    %190 = vector.shape_cast %189 : vector<1x128x128xf32> to vector<128x128xf32>
    %cst_100 = arith.constant dense<0.000000e+00> : vector<116x128xf32>
    %191 = tpu.matmul %182, %184, %cst_100 {dimension_numbers = #tpu.dot_dimension_numbers<[1], [0], [0], [1], [0, 0, 1, 1], [], []>} : vector<116x128xf32>, vector<128x128xf32>, vector<116x128xf32> -> vector<116x128xf32>
    %c1_101 = arith.constant 1 : index
    %c0_102 = arith.constant 0 : index
    %c0_103 = arith.constant 0 : index
    %192 = vector.load %arg3[%c1_101, %c0_102, %c0_103] : memref<2x1x128xf32, #tpu.memory_space<vmem>>, vector<1x1x128xf32>
    %193 = vector.shape_cast %192 : vector<1x1x128xf32> to vector<1x128xf32>
    %194 = vector.broadcast %193 : vector<1x128xf32> to vector<116x128xf32>
    %195 = arith.addf %191, %194 : vector<116x128xf32>
    %cst_104 = arith.constant dense<0.000000e+00> : vector<116x128xf32>
    %196 = tpu.matmul %182, %186, %cst_104 {dimension_numbers = #tpu.dot_dimension_numbers<[1], [0], [0], [1], [0, 0, 1, 1], [], []>} : vector<116x128xf32>, vector<128x128xf32>, vector<116x128xf32> -> vector<116x128xf32>
    %c1_105 = arith.constant 1 : index
    %c0_106 = arith.constant 0 : index
    %c0_107 = arith.constant 0 : index
    %197 = vector.load %arg5[%c1_105, %c0_106, %c0_107] : memref<2x1x128xf32, #tpu.memory_space<vmem>>, vector<1x1x128xf32>
    %198 = vector.shape_cast %197 : vector<1x1x128xf32> to vector<1x128xf32>
    %199 = vector.broadcast %198 : vector<1x128xf32> to vector<116x128xf32>
    %200 = arith.addf %196, %199 : vector<116x128xf32>
    %cst_108 = arith.constant dense<0.000000e+00> : vector<116x128xf32>
    %201 = tpu.matmul %182, %188, %cst_108 {dimension_numbers = #tpu.dot_dimension_numbers<[1], [0], [0], [1], [0, 0, 1, 1], [], []>} : vector<116x128xf32>, vector<128x128xf32>, vector<116x128xf32> -> vector<116x128xf32>
    %c1_109 = arith.constant 1 : index
    %c0_110 = arith.constant 0 : index
    %c0_111 = arith.constant 0 : index
    %202 = vector.load %arg7[%c1_109, %c0_110, %c0_111] : memref<2x1x128xf32, #tpu.memory_space<vmem>>, vector<1x1x128xf32>
    %203 = vector.shape_cast %202 : vector<1x1x128xf32> to vector<1x128xf32>
    %204 = vector.broadcast %203 : vector<1x128xf32> to vector<116x128xf32>
    %205 = arith.addf %201, %204 : vector<116x128xf32>
    %206 = vector.extract_strided_slice %195 {offsets = [0, 0], sizes = [116, 32], strides = [1, 1]} : vector<116x128xf32> to vector<116x32xf32>
    %207 = vector.extract_strided_slice %200 {offsets = [0, 0], sizes = [116, 32], strides = [1, 1]} : vector<116x128xf32> to vector<116x32xf32>
    %208 = vector.extract_strided_slice %205 {offsets = [0, 0], sizes = [116, 32], strides = [1, 1]} : vector<116x128xf32> to vector<116x32xf32>
    %cst_112 = arith.constant dense<0.000000e+00> : vector<116x116xf32>
    %209 = tpu.matmul %206, %207, %cst_112 {dimension_numbers = #tpu.dot_dimension_numbers<[1], [1], [0], [0], [0, 0, 1, 0], [], []>} : vector<116x32xf32>, vector<116x32xf32>, vector<116x116xf32> -> vector<116x116xf32>
    %cst_113 = arith.constant 0.176776692 : f32
    %210 = vector.broadcast %cst_113 : f32 to vector<116x116xf32>
    %211 = arith.mulf %209, %210 : vector<116x116xf32>
    %cst_114 = arith.constant dense<0xFF800000> : vector<116xf32>
    %212 = vector.multi_reduction <maximumf>, %211, %cst_114 [1] : vector<116x116xf32> to vector<116xf32>
    %213 = vector.shape_cast %212 : vector<116xf32> to vector<116x1xf32>
    %214 = vector.broadcast %213 : vector<116x1xf32> to vector<116x116xf32>
    %215 = arith.subf %211, %214 : vector<116x116xf32>
    %216 = math.exp %215 : vector<116x116xf32>
    %cst_115 = arith.constant dense<0.000000e+00> : vector<116xf32>
    %217 = vector.multi_reduction <add>, %216, %cst_115 [1] : vector<116x116xf32> to vector<116xf32>
    %218 = vector.shape_cast %217 : vector<116xf32> to vector<116x1xf32>
    %219 = tpu.reciprocal %218 {approx = true} : vector<116x1xf32> -> vector<116x1xf32>
    %220 = vector.broadcast %219 : vector<116x1xf32> to vector<116x116xf32>
    %221 = arith.mulf %216, %220 : vector<116x116xf32>
    %cst_116 = arith.constant dense<0.000000e+00> : vector<116x32xf32>
    %222 = tpu.matmul %221, %208, %cst_116 {dimension_numbers = #tpu.dot_dimension_numbers<[1], [0], [0], [1], [0, 0, 1, 1], [], []>} : vector<116x116xf32>, vector<116x32xf32>, vector<116x32xf32> -> vector<116x32xf32>
    %223 = vector.extract_strided_slice %190 {offsets = [0, 0], sizes = [32, 128], strides = [1, 1]} : vector<128x128xf32> to vector<32x128xf32>
    %cst_117 = arith.constant dense<0.000000e+00> : vector<116x128xf32>
    %224 = tpu.matmul %222, %223, %cst_117 {dimension_numbers = #tpu.dot_dimension_numbers<[1], [0], [0], [1], [0, 0, 1, 1], [], []>} : vector<116x32xf32>, vector<32x128xf32>, vector<116x128xf32> -> vector<116x128xf32>
    %225 = vector.extract_strided_slice %195 {offsets = [0, 32], sizes = [116, 32], strides = [1, 1]} : vector<116x128xf32> to vector<116x32xf32>
    %226 = vector.extract_strided_slice %200 {offsets = [0, 32], sizes = [116, 32], strides = [1, 1]} : vector<116x128xf32> to vector<116x32xf32>
    %227 = vector.extract_strided_slice %205 {offsets = [0, 32], sizes = [116, 32], strides = [1, 1]} : vector<116x128xf32> to vector<116x32xf32>
    %cst_118 = arith.constant dense<0.000000e+00> : vector<116x116xf32>
    %228 = tpu.matmul %225, %226, %cst_118 {dimension_numbers = #tpu.dot_dimension_numbers<[1], [1], [0], [0], [0, 0, 1, 0], [], []>} : vector<116x32xf32>, vector<116x32xf32>, vector<116x116xf32> -> vector<116x116xf32>
    %cst_119 = arith.constant 0.176776692 : f32
    %229 = vector.broadcast %cst_119 : f32 to vector<116x116xf32>
    %230 = arith.mulf %228, %229 : vector<116x116xf32>
    %cst_120 = arith.constant dense<0xFF800000> : vector<116xf32>
    %231 = vector.multi_reduction <maximumf>, %230, %cst_120 [1] : vector<116x116xf32> to vector<116xf32>
    %232 = vector.shape_cast %231 : vector<116xf32> to vector<116x1xf32>
    %233 = vector.broadcast %232 : vector<116x1xf32> to vector<116x116xf32>
    %234 = arith.subf %230, %233 : vector<116x116xf32>
    %235 = math.exp %234 : vector<116x116xf32>
    %cst_121 = arith.constant dense<0.000000e+00> : vector<116xf32>
    %236 = vector.multi_reduction <add>, %235, %cst_121 [1] : vector<116x116xf32> to vector<116xf32>
    %237 = vector.shape_cast %236 : vector<116xf32> to vector<116x1xf32>
    %238 = tpu.reciprocal %237 {approx = true} : vector<116x1xf32> -> vector<116x1xf32>
    %239 = vector.broadcast %238 : vector<116x1xf32> to vector<116x116xf32>
    %240 = arith.mulf %235, %239 : vector<116x116xf32>
    %cst_122 = arith.constant dense<0.000000e+00> : vector<116x32xf32>
    %241 = tpu.matmul %240, %227, %cst_122 {dimension_numbers = #tpu.dot_dimension_numbers<[1], [0], [0], [1], [0, 0, 1, 1], [], []>} : vector<116x116xf32>, vector<116x32xf32>, vector<116x32xf32> -> vector<116x32xf32>
    %242 = vector.extract_strided_slice %190 {offsets = [32, 0], sizes = [32, 128], strides = [1, 1]} : vector<128x128xf32> to vector<32x128xf32>
    %cst_123 = arith.constant dense<0.000000e+00> : vector<116x128xf32>
    %243 = tpu.matmul %241, %242, %cst_123 {dimension_numbers = #tpu.dot_dimension_numbers<[1], [0], [0], [1], [0, 0, 1, 1], [], []>} : vector<116x32xf32>, vector<32x128xf32>, vector<116x128xf32> -> vector<116x128xf32>
    %244 = arith.addf %224, %243 : vector<116x128xf32>
    %245 = vector.extract_strided_slice %195 {offsets = [0, 64], sizes = [116, 32], strides = [1, 1]} : vector<116x128xf32> to vector<116x32xf32>
    %246 = vector.extract_strided_slice %200 {offsets = [0, 64], sizes = [116, 32], strides = [1, 1]} : vector<116x128xf32> to vector<116x32xf32>
    %247 = vector.extract_strided_slice %205 {offsets = [0, 64], sizes = [116, 32], strides = [1, 1]} : vector<116x128xf32> to vector<116x32xf32>
    %cst_124 = arith.constant dense<0.000000e+00> : vector<116x116xf32>
    %248 = tpu.matmul %245, %246, %cst_124 {dimension_numbers = #tpu.dot_dimension_numbers<[1], [1], [0], [0], [0, 0, 1, 0], [], []>} : vector<116x32xf32>, vector<116x32xf32>, vector<116x116xf32> -> vector<116x116xf32>
    %cst_125 = arith.constant 0.176776692 : f32
    %249 = vector.broadcast %cst_125 : f32 to vector<116x116xf32>
    %250 = arith.mulf %248, %249 : vector<116x116xf32>
    %cst_126 = arith.constant dense<0xFF800000> : vector<116xf32>
    %251 = vector.multi_reduction <maximumf>, %250, %cst_126 [1] : vector<116x116xf32> to vector<116xf32>
    %252 = vector.shape_cast %251 : vector<116xf32> to vector<116x1xf32>
    %253 = vector.broadcast %252 : vector<116x1xf32> to vector<116x116xf32>
    %254 = arith.subf %250, %253 : vector<116x116xf32>
    %255 = math.exp %254 : vector<116x116xf32>
    %cst_127 = arith.constant dense<0.000000e+00> : vector<116xf32>
    %256 = vector.multi_reduction <add>, %255, %cst_127 [1] : vector<116x116xf32> to vector<116xf32>
    %257 = vector.shape_cast %256 : vector<116xf32> to vector<116x1xf32>
    %258 = tpu.reciprocal %257 {approx = true} : vector<116x1xf32> -> vector<116x1xf32>
    %259 = vector.broadcast %258 : vector<116x1xf32> to vector<116x116xf32>
    %260 = arith.mulf %255, %259 : vector<116x116xf32>
    %cst_128 = arith.constant dense<0.000000e+00> : vector<116x32xf32>
    %261 = tpu.matmul %260, %247, %cst_128 {dimension_numbers = #tpu.dot_dimension_numbers<[1], [0], [0], [1], [0, 0, 1, 1], [], []>} : vector<116x116xf32>, vector<116x32xf32>, vector<116x32xf32> -> vector<116x32xf32>
    %262 = vector.extract_strided_slice %190 {offsets = [64, 0], sizes = [32, 128], strides = [1, 1]} : vector<128x128xf32> to vector<32x128xf32>
    %cst_129 = arith.constant dense<0.000000e+00> : vector<116x128xf32>
    %263 = tpu.matmul %261, %262, %cst_129 {dimension_numbers = #tpu.dot_dimension_numbers<[1], [0], [0], [1], [0, 0, 1, 1], [], []>} : vector<116x32xf32>, vector<32x128xf32>, vector<116x128xf32> -> vector<116x128xf32>
    %264 = arith.addf %244, %263 : vector<116x128xf32>
    %265 = vector.extract_strided_slice %195 {offsets = [0, 96], sizes = [116, 32], strides = [1, 1]} : vector<116x128xf32> to vector<116x32xf32>
    %266 = vector.extract_strided_slice %200 {offsets = [0, 96], sizes = [116, 32], strides = [1, 1]} : vector<116x128xf32> to vector<116x32xf32>
    %267 = vector.extract_strided_slice %205 {offsets = [0, 96], sizes = [116, 32], strides = [1, 1]} : vector<116x128xf32> to vector<116x32xf32>
    %cst_130 = arith.constant dense<0.000000e+00> : vector<116x116xf32>
    %268 = tpu.matmul %265, %266, %cst_130 {dimension_numbers = #tpu.dot_dimension_numbers<[1], [1], [0], [0], [0, 0, 1, 0], [], []>} : vector<116x32xf32>, vector<116x32xf32>, vector<116x116xf32> -> vector<116x116xf32>
    %cst_131 = arith.constant 0.176776692 : f32
    %269 = vector.broadcast %cst_131 : f32 to vector<116x116xf32>
    %270 = arith.mulf %268, %269 : vector<116x116xf32>
    %cst_132 = arith.constant dense<0xFF800000> : vector<116xf32>
    %271 = vector.multi_reduction <maximumf>, %270, %cst_132 [1] : vector<116x116xf32> to vector<116xf32>
    %272 = vector.shape_cast %271 : vector<116xf32> to vector<116x1xf32>
    %273 = vector.broadcast %272 : vector<116x1xf32> to vector<116x116xf32>
    %274 = arith.subf %270, %273 : vector<116x116xf32>
    %275 = math.exp %274 : vector<116x116xf32>
    %cst_133 = arith.constant dense<0.000000e+00> : vector<116xf32>
    %276 = vector.multi_reduction <add>, %275, %cst_133 [1] : vector<116x116xf32> to vector<116xf32>
    %277 = vector.shape_cast %276 : vector<116xf32> to vector<116x1xf32>
    %278 = tpu.reciprocal %277 {approx = true} : vector<116x1xf32> -> vector<116x1xf32>
    %279 = vector.broadcast %278 : vector<116x1xf32> to vector<116x116xf32>
    %280 = arith.mulf %275, %279 : vector<116x116xf32>
    %cst_134 = arith.constant dense<0.000000e+00> : vector<116x32xf32>
    %281 = tpu.matmul %280, %267, %cst_134 {dimension_numbers = #tpu.dot_dimension_numbers<[1], [0], [0], [1], [0, 0, 1, 1], [], []>} : vector<116x116xf32>, vector<116x32xf32>, vector<116x32xf32> -> vector<116x32xf32>
    %282 = vector.extract_strided_slice %190 {offsets = [96, 0], sizes = [32, 128], strides = [1, 1]} : vector<128x128xf32> to vector<32x128xf32>
    %cst_135 = arith.constant dense<0.000000e+00> : vector<116x128xf32>
    %283 = tpu.matmul %281, %282, %cst_135 {dimension_numbers = #tpu.dot_dimension_numbers<[1], [0], [0], [1], [0, 0, 1, 1], [], []>} : vector<116x32xf32>, vector<32x128xf32>, vector<116x128xf32> -> vector<116x128xf32>
    %284 = arith.addf %264, %283 : vector<116x128xf32>
    %c1_136 = arith.constant 1 : index
    %c0_137 = arith.constant 0 : index
    %c0_138 = arith.constant 0 : index
    %285 = vector.load %arg9[%c1_136, %c0_137, %c0_138] : memref<2x1x128xf32, #tpu.memory_space<vmem>>, vector<1x1x128xf32>
    %286 = vector.shape_cast %285 : vector<1x1x128xf32> to vector<1x128xf32>
    %287 = vector.broadcast %286 : vector<1x128xf32> to vector<116x128xf32>
    %288 = arith.addf %284, %287 : vector<116x128xf32>
    %289 = arith.addf %288, %182 : vector<116x128xf32>
    %c1_139 = arith.constant 1 : index
    %c0_140 = arith.constant 0 : index
    %c0_141 = arith.constant 0 : index
    %290 = vector.load %arg10[%c1_139, %c0_140, %c0_141] : memref<2x1x128xf32, #tpu.memory_space<vmem>>, vector<1x1x128xf32>
    %291 = vector.shape_cast %290 : vector<1x1x128xf32> to vector<1x128xf32>
    %c1_142 = arith.constant 1 : index
    %c0_143 = arith.constant 0 : index
    %c0_144 = arith.constant 0 : index
    %292 = vector.load %arg11[%c1_142, %c0_143, %c0_144] : memref<2x1x128xf32, #tpu.memory_space<vmem>>, vector<1x1x128xf32>
    %293 = vector.shape_cast %292 : vector<1x1x128xf32> to vector<1x128xf32>
    %cst_145 = arith.constant dense<0.000000e+00> : vector<116xf32>
    %294 = vector.multi_reduction <add>, %289, %cst_145 [1] : vector<116x128xf32> to vector<116xf32>
    %295 = vector.shape_cast %294 : vector<116xf32> to vector<116x1xf32>
    %cst_146 = arith.constant 8.620690e-03 : f32
    %296 = vector.broadcast %cst_146 : f32 to vector<116x1xf32>
    %297 = arith.mulf %295, %296 : vector<116x1xf32>
    %298 = vector.broadcast %297 : vector<116x1xf32> to vector<116x128xf32>
    %299 = arith.subf %289, %298 : vector<116x128xf32>
    %300 = vector.broadcast %6 : vector<1x128xf32> to vector<116x128xf32>
    %301 = arith.mulf %299, %300 : vector<116x128xf32>
    %302 = arith.mulf %301, %301 : vector<116x128xf32>
    %cst_147 = arith.constant dense<0.000000e+00> : vector<116xf32>
    %303 = vector.multi_reduction <add>, %302, %cst_147 [1] : vector<116x128xf32> to vector<116xf32>
    %304 = vector.shape_cast %303 : vector<116xf32> to vector<116x1xf32>
    %cst_148 = arith.constant 8.620690e-03 : f32
    %305 = vector.broadcast %cst_148 : f32 to vector<116x1xf32>
    %306 = arith.mulf %304, %305 : vector<116x1xf32>
    %cst_149 = arith.constant 9.99999974E-6 : f32
    %307 = vector.broadcast %cst_149 : f32 to vector<116x1xf32>
    %308 = arith.addf %306, %307 : vector<116x1xf32>
    %309 = math.rsqrt %308 : vector<116x1xf32>
    %310 = vector.broadcast %309 : vector<116x1xf32> to vector<116x128xf32>
    %311 = arith.mulf %301, %310 : vector<116x128xf32>
    %312 = vector.broadcast %291 : vector<1x128xf32> to vector<116x128xf32>
    %313 = arith.mulf %311, %312 : vector<116x128xf32>
    %314 = vector.broadcast %293 : vector<1x128xf32> to vector<116x128xf32>
    %315 = arith.addf %313, %314 : vector<116x128xf32>
    %c1_150 = arith.constant 1 : index
    %c0_151 = arith.constant 0 : index
    %c0_152 = arith.constant 0 : index
    %316 = vector.load %arg12[%c1_150, %c0_151, %c0_152] : memref<2x128x128xf32, #tpu.memory_space<vmem>>, vector<1x128x128xf32>
    %317 = vector.shape_cast %316 : vector<1x128x128xf32> to vector<128x128xf32>
    %cst_153 = arith.constant dense<0.000000e+00> : vector<116x128xf32>
    %318 = tpu.matmul %315, %317, %cst_153 {dimension_numbers = #tpu.dot_dimension_numbers<[1], [0], [0], [1], [0, 0, 1, 1], [], []>} : vector<116x128xf32>, vector<128x128xf32>, vector<116x128xf32> -> vector<116x128xf32>
    %c1_154 = arith.constant 1 : index
    %c0_155 = arith.constant 0 : index
    %c0_156 = arith.constant 0 : index
    %319 = vector.load %arg13[%c1_154, %c0_155, %c0_156] : memref<2x1x128xf32, #tpu.memory_space<vmem>>, vector<1x1x128xf32>
    %320 = vector.shape_cast %319 : vector<1x1x128xf32> to vector<1x128xf32>
    %321 = vector.broadcast %320 : vector<1x128xf32> to vector<116x128xf32>
    %322 = arith.addf %318, %321 : vector<116x128xf32>
    %cst_157 = arith.constant 0.000000e+00 : f32
    %323 = vector.broadcast %cst_157 : f32 to vector<116x128xf32>
    %324 = arith.maximumf %322, %323 : vector<116x128xf32>
    %c1_158 = arith.constant 1 : index
    %c0_159 = arith.constant 0 : index
    %c0_160 = arith.constant 0 : index
    %325 = vector.load %arg14[%c1_158, %c0_159, %c0_160] : memref<2x128x128xf32, #tpu.memory_space<vmem>>, vector<1x128x128xf32>
    %326 = vector.shape_cast %325 : vector<1x128x128xf32> to vector<128x128xf32>
    %cst_161 = arith.constant dense<0.000000e+00> : vector<116x128xf32>
    %327 = tpu.matmul %324, %326, %cst_161 {dimension_numbers = #tpu.dot_dimension_numbers<[1], [0], [0], [1], [0, 0, 1, 1], [], []>} : vector<116x128xf32>, vector<128x128xf32>, vector<116x128xf32> -> vector<116x128xf32>
    %c1_162 = arith.constant 1 : index
    %c0_163 = arith.constant 0 : index
    %c0_164 = arith.constant 0 : index
    %328 = vector.load %arg15[%c1_162, %c0_163, %c0_164] : memref<2x1x128xf32, #tpu.memory_space<vmem>>, vector<1x1x128xf32>
    %329 = vector.shape_cast %328 : vector<1x1x128xf32> to vector<1x128xf32>
    %330 = vector.broadcast %329 : vector<1x128xf32> to vector<116x128xf32>
    %331 = arith.addf %327, %330 : vector<116x128xf32>
    %332 = arith.addf %331, %315 : vector<116x128xf32>
    %c1_165 = arith.constant 1 : index
    %c0_166 = arith.constant 0 : index
    %c0_167 = arith.constant 0 : index
    %333 = vector.load %arg16[%c1_165, %c0_166, %c0_167] : memref<2x1x128xf32, #tpu.memory_space<vmem>>, vector<1x1x128xf32>
    %334 = vector.shape_cast %333 : vector<1x1x128xf32> to vector<1x128xf32>
    %c1_168 = arith.constant 1 : index
    %c0_169 = arith.constant 0 : index
    %c0_170 = arith.constant 0 : index
    %335 = vector.load %arg17[%c1_168, %c0_169, %c0_170] : memref<2x1x128xf32, #tpu.memory_space<vmem>>, vector<1x1x128xf32>
    %336 = vector.shape_cast %335 : vector<1x1x128xf32> to vector<1x128xf32>
    %cst_171 = arith.constant dense<0.000000e+00> : vector<116xf32>
    %337 = vector.multi_reduction <add>, %332, %cst_171 [1] : vector<116x128xf32> to vector<116xf32>
    %338 = vector.shape_cast %337 : vector<116xf32> to vector<116x1xf32>
    %cst_172 = arith.constant 8.620690e-03 : f32
    %339 = vector.broadcast %cst_172 : f32 to vector<116x1xf32>
    %340 = arith.mulf %338, %339 : vector<116x1xf32>
    %341 = vector.broadcast %340 : vector<116x1xf32> to vector<116x128xf32>
    %342 = arith.subf %332, %341 : vector<116x128xf32>
    %343 = vector.broadcast %6 : vector<1x128xf32> to vector<116x128xf32>
    %344 = arith.mulf %342, %343 : vector<116x128xf32>
    %345 = arith.mulf %344, %344 : vector<116x128xf32>
    %cst_173 = arith.constant dense<0.000000e+00> : vector<116xf32>
    %346 = vector.multi_reduction <add>, %345, %cst_173 [1] : vector<116x128xf32> to vector<116xf32>
    %347 = vector.shape_cast %346 : vector<116xf32> to vector<116x1xf32>
    %cst_174 = arith.constant 8.620690e-03 : f32
    %348 = vector.broadcast %cst_174 : f32 to vector<116x1xf32>
    %349 = arith.mulf %347, %348 : vector<116x1xf32>
    %cst_175 = arith.constant 9.99999974E-6 : f32
    %350 = vector.broadcast %cst_175 : f32 to vector<116x1xf32>
    %351 = arith.addf %349, %350 : vector<116x1xf32>
    %352 = math.rsqrt %351 : vector<116x1xf32>
    %353 = vector.broadcast %352 : vector<116x1xf32> to vector<116x128xf32>
    %354 = arith.mulf %344, %353 : vector<116x128xf32>
    %355 = vector.broadcast %334 : vector<1x128xf32> to vector<116x128xf32>
    %356 = arith.mulf %354, %355 : vector<116x128xf32>
    %357 = vector.broadcast %336 : vector<1x128xf32> to vector<116x128xf32>
    %358 = arith.addf %356, %357 : vector<116x128xf32>
    %c0_176 = arith.constant 0 : index
    %c0_177 = arith.constant 0 : index
    %c0_178 = arith.constant 0 : index
    %359 = vector.load %arg18[%c0_176, %c0_177, %c0_178] : memref<2x116x128xf32, #tpu.memory_space<vmem>>, vector<1x116x128xf32>
    %360 = vector.shape_cast %359 : vector<1x116x128xf32> to vector<116x128xf32>
    %361 = arith.mulf %358, %360 : vector<116x128xf32>
    %cst_179 = arith.constant dense<0.000000e+00> : vector<116xf32>
    %362 = vector.multi_reduction <add>, %361, %cst_179 [1] : vector<116x128xf32> to vector<116xf32>
    %363 = vector.shape_cast %362 : vector<116xf32> to vector<116x1xf32>
    %cst_180 = arith.constant dense<0.000000e+00> : vector<1xf32>
    %364 = vector.multi_reduction <add>, %363, %cst_180 [0] : vector<116x1xf32> to vector<1xf32>
    %365 = vector.shape_cast %364 : vector<1xf32> to vector<1x1xf32>
    %c1_181 = arith.constant 1 : index
    %c0_182 = arith.constant 0 : index
    %c0_183 = arith.constant 0 : index
    %366 = vector.load %arg18[%c1_181, %c0_182, %c0_183] : memref<2x116x128xf32, #tpu.memory_space<vmem>>, vector<1x116x128xf32>
    %367 = vector.shape_cast %366 : vector<1x116x128xf32> to vector<116x128xf32>
    %368 = arith.mulf %358, %367 : vector<116x128xf32>
    %cst_184 = arith.constant dense<0.000000e+00> : vector<116xf32>
    %369 = vector.multi_reduction <add>, %368, %cst_184 [1] : vector<116x128xf32> to vector<116xf32>
    %370 = vector.shape_cast %369 : vector<116xf32> to vector<116x1xf32>
    %cst_185 = arith.constant dense<0.000000e+00> : vector<1xf32>
    %371 = vector.multi_reduction <add>, %370, %cst_185 [0] : vector<116x1xf32> to vector<1xf32>
    %372 = vector.shape_cast %371 : vector<1xf32> to vector<1x1xf32>
    %373 = tpu.iota {dimensions = array<i32: 1>} : vector<1x128xi32>
    %c0_i32 = arith.constant 0 : i32
    %374 = vector.broadcast %c0_i32 : i32 to vector<1x128xi32>
    %375 = arith.cmpi eq, %373, %374 : vector<1x128xi32>
    %cst_186 = arith.constant 0.000000e+00 : f32
    %376 = vector.shape_cast %365 : vector<1x1xf32> to vector<1x1xf32>
    %377 = vector.broadcast %376 : vector<1x1xf32> to vector<1x128xf32>
    %378 = vector.broadcast %cst_186 : f32 to vector<1x128xf32>
    %379 = arith.select %375, %377, %378 : vector<1x128xi1>, vector<1x128xf32>
    %c1_i32 = arith.constant 1 : i32
    %380 = vector.broadcast %c1_i32 : i32 to vector<1x128xi32>
    %381 = arith.cmpi eq, %373, %380 : vector<1x128xi32>
    %cst_187 = arith.constant 0.000000e+00 : f32
    %382 = vector.shape_cast %372 : vector<1x1xf32> to vector<1x1xf32>
    %383 = vector.broadcast %382 : vector<1x1xf32> to vector<1x128xf32>
    %384 = vector.broadcast %cst_187 : f32 to vector<1x128xf32>
    %385 = arith.select %381, %383, %384 : vector<1x128xi1>, vector<1x128xf32>
    %386 = arith.addf %379, %385 : vector<1x128xf32>
    %c0_188 = arith.constant 0 : index
    %c0_189 = arith.constant 0 : index
    %387 = vector.load %arg19[%c0_188, %c0_189] : memref<1x128xf32, #tpu.memory_space<vmem>>, vector<1x128xf32>
    %388 = arith.addf %386, %387 : vector<1x128xf32>
    %c0_190 = arith.constant 0 : index
    %c0_191 = arith.constant 0 : index
    %c0_192 = arith.constant 0 : index
    %389 = vector.load %arg20[%c0_190, %c0_191, %c0_192] : memref<1x1x128xf32, #tpu.memory_space<vmem>>, vector<1x1x128xf32>
    %390 = vector.shape_cast %389 : vector<1x1x128xf32> to vector<1x128xf32>
    %391 = vector.shape_cast %388 : vector<1x128xf32> to vector<1x1x128xf32>
    tpu.vector_store %arg20[%c0_190, %c0_191, %c0_192], %391 {strides = array<i32>} : memref<1x1x128xf32, #tpu.memory_space<vmem>>, vector<1x1x128xf32>,
    return
  }
  func.func @transform_0(%arg0: i32) -> (i32, i32, i32) {
    %c0_i32 = arith.constant 0 : i32
    %c0_i32_0 = arith.constant 0 : i32
    %c0_i32_1 = arith.constant 0 : i32
    return %arg0, %c0_i32, %c0_i32_0 : i32, i32, i32
  }
  func.func @transform_1(%arg0: i32) -> (i32, i32, i32) {
    %c0_i32 = arith.constant 0 : i32
    %c0_i32_0 = arith.constant 0 : i32
    %c0_i32_1 = arith.constant 0 : i32
    %c0_i32_2 = arith.constant 0 : i32
    return %c0_i32, %c0_i32_0, %c0_i32_1 : i32, i32, i32
  }
  func.func @transform_2(%arg0: i32) -> (i32, i32, i32) {
    %c0_i32 = arith.constant 0 : i32
    %c0_i32_0 = arith.constant 0 : i32
    %c0_i32_1 = arith.constant 0 : i32
    %c0_i32_2 = arith.constant 0 : i32
    return %c0_i32, %c0_i32_0, %c0_i32_1 : i32, i32, i32
  }
  func.func @transform_3(%arg0: i32) -> (i32, i32, i32) {
    %c0_i32 = arith.constant 0 : i32
    %c0_i32_0 = arith.constant 0 : i32
    %c0_i32_1 = arith.constant 0 : i32
    %c0_i32_2 = arith.constant 0 : i32
    return %c0_i32, %c0_i32_0, %c0_i32_1 : i32, i32, i32
  }
  func.func @transform_4(%arg0: i32) -> (i32, i32, i32) {
    %c0_i32 = arith.constant 0 : i32
    %c0_i32_0 = arith.constant 0 : i32
    %c0_i32_1 = arith.constant 0 : i32
    %c0_i32_2 = arith.constant 0 : i32
    return %c0_i32, %c0_i32_0, %c0_i32_1 : i32, i32, i32
  }
  func.func @transform_5(%arg0: i32) -> (i32, i32, i32) {
    %c0_i32 = arith.constant 0 : i32
    %c0_i32_0 = arith.constant 0 : i32
    %c0_i32_1 = arith.constant 0 : i32
    %c0_i32_2 = arith.constant 0 : i32
    return %c0_i32, %c0_i32_0, %c0_i32_1 : i32, i32, i32
  }
  func.func @transform_6(%arg0: i32) -> (i32, i32, i32) {
    %c0_i32 = arith.constant 0 : i32
    %c0_i32_0 = arith.constant 0 : i32
    %c0_i32_1 = arith.constant 0 : i32
    %c0_i32_2 = arith.constant 0 : i32
    return %c0_i32, %c0_i32_0, %c0_i32_1 : i32, i32, i32
  }
  func.func @transform_7(%arg0: i32) -> (i32, i32, i32) {
    %c0_i32 = arith.constant 0 : i32
    %c0_i32_0 = arith.constant 0 : i32
    %c0_i32_1 = arith.constant 0 : i32
    %c0_i32_2 = arith.constant 0 : i32
    return %c0_i32, %c0_i32_0, %c0_i32_1 : i32, i32, i32
  }
  func.func @transform_8(%arg0: i32) -> (i32, i32, i32) {
    %c0_i32 = arith.constant 0 : i32
    %c0_i32_0 = arith.constant 0 : i32
    %c0_i32_1 = arith.constant 0 : i32
    %c0_i32_2 = arith.constant 0 : i32
    return %c0_i32, %c0_i32_0, %c0_i32_1 : i32, i32, i32
  }
  func.func @transform_9(%arg0: i32) -> (i32, i32, i32) {
    %c0_i32 = arith.constant 0 : i32
    %c0_i32_0 = arith.constant 0 : i32
    %c0_i32_1 = arith.constant 0 : i32
    %c0_i32_2 = arith.constant 0 : i32
    return %c0_i32, %c0_i32_0, %c0_i32_1 : i32, i32, i32
  }
  func.func @transform_10(%arg0: i32) -> (i32, i32, i32) {
    %c0_i32 = arith.constant 0 : i32
    %c0_i32_0 = arith.constant 0 : i32
    %c0_i32_1 = arith.constant 0 : i32
    %c0_i32_2 = arith.constant 0 : i32
    return %c0_i32, %c0_i32_0, %c0_i32_1 : i32, i32, i32
  }
  func.func @transform_11(%arg0: i32) -> (i32, i32, i32) {
    %c0_i32 = arith.constant 0 : i32
    %c0_i32_0 = arith.constant 0 : i32
    %c0_i32_1 = arith.constant 0 : i32
    %c0_i32_2 = arith.constant 0 : i32
    return %c0_i32, %c0_i32_0, %c0_i32_1 : i32, i32, i32
  }
  func.func @transform_12(%arg0: i32) -> (i32, i32, i32) {
    %c0_i32 = arith.constant 0 : i32
    %c0_i32_0 = arith.constant 0 : i32
    %c0_i32_1 = arith.constant 0 : i32
    %c0_i32_2 = arith.constant 0 : i32
    return %c0_i32, %c0_i32_0, %c0_i32_1 : i32, i32, i32
  }
  func.func @transform_13(%arg0: i32) -> (i32, i32, i32) {
    %c0_i32 = arith.constant 0 : i32
    %c0_i32_0 = arith.constant 0 : i32
    %c0_i32_1 = arith.constant 0 : i32
    %c0_i32_2 = arith.constant 0 : i32
    return %c0_i32, %c0_i32_0, %c0_i32_1 : i32, i32, i32
  }
  func.func @transform_14(%arg0: i32) -> (i32, i32, i32) {
    %c0_i32 = arith.constant 0 : i32
    %c0_i32_0 = arith.constant 0 : i32
    %c0_i32_1 = arith.constant 0 : i32
    %c0_i32_2 = arith.constant 0 : i32
    return %c0_i32, %c0_i32_0, %c0_i32_1 : i32, i32, i32
  }
  func.func @transform_15(%arg0: i32) -> (i32, i32, i32) {
    %c0_i32 = arith.constant 0 : i32
    %c0_i32_0 = arith.constant 0 : i32
    %c0_i32_1 = arith.constant 0 : i32
    %c0_i32_2 = arith.constant 0 : i32
    return %c0_i32, %c0_i32_0, %c0_i32_1 : i32, i32, i32
  }
  func.func @transform_16(%arg0: i32) -> (i32, i32, i32) {
    %c0_i32 = arith.constant 0 : i32
    %c0_i32_0 = arith.constant 0 : i32
    %c0_i32_1 = arith.constant 0 : i32
    %c0_i32_2 = arith.constant 0 : i32
    return %c0_i32, %c0_i32_0, %c0_i32_1 : i32, i32, i32
  }
  func.func @transform_17(%arg0: i32) -> (i32, i32, i32) {
    %c0_i32 = arith.constant 0 : i32
    %c0_i32_0 = arith.constant 0 : i32
    %c0_i32_1 = arith.constant 0 : i32
    %c0_i32_2 = arith.constant 0 : i32
    return %c0_i32, %c0_i32_0, %c0_i32_1 : i32, i32, i32
  }
  func.func @transform_18(%arg0: i32) -> (i32, i32) {
    %c0_i32 = arith.constant 0 : i32
    %c0_i32_0 = arith.constant 0 : i32
    %c0_i32_1 = arith.constant 0 : i32
    return %c0_i32, %c0_i32_0 : i32, i32
  }
  func.func @transform_19(%arg0: i32) -> (i32, i32, i32) {
    %c0_i32 = arith.constant 0 : i32
    %c0_i32_0 = arith.constant 0 : i32
    %c0_i32_1 = arith.constant 0 : i32
    return %arg0, %c0_i32, %c0_i32_0 : i32, i32, i32
  }
}

</mosaic_0001>

<llo_original>
// kernel: tpu_custom_call.1
$region0: #{tpu_custom_call.1}
  #allocation0 [shape = 'u32[]', space=smem, size = 0x4, offset = 0x4, fixed_abs, tag = 'smem constant byte address 0x4 - core index']
  #allocation1 [shape = 'u32[144,128]{1,0:T(1,128)}', space=vmem, size = 0x12000, scoped, tag = 'internal scratch']
  %s0 = inlined_call_operand.vmem [shape: f32[2,116,128], index: 0, kind: input, shape index: {}]
  %s1 = inlined_call_operand.vmem [shape: f32[2,128,128], index: 1, kind: input, shape index: {}]
  %s2 = inlined_call_operand.vmem [shape: f32[2,1,128], index: 2, kind: input, shape index: {}]
  %s3 = inlined_call_operand.vmem [shape: f32[2,128,128], index: 3, kind: input, shape index: {}]
  %s4 = inlined_call_operand.vmem [shape: f32[2,1,128], index: 4, kind: input, shape index: {}]
  %s5 = inlined_call_operand.vmem [shape: f32[2,128,128], index: 5, kind: input, shape index: {}]
  %s6 = inlined_call_operand.hbm [shape: f32[2,1,128], index: 6, kind: input, shape index: {}]
  %s7 = inlined_call_operand.hbm [shape: f32[2,128,128], index: 7, kind: input, shape index: {}]
  %s8 = inlined_call_operand.hbm [shape: f32[2,1,128], index: 8, kind: input, shape index: {}]
  %s9 = inlined_call_operand.hbm [shape: f32[2,1,128], index: 9, kind: input, shape index: {}]
  %s10 = inlined_call_operand.hbm [shape: f32[2,1,128], index: 10, kind: input, shape index: {}]
  %s11 = inlined_call_operand.hbm [shape: f32[2,128,128], index: 11, kind: input, shape index: {}]
  %s12 = inlined_call_operand.hbm [shape: f32[2,1,128], index: 12, kind: input, shape index: {}]
  %s13 = inlined_call_operand.hbm [shape: f32[2,128,128], index: 13, kind: input, shape index: {}]
  %s14 = inlined_call_operand.hbm [shape: f32[2,1,128], index: 14, kind: input, shape index: {}]
  %s15 = inlined_call_operand.hbm [shape: f32[2,1,128], index: 15, kind: input, shape index: {}]
  %s16 = inlined_call_operand.hbm [shape: f32[2,1,128], index: 16, kind: input, shape index: {}]
  %s17 = inlined_call_operand.vmem [shape: f32[2,116,128], index: 17, kind: input, shape index: {}]
  %s18 = inlined_call_operand.vmem [shape: f32[1,128], index: 18, kind: input, shape index: {}]
  %s19 = inlined_call_operand.hbm [shape: f32[2,1,128], index: 19, kind: output, shape index: {}]
  %s20 = sld [smem:[#allocation0]]
  $region153: #{tpu_custom_call.1} parent=0
    _
  %s22 = ssub.s32 1, %s20
  %s23 = scalar_select 0, %s22, %s20
  $region1: #{tpu_custom_call.1} parent=0
    #allocation2 [shape = 'u8[1024]{0}', space=vmem, size = 0x400, scoped, tag = 'input window, operand 6, single buffered']
    #allocation3 [shape = 's32[2]{0}', space=sflag, size = 0x8, scoped, tag = 'scoped memory for tpu_custom_call.1']
    #allocation4 [shape = 's32[2]{0}', space=sflag, size = 0x8, scoped, tag = 'scoped memory for tpu_custom_call.1']
    #allocation5 [shape = 'u8[131072]{0}', space=vmem, size = 0x20000, scoped, tag = 'input window, operand 7, single buffered']
    #allocation6 [shape = 's32[1]{0}', space=sflag, size = 0x4, scoped, tag = 'scoped memory for tpu_custom_call.1']
    #allocation7 [shape = 'u8[1024]{0}', space=vmem, size = 0x400, scoped, tag = 'input window, operand 8, single buffered']
    #allocation8 [shape = 'u8[1024]{0}', space=vmem, size = 0x400, scoped, tag = 'input window, operand 9, single buffered']
    #allocation9 [shape = 's32[1]{0}', space=sflag, size = 0x4, scoped, tag = 'scoped memory for tpu_custom_call.1']
    #allocation10 [shape = 'u8[1024]{0}', space=vmem, size = 0x400, scoped, tag = 'input window, operand 10, single buffered']
    #allocation11 [shape = 'u8[131072]{0}', space=vmem, size = 0x20000, scoped, tag = 'input window, operand 11, single buffered']
    #allocation12 [shape = 's32[1]{0}', space=sflag, size = 0x4, scoped, tag = 'scoped memory for tpu_custom_call.1']
    #allocation13 [shape = 'u8[1024]{0}', space=vmem, size = 0x400, scoped, tag = 'input window, operand 12, single buffered']
    #allocation14 [shape = 'u8[131072]{0}', space=vmem, size = 0x20000, scoped, tag = 'input window, operand 13, single buffered']
    #allocation15 [shape = 's32[1]{0}', space=sflag, size = 0x4, scoped, tag = 'scoped memory for tpu_custom_call.1']
    #allocation16 [shape = 'u8[1024]{0}', space=vmem, size = 0x400, scoped, tag = 'input window, operand 14, single buffered']
    #allocation17 [shape = 'u8[1024]{0}', space=vmem, size = 0x400, scoped, tag = 'input window, operand 15, single buffered']
    #allocation18 [shape = 's32[1]{0}', space=sflag, size = 0x4, scoped, tag = 'scoped memory for tpu_custom_call.1']
    #allocation19 [shape = 'u8[1024]{0}', space=vmem, size = 0x400, scoped, tag = 'input window, operand 16, single buffered']
    #allocation20 [shape = 'u8[1024]{0}', space=vmem, size = 0x400, scoped, tag = 'output window, operand 0']
    %24 = vsyncpa [#allocation3], 0
    %25 = vsyncpa [#allocation6], 0
    %26 = vsyncpa [#allocation9], 0
    %27 = vsyncpa [#allocation12], 0
    %28 = vsyncpa [#allocation15], 0
    %29 = vsyncpa [#allocation18], 0
    %30 = vsyncpa [#allocation4], 0
    %s31 = scalar_lea.sflag [#allocation4], 1
    %32 = vsyncpa %s31, 0
    loop: start=0, step=1, limit=4
    $region2: #{tpu_custom_call.1} parent=1 // loop_pre_header
      _
    $region3: #{tpu_custom_call.1} parent=1 // loop_header
      %s34 = sphi 0, %s38
      %p35 = scmp.ge.s32.totalorder %s34, 4
      %s44 = sphi 0, %s46
      %s47 = sphi 0, %s44
      %s48 = sphi 0, %s47
      %s64 = sphi 0, %s48
      %s68 = sphi 0, %s68
      %s70 = sphi 0, %s68
      %s71 = sphi 0, %s70
      %s85 = sphi 0, %s71
      %s89 = sphi 0, %s89
      %s91 = sphi 0, %s89
      %s92 = sphi 0, %s91
      %s106 = sphi 0, %s92
      %s110 = sphi 0, %s110
      %s112 = sphi 0, %s110
      %s113 = sphi 0, %s112
      %s127 = sphi 0, %s113
      %s131 = sphi 0, %s131
      %s133 = sphi 0, %s131
      %s134 = sphi 0, %s133
      %s148 = sphi 0, %s134
      %s152 = sphi 0, %s152
      %s154 = sphi 0, %s152
      %s155 = sphi 0, %s154
      %s169 = sphi 0, %s155
      %s173 = sphi 0, %s173
      %s175 = sphi 0, %s173
      %s176 = sphi 0, %s175
      %s190 = sphi 0, %s176
      %s194 = sphi 0, %s194
      %s196 = sphi 0, %s194
      %s197 = sphi 0, %s196
      %s211 = sphi 0, %s197
      %s215 = sphi 0, %s215
      %s217 = sphi 0, %s215
      %s218 = sphi 0, %s217
      %s232 = sphi 0, %s218
      %s236 = sphi 0, %s236
      %s238 = sphi 0, %s236
      %s239 = sphi 0, %s238
      %s253 = sphi 0, %s239
      %s257 = sphi 0, %s257
      %s259 = sphi 0, %s257
      %s260 = sphi 0, %s259
      %s274 = sphi 0, %s260
      %s278 = sphi 0, %s278
      %s280 = sphi 0, %s278
      %s281 = sphi 0, %s280
      %s295 = sphi 0, %s281
      %s299 = sphi 0, %s299
      %s301 = sphi 0, %s299
      %s302 = sphi 0, %s301
      %s316 = sphi 0, %s302
      %s320 = sphi 0, %s320
      %s322 = sphi 0, %s320
      %s323 = sphi 0, %s322
      %s337 = sphi 0, %s323
      %s341 = sphi 0, %s341
      %s343 = sphi 0, %s341
      %s344 = sphi 0, %s343
      %s358 = sphi 0, %s344
      %s362 = sphi 0, %s362
      %s364 = sphi 0, %s362
      %s365 = sphi 0, %s364
      %s379 = sphi 0, %s365
      %s383 = sphi 0, %s383
      %s385 = sphi 0, %s383
      %s386 = sphi 0, %s385
      %s400 = sphi 0, %s386
      %s404 = sphi 0, %s404
      %s406 = sphi 0, %s404
      %s407 = sphi 0, %s406
      %s421 = sphi 0, %s407
      %s425 = sphi 0, %s425
      %s427 = sphi 0, %s425
      %s428 = sphi 0, %s427
      %s442 = sphi 0, %s428
      %s448 = sphi 0, %s450
      %s451 = sphi 0, %s448
      %s452 = sphi 0, %s451
      %s468 = sphi 0, %s452
    $region4: #{tpu_custom_call.1} parent=1 // loop_header_branch
      %37 = sbr.rel (%p35) target = $region8
    $region5: #{tpu_custom_call.1} parent=1 // loop_body
      %s39 = ssub.s32 %s34, 1
      %s40 = ssub.s32 %s34, 2
      %s41 = sadd.s32 %s34, 1
      %s42 = ssub.s32 %s34, %s41
      %p43 = scmp.eq.s32.totalorder %s42, 0
      %s45 = sadd.s32 %s44, 1
      %s46 = scalar_select %p43, %s44, %s45
      %p49 = pneg %p43
      %p50 = scmp.eq.s32.totalorder %s34, 1
      %p51 = por %p49, %p50
      %p52 = scmp.ne.s32.totalorder %s44, %s47
      %p53 = scmp.eq.s32.totalorder %s34, 0
      %p54 = por %p52, %p53
      %p55 = scmp.ne.s32.totalorder %s44, %s47
      %p56 = scmp.eq.s32.totalorder %s39, 1
      %p57 = por %p55, %p56
      %p58 = scmp.ne.s32.totalorder %s47, %s48
      %p59 = scmp.eq.s32.totalorder %s39, 0
      %p60 = por %p58, %p59
      %p61 = scmp.ne.s32.totalorder %s47, %s48
      %p62 = scmp.eq.s32.totalorder %s40, 1
      %p63 = por %p61, %p62
      %p65 = scmp.ne.s32.totalorder %s48, %s64
      %p66 = scmp.eq.s32.totalorder %s40, 0
      %p67 = por %p65, %p66
      %s69 = sadd.s32 %s68, 1
      %p72 = scmp.eq.s32.totalorder %s34, 1
      %p73 = scmp.ne.s32.totalorder %s68, %s70
      %p74 = scmp.eq.s32.totalorder %s34, 0
      %p75 = por %p73, %p74
      %p76 = scmp.ne.s32.totalorder %s68, %s70
      %p77 = scmp.eq.s32.totalorder %s39, 1
      %p78 = por %p76, %p77
      %p79 = scmp.ne.s32.totalorder %s70, %s71
      %p80 = scmp.eq.s32.totalorder %s39, 0
      %p81 = por %p79, %p80
      %p82 = scmp.ne.s32.totalorder %s70, %s71
      %p83 = scmp.eq.s32.totalorder %s40, 1
      %p84 = por %p82, %p83
      %p86 = scmp.ne.s32.totalorder %s71, %s85
      %p87 = scmp.eq.s32.totalorder %s40, 0
      %p88 = por %p86, %p87
      %s90 = sadd.s32 %s89, 1
      %p93 = scmp.eq.s32.totalorder %s34, 1
      %p94 = scmp.ne.s32.totalorder %s89, %s91
      %p95 = scmp.eq.s32.totalorder %s34, 0
      %p96 = por %p94, %p95
      %p97 = scmp.ne.s32.totalorder %s89, %s91
      %p98 = scmp.eq.s32.totalorder %s39, 1
      %p99 = por %p97, %p98
      %p100 = scmp.ne.s32.totalorder %s91, %s92
      %p101 = scmp.eq.s32.totalorder %s39, 0
      %p102 = por %p100, %p101
      %p103 = scmp.ne.s32.totalorder %s91, %s92
      %p104 = scmp.eq.s32.totalorder %s40, 1
      %p105 = por %p103, %p104
      %p107 = scmp.ne.s32.totalorder %s92, %s106
      %p108 = scmp.eq.s32.totalorder %s40, 0
      %p109 = por %p107, %p108
      %s111 = sadd.s32 %s110, 1
      %p114 = scmp.eq.s32.totalorder %s34, 1
      %p115 = scmp.ne.s32.totalorder %s110, %s112
      %p116 = scmp.eq.s32.totalorder %s34, 0
      %p117 = por %p115, %p116
      %p118 = scmp.ne.s32.totalorder %s110, %s112
      %p119 = scmp.eq.s32.totalorder %s39, 1
      %p120 = por %p118, %p119
      %p121 = scmp.ne.s32.totalorder %s112, %s113
      %p122 = scmp.eq.s32.totalorder %s39, 0
      %p123 = por %p121, %p122
      %p124 = scmp.ne.s32.totalorder %s112, %s113
      %p125 = scmp.eq.s32.totalorder %s40, 1
      %p126 = por %p124, %p125
      %p128 = scmp.ne.s32.totalorder %s113, %s127
      %p129 = scmp.eq.s32.totalorder %s40, 0
      %p130 = por %p128, %p129
      %s132 = sadd.s32 %s131, 1
      %p135 = scmp.eq.s32.totalorder %s34, 1
      %p136 = scmp.ne.s32.totalorder %s131, %s133
      %p137 = scmp.eq.s32.totalorder %s34, 0
      %p138 = por %p136, %p137
      %p139 = scmp.ne.s32.totalorder %s131, %s133
      %p140 = scmp.eq.s32.totalorder %s39, 1
      %p141 = por %p139, %p140
      %p142 = scmp.ne.s32.totalorder %s133, %s134
      %p143 = scmp.eq.s32.totalorder %s39, 0
      %p144 = por %p142, %p143
      %p145 = scmp.ne.s32.totalorder %s133, %s134
      %p146 = scmp.eq.s32.totalorder %s40, 1
      %p147 = por %p145, %p146
      %p149 = scmp.ne.s32.totalorder %s134, %s148
      %p150 = scmp.eq.s32.totalorder %s40, 0
      %p151 = por %p149, %p150
      %s153 = sadd.s32 %s152, 1
      %p156 = scmp.eq.s32.totalorder %s34, 1
      %p157 = scmp.ne.s32.totalorder %s152, %s154
      %p158 = scmp.eq.s32.totalorder %s34, 0
      %p159 = por %p157, %p158
      %p160 = scmp.ne.s32.totalorder %s152, %s154
      %p161 = scmp.eq.s32.totalorder %s39, 1
      %p162 = por %p160, %p161
      %p163 = scmp.ne.s32.totalorder %s154, %s155
      %p164 = scmp.eq.s32.totalorder %s39, 0
      %p165 = por %p163, %p164
      %p166 = scmp.ne.s32.totalorder %s154, %s155
      %p167 = scmp.eq.s32.totalorder %s40, 1
      %p168 = por %p166, %p167
      %p170 = scmp.ne.s32.totalorder %s155, %s169
      %p171 = scmp.eq.s32.totalorder %s40, 0
      %p172 = por %p170, %p171
      %s174 = sadd.s32 %s173, 1
      %p177 = scmp.eq.s32.totalorder %s34, 1
      %p178 = scmp.ne.s32.totalorder %s173, %s175
      %p179 = scmp.eq.s32.totalorder %s34, 0
      %p180 = por %p178, %p179
      %p181 = scmp.ne.s32.totalorder %s173, %s175
      %p182 = scmp.eq.s32.totalorder %s39, 1
      %p183 = por %p181, %p182
      %p184 = scmp.ne.s32.totalorder %s175, %s176
      %p185 = scmp.eq.s32.totalorder %s39, 0
      %p186 = por %p184, %p185
      %p187 = scmp.ne.s32.totalorder %s175, %s176
      %p188 = scmp.eq.s32.totalorder %s40, 1
      %p189 = por %p187, %p188
      %p191 = scmp.ne.s32.totalorder %s176, %s190
      %p192 = scmp.eq.s32.totalorder %s40, 0
      %p193 = por %p191, %p192
      %s195 = sadd.s32 %s194, 1
      %p198 = scmp.eq.s32.totalorder %s34, 1
      %p199 = scmp.ne.s32.totalorder %s194, %s196
      %p200 = scmp.eq.s32.totalorder %s34, 0
      %p201 = por %p199, %p200
      %p202 = scmp.ne.s32.totalorder %s194, %s196
      %p203 = scmp.eq.s32.totalorder %s39, 1
      %p204 = por %p202, %p203
      %p205 = scmp.ne.s32.totalorder %s196, %s197
      %p206 = scmp.eq.s32.totalorder %s39, 0
      %p207 = por %p205, %p206
      %p208 = scmp.ne.s32.totalorder %s196, %s197
      %p209 = scmp.eq.s32.totalorder %s40, 1
      %p210 = por %p208, %p209
      %p212 = scmp.ne.s32.totalorder %s197, %s211
      %p213 = scmp.eq.s32.totalorder %s40, 0
      %p214 = por %p212, %p213
      %s216 = sadd.s32 %s215, 1
      %p219 = scmp.eq.s32.totalorder %s34, 1
      %p220 = scmp.ne.s32.totalorder %s215, %s217
      %p221 = scmp.eq.s32.totalorder %s34, 0
      %p222 = por %p220, %p221
      %p223 = scmp.ne.s32.totalorder %s215, %s217
      %p224 = scmp.eq.s32.totalorder %s39, 1
      %p225 = por %p223, %p224
      %p226 = scmp.ne.s32.totalorder %s217, %s218
      %p227 = scmp.eq.s32.totalorder %s39, 0
      %p228 = por %p226, %p227
      %p229 = scmp.ne.s32.totalorder %s217, %s218
      %p230 = scmp.eq.s32.totalorder %s40, 1
      %p231 = por %p229, %p230
      %p233 = scmp.ne.s32.totalorder %s218, %s232
      %p234 = scmp.eq.s32.totalorder %s40, 0
      %p235 = por %p233, %p234
      %s237 = sadd.s32 %s236, 1
      %p240 = scmp.eq.s32.totalorder %s34, 1
      %p241 = scmp.ne.s32.totalorder %s236, %s238
      %p242 = scmp.eq.s32.totalorder %s34, 0
      %p243 = por %p241, %p242
      %p244 = scmp.ne.s32.totalorder %s236, %s238
      %p245 = scmp.eq.s32.totalorder %s39, 1
      %p246 = por %p244, %p245
      %p247 = scmp.ne.s32.totalorder %s238, %s239
      %p248 = scmp.eq.s32.totalorder %s39, 0
      %p249 = por %p247, %p248
      %p250 = scmp.ne.s32.totalorder %s238, %s239
      %p251 = scmp.eq.s32.totalorder %s40, 1
      %p252 = por %p250, %p251
      %p254 = scmp.ne.s32.totalorder %s239, %s253
      %p255 = scmp.eq.s32.totalorder %s40, 0
      %p256 = por %p254, %p255
      %s258 = sadd.s32 %s257, 1
      %p261 = scmp.eq.s32.totalorder %s34, 1
      %p262 = scmp.ne.s32.totalorder %s257, %s259
      %p263 = scmp.eq.s32.totalorder %s34, 0
      %p264 = por %p262, %p263
      %p265 = scmp.ne.s32.totalorder %s257, %s259
      %p266 = scmp.eq.s32.totalorder %s39, 1
      %p267 = por %p265, %p266
      %p268 = scmp.ne.s32.totalorder %s259, %s260
      %p269 = scmp.eq.s32.totalorder %s39, 0
      %p270 = por %p268, %p269
      %p271 = scmp.ne.s32.totalorder %s259, %s260
      %p272 = scmp.eq.s32.totalorder %s40, 1
      %p273 = por %p271, %p272
      %p275 = scmp.ne.s32.totalorder %s260, %s274
      %p276 = scmp.eq.s32.totalorder %s40, 0
      %p277 = por %p275, %p276
      %s279 = sadd.s32 %s278, 1
      %p282 = scmp.eq.s32.totalorder %s34, 1
      %p283 = scmp.ne.s32.totalorder %s278, %s280
      %p284 = scmp.eq.s32.totalorder %s34, 0
      %p285 = por %p283, %p284
      %p286 = scmp.ne.s32.totalorder %s278, %s280
      %p287 = scmp.eq.s32.totalorder %s39, 1
      %p288 = por %p286, %p287
      %p289 = scmp.ne.s32.totalorder %s280, %s281
      %p290 = scmp.eq.s32.totalorder %s39, 0
      %p291 = por %p289, %p290
      %p292 = scmp.ne.s32.totalorder %s280, %s281
      %p293 = scmp.eq.s32.totalorder %s40, 1
      %p294 = por %p292, %p293
      %p296 = scmp.ne.s32.totalorder %s281, %s295
      %p297 = scmp.eq.s32.totalorder %s40, 0
      %p298 = por %p296, %p297
      %s300 = sadd.s32 %s299, 1
      %p303 = scmp.eq.s32.totalorder %s34, 1
      %p304 = scmp.ne.s32.totalorder %s299, %s301
      %p305 = scmp.eq.s32.totalorder %s34, 0
      %p306 = por %p304, %p305
      %p307 = scmp.ne.s32.totalorder %s299, %s301
      %p308 = scmp.eq.s32.totalorder %s39, 1
      %p309 = por %p307, %p308
      %p310 = scmp.ne.s32.totalorder %s301, %s302
      %p311 = scmp.eq.s32.totalorder %s39, 0
      %p312 = por %p310, %p311
      %p313 = scmp.ne.s32.totalorder %s301, %s302
      %p314 = scmp.eq.s32.totalorder %s40, 1
      %p315 = por %p313, %p314
      %p317 = scmp.ne.s32.totalorder %s302, %s316
      %p318 = scmp.eq.s32.totalorder %s40, 0
      %p319 = por %p317, %p318
      %s321 = sadd.s32 %s320, 1
      %p324 = scmp.eq.s32.totalorder %s34, 1
      %p325 = scmp.ne.s32.totalorder %s320, %s322
      %p326 = scmp.eq.s32.totalorder %s34, 0
      %p327 = por %p325, %p326
      %p328 = scmp.ne.s32.totalorder %s320, %s322
      %p329 = scmp.eq.s32.totalorder %s39, 1
      %p330 = por %p328, %p329
      %p331 = scmp.ne.s32.totalorder %s322, %s323
      %p332 = scmp.eq.s32.totalorder %s39, 0
      %p333 = por %p331, %p332
      %p334 = scmp.ne.s32.totalorder %s322, %s323
      %p335 = scmp.eq.s32.totalorder %s40, 1
      %p336 = por %p334, %p335
      %p338 = scmp.ne.s32.totalorder %s323, %s337
      %p339 = scmp.eq.s32.totalorder %s40, 0
      %p340 = por %p338, %p339
      %s342 = sadd.s32 %s341, 1
      %p345 = scmp.eq.s32.totalorder %s34, 1
      %p346 = scmp.ne.s32.totalorder %s341, %s343
      %p347 = scmp.eq.s32.totalorder %s34, 0
      %p348 = por %p346, %p347
      %p349 = scmp.ne.s32.totalorder %s341, %s343
      %p350 = scmp.eq.s32.totalorder %s39, 1
      %p351 = por %p349, %p350
      %p352 = scmp.ne.s32.totalorder %s343, %s344
      %p353 = scmp.eq.s32.totalorder %s39, 0
      %p354 = por %p352, %p353
      %p355 = scmp.ne.s32.totalorder %s343, %s344
      %p356 = scmp.eq.s32.totalorder %s40, 1
      %p357 = por %p355, %p356
      %p359 = scmp.ne.s32.totalorder %s344, %s358
      %p360 = scmp.eq.s32.totalorder %s40, 0
      %p361 = por %p359, %p360
      %s363 = sadd.s32 %s362, 1
      %p366 = scmp.eq.s32.totalorder %s34, 1
      %p367 = scmp.ne.s32.totalorder %s362, %s364
      %p368 = scmp.eq.s32.totalorder %s34, 0
      %p369 = por %p367, %p368
      %p370 = scmp.ne.s32.totalorder %s362, %s364
      %p371 = scmp.eq.s32.totalorder %s39, 1
      %p372 = por %p370, %p371
      %p373 = scmp.ne.s32.totalorder %s364, %s365
      %p374 = scmp.eq.s32.totalorder %s39, 0
      %p375 = por %p373, %p374
      %p376 = scmp.ne.s32.totalorder %s364, %s365
      %p377 = scmp.eq.s32.totalorder %s40, 1
      %p378 = por %p376, %p377
      %p380 = scmp.ne.s32.totalorder %s365, %s379
      %p381 = scmp.eq.s32.totalorder %s40, 0
      %p382 = por %p380, %p381
      %s384 = sadd.s32 %s383, 1
      %p387 = scmp.eq.s32.totalorder %s34, 1
      %p388 = scmp.ne.s32.totalorder %s383, %s385
      %p389 = scmp.eq.s32.totalorder %s34, 0
      %p390 = por %p388, %p389
      %p391 = scmp.ne.s32.totalorder %s383, %s385
      %p392 = scmp.eq.s32.totalorder %s39, 1
      %p393 = por %p391, %p392
      %p394 = scmp.ne.s32.totalorder %s385, %s386
      %p395 = scmp.eq.s32.totalorder %s39, 0
      %p396 = por %p394, %p395
      %p397 = scmp.ne.s32.totalorder %s385, %s386
      %p398 = scmp.eq.s32.totalorder %s40, 1
      %p399 = por %p397, %p398
      %p401 = scmp.ne.s32.totalorder %s386, %s400
      %p402 = scmp.eq.s32.totalorder %s40, 0
      %p403 = por %p401, %p402
      %s405 = sadd.s32 %s404, 1
      %p408 = scmp.eq.s32.totalorder %s34, 1
      %p409 = scmp.ne.s32.totalorder %s404, %s406
      %p410 = scmp.eq.s32.totalorder %s34, 0
      %p411 = por %p409, %p410
      %p412 = scmp.ne.s32.totalorder %s404, %s406
      %p413 = scmp.eq.s32.totalorder %s39, 1
      %p414 = por %p412, %p413
      %p415 = scmp.ne.s32.totalorder %s406, %s407
      %p416 = scmp.eq.s32.totalorder %s39, 0
      %p417 = por %p415, %p416
      %p418 = scmp.ne.s32.totalorder %s406, %s407
      %p419 = scmp.eq.s32.totalorder %s40, 1
      %p420 = por %p418, %p419
      %p422 = scmp.ne.s32.totalorder %s407, %s421
      %p423 = scmp.eq.s32.totalorder %s40, 0
      %p424 = por %p422, %p423
      %s426 = sadd.s32 %s425, 1
      %p429 = scmp.eq.s32.totalorder %s34, 1
      %p430 = scmp.ne.s32.totalorder %s425, %s427
      %p431 = scmp.eq.s32.totalorder %s34, 0
      %p432 = por %p430, %p431
      %p433 = scmp.ne.s32.totalorder %s425, %s427
      %p434 = scmp.eq.s32.totalorder %s39, 1
      %p435 = por %p433, %p434
      %p436 = scmp.ne.s32.totalorder %s427, %s428
      %p437 = scmp.eq.s32.totalorder %s39, 0
      %p438 = por %p436, %p437
      %p439 = scmp.ne.s32.totalorder %s427, %s428
      %p440 = scmp.eq.s32.totalorder %s40, 1
      %p441 = por %p439, %p440
      %p443 = scmp.ne.s32.totalorder %s428, %s442
      %p444 = scmp.eq.s32.totalorder %s40, 0
      %p445 = por %p443, %p444
      %s446 = ssub.s32 %s34, %s41
      %p447 = scmp.eq.s32.totalorder %s446, 0
      %s449 = sadd.s32 %s448, 1
      %s450 = scalar_select %p447, %s448, %s449
      %p453 = pneg %p447
      %p454 = scmp.eq.s32.totalorder %s34, 1
      %p455 = por %p453, %p454
      %p456 = scmp.ne.s32.totalorder %s448, %s451
      %p457 = scmp.eq.s32.totalorder %s34, 0
      %p458 = por %p456, %p457
      %p459 = scmp.ne.s32.totalorder %s448, %s451
      %p460 = scmp.eq.s32.totalorder %s39, 1
      %p461 = por %p459, %p460
      %p462 = scmp.ne.s32.totalorder %s451, %s452
      %p463 = scmp.eq.s32.totalorder %s39, 0
      %p464 = por %p462, %p463
      %p465 = scmp.ne.s32.totalorder %s451, %s452
      %p466 = scmp.eq.s32.totalorder %s40, 1
      %p467 = por %p465, %p466
      %p469 = scmp.ne.s32.totalorder %s452, %s468
      %p470 = scmp.eq.s32.totalorder %s40, 0
      %p471 = por %p469, %p470
      %p472 = scmp.le.s32.totalorder 1, %s34
      %p473 = scmp.lt.s32.totalorder %s34, 3
      %p474 = pnand %p472, %p473
      %p475 = pneg %p474
      // Predicated region
      $region9: #{tpu_custom_call.1} parent=5 // pred_check
        _
      $region10: #{tpu_custom_call.1} parent=5 // pred_check_branch
        %477 = sbr.rel (%p474) target = $region12
      $region11: #{tpu_custom_call.1} parent=5 // pred_region
        %s478 = ssub.s32 %s34, 1
        // Predicated region
        $region13: #{tpu_custom_call.1} parent=11 // pred_check
          %p479 = pneg %p81
        $region14: #{tpu_custom_call.1} parent=11 // pred_check_branch
          %481 = sbr.rel (%p479) target = $region16
        $region15: #{tpu_custom_call.1} parent=11 // pred_region
          _
        $region16: #{tpu_custom_call.1} parent=11 // pred_fallthru
          _
        // Predicated region
        $region17: #{tpu_custom_call.1} parent=11 // pred_check
          %p482 = pneg %p102
        $region18: #{tpu_custom_call.1} parent=11 // pred_check_branch
          %484 = sbr.rel (%p482) target = $region20
        $region19: #{tpu_custom_call.1} parent=11 // pred_region
          _
        $region20: #{tpu_custom_call.1} parent=11 // pred_fallthru
          _
        // Predicated region
        $region21: #{tpu_custom_call.1} parent=11 // pred_check
          %p485 = pneg %p123
        $region22: #{tpu_custom_call.1} parent=11 // pred_check_branch
          %487 = sbr.rel (%p485) target = $region24
        $region23: #{tpu_custom_call.1} parent=11 // pred_region
          _
        $region24: #{tpu_custom_call.1} parent=11 // pred_fallthru
          _
        // Predicated region
        $region25: #{tpu_custom_call.1} parent=11 // pred_check
          %p488 = pneg %p144
        $region26: #{tpu_custom_call.1} parent=11 // pred_check_branch
          %490 = sbr.rel (%p488) target = $region28
        $region27: #{tpu_custom_call.1} parent=11 // pred_region
          _
        $region28: #{tpu_custom_call.1} parent=11 // pred_fallthru
          _
        // Predicated region
        $region29: #{tpu_custom_call.1} parent=11 // pred_check
          %p491 = pneg %p165
        $region30: #{tpu_custom_call.1} parent=11 // pred_check_branch
          %493 = sbr.rel (%p491) target = $region32
        $region31: #{tpu_custom_call.1} parent=11 // pred_region
          _
        $region32: #{tpu_custom_call.1} parent=11 // pred_fallthru
          _
        // Predicated region
        $region33: #{tpu_custom_call.1} parent=11 // pred_check
          %p494 = pneg %p186
        $region34: #{tpu_custom_call.1} parent=11 // pred_check_branch
          %496 = sbr.rel (%p494) target = $region36
        $region35: #{tpu_custom_call.1} parent=11 // pred_region
          %s498 = ssub.s32 32, 32
          %499 = vsyncadd [#allocation3], %s498
          %s500 = sshll.u32 [#allocation2], 4
          %s501 = int_to_ptr.vmem [resolvable:$true] %s500
          %506 = dma.hbm_to_vmem [thread:$0]  %s6, 32, %s501, [#allocation3], 16, 16, 1
        $region36: #{tpu_custom_call.1} parent=11 // pred_fallthru
          _
        // Predicated region
        $region37: #{tpu_custom_call.1} parent=11 // pred_check
          %p507 = pneg %p207
        $region38: #{tpu_custom_call.1} parent=11 // pred_check_branch
          %509 = sbr.rel (%p507) target = $region40
        $region39: #{tpu_custom_call.1} parent=11 // pred_region
          %s511 = ssub.s32 4096, 4096
          %512 = vsyncadd [#allocation6], %s511
          %s513 = sshll.u32 [#allocation5], 4
          %s514 = int_to_ptr.vmem [resolvable:$true] %s513
          %519 = dma.hbm_to_vmem [thread:$0]  %s7, 4096, %s514, [#allocation6], 128, 128, 8
        $region40: #{tpu_custom_call.1} parent=11 // pred_fallthru
          _
        // Predicated region
        $region41: #{tpu_custom_call.1} parent=11 // pred_check
          %p520 = pneg %p228
        $region42: #{tpu_custom_call.1} parent=11 // pred_check_branch
          %522 = sbr.rel (%p520) target = $region44
        $region43: #{tpu_custom_call.1} parent=11 // pred_region
          %s524 = ssub.s32 32, 32
          %525 = vsyncadd [#allocation6], %s524
          %s526 = sshll.u32 [#allocation7], 4
          %s527 = int_to_ptr.vmem [resolvable:$true] %s526
          %532 = dma.hbm_to_vmem [thread:$0]  %s8, 32, %s527, [#allocation6], 16, 16, 1
        $region44: #{tpu_custom_call.1} parent=11 // pred_fallthru
          _
        // Predicated region
        $region45: #{tpu_custom_call.1} parent=11 // pred_check
          %p533 = pneg %p249
        $region46: #{tpu_custom_call.1} parent=11 // pred_check_branch
          %535 = sbr.rel (%p533) target = $region48
        $region47: #{tpu_custom_call.1} parent=11 // pred_region
          %s537 = ssub.s32 32, 32
          %538 = vsyncadd [#allocation9], %s537
          %s539 = sshll.u32 [#allocation8], 4
          %s540 = int_to_ptr.vmem [resolvable:$true] %s539
          %545 = dma.hbm_to_vmem [thread:$0]  %s9, 32, %s540, [#allocation9], 16, 16, 1
        $region48: #{tpu_custom_call.1} parent=11 // pred_fallthru
          _
        // Predicated region
        $region49: #{tpu_custom_call.1} parent=11 // pred_check
          %p546 = pneg %p270
        $region50: #{tpu_custom_call.1} parent=11 // pred_check_branch
          %548 = sbr.rel (%p546) target = $region52
        $region51: #{tpu_custom_call.1} parent=11 // pred_region
          %s550 = ssub.s32 32, 32
          %551 = vsyncadd [#allocation9], %s550
          %s552 = sshll.u32 [#allocation10], 4
          %s553 = int_to_ptr.vmem [resolvable:$true] %s552
          %558 = dma.hbm_to_vmem [thread:$0]  %s10, 32, %s553, [#allocation9], 16, 16, 1
        $region52: #{tpu_custom_call.1} parent=11 // pred_fallthru
          _
        // Predicated region
        $region53: #{tpu_custom_call.1} parent=11 // pred_check
          %p559 = pneg %p291
        $region54: #{tpu_custom_call.1} parent=11 // pred_check_branch
          %561 = sbr.rel (%p559) target = $region56
        $region55: #{tpu_custom_call.1} parent=11 // pred_region
          %s563 = ssub.s32 4096, 4096
          %564 = vsyncadd [#allocation12], %s563
          %s565 = sshll.u32 [#allocation11], 4
          %s566 = int_to_ptr.vmem [resolvable:$true] %s565
          %571 = dma.hbm_to_vmem [thread:$0]  %s11, 4096, %s566, [#allocation12], 128, 128, 8
        $region56: #{tpu_custom_call.1} parent=11 // pred_fallthru
          _
        // Predicated region
        $region57: #{tpu_custom_call.1} parent=11 // pred_check
          %p572 = pneg %p312
        $region58: #{tpu_custom_call.1} parent=11 // pred_check_branch
          %574 = sbr.rel (%p572) target = $region60
        $region59: #{tpu_custom_call.1} parent=11 // pred_region
          %s576 = ssub.s32 32, 32
          %577 = vsyncadd [#allocation12], %s576
          %s578 = sshll.u32 [#allocation13], 4
          %s579 = int_to_ptr.vmem [resolvable:$true] %s578
          %584 = dma.hbm_to_vmem [thread:$0]  %s12, 32, %s579, [#allocation12], 16, 16, 1
        $region60: #{tpu_custom_call.1} parent=11 // pred_fallthru
          _
        // Predicated region
        $region61: #{tpu_custom_call.1} parent=11 // pred_check
          %p585 = pneg %p333
        $region62: #{tpu_custom_call.1} parent=11 // pred_check_branch
          %587 = sbr.rel (%p585) target = $region64
        $region63: #{tpu_custom_call.1} parent=11 // pred_region
          %s589 = ssub.s32 4096, 4096
          %590 = vsyncadd [#allocation15], %s589
          %s591 = sshll.u32 [#allocation14], 4
          %s592 = int_to_ptr.vmem [resolvable:$true] %s591
          %597 = dma.hbm_to_vmem [thread:$0]  %s13, 4096, %s592, [#allocation15], 128, 128, 8
        $region64: #{tpu_custom_call.1} parent=11 // pred_fallthru
          _
        // Predicated region
        $region65: #{tpu_custom_call.1} parent=11 // pred_check
          %p598 = pneg %p354
        $region66: #{tpu_custom_call.1} parent=11 // pred_check_branch
          %600 = sbr.rel (%p598) target = $region68
        $region67: #{tpu_custom_call.1} parent=11 // pred_region
          %s602 = ssub.s32 32, 32
          %603 = vsyncadd [#allocation15], %s602
          %s604 = sshll.u32 [#allocation16], 4
          %s605 = int_to_ptr.vmem [resolvable:$true] %s604
          %610 = dma.hbm_to_vmem [thread:$0]  %s14, 32, %s605, [#allocation15], 16, 16, 1
        $region68: #{tpu_custom_call.1} parent=11 // pred_fallthru
          _
        // Predicated region
        $region69: #{tpu_custom_call.1} parent=11 // pred_check
          %p611 = pneg %p375
        $region70: #{tpu_custom_call.1} parent=11 // pred_check_branch
          %613 = sbr.rel (%p611) target = $region72
        $region71: #{tpu_custom_call.1} parent=11 // pred_region
          %s615 = ssub.s32 32, 32
          %616 = vsyncadd [#allocation18], %s615
          %s617 = sshll.u32 [#allocation17], 4
          %s618 = int_to_ptr.vmem [resolvable:$true] %s617
          %623 = dma.hbm_to_vmem [thread:$0]  %s15, 32, %s618, [#allocation18], 16, 16, 1
        $region72: #{tpu_custom_call.1} parent=11 // pred_fallthru
          _
        // Predicated region
        $region73: #{tpu_custom_call.1} parent=11 // pred_check
          %p624 = pneg %p396
        $region74: #{tpu_custom_call.1} parent=11 // pred_check_branch
          %626 = sbr.rel (%p624) target = $region76
        $region75: #{tpu_custom_call.1} parent=11 // pred_region
          %s628 = ssub.s32 32, 32
          %629 = vsyncadd [#allocation18], %s628
          %s630 = sshll.u32 [#allocation19], 4
          %s631 = int_to_ptr.vmem [resolvable:$true] %s630
          %636 = dma.hbm_to_vmem [thread:$0]  %s16, 32, %s631, [#allocation18], 16, 16, 1
        $region76: #{tpu_custom_call.1} parent=11 // pred_fallthru
          _
        // Predicated region
        $region77: #{tpu_custom_call.1} parent=11 // pred_check
          %p637 = pneg %p417
        $region78: #{tpu_custom_call.1} parent=11 // pred_check_branch
          %639 = sbr.rel (%p637) target = $region80
        $region79: #{tpu_custom_call.1} parent=11 // pred_region
          _
        $region80: #{tpu_custom_call.1} parent=11 // pred_fallthru
          _
        // Predicated region
        $region81: #{tpu_custom_call.1} parent=11 // pred_check
          %p640 = pneg %p438
        $region82: #{tpu_custom_call.1} parent=11 // pred_check_branch
          %642 = sbr.rel (%p640) target = $region84
        $region83: #{tpu_custom_call.1} parent=11 // pred_region
          _
        $region84: #{tpu_custom_call.1} parent=11 // pred_fallthru
          _
      $region12: #{tpu_custom_call.1} parent=5 // pred_fallthru
        _
      %p643 = scmp.lt.s32.totalorder %s34, 2
      // Predicated region
      $region85: #{tpu_custom_call.1} parent=5 // pred_check
        %p644 = pneg %p643
      $region86: #{tpu_custom_call.1} parent=5 // pred_check_branch
        %646 = sbr.rel (%p644) target = $region88
      $region87: #{tpu_custom_call.1} parent=5 // pred_region
        // Predicated region
        $region89: #{tpu_custom_call.1} parent=87 // pred_check
          %p647 = pneg %p54
        $region90: #{tpu_custom_call.1} parent=87 // pred_check_branch
          %649 = sbr.rel (%p647) target = $region92
        $region91: #{tpu_custom_call.1} parent=87 // pred_region
          %p650 = scmp.lt.s32.totalorder %s34, 1
          %s651 = scalar_select %p650, %s34, 1
          %s652 = smul.addr %s651, 15
          %s653 = smul.addr %s652, 8
          %s654 = scalar_lea.vmem %s0, %s653
        $region92: #{tpu_custom_call.1} parent=87 // pred_fallthru
          _
      $region88: #{tpu_custom_call.1} parent=5 // pred_fallthru
        _
      %p655 = scmp.le.s32.totalorder 1, %s34
      %p656 = scmp.lt.s32.totalorder %s34, 3
      %p657 = pnand %p655, %p656
      %p658 = pneg %p657
      // Predicated region
      $region93: #{tpu_custom_call.1} parent=5 // pred_check
        _
      $region94: #{tpu_custom_call.1} parent=5 // pred_check_branch
        %660 = sbr.rel (%p657) target = $region96
      $region95: #{tpu_custom_call.1} parent=5 // pred_region
        %s661 = ssub.s32 %s34, 1
        // Predicated region
        $region97: #{tpu_custom_call.1} parent=95 // pred_check
          %p662 = pneg %p186
        $region98: #{tpu_custom_call.1} parent=95 // pred_check_branch
          %664 = sbr.rel (%p662) target = $region100
        $region99: #{tpu_custom_call.1} parent=95 // pred_region
          %665 = dma.done [#allocation3], 32
        $region100: #{tpu_custom_call.1} parent=95 // pred_fallthru
          _
        // Predicated region
        $region101: #{tpu_custom_call.1} parent=95 // pred_check
          %p666 = pneg %p207
        $region102: #{tpu_custom_call.1} parent=95 // pred_check_branch
          %668 = sbr.rel (%p666) target = $region104
        $region103: #{tpu_custom_call.1} parent=95 // pred_region
          %669 = dma.done [#allocation6], 4096
        $region104: #{tpu_custom_call.1} parent=95 // pred_fallthru
          _
        // Predicated region
        $region105: #{tpu_custom_call.1} parent=95 // pred_check
          %p670 = pneg %p228
        $region106: #{tpu_custom_call.1} parent=95 // pred_check_branch
          %672 = sbr.rel (%p670) target = $region108
        $region107: #{tpu_custom_call.1} parent=95 // pred_region
          %673 = dma.done [#allocation6], 32
        $region108: #{tpu_custom_call.1} parent=95 // pred_fallthru
          _
        // Predicated region
        $region109: #{tpu_custom_call.1} parent=95 // pred_check
          %p674 = pneg %p249
        $region110: #{tpu_custom_call.1} parent=95 // pred_check_branch
          %676 = sbr.rel (%p674) target = $region112
        $region111: #{tpu_custom_call.1} parent=95 // pred_region
          %677 = dma.done [#allocation9], 32
        $region112: #{tpu_custom_call.1} parent=95 // pred_fallthru
          _
        // Predicated region
        $region113: #{tpu_custom_call.1} parent=95 // pred_check
          %p678 = pneg %p270
        $region114: #{tpu_custom_call.1} parent=95 // pred_check_branch
          %680 = sbr.rel (%p678) target = $region116
        $region115: #{tpu_custom_call.1} parent=95 // pred_region
          %681 = dma.done [#allocation9], 32
        $region116: #{tpu_custom_call.1} parent=95 // pred_fallthru
          _
        // Predicated region
        $region117: #{tpu_custom_call.1} parent=95 // pred_check
          %p682 = pneg %p291
        $region118: #{tpu_custom_call.1} parent=95 // pred_check_branch
          %684 = sbr.rel (%p682) target = $region120
        $region119: #{tpu_custom_call.1} parent=95 // pred_region
          %685 = dma.done [#allocation12], 4096
        $region120: #{tpu_custom_call.1} parent=95 // pred_fallthru
          _
        // Predicated region
        $region121: #{tpu_custom_call.1} parent=95 // pred_check
          %p686 = pneg %p312
        $region122: #{tpu_custom_call.1} parent=95 // pred_check_branch
          %688 = sbr.rel (%p686) target = $region124
        $region123: #{tpu_custom_call.1} parent=95 // pred_region
          %689 = dma.done [#allocation12], 32
        $region124: #{tpu_custom_call.1} parent=95 // pred_fallthru
          _
        // Predicated region
        $region125: #{tpu_custom_call.1} parent=95 // pred_check
          %p690 = pneg %p333
        $region126: #{tpu_custom_call.1} parent=95 // pred_check_branch
          %692 = sbr.rel (%p690) target = $region128
        $region127: #{tpu_custom_call.1} parent=95 // pred_region
          %693 = dma.done [#allocation15], 4096
        $region128: #{tpu_custom_call.1} parent=95 // pred_fallthru
          _
        // Predicated region
        $region129: #{tpu_custom_call.1} parent=95 // pred_check
          %p694 = pneg %p354
        $region130: #{tpu_custom_call.1} parent=95 // pred_check_branch
          %696 = sbr.rel (%p694) target = $region132
        $region131: #{tpu_custom_call.1} parent=95 // pred_region
          %697 = dma.done [#allocation15], 32
        $region132: #{tpu_custom_call.1} parent=95 // pred_fallthru
          _
        // Predicated region
        $region133: #{tpu_custom_call.1} parent=95 // pred_check
          %p698 = pneg %p375
        $region134: #{tpu_custom_call.1} parent=95 // pred_check_branch
          %700 = sbr.rel (%p698) target = $region136
        $region135: #{tpu_custom_call.1} parent=95 // pred_region
          %701 = dma.done [#allocation18], 32
        $region136: #{tpu_custom_call.1} parent=95 // pred_fallthru
          _
        // Predicated region
        $region137: #{tpu_custom_call.1} parent=95 // pred_check
          %p702 = pneg %p396
        $region138: #{tpu_custom_call.1} parent=95 // pred_check_branch
          %704 = sbr.rel (%p702) target = $region140
        $region139: #{tpu_custom_call.1} parent=95 // pred_region
          %705 = dma.done [#allocation18], 32
        $region140: #{tpu_custom_call.1} parent=95 // pred_fallthru
          _
        %p706 = scmp.lt.s32.totalorder %s39, 1
        %s707 = scalar_select %p706, %s39, 1
        %s708 = smul.addr %s707, 15
        %s709 = smul.addr %s708, 8
        %s710 = scalar_lea.vmem %s0, %s709
        %p711 = pneg %p60
        %p712 = pneg %p57
        %p713 = pneg %p81
        %p714 = pneg %p78
        %p715 = pneg %p102
        %p716 = pneg %p99
        %p717 = pneg %p123
        %p718 = pneg %p120
        %p719 = pneg %p144
        %p720 = pneg %p141
        %p721 = pneg %p165
        %p722 = pneg %p162
        %p723 = pneg %p186
        %p724 = pneg %p183
        %p725 = pneg %p207
        %p726 = pneg %p204
        %p727 = pneg %p228
        %p728 = pneg %p225
        %p729 = pneg %p249
        %p730 = pneg %p246
        %p731 = pneg %p270
        %p732 = pneg %p267
        %p733 = pneg %p291
        %p734 = pneg %p288
        %p735 = pneg %p312
        %p736 = pneg %p309
        %p737 = pneg %p333
        %p738 = pneg %p330
        %p739 = pneg %p354
        %p740 = pneg %p351
        %p741 = pneg %p375
        %p742 = pneg %p372
        %p743 = pneg %p396
        %p744 = pneg %p393
        %p745 = pneg %p417
        %p746 = pneg %p414
        %p747 = pneg %p438
        %p748 = pneg %p435
        %p749 = pneg %p464
        %p750 = pneg %p461
        %s751 = sand.u32 %s451, 1
        %s752 = scalar_lea.sflag [#allocation4], %s751
        %s753 = sand.u32 %s451, 1
        %s754 = scalar_lea.vmem [#allocation20], %s753
        %p755 = scmp.lt.s32.totalorder %s39, 1
        %s756 = scalar_select %p755, %s39, 1
        %s757 = smul.addr %s756, 15
        %s758 = smul.addr %s757, 8
        %s759 = scalar_lea.vmem %s0, %s758
        %v760 = vld [vmem:[%s759] sm:$0xff]
        %v761 = vld [vmem:[%s759 + $0x8] sm:$0xff]
        %v762 = vld [vmem:[%s759 + $0x10] sm:$0xff]
        %v763 = vld [vmem:[%s759 + $0x18] sm:$0xff]
        %v764 = vld [vmem:[%s759 + $0x20] sm:$0xff]
        %v765 = vld [vmem:[%s759 + $0x28] sm:$0xff]
        %v766 = vld [vmem:[%s759 + $0x30] sm:$0xff]
        %v767 = vld [vmem:[%s759 + $0x38] sm:$0xff]
        %v768 = vld [vmem:[%s759 + $0x40] sm:$0xff]
        %v769 = vld [vmem:[%s759 + $0x48] sm:$0xff]
        %v770 = vld [vmem:[%s759 + $0x50] sm:$0xff]
        %v771 = vld [vmem:[%s759 + $0x58] sm:$0xff]
        %v772 = vld [vmem:[%s759 + $0x60] sm:$0xff]
        %v773 = vld [vmem:[%s759 + $0x68] sm:$0xff]
        %v774 = vld [vmem:[%s759 + $0x70] sm:$0xf]
        %v775 = vlaneseq
        %v776 = vand.u32 %v775, 127
        %vm777 = vcmp.lt.s32.totalorder %v776, 116
        %v778 = vsel %vm777, 1, 0
        %v779 = vcvt.s32.f32 %v778
        %v780 = vld [vmem:[%s1] sm:$0xff]
        %v781 = vld [vmem:[%s1 + $0x8] sm:$0xff]
        %v782 = vld [vmem:[%s1 + $0x10] sm:$0xff]
        %v783 = vld [vmem:[%s1 + $0x18] sm:$0xff]
        %v784 = vld [vmem:[%s1 + $0x20] sm:$0xff]
        %v785 = vld [vmem:[%s1 + $0x28] sm:$0xff]
        %v786 = vld [vmem:[%s1 + $0x30] sm:$0xff]
        %v787 = vld [vmem:[%s1 + $0x38] sm:$0xff]
        %v788 = vld [vmem:[%s1 + $0x40] sm:$0xff]
        %v789 = vld [vmem:[%s1 + $0x48] sm:$0xff]
        %v790 = vld [vmem:[%s1 + $0x50] sm:$0xff]
        %v791 = vld [vmem:[%s1 + $0x58] sm:$0xff]
        %v792 = vld [vmem:[%s1 + $0x60] sm:$0xff]
        %v793 = vld [vmem:[%s1 + $0x68] sm:$0xff]
        %v794 = vld [vmem:[%s1 + $0x70] sm:$0xff]
        %v795 = vld [vmem:[%s1 + $0x78] sm:$0xff]
        %v796 = vld [vmem:[%s3] sm:$0xff]
        %v797 = vld [vmem:[%s3 + $0x8] sm:$0xff]
        %v798 = vld [vmem:[%s3 + $0x10] sm:$0xff]
        %v799 = vld [vmem:[%s3 + $0x18] sm:$0xff]
        %v800 = vld [vmem:[%s3 + $0x20] sm:$0xff]
        %v801 = vld [vmem:[%s3 + $0x28] sm:$0xff]
        %v802 = vld [vmem:[%s3 + $0x30] sm:$0xff]
        %v803 = vld [vmem:[%s3 + $0x38] sm:$0xff]
        %v804 = vld [vmem:[%s3 + $0x40] sm:$0xff]
        %v805 = vld [vmem:[%s3 + $0x48] sm:$0xff]
        %v806 = vld [vmem:[%s3 + $0x50] sm:$0xff]
        %v807 = vld [vmem:[%s3 + $0x58] sm:$0xff]
        %v808 = vld [vmem:[%s3 + $0x60] sm:$0xff]
        %v809 = vld [vmem:[%s3 + $0x68] sm:$0xff]
        %v810 = vld [vmem:[%s3 + $0x70] sm:$0xff]
        %v811 = vld [vmem:[%s3 + $0x78] sm:$0xff]
        %v812 = vld [vmem:[%s5] sm:$0xff]
        %v813 = vld [vmem:[%s5 + $0x8] sm:$0xff]
        %v814 = vld [vmem:[%s5 + $0x10] sm:$0xff]
        %v815 = vld [vmem:[%s5 + $0x18] sm:$0xff]
        %v816 = vld [vmem:[%s5 + $0x20] sm:$0xff]
        %v817 = vld [vmem:[%s5 + $0x28] sm:$0xff]
        %v818 = vld [vmem:[%s5 + $0x30] sm:$0xff]
        %v819 = vld [vmem:[%s5 + $0x38] sm:$0xff]
        %v820 = vld [vmem:[%s5 + $0x40] sm:$0xff]
        %v821 = vld [vmem:[%s5 + $0x48] sm:$0xff]
        %v822 = vld [vmem:[%s5 + $0x50] sm:$0xff]
        %v823 = vld [vmem:[%s5 + $0x58] sm:$0xff]
        %v824 = vld [vmem:[%s5 + $0x60] sm:$0xff]
        %v825 = vld [vmem:[%s5 + $0x68] sm:$0xff]
        %v826 = vld [vmem:[%s5 + $0x70] sm:$0xff]
        %v827 = vld [vmem:[%s5 + $0x78] sm:$0xff]
        %v828 = vld [vmem:[#allocation5] sm:$0xff]
        %v829 = vld [vmem:[#allocation5 + $0x8] sm:$0xff]
        %v830 = vld [vmem:[#allocation5 + $0x10] sm:$0xff]
        %v831 = vld [vmem:[#allocation5 + $0x18] sm:$0xff]
        %v832 = vld [vmem:[#allocation5 + $0x20] sm:$0xff]
        %v833 = vld [vmem:[#allocation5 + $0x28] sm:$0xff]
        %v834 = vld [vmem:[#allocation5 + $0x30] sm:$0xff]
        %v835 = vld [vmem:[#allocation5 + $0x38] sm:$0xff]
        %v836 = vld [vmem:[#allocation5 + $0x40] sm:$0xff]
        %v837 = vld [vmem:[#allocation5 + $0x48] sm:$0xff]
        %v838 = vld [vmem:[#allocation5 + $0x50] sm:$0xff]
        %v839 = vld [vmem:[#allocation5 + $0x58] sm:$0xff]
        %v840 = vld [vmem:[#allocation5 + $0x60] sm:$0xff]
        %v841 = vld [vmem:[#allocation5 + $0x68] sm:$0xff]
        %v842 = vld [vmem:[#allocation5 + $0x70] sm:$0xff]
        %v843 = vld [vmem:[#allocation5 + $0x78] sm:$0xff]
        %v844 = vld [vmem:[%s2] sm:$0x1]
        %v846 = vlaneseq
        %v847 = vshrl.u32 %v846, 7
        %v848 = vsub.s32 0, %v847
        %v849 = vrot.slane %v844, %v848
        %851 = vmatprep.subr.mxu0 0.0
        %852 = vmatpush1.msra.mxu0 %v780
        %853 = vmatprep.subr.mxu0 0.0
        %854 = vmatpush1.msra.mxu0 %v781
        %855 = vmatprep.subr.mxu0 0.0
        %856 = vmatpush1.msra.mxu0 %v782
        %857 = vmatprep.subr.mxu0 0.0
        %858 = vmatpush1.msra.mxu0 %v783
        %859 = vmatprep.subr.mxu0 0.0
        %860 = vmatpush1.msra.mxu0 %v784
        %861 = vmatprep.subr.mxu0 0.0
        %862 = vmatpush1.msra.mxu0 %v785
        %863 = vmatprep.subr.mxu0 0.0
        %864 = vmatpush1.msra.mxu0 %v786
        %865 = vmatprep.subr.mxu0 0.0
        %866 = vmatpush1.msra.mxu0 %v787
        %867 = vmatprep.subr.mxu0 0.0
        %868 = vmatpush1.msra.mxu0 %v788
        %869 = vmatprep.subr.mxu0 0.0
        %870 = vmatpush1.msra.mxu0 %v789
        %871 = vmatprep.subr.mxu0 0.0
        %872 = vmatpush1.msra.mxu0 %v790
        %873 = vmatprep.subr.mxu0 0.0
        %874 = vmatpush1.msra.mxu0 %v791
        %875 = vmatprep.subr.mxu0 0.0
        %876 = vmatpush1.msra.mxu0 %v792
        %877 = vmatprep.subr.mxu0 0.0
        %878 = vmatpush1.msra.mxu0 %v793
        %879 = vmatprep.subr.mxu0 0.0
        %880 = vmatpush1.msra.mxu0 %v794
        %881 = vmatprep.subr.mxu0 0.0
        %882 = vmatpush1.msra.mxu0 %v795
        %883 = vmatprep.subr.mxu0 0.0
        %884 = vmatpush1.msra.mxu0 0.0
        %885 = vmatprep.subr.mxu0 0.0
        %886 = vmatpush1.msra.mxu0 0.0
        %887 = vmatprep.subr.mxu0 0.0
        %888 = vmatpush1.msra.mxu0 0.0
        %889 = vmatprep.subr.mxu0 0.0
        %890 = vmatpush1.msra.mxu0 0.0
        %891 = vmatprep.subr.mxu0 0.0
        %892 = vmatpush1.msra.mxu0 0.0
        %893 = vmatprep.subr.mxu0 0.0
        %894 = vmatpush1.msra.mxu0 0.0
        %895 = vmatprep.subr.mxu0 0.0
        %896 = vmatpush1.msra.mxu0 0.0
        %897 = vmatprep.subr.mxu0 0.0
        %898 = vmatpush1.msra.mxu0 0.0
        %899 = vmatprep.subr.mxu0 0.0
        %900 = vmatpush1.msra.mxu0 0.0
        %901 = vmatprep.subr.mxu0 0.0
        %902 = vmatpush1.msra.mxu0 0.0
        %903 = vmatprep.subr.mxu0 0.0
        %904 = vmatpush1.msra.mxu0 0.0
        %905 = vmatprep.subr.mxu0 0.0
        %906 = vmatpush1.msra.mxu0 0.0
        %907 = vmatprep.subr.mxu0 0.0
        %908 = vmatpush1.msra.mxu0 0.0
        %909 = vmatprep.subr.mxu0 0.0
        %910 = vmatpush1.msra.mxu0 0.0
        %911 = vmatprep.subr.mxu0 0.0
        %912 = vmatpush1.msra.mxu0 0.0
        %913 = vmatprep.subr.mxu0 0.0
        %914 = vmatpush1.msra.mxu0 0.0
        %915 = vmatprep.mubr.f32.mxu0 0.0
        %916 = vmatmul.mubr.f32.gmra.mrb[0].mxu0 %v760
        %v917 = vpop.f32.mrb[0].mxu0
        %v918 = vadd.f32 %v849, %v917
        %v919 = vpop.f32.mrb[0].mxu0
        %920 = vmatprep.mubr.f32.mxu0 0.0
        %921 = vmatmul.mubr.f32.gmra.mrb[0].mxu0 %v761
        %v922 = vpop.f32.mrb[0].mxu0
        %v923 = vadd.f32 %v849, %v922
        %v924 = vpop.f32.mrb[0].mxu0
        %925 = vmatprep.mubr.f32.mxu0 0.0
        %926 = vmatmul.mubr.f32.gmra.mrb[0].mxu0 %v762
        %v927 = vpop.f32.mrb[0].mxu0
        %v928 = vadd.f32 %v849, %v927
        %v929 = vpop.f32.mrb[0].mxu0
        %930 = vmatprep.mubr.f32.mxu0 0.0
        %931 = vmatmul.mubr.f32.gmra.mrb[0].mxu0 %v763
        %v932 = vpop.f32.mrb[0].mxu0
        %v933 = vadd.f32 %v849, %v932
        %v934 = vpop.f32.mrb[0].mxu0
        %935 = vmatprep.mubr.f32.mxu0 0.0
        %936 = vmatmul.mubr.f32.gmra.mrb[0].mxu0 %v764
        %v937 = vpop.f32.mrb[0].mxu0
        %v938 = vadd.f32 %v849, %v937
        %v939 = vpop.f32.mrb[0].mxu0
        %940 = vmatprep.mubr.f32.mxu0 0.0
        %941 = vmatmul.mubr.f32.gmra.mrb[0].mxu0 %v765
        %v942 = vpop.f32.mrb[0].mxu0
        %v943 = vadd.f32 %v849, %v942
        %v944 = vpop.f32.mrb[0].mxu0
        %945 = vmatprep.mubr.f32.mxu0 0.0
        %946 = vmatmul.mubr.f32.gmra.mrb[0].mxu0 %v766
        %v947 = vpop.f32.mrb[0].mxu0
        %v948 = vadd.f32 %v849, %v947
        %v949 = vpop.f32.mrb[0].mxu0
        %950 = vmatprep.mubr.f32.mxu0 0.0
        %951 = vmatmul.mubr.f32.gmra.mrb[0].mxu0 %v767
        %v952 = vpop.f32.mrb[0].mxu0
        %v953 = vadd.f32 %v849, %v952
        %v954 = vpop.f32.mrb[0].mxu0
        %955 = vmatprep.mubr.f32.mxu0 0.0
        %956 = vmatmul.mubr.f32.gmra.mrb[0].mxu0 %v768
        %v957 = vpop.f32.mrb[0].mxu0
        %v958 = vadd.f32 %v849, %v957
        %v959 = vpop.f32.mrb[0].mxu0
        %960 = vmatprep.mubr.f32.mxu0 0.0
        %961 = vmatmul.mubr.f32.gmra.mrb[0].mxu0 %v769
        %v962 = vpop.f32.mrb[0].mxu0
        %v963 = vadd.f32 %v849, %v962
        %v964 = vpop.f32.mrb[0].mxu0
        %965 = vmatprep.mubr.f32.mxu0 0.0
        %966 = vmatmul.mubr.f32.gmra.mrb[0].mxu0 %v770
        %v967 = vpop.f32.mrb[0].mxu0
        %v968 = vadd.f32 %v849, %v967
        %v969 = vpop.f32.mrb[0].mxu0
        %970 = vmatprep.mubr.f32.mxu0 0.0
        %971 = vmatmul.mubr.f32.gmra.mrb[0].mxu0 %v771
        %v972 = vpop.f32.mrb[0].mxu0
        %v973 = vadd.f32 %v849, %v972
        %v974 = vpop.f32.mrb[0].mxu0
        %975 = vmatprep.mubr.f32.mxu0 0.0
        %976 = vmatmul.mubr.f32.gmra.mrb[0].mxu0 %v772
        %v977 = vpop.f32.mrb[0].mxu0
        %v978 = vadd.f32 %v849, %v977
        %v979 = vpop.f32.mrb[0].mxu0
        %980 = vmatprep.mubr.f32.mxu0 0.0
        %981 = vmatmul.mubr.f32.gmra.mrb[0].mxu0 %v773
        %v982 = vpop.f32.mrb[0].mxu0
        %v983 = vadd.f32 %v849, %v982
        %v984 = vpop.f32.mrb[0].mxu0
        %985 = vmatprep.mubr.f32.mxu0 0.0
        %986 = vmatmul.mubr.f32.gmra.mrb[0].mxu0 %v774
        %v987 = vpop.f32.mrb[0].mxu0
        %v988 = vadd.f32 %v849, %v987
        %v989 = vpop.f32.mrb[0].mxu0
        %990 = vdwg.mxu0
        %v991 = vld [vmem:[%s4] sm:$0x1]
        %v993 = vlaneseq
        %v994 = vshrl.u32 %v993, 7
        %v995 = vsub.s32 0, %v994
        %v996 = vrot.slane %v991, %v995
        %998 = vmatprep.subr.mxu0 0.0
        %999 = vmatpush1.msra.mxu0 %v796
        %1000 = vmatprep.subr.mxu0 0.0
        %1001 = vmatpush1.msra.mxu0 %v797
        %1002 = vmatprep.subr.mxu0 0.0
        %1003 = vmatpush1.msra.mxu0 %v798
        %1004 = vmatprep.subr.mxu0 0.0
        %1005 = vmatpush1.msra.mxu0 %v799
        %1006 = vmatprep.subr.mxu0 0.0
        %1007 = vmatpush1.msra.mxu0 %v800
        %1008 = vmatprep.subr.mxu0 0.0
        %1009 = vmatpush1.msra.mxu0 %v801
        %1010 = vmatprep.subr.mxu0 0.0
        %1011 = vmatpush1.msra.mxu0 %v802
        %1012 = vmatprep.subr.mxu0 0.0
        %1013 = vmatpush1.msra.mxu0 %v803
        %1014 = vmatprep.subr.mxu0 0.0
        %1015 = vmatpush1.msra.mxu0 %v804
        %1016 = vmatprep.subr.mxu0 0.0
        %1017 = vmatpush1.msra.mxu0 %v805
        %1018 = vmatprep.subr.mxu0 0.0
        %1019 = vmatpush1.msra.mxu0 %v806
        %1020 = vmatprep.subr.mxu0 0.0
        %1021 = vmatpush1.msra.mxu0 %v807
        %1022 = vmatprep.subr.mxu0 0.0
        %1023 = vmatpush1.msra.mxu0 %v808
        %1024 = vmatprep.subr.mxu0 0.0
        %1025 = vmatpush1.msra.mxu0 %v809
        %1026 = vmatprep.subr.mxu0 0.0
        %1027 = vmatpush1.msra.mxu0 %v810
        %1028 = vmatprep.subr.mxu0 0.0
        %1029 = vmatpush1.msra.mxu0 %v811
        %1030 = vmatprep.subr.mxu0 0.0
        %1031 = vmatpush1.msra.mxu0 0.0
        %1032 = vmatprep.subr.mxu0 0.0
        %1033 = vmatpush1.msra.mxu0 0.0
        %1034 = vmatprep.subr.mxu0 0.0
        %1035 = vmatpush1.msra.mxu0 0.0
        %1036 = vmatprep.subr.mxu0 0.0
        %1037 = vmatpush1.msra.mxu0 0.0
        %1038 = vmatprep.subr.mxu0 0.0
        %1039 = vmatpush1.msra.mxu0 0.0
        %1040 = vmatprep.subr.mxu0 0.0
        %1041 = vmatpush1.msra.mxu0 0.0
        %1042 = vmatprep.subr.mxu0 0.0
        %1043 = vmatpush1.msra.mxu0 0.0
        %1044 = vmatprep.subr.mxu0 0.0
        %1045 = vmatpush1.msra.mxu0 0.0
        %1046 = vmatprep.subr.mxu0 0.0
        %1047 = vmatpush1.msra.mxu0 0.0
        %1048 = vmatprep.subr.mxu0 0.0
        %1049 = vmatpush1.msra.mxu0 0.0
        %1050 = vmatprep.subr.mxu0 0.0
        %1051 = vmatpush1.msra.mxu0 0.0
        %1052 = vmatprep.subr.mxu0 0.0
        %1053 = vmatpush1.msra.mxu0 0.0
        %1054 = vmatprep.subr.mxu0 0.0
        %1055 = vmatpush1.msra.mxu0 0.0
        %1056 = vmatprep.subr.mxu0 0.0
        %1057 = vmatpush1.msra.mxu0 0.0
        %1058 = vmatprep.subr.mxu0 0.0
        %1059 = vmatpush1.msra.mxu0 0.0
        %1060 = vmatprep.subr.mxu0 0.0
        %1061 = vmatpush1.msra.mxu0 0.0
        %1062 = vmatprep.mubr.f32.mxu0 0.0
        %1063 = vmatmul.mubr.f32.gmra.mrb[0].mxu0 %v760
        %v1064 = vpop.f32.mrb[0].mxu0
        %v1065 = vadd.f32 %v996, %v1064
        %v1066 = vpop.f32.mrb[0].mxu0
        %1067 = vmatprep.mubr.f32.mxu0 0.0
        %1068 = vmatmul.mubr.f32.gmra.mrb[0].mxu0 %v761
        %v1069 = vpop.f32.mrb[0].mxu0
        %v1070 = vadd.f32 %v996, %v1069
        %v1071 = vpop.f32.mrb[0].mxu0
        %1072 = vmatprep.mubr.f32.mxu0 0.0
        %1073 = vmatmul.mubr.f32.gmra.mrb[0].mxu0 %v762
        %v1074 = vpop.f32.mrb[0].mxu0
        %v1075 = vadd.f32 %v996, %v1074
        %v1076 = vpop.f32.mrb[0].mxu0
        %1077 = vmatprep.mubr.f32.mxu0 0.0
        %1078 = vmatmul.mubr.f32.gmra.mrb[0].mxu0 %v763
        %v1079 = vpop.f32.mrb[0].mxu0
        %v1080 = vadd.f32 %v996, %v1079
        %v1081 = vpop.f32.mrb[0].mxu0
        %1082 = vmatprep.mubr.f32.mxu0 0.0
        %1083 = vmatmul.mubr.f32.gmra.mrb[0].mxu0 %v764
        %v1084 = vpop.f32.mrb[0].mxu0
        %v1085 = vadd.f32 %v996, %v1084
        %v1086 = vpop.f32.mrb[0].mxu0
        %1087 = vmatprep.mubr.f32.mxu0 0.0
        %1088 = vmatmul.mubr.f32.gmra.mrb[0].mxu0 %v765
        %v1089 = vpop.f32.mrb[0].mxu0
        %v1090 = vadd.f32 %v996, %v1089
        %v1091 = vpop.f32.mrb[0].mxu0
        %1092 = vmatprep.mubr.f32.mxu0 0.0
        %1093 = vmatmul.mubr.f32.gmra.mrb[0].mxu0 %v766
        %v1094 = vpop.f32.mrb[0].mxu0
        %v1095 = vadd.f32 %v996, %v1094
        %v1096 = vpop.f32.mrb[0].mxu0
        %1097 = vmatprep.mubr.f32.mxu0 0.0
        %1098 = vmatmul.mubr.f32.gmra.mrb[0].mxu0 %v767
        %v1099 = vpop.f32.mrb[0].mxu0
        %v1100 = vadd.f32 %v996, %v1099
        %v1101 = vpop.f32.mrb[0].mxu0
        %1102 = vmatprep.mubr.f32.mxu0 0.0
        %1103 = vmatmul.mubr.f32.gmra.mrb[0].mxu0 %v768
        %v1104 = vpop.f32.mrb[0].mxu0
        %v1105 = vadd.f32 %v996, %v1104
        %v1106 = vpop.f32.mrb[0].mxu0
        %1107 = vmatprep.mubr.f32.mxu0 0.0
        %1108 = vmatmul.mubr.f32.gmra.mrb[0].mxu0 %v769
        %v1109 = vpop.f32.mrb[0].mxu0
        %v1110 = vadd.f32 %v996, %v1109
        %v1111 = vpop.f32.mrb[0].mxu0
        %1112 = vmatprep.mubr.f32.mxu0 0.0
        %1113 = vmatmul.mubr.f32.gmra.mrb[0].mxu0 %v770
        %v1114 = vpop.f32.mrb[0].mxu0
        %v1115 = vadd.f32 %v996, %v1114
        %v1116 = vpop.f32.mrb[0].mxu0
        %1117 = vmatprep.mubr.f32.mxu0 0.0
        %1118 = vmatmul.mubr.f32.gmra.mrb[0].mxu0 %v771
        %v1119 = vpop.f32.mrb[0].mxu0
        %v1120 = vadd.f32 %v996, %v1119
        %v1121 = vpop.f32.mrb[0].mxu0
        %1122 = vmatprep.mubr.f32.mxu0 0.0
        %1123 = vmatmul.mubr.f32.gmra.mrb[0].mxu0 %v772
        %v1124 = vpop.f32.mrb[0].mxu0
        %v1125 = vadd.f32 %v996, %v1124
        %v1126 = vpop.f32.mrb[0].mxu0
        %1127 = vmatprep.mubr.f32.mxu0 0.0
        %1128 = vmatmul.mubr.f32.gmra.mrb[0].mxu0 %v773
        %v1129 = vpop.f32.mrb[0].mxu0
        %v1130 = vadd.f32 %v996, %v1129
        %v1131 = vpop.f32.mrb[0].mxu0
        %1132 = vmatprep.mubr.f32.mxu0 0.0
        %1133 = vmatmul.mubr.f32.gmra.mrb[0].mxu0 %v774
        %v1134 = vpop.f32.mrb[0].mxu0
        %v1135 = vadd.f32 %v996, %v1134
        %v1136 = vpop.f32.mrb[0].mxu0
        %1137 = vdwg.mxu0
        %v1138 = vld [vmem:[#allocation2] sm:$0x1]
        %v1140 = vlaneseq
        %v1141 = vshrl.u32 %v1140, 7
        %v1142 = vsub.s32 0, %v1141
        %v1143 = vrot.slane %v1138, %v1142
        %1145 = vmatprep.subr.mxu0 0.0
        %1146 = vmatpush1.msra.mxu0 %v812
        %1147 = vmatprep.subr.mxu0 0.0
        %1148 = vmatpush1.msra.mxu0 %v813
        %1149 = vmatprep.subr.mxu0 0.0
        %1150 = vmatpush1.msra.mxu0 %v814
        %1151 = vmatprep.subr.mxu0 0.0
        %1152 = vmatpush1.msra.mxu0 %v815
        %1153 = vmatprep.subr.mxu0 0.0
        %1154 = vmatpush1.msra.mxu0 %v816
        %1155 = vmatprep.subr.mxu0 0.0
        %1156 = vmatpush1.msra.mxu0 %v817
        %1157 = vmatprep.subr.mxu0 0.0
        %1158 = vmatpush1.msra.mxu0 %v818
        %1159 = vmatprep.subr.mxu0 0.0
        %1160 = vmatpush1.msra.mxu0 %v819
        %1161 = vmatprep.subr.mxu0 0.0
        %1162 = vmatpush1.msra.mxu0 %v820
        %1163 = vmatprep.subr.mxu0 0.0
        %1164 = vmatpush1.msra.mxu0 %v821
        %1165 = vmatprep.subr.mxu0 0.0
        %1166 = vmatpush1.msra.mxu0 %v822
        %1167 = vmatprep.subr.mxu0 0.0
        %1168 = vmatpush1.msra.mxu0 %v823
        %1169 = vmatprep.subr.mxu0 0.0
        %1170 = vmatpush1.msra.mxu0 %v824
        %1171 = vmatprep.subr.mxu0 0.0
        %1172 = vmatpush1.msra.mxu0 %v825
        %1173 = vmatprep.subr.mxu0 0.0
        %1174 = vmatpush1.msra.mxu0 %v826
        %1175 = vmatprep.subr.mxu0 0.0
        %1176 = vmatpush1.msra.mxu0 %v827
        %1177 = vmatprep.subr.mxu0 0.0
        %1178 = vmatpush1.msra.mxu0 0.0
        %1179 = vmatprep.subr.mxu0 0.0
        %1180 = vmatpush1.msra.mxu0 0.0
        %1181 = vmatprep.subr.mxu0 0.0
        %1182 = vmatpush1.msra.mxu0 0.0
        %1183 = vmatprep.subr.mxu0 0.0
        %1184 = vmatpush1.msra.mxu0 0.0
        %1185 = vmatprep.subr.mxu0 0.0
        %1186 = vmatpush1.msra.mxu0 0.0
        %1187 = vmatprep.subr.mxu0 0.0
        %1188 = vmatpush1.msra.mxu0 0.0
        %1189 = vmatprep.subr.mxu0 0.0
        %1190 = vmatpush1.msra.mxu0 0.0
        %1191 = vmatprep.subr.mxu0 0.0
        %1192 = vmatpush1.msra.mxu0 0.0
        %1193 = vmatprep.subr.mxu0 0.0
        %1194 = vmatpush1.msra.mxu0 0.0
        %1195 = vmatprep.subr.mxu0 0.0
        %1196 = vmatpush1.msra.mxu0 0.0
        %1197 = vmatprep.subr.mxu0 0.0
        %1198 = vmatpush1.msra.mxu0 0.0
        %1199 = vmatprep.subr.mxu0 0.0
        %1200 = vmatpush1.msra.mxu0 0.0
        %1201 = vmatprep.subr.mxu0 0.0
        %1202 = vmatpush1.msra.mxu0 0.0
        %1203 = vmatprep.subr.mxu0 0.0
        %1204 = vmatpush1.msra.mxu0 0.0
        %1205 = vmatprep.subr.mxu0 0.0
        %1206 = vmatpush1.msra.mxu0 0.0
        %1207 = vmatprep.subr.mxu0 0.0
        %1208 = vmatpush1.msra.mxu0 0.0
        %1209 = vmatprep.mubr.f32.mxu0 0.0
        %1210 = vmatmul.mubr.f32.gmra.mrb[0].mxu0 %v760
        %v1211 = vpop.f32.mrb[0].mxu0
        %v1212 = vadd.f32 %v1143, %v1211
        %v1213 = vpop.f32.mrb[0].mxu0
        %1214 = vmatprep.mubr.f32.mxu0 0.0
        %1215 = vmatmul.mubr.f32.gmra.mrb[0].mxu0 %v761
        %v1216 = vpop.f32.mrb[0].mxu0
        %v1217 = vadd.f32 %v1143, %v1216
        %v1218 = vpop.f32.mrb[0].mxu0
        %1219 = vmatprep.mubr.f32.mxu0 0.0
        %1220 = vmatmul.mubr.f32.gmra.mrb[0].mxu0 %v762
        %v1221 = vpop.f32.mrb[0].mxu0
        %v1222 = vadd.f32 %v1143, %v1221
        %v1223 = vpop.f32.mrb[0].mxu0
        %1224 = vmatprep.mubr.f32.mxu0 0.0
        %1225 = vmatmul.mubr.f32.gmra.mrb[0].mxu0 %v763
        %v1226 = vpop.f32.mrb[0].mxu0
        %v1227 = vadd.f32 %v1143, %v1226
        %v1228 = vpop.f32.mrb[0].mxu0
        %1229 = vmatprep.mubr.f32.mxu0 0.0
        %1230 = vmatmul.mubr.f32.gmra.mrb[0].mxu0 %v764
        %v1231 = vpop.f32.mrb[0].mxu0
        %v1232 = vadd.f32 %v1143, %v1231
        %v1233 = vpop.f32.mrb[0].mxu0
        %1234 = vmatprep.mubr.f32.mxu0 0.0
        %1235 = vmatmul.mubr.f32.gmra.mrb[0].mxu0 %v765
        %v1236 = vpop.f32.mrb[0].mxu0
        %v1237 = vadd.f32 %v1143, %v1236
        %v1238 = vpop.f32.mrb[0].mxu0
        %1239 = vmatprep.mubr.f32.mxu0 0.0
        %1240 = vmatmul.mubr.f32.gmra.mrb[0].mxu0 %v766
        %v1241 = vpop.f32.mrb[0].mxu0
        %v1242 = vadd.f32 %v1143, %v1241
        %v1243 = vpop.f32.mrb[0].mxu0
        %1244 = vmatprep.mubr.f32.mxu0 0.0
        %1245 = vmatmul.mubr.f32.gmra.mrb[0].mxu0 %v767
        %v1246 = vpop.f32.mrb[0].mxu0
        %v1247 = vadd.f32 %v1143, %v1246
        %v1248 = vpop.f32.mrb[0].mxu0
        %1249 = vmatprep.mubr.f32.mxu0 0.0
        %1250 = vmatmul.mubr.f32.gmra.mrb[0].mxu0 %v768
        %v1251 = vpop.f32.mrb[0].mxu0
        %v1252 = vadd.f32 %v1143, %v1251
        %v1253 = vpop.f32.mrb[0].mxu0
        %1254 = vmatprep.mubr.f32.mxu0 0.0
        %1255 = vmatmul.mubr.f32.gmra.mrb[0].mxu0 %v769
        %v1256 = vpop.f32.mrb[0].mxu0
        %v1257 = vadd.f32 %v1143, %v1256
        %v1258 = vpop.f32.mrb[0].mxu0
        %1259 = vmatprep.mubr.f32.mxu0 0.0
        %1260 = vmatmul.mubr.f32.gmra.mrb[0].mxu0 %v770
        %v1261 = vpop.f32.mrb[0].mxu0
        %v1262 = vadd.f32 %v1143, %v1261
        %v1263 = vpop.f32.mrb[0].mxu0
        %1264 = vmatprep.mubr.f32.mxu0 0.0
        %1265 = vmatmul.mubr.f32.gmra.mrb[0].mxu0 %v771
        %v1266 = vpop.f32.mrb[0].mxu0
        %v1267 = vadd.f32 %v1143, %v1266
        %v1268 = vpop.f32.mrb[0].mxu0
        %1269 = vmatprep.mubr.f32.mxu0 0.0
        %1270 = vmatmul.mubr.f32.gmra.mrb[0].mxu0 %v772
        %v1271 = vpop.f32.mrb[0].mxu0
        %v1272 = vadd.f32 %v1143, %v1271
        %v1273 = vpop.f32.mrb[0].mxu0
        %1274 = vmatprep.mubr.f32.mxu0 0.0
        %1275 = vmatmul.mubr.f32.gmra.mrb[0].mxu0 %v773
        %v1276 = vpop.f32.mrb[0].mxu0
        %v1277 = vadd.f32 %v1143, %v1276
        %v1278 = vpop.f32.mrb[0].mxu0
        %1279 = vmatprep.mubr.f32.mxu0 0.0
        %1280 = vmatmul.mubr.f32.gmra.mrb[0].mxu0 %v774
        %v1281 = vpop.f32.mrb[0].mxu0
        %v1282 = vadd.f32 %v1143, %v1281
        %v1283 = vpop.f32.mrb[0].mxu0
        %1284 = vdwg.mxu0
        %vm1285 = vcmask 261120
        %v1287 = vsel %vm1285, %v918, 0
        %v1290 = vsel %vm1285, %v923, 0
        %v1293 = vsel %vm1285, %v928, 0
        %v1296 = vsel %vm1285, %v933, 0
        %v1299 = vsel %vm1285, %v938, 0
        %v1302 = vsel %vm1285, %v943, 0
        %v1305 = vsel %vm1285, %v948, 0
        %v1308 = vsel %vm1285, %v953, 0
        %v1311 = vsel %vm1285, %v958, 0
        %v1314 = vsel %vm1285, %v963, 0
        %v1317 = vsel %vm1285, %v968, 0
        %v1320 = vsel %vm1285, %v973, 0
        %v1323 = vsel %vm1285, %v978, 0
        %v1326 = vsel %vm1285, %v983, 0
        %v1329 = vsel %vm1285, %v988, 0
        %v1332 = vsel %vm1285, %v1065, 0
        %v1335 = vsel %vm1285, %v1070, 0
        %v1338 = vsel %vm1285, %v1075, 0
        %v1341 = vsel %vm1285, %v1080, 0
        %v1344 = vsel %vm1285, %v1085, 0
        %v1347 = vsel %vm1285, %v1090, 0
        %v1350 = vsel %vm1285, %v1095, 0
        %v1353 = vsel %vm1285, %v1100, 0
        %v1356 = vsel %vm1285, %v1105, 0
        %v1359 = vsel %vm1285, %v1110, 0
        %v1362 = vsel %vm1285, %v1115, 0
        %v1365 = vsel %vm1285, %v1120, 0
        %v1368 = vsel %vm1285, %v1125, 0
        %v1371 = vsel %vm1285, %v1130, 0
        %v1374 = vsel %vm1285, %v1135, 0
        %1376 = vmatprep.subr.mxu0 0.0
        %1377 = vmatpush1.xpose.msra.mxu0 %v1332
        %1378 = vmatprep.subr.mxu0 0.0
        %1379 = vmatpush1.xpose.msra.mxu0 %v1335
        %1380 = vmatprep.subr.mxu0 0.0
        %1381 = vmatpush1.xpose.msra.mxu0 %v1338
        %1382 = vmatprep.subr.mxu0 0.0
        %1383 = vmatpush1.xpose.msra.mxu0 %v1341
        %1384 = vmatprep.subr.mxu0 0.0
        %1385 = vmatpush1.xpose.msra.mxu0 %v1344
        %1386 = vmatprep.subr.mxu0 0.0
        %1387 = vmatpush1.xpose.msra.mxu0 %v1347
        %1388 = vmatprep.subr.mxu0 0.0
        %1389 = vmatpush1.xpose.msra.mxu0 %v1350
        %1390 = vmatprep.subr.mxu0 0.0
        %1391 = vmatpush1.xpose.msra.mxu0 %v1353
        %1392 = vmatprep.subr.mxu0 0.0
        %1393 = vmatpush1.xpose.msra.mxu0 %v1356
        %1394 = vmatprep.subr.mxu0 0.0
        %1395 = vmatpush1.xpose.msra.mxu0 %v1359
        %1396 = vmatprep.subr.mxu0 0.0
        %1397 = vmatpush1.xpose.msra.mxu0 %v1362
        %1398 = vmatprep.subr.mxu0 0.0
        %1399 = vmatpush1.xpose.msra.mxu0 %v1365
        %1400 = vmatprep.subr.mxu0 0.0
        %1401 = vmatpush1.xpose.msra.mxu0 %v1368
        %1402 = vmatprep.subr.mxu0 0.0
        %1403 = vmatpush1.xpose.msra.mxu0 %v1371
        %1404 = vmatprep.subr.mxu0 0.0
        %1405 = vmatpush1.xpose.msra.mxu0 %v1374
        %1406 = vmatprep.subr.mxu0 0.0
        %1407 = vmatpush1.xpose.msra.mxu0 0.0
        %1408 = vmatprep.subr.mxu0 0.0
        %1409 = vmatpush1.xpose.msra.mxu0 0.0
        %1410 = vmatprep.subr.mxu0 0.0
        %1411 = vmatpush1.xpose.msra.mxu0 0.0
        %1412 = vmatprep.subr.mxu0 0.0
        %1413 = vmatpush1.xpose.msra.mxu0 0.0
        %1414 = vmatprep.subr.mxu0 0.0
        %1415 = vmatpush1.xpose.msra.mxu0 0.0
        %1416 = vmatprep.subr.mxu0 0.0
        %1417 = vmatpush1.xpose.msra.mxu0 0.0
        %1418 = vmatprep.subr.mxu0 0.0
        %1419 = vmatpush1.xpose.msra.mxu0 0.0
        %1420 = vmatprep.subr.mxu0 0.0
        %1421 = vmatpush1.xpose.msra.mxu0 0.0
        %1422 = vmatprep.subr.mxu0 0.0
        %1423 = vmatpush1.xpose.msra.mxu0 0.0
        %1424 = vmatprep.subr.mxu0 0.0
        %1425 = vmatpush1.xpose.msra.mxu0 0.0
        %1426 = vmatprep.subr.mxu0 0.0
        %1427 = vmatpush1.xpose.msra.mxu0 0.0
        %1428 = vmatprep.subr.mxu0 0.0
        %1429 = vmatpush1.xpose.msra.mxu0 0.0
        %1430 = vmatprep.subr.mxu0 0.0
        %1431 = vmatpush1.xpose.msra.mxu0 0.0
        %1432 = vmatprep.subr.mxu0 0.0
        %1433 = vmatpush1.xpose.msra.mxu0 0.0
        %1434 = vmatprep.subr.mxu0 0.0
        %1435 = vmatpush1.xpose.msra.mxu0 0.0
        %1436 = vmatprep.subr.mxu0 0.0
        %1437 = vmatpush1.xpose.msra.mxu0 0.0
        %1438 = vmatprep.subr.mxu0 0.0
        %1439 = vmatpush1.xpose.msra.mxu0 0.0
        %1440 = vmatprep.mubr.f32.mxu0 0.0
        %1441 = vmatmul.mubr.f32.gmra.mrb[0].mxu0 %v1287
        %v1442 = vpop.f32.mrb[0].mxu0
        %v1443 = vadd.f32 0.0, %v1442
        %v1444 = vpop.f32.mrb[0].mxu0
        %1445 = vmatprep.mubr.f32.mxu0 0.0
        %1446 = vmatmul.mubr.f32.gmra.mrb[0].mxu0 %v1290
        %v1447 = vpop.f32.mrb[0].mxu0
        %v1448 = vadd.f32 0.0, %v1447
        %v1449 = vpop.f32.mrb[0].mxu0
        %1450 = vmatprep.mubr.f32.mxu0 0.0
        %1451 = vmatmul.mubr.f32.gmra.mrb[0].mxu0 %v1293
        %v1452 = vpop.f32.mrb[0].mxu0
        %v1453 = vadd.f32 0.0, %v1452
        %v1454 = vpop.f32.mrb[0].mxu0
        %1455 = vmatprep.mubr.f32.mxu0 0.0
        %1456 = vmatmul.mubr.f32.gmra.mrb[0].mxu0 %v1296
        %v1457 = vpop.f32.mrb[0].mxu0
        %v1458 = vadd.f32 0.0, %v1457
        %v1459 = vpop.f32.mrb[0].mxu0
        %1460 = vmatprep.mubr.f32.mxu0 0.0
        %1461 = vmatmul.mubr.f32.gmra.mrb[0].mxu0 %v1299
        %v1462 = vpop.f32.mrb[0].mxu0
        %v1463 = vadd.f32 0.0, %v1462
        %v1464 = vpop.f32.mrb[0].mxu0
        %1465 = vmatprep.mubr.f32.mxu0 0.0
        %1466 = vmatmul.mubr.f32.gmra.mrb[0].mxu0 %v1302
        %v1467 = vpop.f32.mrb[0].mxu0
        %v1468 = vadd.f32 0.0, %v1467
        %v1469 = vpop.f32.mrb[0].mxu0
        %1470 = vmatprep.mubr.f32.mxu0 0.0
        %1471 = vmatmul.mubr.f32.gmra.mrb[0].mxu0 %v1305
        %v1472 = vpop.f32.mrb[0].mxu0
        %v1473 = vadd.f32 0.0, %v1472
        %v1474 = vpop.f32.mrb[0].mxu0
        %1475 = vmatprep.mubr.f32.mxu0 0.0
        %1476 = vmatmul.mubr.f32.gmra.mrb[0].mxu0 %v1308
        %v1477 = vpop.f32.mrb[0].mxu0
        %v1478 = vadd.f32 0.0, %v1477
        %v1479 = vpop.f32.mrb[0].mxu0
        %1480 = vmatprep.mubr.f32.mxu0 0.0
        %1481 = vmatmul.mubr.f32.gmra.mrb[0].mxu0 %v1311
        %v1482 = vpop.f32.mrb[0].mxu0
        %v1483 = vadd.f32 0.0, %v1482
        %v1484 = vpop.f32.mrb[0].mxu0
        %1485 = vmatprep.mubr.f32.mxu0 0.0
        %1486 = vmatmul.mubr.f32.gmra.mrb[0].mxu0 %v1314
        %v1487 = vpop.f32.mrb[0].mxu0
        %v1488 = vadd.f32 0.0, %v1487
        %v1489 = vpop.f32.mrb[0].mxu0
        %1490 = vmatprep.mubr.f32.mxu0 0.0
        %1491 = vmatmul.mubr.f32.gmra.mrb[0].mxu0 %v1317
        %v1492 = vpop.f32.mrb[0].mxu0
        %v1493 = vadd.f32 0.0, %v1492
        %v1494 = vpop.f32.mrb[0].mxu0
        %1495 = vmatprep.mubr.f32.mxu0 0.0
        %1496 = vmatmul.mubr.f32.gmra.mrb[0].mxu0 %v1320
        %v1497 = vpop.f32.mrb[0].mxu0
        %v1498 = vadd.f32 0.0, %v1497
        %v1499 = vpop.f32.mrb[0].mxu0
        %1500 = vmatprep.mubr.f32.mxu0 0.0
        %1501 = vmatmul.mubr.f32.gmra.mrb[0].mxu0 %v1323
        %v1502 = vpop.f32.mrb[0].mxu0
        %v1503 = vadd.f32 0.0, %v1502
        %v1504 = vpop.f32.mrb[0].mxu0
        %1505 = vmatprep.mubr.f32.mxu0 0.0
        %1506 = vmatmul.mubr.f32.gmra.mrb[0].mxu0 %v1326
        %v1507 = vpop.f32.mrb[0].mxu0
        %v1508 = vadd.f32 0.0, %v1507
        %v1509 = vpop.f32.mrb[0].mxu0
        %1510 = vmatprep.mubr.f32.mxu0 0.0
        %1511 = vmatmul.mubr.f32.gmra.mrb[0].mxu0 %v1329
        %v1512 = vpop.f32.mrb[0].mxu0
        %v1513 = vadd.f32 0.0, %v1512
        %v1514 = vpop.f32.mrb[0].mxu0
        %1515 = vdwg.mxu0
        %v1516 = vmul.f32 %v1443, 0.17677669
        %v1517 = vmul.f32 %v1448, 0.17677669
        %v1518 = vmul.f32 %v1453, 0.17677669
        %v1519 = vmul.f32 %v1458, 0.17677669
        %v1520 = vmul.f32 %v1463, 0.17677669
        %v1521 = vmul.f32 %v1468, 0.17677669
        %v1522 = vmul.f32 %v1473, 0.17677669
        %v1523 = vmul.f32 %v1478, 0.17677669
        %v1524 = vmul.f32 %v1483, 0.17677669
        %v1525 = vmul.f32 %v1488, 0.17677669
        %v1526 = vmul.f32 %v1493, 0.17677669
        %v1527 = vmul.f32 %v1498, 0.17677669
        %v1528 = vmul.f32 %v1503, 0.17677669
        %v1529 = vmul.f32 %v1508, 0.17677669
        %v1530 = vmul.f32 %v1513, 0.17677669
        %vm1531 = vcmask 949248
        %v1532 = vsel %vm1531, %v1516, -inf
        %1533 = vmax.xlane.f32.xlu0 %v1532
        %v1534 = vpop.xlane.xlu0 %1533
        %v1535 = vsel %vm1531, %v1517, -inf
        %1536 = vmax.xlane.f32.xlu0 %v1535
        %v1537 = vpop.xlane.xlu0 %1536
        %v1538 = vsel %vm1531, %v1518, -inf
        %1539 = vmax.xlane.f32.xlu0 %v1538
        %v1540 = vpop.xlane.xlu0 %1539
        %v1541 = vsel %vm1531, %v1519, -inf
        %1542 = vmax.xlane.f32.xlu0 %v1541
        %v1543 = vpop.xlane.xlu0 %1542
        %v1544 = vsel %vm1531, %v1520, -inf
        %1545 = vmax.xlane.f32.xlu0 %v1544
        %v1546 = vpop.xlane.xlu0 %1545
        %v1547 = vsel %vm1531, %v1521, -inf
        %1548 = vmax.xlane.f32.xlu0 %v1547
        %v1549 = vpop.xlane.xlu0 %1548
        %v1550 = vsel %vm1531, %v1522, -inf
        %1551 = vmax.xlane.f32.xlu0 %v1550
        %v1552 = vpop.xlane.xlu0 %1551
        %v1553 = vsel %vm1531, %v1523, -inf
        %1554 = vmax.xlane.f32.xlu0 %v1553
        %v1555 = vpop.xlane.xlu0 %1554
        %v1556 = vsel %vm1531, %v1524, -inf
        %1557 = vmax.xlane.f32.xlu0 %v1556
        %v1558 = vpop.xlane.xlu0 %1557
        %v1559 = vsel %vm1531, %v1525, -inf
        %1560 = vmax.xlane.f32.xlu0 %v1559
        %v1561 = vpop.xlane.xlu0 %1560
        %v1562 = vsel %vm1531, %v1526, -inf
        %1563 = vmax.xlane.f32.xlu0 %v1562
        %v1564 = vpop.xlane.xlu0 %1563
        %v1565 = vsel %vm1531, %v1527, -inf
        %1566 = vmax.xlane.f32.xlu0 %v1565
        %v1567 = vpop.xlane.xlu0 %1566
        %v1568 = vsel %vm1531, %v1528, -inf
        %1569 = vmax.xlane.f32.xlu0 %v1568
        %v1570 = vpop.xlane.xlu0 %1569
        %v1571 = vsel %vm1531, %v1529, -inf
        %1572 = vmax.xlane.f32.xlu0 %v1571
        %v1573 = vpop.xlane.xlu0 %1572
        %vm1574 = vcmask 945152
        %v1575 = vsel %vm1574, %v1530, -inf
        %1576 = vmax.xlane.f32.xlu0 %v1575
        %v1577 = vpop.xlane.xlu0 %1576
        %v1578 = vsub.f32 %v1516, %v1534
        %v1579 = vsub.f32 %v1517, %v1537
        %v1580 = vsub.f32 %v1518, %v1540
        %v1581 = vsub.f32 %v1519, %v1543
        %v1582 = vsub.f32 %v1520, %v1546
        %v1583 = vsub.f32 %v1521, %v1549
        %v1584 = vsub.f32 %v1522, %v1552
        %v1585 = vsub.f32 %v1523, %v1555
        %v1586 = vsub.f32 %v1524, %v1558
        %v1587 = vsub.f32 %v1525, %v1561
        %v1588 = vsub.f32 %v1526, %v1564
        %v1589 = vsub.f32 %v1527, %v1567
        %v1590 = vsub.f32 %v1528, %v1570
        %v1591 = vsub.f32 %v1529, %v1573
        %v1592 = vsub.f32 %v1530, %v1577
        %v1593 = vmul.f32 %v1578, 1.442695
        %v1594 = vpow.pop %v1593
        %v1595 = vmul.f32 %v1579, 1.442695
        %v1596 = vpow.pop %v1595
        %v1597 = vmul.f32 %v1580, 1.442695
        %v1598 = vpow.pop %v1597
        %v1599 = vmul.f32 %v1581, 1.442695
        %v1600 = vpow.pop %v1599
        %v1601 = vmul.f32 %v1582, 1.442695
        %v1602 = vpow.pop %v1601
        %v1603 = vmul.f32 %v1583, 1.442695
        %v1604 = vpow.pop %v1603
        %v1605 = vmul.f32 %v1584, 1.442695
        %v1606 = vpow.pop %v1605
        %v1607 = vmul.f32 %v1585, 1.442695
        %v1608 = vpow.pop %v1607
        %v1609 = vmul.f32 %v1586, 1.442695
        %v1610 = vpow.pop %v1609
        %v1611 = vmul.f32 %v1587, 1.442695
        %v1612 = vpow.pop %v1611
        %v1613 = vmul.f32 %v1588, 1.442695
        %v1614 = vpow.pop %v1613
        %v1615 = vmul.f32 %v1589, 1.442695
        %v1616 = vpow.pop %v1615
        %v1617 = vmul.f32 %v1590, 1.442695
        %v1618 = vpow.pop %v1617
        %v1619 = vmul.f32 %v1591, 1.442695
        %v1620 = vpow.pop %v1619
        %v1621 = vmul.f32 %v1592, 1.442695
        %v1622 = vpow.pop %v1621
        %v1623 = vsel %vm1531, %v1594, 0.0
        %1624 = vadd.xlane.f32.xlu0 %v1623
        %v1625 = vpop.xlane.xlu0 %1624
        %v1626 = vsel %vm1531, %v1596, 0.0
        %1627 = vadd.xlane.f32.xlu0 %v1626
        %v1628 = vpop.xlane.xlu0 %1627
        %v1629 = vsel %vm1531, %v1598, 0.0
        %1630 = vadd.xlane.f32.xlu0 %v1629
        %v1631 = vpop.xlane.xlu0 %1630
        %v1632 = vsel %vm1531, %v1600, 0.0
        %1633 = vadd.xlane.f32.xlu0 %v1632
        %v1634 = vpop.xlane.xlu0 %1633
        %v1635 = vsel %vm1531, %v1602, 0.0
        %1636 = vadd.xlane.f32.xlu0 %v1635
        %v1637 = vpop.xlane.xlu0 %1636
        %v1638 = vsel %vm1531, %v1604, 0.0
        %1639 = vadd.xlane.f32.xlu0 %v1638
        %v1640 = vpop.xlane.xlu0 %1639
        %v1641 = vsel %vm1531, %v1606, 0.0
        %1642 = vadd.xlane.f32.xlu0 %v1641
        %v1643 = vpop.xlane.xlu0 %1642
        %v1644 = vsel %vm1531, %v1608, 0.0
        %1645 = vadd.xlane.f32.xlu0 %v1644
        %v1646 = vpop.xlane.xlu0 %1645
        %v1647 = vsel %vm1531, %v1610, 0.0
        %1648 = vadd.xlane.f32.xlu0 %v1647
        %v1649 = vpop.xlane.xlu0 %1648
        %v1650 = vsel %vm1531, %v1612, 0.0
        %1651 = vadd.xlane.f32.xlu0 %v1650
        %v1652 = vpop.xlane.xlu0 %1651
        %v1653 = vsel %vm1531, %v1614, 0.0
        %1654 = vadd.xlane.f32.xlu0 %v1653
        %v1655 = vpop.xlane.xlu0 %1654
        %v1656 = vsel %vm1531, %v1616, 0.0
        %1657 = vadd.xlane.f32.xlu0 %v1656
        %v1658 = vpop.xlane.xlu0 %1657
        %v1659 = vsel %vm1531, %v1618, 0.0
        %1660 = vadd.xlane.f32.xlu0 %v1659
        %v1661 = vpop.xlane.xlu0 %1660
        %v1662 = vsel %vm1531, %v1620, 0.0
        %1663 = vadd.xlane.f32.xlu0 %v1662
        %v1664 = vpop.xlane.xlu0 %1663
        %v1665 = vsel %vm1574, %v1622, 0.0
        %1666 = vadd.xlane.f32.xlu0 %v1665
        %v1667 = vpop.xlane.xlu0 %1666
        %v1668 = vrcp.pop %v1625
        %v1669 = vrcp.pop %v1628
        %v1670 = vrcp.pop %v1631
        %v1671 = vrcp.pop %v1634
        %v1672 = vrcp.pop %v1637
        %v1673 = vrcp.pop %v1640
        %v1674 = vrcp.pop %v1643
        %v1675 = vrcp.pop %v1646
        %v1676 = vrcp.pop %v1649
        %v1677 = vrcp.pop %v1652
        %v1678 = vrcp.pop %v1655
        %v1679 = vrcp.pop %v1658
        %v1680 = vrcp.pop %v1661
        %v1681 = vrcp.pop %v1664
        %v1682 = vrcp.pop %v1667
        %v1683 = vmul.f32 %v1594, %v1668
        %v1684 = vmul.f32 %v1596, %v1669
        %v1685 = vmul.f32 %v1598, %v1670
        %v1686 = vmul.f32 %v1600, %v1671
        %v1687 = vmul.f32 %v1602, %v1672
        %v1688 = vmul.f32 %v1604, %v1673
        %v1689 = vmul.f32 %v1606, %v1674
        %v1690 = vmul.f32 %v1608, %v1675
        %v1691 = vmul.f32 %v1610, %v1676
        %v1692 = vmul.f32 %v1612, %v1677
        %v1693 = vmul.f32 %v1614, %v1678
        %v1694 = vmul.f32 %v1616, %v1679
        %v1695 = vmul.f32 %v1618, %v1680
        %v1696 = vmul.f32 %v1620, %v1681
        %v1697 = vmul.f32 %v1622, %v1682
        %v1699 = vsel %vm1531, %v1683, 0
        %v1702 = vsel %vm1531, %v1684, 0
        %v1705 = vsel %vm1531, %v1685, 0
        %v1708 = vsel %vm1531, %v1686, 0
        %v1711 = vsel %vm1531, %v1687, 0
        %v1714 = vsel %vm1531, %v1688, 0
        %v1717 = vsel %vm1531, %v1689, 0
        %v1720 = vsel %vm1531, %v1690, 0
        %v1723 = vsel %vm1531, %v1691, 0
        %v1726 = vsel %vm1531, %v1692, 0
        %v1729 = vsel %vm1531, %v1693, 0
        %v1732 = vsel %vm1531, %v1694, 0
        %v1735 = vsel %vm1531, %v1695, 0
        %v1738 = vsel %vm1531, %v1696, 0
        %v1741 = vsel %vm1531, %v1697, 0
        %vm1743 = vcmask 1043456
        %v1745 = vsel %vm1743, %v1282, 0
        %1747 = vmatprep.subr.mxu0 0.0
        %1748 = vmatpush1.msra.mxu0 %v1212
        %1749 = vmatprep.subr.mxu0 0.0
        %1750 = vmatpush1.msra.mxu0 %v1217
        %1751 = vmatprep.subr.mxu0 0.0
        %1752 = vmatpush1.msra.mxu0 %v1222
        %1753 = vmatprep.subr.mxu0 0.0
        %1754 = vmatpush1.msra.mxu0 %v1227
        %1755 = vmatprep.subr.mxu0 0.0
        %1756 = vmatpush1.msra.mxu0 %v1232
        %1757 = vmatprep.subr.mxu0 0.0
        %1758 = vmatpush1.msra.mxu0 %v1237
        %1759 = vmatprep.subr.mxu0 0.0
        %1760 = vmatpush1.msra.mxu0 %v1242
        %1761 = vmatprep.subr.mxu0 0.0
        %1762 = vmatpush1.msra.mxu0 %v1247
        %1763 = vmatprep.subr.mxu0 0.0
        %1764 = vmatpush1.msra.mxu0 %v1252
        %1765 = vmatprep.subr.mxu0 0.0
        %1766 = vmatpush1.msra.mxu0 %v1257
        %1767 = vmatprep.subr.mxu0 0.0
        %1768 = vmatpush1.msra.mxu0 %v1262
        %1769 = vmatprep.subr.mxu0 0.0
        %1770 = vmatpush1.msra.mxu0 %v1267
        %1771 = vmatprep.subr.mxu0 0.0
        %1772 = vmatpush1.msra.mxu0 %v1272
        %1773 = vmatprep.subr.mxu0 0.0
        %1774 = vmatpush1.msra.mxu0 %v1277
        %1775 = vmatprep.subr.mxu0 0.0
        %1776 = vmatpush1.msra.mxu0 %v1745
        %1777 = vmatprep.subr.mxu0 0.0
        %1778 = vmatpush1.msra.mxu0 0.0
        %1779 = vmatprep.subr.mxu0 0.0
        %1780 = vmatpush1.msra.mxu0 0.0
        %1781 = vmatprep.subr.mxu0 0.0
        %1782 = vmatpush1.msra.mxu0 0.0
        %1783 = vmatprep.subr.mxu0 0.0
        %1784 = vmatpush1.msra.mxu0 0.0
        %1785 = vmatprep.subr.mxu0 0.0
        %1786 = vmatpush1.msra.mxu0 0.0
        %1787 = vmatprep.subr.mxu0 0.0
        %1788 = vmatpush1.msra.mxu0 0.0
        %1789 = vmatprep.subr.mxu0 0.0
        %1790 = vmatpush1.msra.mxu0 0.0
        %1791 = vmatprep.subr.mxu0 0.0
        %1792 = vmatpush1.msra.mxu0 0.0
        %1793 = vmatprep.subr.mxu0 0.0
        %1794 = vmatpush1.msra.mxu0 0.0
        %1795 = vmatprep.subr.mxu0 0.0
        %1796 = vmatpush1.msra.mxu0 0.0
        %1797 = vmatprep.subr.mxu0 0.0
        %1798 = vmatpush1.msra.mxu0 0.0
        %1799 = vmatprep.subr.mxu0 0.0
        %1800 = vmatpush1.msra.mxu0 0.0
        %1801 = vmatprep.subr.mxu0 0.0
        %1802 = vmatpush1.msra.mxu0 0.0
        %1803 = vmatprep.subr.mxu0 0.0
        %1804 = vmatpush1.msra.mxu0 0.0
        %1805 = vmatprep.subr.mxu0 0.0
        %1806 = vmatpush1.msra.mxu0 0.0
        %1807 = vmatprep.subr.mxu0 0.0
        %1808 = vmatpush1.msra.mxu0 0.0
        %1809 = vmatprep.subr.mxu0 0.0
        %1810 = vmatpush1.msra.mxu0 0.0
        %1811 = vmatprep.mubr.f32.mxu0 0.0
        %1812 = vmatmul.mubr.f32.gmra.mrb[0].mxu0 %v1699
        %v1813 = vpop.f32.mrb[0].mxu0
        %v1814 = vadd.f32 0.0, %v1813
        %v1815 = vpop.f32.mrb[0].mxu0
        %1816 = vmatprep.mubr.f32.mxu0 0.0
        %1817 = vmatmul.mubr.f32.gmra.mrb[0].mxu0 %v1702
        %v1818 = vpop.f32.mrb[0].mxu0
        %v1819 = vadd.f32 0.0, %v1818
        %v1820 = vpop.f32.mrb[0].mxu0
        %1821 = vmatprep.mubr.f32.mxu0 0.0
        %1822 = vmatmul.mubr.f32.gmra.mrb[0].mxu0 %v1705
        %v1823 = vpop.f32.mrb[0].mxu0
        %v1824 = vadd.f32 0.0, %v1823
        %v1825 = vpop.f32.mrb[0].mxu0
        %1826 = vmatprep.mubr.f32.mxu0 0.0
        %1827 = vmatmul.mubr.f32.gmra.mrb[0].mxu0 %v1708
        %v1828 = vpop.f32.mrb[0].mxu0
        %v1829 = vadd.f32 0.0, %v1828
        %v1830 = vpop.f32.mrb[0].mxu0
        %1831 = vmatprep.mubr.f32.mxu0 0.0
        %1832 = vmatmul.mubr.f32.gmra.mrb[0].mxu0 %v1711
        %v1833 = vpop.f32.mrb[0].mxu0
        %v1834 = vadd.f32 0.0, %v1833
        %v1835 = vpop.f32.mrb[0].mxu0
        %1836 = vmatprep.mubr.f32.mxu0 0.0
        %1837 = vmatmul.mubr.f32.gmra.mrb[0].mxu0 %v1714
        %v1838 = vpop.f32.mrb[0].mxu0
        %v1839 = vadd.f32 0.0, %v1838
        %v1840 = vpop.f32.mrb[0].mxu0
        %1841 = vmatprep.mubr.f32.mxu0 0.0
        %1842 = vmatmul.mubr.f32.gmra.mrb[0].mxu0 %v1717
        %v1843 = vpop.f32.mrb[0].mxu0
        %v1844 = vadd.f32 0.0, %v1843
        %v1845 = vpop.f32.mrb[0].mxu0
        %1846 = vmatprep.mubr.f32.mxu0 0.0
        %1847 = vmatmul.mubr.f32.gmra.mrb[0].mxu0 %v1720
        %v1848 = vpop.f32.mrb[0].mxu0
        %v1849 = vadd.f32 0.0, %v1848
        %v1850 = vpop.f32.mrb[0].mxu0
        %1851 = vmatprep.mubr.f32.mxu0 0.0
        %1852 = vmatmul.mubr.f32.gmra.mrb[0].mxu0 %v1723
        %v1853 = vpop.f32.mrb[0].mxu0
        %v1854 = vadd.f32 0.0, %v1853
        %v1855 = vpop.f32.mrb[0].mxu0
        %1856 = vmatprep.mubr.f32.mxu0 0.0
        %1857 = vmatmul.mubr.f32.gmra.mrb[0].mxu0 %v1726
        %v1858 = vpop.f32.mrb[0].mxu0
        %v1859 = vadd.f32 0.0, %v1858
        %v1860 = vpop.f32.mrb[0].mxu0
        %1861 = vmatprep.mubr.f32.mxu0 0.0
        %1862 = vmatmul.mubr.f32.gmra.mrb[0].mxu0 %v1729
        %v1863 = vpop.f32.mrb[0].mxu0
        %v1864 = vadd.f32 0.0, %v1863
        %v1865 = vpop.f32.mrb[0].mxu0
        %1866 = vmatprep.mubr.f32.mxu0 0.0
        %1867 = vmatmul.mubr.f32.gmra.mrb[0].mxu0 %v1732
        %v1868 = vpop.f32.mrb[0].mxu0
        %v1869 = vadd.f32 0.0, %v1868
        %v1870 = vpop.f32.mrb[0].mxu0
        %1871 = vmatprep.mubr.f32.mxu0 0.0
        %1872 = vmatmul.mubr.f32.gmra.mrb[0].mxu0 %v1735
        %v1873 = vpop.f32.mrb[0].mxu0
        %v1874 = vadd.f32 0.0, %v1873
        %v1875 = vpop.f32.mrb[0].mxu0
        %1876 = vmatprep.mubr.f32.mxu0 0.0
        %1877 = vmatmul.mubr.f32.gmra.mrb[0].mxu0 %v1738
        %v1878 = vpop.f32.mrb[0].mxu0
        %v1879 = vadd.f32 0.0, %v1878
        %v1880 = vpop.f32.mrb[0].mxu0
        %1881 = vmatprep.mubr.f32.mxu0 0.0
        %1882 = vmatmul.mubr.f32.gmra.mrb[0].mxu0 %v1741
        %v1883 = vpop.f32.mrb[0].mxu0
        %v1884 = vadd.f32 0.0, %v1883
        %v1885 = vpop.f32.mrb[0].mxu0
        %1886 = vdwg.mxu0
        %1887 = vrot.lane.b32.xlu0 %v918, 96
        %v1888 = vpop.permute.xlu0 %1887
        %1889 = vrot.lane.b32.xlu0 %v923, 96
        %v1890 = vpop.permute.xlu0 %1889
        %1891 = vrot.lane.b32.xlu0 %v928, 96
        %v1892 = vpop.permute.xlu0 %1891
        %1893 = vrot.lane.b32.xlu0 %v933, 96
        %v1894 = vpop.permute.xlu0 %1893
        %1895 = vrot.lane.b32.xlu0 %v938, 96
        %v1896 = vpop.permute.xlu0 %1895
        %1897 = vrot.lane.b32.xlu0 %v943, 96
        %v1898 = vpop.permute.xlu0 %1897
        %1899 = vrot.lane.b32.xlu0 %v948, 96
        %v1900 = vpop.permute.xlu0 %1899
        %1901 = vrot.lane.b32.xlu0 %v953, 96
        %v1902 = vpop.permute.xlu0 %1901
        %1903 = vrot.lane.b32.xlu0 %v958, 96
        %v1904 = vpop.permute.xlu0 %1903
        %1905 = vrot.lane.b32.xlu0 %v963, 96
        %v1906 = vpop.permute.xlu0 %1905
        %1907 = vrot.lane.b32.xlu0 %v968, 96
        %v1908 = vpop.permute.xlu0 %1907
        %1909 = vrot.lane.b32.xlu0 %v973, 96
        %v1910 = vpop.permute.xlu0 %1909
        %1911 = vrot.lane.b32.xlu0 %v978, 96
        %v1912 = vpop.permute.xlu0 %1911
        %1913 = vrot.lane.b32.xlu0 %v983, 96
        %v1914 = vpop.permute.xlu0 %1913
        %1915 = vrot.lane.b32.xlu0 %v988, 96
        %v1916 = vpop.permute.xlu0 %1915
        %1917 = vrot.lane.b32.xlu0 %v1065, 96
        %v1918 = vpop.permute.xlu0 %1917
        %1919 = vrot.lane.b32.xlu0 %v1070, 96
        %v1920 = vpop.permute.xlu0 %1919
        %1921 = vrot.lane.b32.xlu0 %v1075, 96
        %v1922 = vpop.permute.xlu0 %1921
        %1923 = vrot.lane.b32.xlu0 %v1080, 96
        %v1924 = vpop.permute.xlu0 %1923
        %1925 = vrot.lane.b32.xlu0 %v1085, 96
        %v1926 = vpop.permute.xlu0 %1925
        %1927 = vrot.lane.b32.xlu0 %v1090, 96
        %v1928 = vpop.permute.xlu0 %1927
        %1929 = vrot.lane.b32.xlu0 %v1095, 96
        %v1930 = vpop.permute.xlu0 %1929
        %1931 = vrot.lane.b32.xlu0 %v1100, 96
        %v1932 = vpop.permute.xlu0 %1931
        %1933 = vrot.lane.b32.xlu0 %v1105, 96
        %v1934 = vpop.permute.xlu0 %1933
        %1935 = vrot.lane.b32.xlu0 %v1110, 96
        %v1936 = vpop.permute.xlu0 %1935
        %1937 = vrot.lane.b32.xlu0 %v1115, 96
        %v1938 = vpop.permute.xlu0 %1937
        %1939 = vrot.lane.b32.xlu0 %v1120, 96
        %v1940 = vpop.permute.xlu0 %1939
        %1941 = vrot.lane.b32.xlu0 %v1125, 96
        %v1942 = vpop.permute.xlu0 %1941
        %1943 = vrot.lane.b32.xlu0 %v1130, 96
        %v1944 = vpop.permute.xlu0 %1943
        %1945 = vrot.lane.b32.xlu0 %v1135, 96
        %v1946 = vpop.permute.xlu0 %1945
        %v1947 = vsel %vm1285, %v1888, 0
        %v1949 = vsel %vm1285, %v1890, 0
        %v1951 = vsel %vm1285, %v1892, 0
        %v1953 = vsel %vm1285, %v1894, 0
        %v1955 = vsel %vm1285, %v1896, 0
        %v1957 = vsel %vm1285, %v1898, 0
        %v1959 = vsel %vm1285, %v1900, 0
        %v1961 = vsel %vm1285, %v1902, 0
        %v1963 = vsel %vm1285, %v1904, 0
        %v1965 = vsel %vm1285, %v1906, 0
        %v1967 = vsel %vm1285, %v1908, 0
        %v1969 = vsel %vm1285, %v1910, 0
        %v1971 = vsel %vm1285, %v1912, 0
        %v1973 = vsel %vm1285, %v1914, 0
        %v1975 = vsel %vm1285, %v1916, 0
        %v1977 = vsel %vm1285, %v1918, 0
        %v1979 = vsel %vm1285, %v1920, 0
        %v1981 = vsel %vm1285, %v1922, 0
        %v1983 = vsel %vm1285, %v1924, 0
        %v1985 = vsel %vm1285, %v1926, 0
        %v1987 = vsel %vm1285, %v1928, 0
        %v1989 = vsel %vm1285, %v1930, 0
        %v1991 = vsel %vm1285, %v1932, 0
        %v1993 = vsel %vm1285, %v1934, 0
        %v1995 = vsel %vm1285, %v1936, 0
        %v1997 = vsel %vm1285, %v1938, 0
        %v1999 = vsel %vm1285, %v1940, 0
        %v2001 = vsel %vm1285, %v1942, 0
        %v2003 = vsel %vm1285, %v1944, 0
        %v2005 = vsel %vm1285, %v1946, 0
        %2007 = vmatprep.subr.mxu0 0.0
        %2008 = vmatpush1.xpose.msra.mxu0 %v1977
        %2009 = vmatprep.subr.mxu0 0.0
        %2010 = vmatpush1.xpose.msra.mxu0 %v1979
        %2011 = vmatprep.subr.mxu0 0.0
        %2012 = vmatpush1.xpose.msra.mxu0 %v1981
        %2013 = vmatprep.subr.mxu0 0.0
        %2014 = vmatpush1.xpose.msra.mxu0 %v1983
        %2015 = vmatprep.subr.mxu0 0.0
        %2016 = vmatpush1.xpose.msra.mxu0 %v1985
        %2017 = vmatprep.subr.mxu0 0.0
        %2018 = vmatpush1.xpose.msra.mxu0 %v1987
        %2019 = vmatprep.subr.mxu0 0.0
        %2020 = vmatpush1.xpose.msra.mxu0 %v1989
        %2021 = vmatprep.subr.mxu0 0.0
        %2022 = vmatpush1.xpose.msra.mxu0 %v1991
        %2023 = vmatprep.subr.mxu0 0.0
        %2024 = vmatpush1.xpose.msra.mxu0 %v1993
        %2025 = vmatprep.subr.mxu0 0.0
        %2026 = vmatpush1.xpose.msra.mxu0 %v1995
        %2027 = vmatprep.subr.mxu0 0.0
        %2028 = vmatpush1.xpose.msra.mxu0 %v1997
        %2029 = vmatprep.subr.mxu0 0.0
        %2030 = vmatpush1.xpose.msra.mxu0 %v1999
        %2031 = vmatprep.subr.mxu0 0.0
        %2032 = vmatpush1.xpose.msra.mxu0 %v2001
        %2033 = vmatprep.subr.mxu0 0.0
        %2034 = vmatpush1.xpose.msra.mxu0 %v2003
        %2035 = vmatprep.subr.mxu0 0.0
        %2036 = vmatpush1.xpose.msra.mxu0 %v2005
        %2037 = vmatprep.subr.mxu0 0.0
        %2038 = vmatpush1.xpose.msra.mxu0 0.0
        %2039 = vmatprep.subr.mxu0 0.0
        %2040 = vmatpush1.xpose.msra.mxu0 0.0
        %2041 = vmatprep.subr.mxu0 0.0
        %2042 = vmatpush1.xpose.msra.mxu0 0.0
        %2043 = vmatprep.subr.mxu0 0.0
        %2044 = vmatpush1.xpose.msra.mxu0 0.0
        %2045 = vmatprep.subr.mxu0 0.0
        %2046 = vmatpush1.xpose.msra.mxu0 0.0
        %2047 = vmatprep.subr.mxu0 0.0
        %2048 = vmatpush1.xpose.msra.mxu0 0.0
        %2049 = vmatprep.subr.mxu0 0.0
        %2050 = vmatpush1.xpose.msra.mxu0 0.0
        %2051 = vmatprep.subr.mxu0 0.0
        %2052 = vmatpush1.xpose.msra.mxu0 0.0
        %2053 = vmatprep.subr.mxu0 0.0
        %2054 = vmatpush1.xpose.msra.mxu0 0.0
        %2055 = vmatprep.subr.mxu0 0.0
        %2056 = vmatpush1.xpose.msra.mxu0 0.0
        %2057 = vmatprep.subr.mxu0 0.0
        %2058 = vmatpush1.xpose.msra.mxu0 0.0
        %2059 = vmatprep.subr.mxu0 0.0
        %2060 = vmatpush1.xpose.msra.mxu0 0.0
        %2061 = vmatprep.subr.mxu0 0.0
        %2062 = vmatpush1.xpose.msra.mxu0 0.0
        %2063 = vmatprep.subr.mxu0 0.0
        %2064 = vmatpush1.xpose.msra.mxu0 0.0
        %2065 = vmatprep.subr.mxu0 0.0
        %2066 = vmatpush1.xpose.msra.mxu0 0.0
        %2067 = vmatprep.subr.mxu0 0.0
        %2068 = vmatpush1.xpose.msra.mxu0 0.0
        %2069 = vmatprep.subr.mxu0 0.0
        %2070 = vmatpush1.xpose.msra.mxu0 0.0
        %2071 = vmatprep.mubr.f32.mxu0 0.0
        %2072 = vmatmul.mubr.f32.gmra.mrb[0].mxu0 %v1947
        %v2073 = vpop.f32.mrb[0].mxu0
        %v2074 = vadd.f32 0.0, %v2073
        %v2075 = vpop.f32.mrb[0].mxu0
        %2076 = vmatprep.mubr.f32.mxu0 0.0
        %2077 = vmatmul.mubr.f32.gmra.mrb[0].mxu0 %v1949
        %v2078 = vpop.f32.mrb[0].mxu0
        %v2079 = vadd.f32 0.0, %v2078
        %v2080 = vpop.f32.mrb[0].mxu0
        %2081 = vmatprep.mubr.f32.mxu0 0.0
        %2082 = vmatmul.mubr.f32.gmra.mrb[0].mxu0 %v1951
        %v2083 = vpop.f32.mrb[0].mxu0
        %v2084 = vadd.f32 0.0, %v2083
        %v2085 = vpop.f32.mrb[0].mxu0
        %2086 = vmatprep.mubr.f32.mxu0 0.0
        %2087 = vmatmul.mubr.f32.gmra.mrb[0].mxu0 %v1953
        %v2088 = vpop.f32.mrb[0].mxu0
        %v2089 = vadd.f32 0.0, %v2088
        %v2090 = vpop.f32.mrb[0].mxu0
        %2091 = vmatprep.mubr.f32.mxu0 0.0
        %2092 = vmatmul.mubr.f32.gmra.mrb[0].mxu0 %v1955
        %v2093 = vpop.f32.mrb[0].mxu0
        %v2094 = vadd.f32 0.0, %v2093
        %v2095 = vpop.f32.mrb[0].mxu0
        %2096 = vmatprep.mubr.f32.mxu0 0.0
        %2097 = vmatmul.mubr.f32.gmra.mrb[0].mxu0 %v1957
        %v2098 = vpop.f32.mrb[0].mxu0
        %v2099 = vadd.f32 0.0, %v2098
        %v2100 = vpop.f32.mrb[0].mxu0
        %2101 = vmatprep.mubr.f32.mxu0 0.0
        %2102 = vmatmul.mubr.f32.gmra.mrb[0].mxu0 %v1959
        %v2103 = vpop.f32.mrb[0].mxu0
        %v2104 = vadd.f32 0.0, %v2103
        %v2105 = vpop.f32.mrb[0].mxu0
        %2106 = vmatprep.mubr.f32.mxu0 0.0
        %2107 = vmatmul.mubr.f32.gmra.mrb[0].mxu0 %v1961
        %v2108 = vpop.f32.mrb[0].mxu0
        %v2109 = vadd.f32 0.0, %v2108
        %v2110 = vpop.f32.mrb[0].mxu0
        %2111 = vmatprep.mubr.f32.mxu0 0.0
        %2112 = vmatmul.mubr.f32.gmra.mrb[0].mxu0 %v1963
        %v2113 = vpop.f32.mrb[0].mxu0
        %v2114 = vadd.f32 0.0, %v2113
        %v2115 = vpop.f32.mrb[0].mxu0
        %2116 = vmatprep.mubr.f32.mxu0 0.0
        %2117 = vmatmul.mubr.f32.gmra.mrb[0].mxu0 %v1965
        %v2118 = vpop.f32.mrb[0].mxu0
        %v2119 = vadd.f32 0.0, %v2118
        %v2120 = vpop.f32.mrb[0].mxu0
        %2121 = vmatprep.mubr.f32.mxu0 0.0
        %2122 = vmatmul.mubr.f32.gmra.mrb[0].mxu0 %v1967
        %v2123 = vpop.f32.mrb[0].mxu0
        %v2124 = vadd.f32 0.0, %v2123
        %v2125 = vpop.f32.mrb[0].mxu0
        %2126 = vmatprep.mubr.f32.mxu0 0.0
        %2127 = vmatmul.mubr.f32.gmra.mrb[0].mxu0 %v1969
        %v2128 = vpop.f32.mrb[0].mxu0
        %v2129 = vadd.f32 0.0, %v2128
        %v2130 = vpop.f32.mrb[0].mxu0
        %2131 = vmatprep.mubr.f32.mxu0 0.0
        %2132 = vmatmul.mubr.f32.gmra.mrb[0].mxu0 %v1971
        %v2133 = vpop.f32.mrb[0].mxu0
        %v2134 = vadd.f32 0.0, %v2133
        %v2135 = vpop.f32.mrb[0].mxu0
        %2136 = vmatprep.mubr.f32.mxu0 0.0
        %2137 = vmatmul.mubr.f32.gmra.mrb[0].mxu0 %v1973
        %v2138 = vpop.f32.mrb[0].mxu0
        %v2139 = vadd.f32 0.0, %v2138
        %v2140 = vpop.f32.mrb[0].mxu0
        %2141 = vmatprep.mubr.f32.mxu0 0.0
        %2142 = vmatmul.mubr.f32.gmra.mrb[0].mxu0 %v1975
        %v2143 = vpop.f32.mrb[0].mxu0
        %v2144 = vadd.f32 0.0, %v2143
        %v2145 = vpop.f32.mrb[0].mxu0
        %2146 = vdwg.mxu0
        %v2147 = vmul.f32 %v2074, 0.17677669
        %v2148 = vmul.f32 %v2079, 0.17677669
        %v2149 = vmul.f32 %v2084, 0.17677669
        %v2150 = vmul.f32 %v2089, 0.17677669
        %v2151 = vmul.f32 %v2094, 0.17677669
        %v2152 = vmul.f32 %v2099, 0.17677669
        %v2153 = vmul.f32 %v2104, 0.17677669
        %v2154 = vmul.f32 %v2109, 0.17677669
        %v2155 = vmul.f32 %v2114, 0.17677669
        %v2156 = vmul.f32 %v2119, 0.17677669
        %v2157 = vmul.f32 %v2124, 0.17677669
        %v2158 = vmul.f32 %v2129, 0.17677669
        %v2159 = vmul.f32 %v2134, 0.17677669
        %v2160 = vmul.f32 %v2139, 0.17677669
        %v2161 = vmul.f32 %v2144, 0.17677669
        %v2162 = vsel %vm1531, %v2147, -inf
        %2163 = vmax.xlane.f32.xlu0 %v2162
        %v2164 = vpop.xlane.xlu0 %2163
        %v2165 = vsel %vm1531, %v2148, -inf
        %2166 = vmax.xlane.f32.xlu0 %v2165
        %v2167 = vpop.xlane.xlu0 %2166
        %v2168 = vsel %vm1531, %v2149, -inf
        %2169 = vmax.xlane.f32.xlu0 %v2168
        %v2170 = vpop.xlane.xlu0 %2169
        %v2171 = vsel %vm1531, %v2150, -inf
        %2172 = vmax.xlane.f32.xlu0 %v2171
        %v2173 = vpop.xlane.xlu0 %2172
        %v2174 = vsel %vm1531, %v2151, -inf
        %2175 = vmax.xlane.f32.xlu0 %v2174
        %v2176 = vpop.xlane.xlu0 %2175
        %v2177 = vsel %vm1531, %v2152, -inf
        %2178 = vmax.xlane.f32.xlu0 %v2177
        %v2179 = vpop.xlane.xlu0 %2178
        %v2180 = vsel %vm1531, %v2153, -inf
        %2181 = vmax.xlane.f32.xlu0 %v2180
        %v2182 = vpop.xlane.xlu0 %2181
        %v2183 = vsel %vm1531, %v2154, -inf
        %2184 = vmax.xlane.f32.xlu0 %v2183
        %v2185 = vpop.xlane.xlu0 %2184
        %v2186 = vsel %vm1531, %v2155, -inf
        %2187 = vmax.xlane.f32.xlu0 %v2186
        %v2188 = vpop.xlane.xlu0 %2187
        %v2189 = vsel %vm1531, %v2156, -inf
        %2190 = vmax.xlane.f32.xlu0 %v2189
        %v2191 = vpop.xlane.xlu0 %2190
        %v2192 = vsel %vm1531, %v2157, -inf
        %2193 = vmax.xlane.f32.xlu0 %v2192
        %v2194 = vpop.xlane.xlu0 %2193
        %v2195 = vsel %vm1531, %v2158, -inf
        %2196 = vmax.xlane.f32.xlu0 %v2195
        %v2197 = vpop.xlane.xlu0 %2196
        %v2198 = vsel %vm1531, %v2159, -inf
        %2199 = vmax.xlane.f32.xlu0 %v2198
        %v2200 = vpop.xlane.xlu0 %2199
        %v2201 = vsel %vm1531, %v2160, -inf
        %2202 = vmax.xlane.f32.xlu0 %v2201
        %v2203 = vpop.xlane.xlu0 %2202
        %v2204 = vsel %vm1574, %v2161, -inf
        %2205 = vmax.xlane.f32.xlu0 %v2204
        %v2206 = vpop.xlane.xlu0 %2205
        %v2207 = vsub.f32 %v2147, %v2164
        %v2208 = vsub.f32 %v2148, %v2167
        %v2209 = vsub.f32 %v2149, %v2170
        %v2210 = vsub.f32 %v2150, %v2173
        %v2211 = vsub.f32 %v2151, %v2176
        %v2212 = vsub.f32 %v2152, %v2179
        %v2213 = vsub.f32 %v2153, %v2182
        %v2214 = vsub.f32 %v2154, %v2185
        %v2215 = vsub.f32 %v2155, %v2188
        %v2216 = vsub.f32 %v2156, %v2191
        %v2217 = vsub.f32 %v2157, %v2194
        %v2218 = vsub.f32 %v2158, %v2197
        %v2219 = vsub.f32 %v2159, %v2200
        %v2220 = vsub.f32 %v2160, %v2203
        %v2221 = vsub.f32 %v2161, %v2206
        %v2222 = vmul.f32 %v2207, 1.442695
        %v2223 = vpow.pop %v2222
        %v2224 = vmul.f32 %v2208, 1.442695
        %v2225 = vpow.pop %v2224
        %v2226 = vmul.f32 %v2209, 1.442695
        %v2227 = vpow.pop %v2226
        %v2228 = vmul.f32 %v2210, 1.442695
        %v2229 = vpow.pop %v2228
        %v2230 = vmul.f32 %v2211, 1.442695
        %v2231 = vpow.pop %v2230
        %v2232 = vmul.f32 %v2212, 1.442695
        %v2233 = vpow.pop %v2232
        %v2234 = vmul.f32 %v2213, 1.442695
        %v2235 = vpow.pop %v2234
        %v2236 = vmul.f32 %v2214, 1.442695
        %v2237 = vpow.pop %v2236
        %v2238 = vmul.f32 %v2215, 1.442695
        %v2239 = vpow.pop %v2238
        %v2240 = vmul.f32 %v2216, 1.442695
        %v2241 = vpow.pop %v2240
        %v2242 = vmul.f32 %v2217, 1.442695
        %v2243 = vpow.pop %v2242
        %v2244 = vmul.f32 %v2218, 1.442695
        %v2245 = vpow.pop %v2244
        %v2246 = vmul.f32 %v2219, 1.442695
        %v2247 = vpow.pop %v2246
        %v2248 = vmul.f32 %v2220, 1.442695
        %v2249 = vpow.pop %v2248
        %v2250 = vmul.f32 %v2221, 1.442695
        %v2251 = vpow.pop %v2250
        %v2252 = vsel %vm1531, %v2223, 0.0
        %2253 = vadd.xlane.f32.xlu0 %v2252
        %v2254 = vpop.xlane.xlu0 %2253
        %v2255 = vsel %vm1531, %v2225, 0.0
        %2256 = vadd.xlane.f32.xlu0 %v2255
        %v2257 = vpop.xlane.xlu0 %2256
        %v2258 = vsel %vm1531, %v2227, 0.0
        %2259 = vadd.xlane.f32.xlu0 %v2258
        %v2260 = vpop.xlane.xlu0 %2259
        %v2261 = vsel %vm1531, %v2229, 0.0
        %2262 = vadd.xlane.f32.xlu0 %v2261
        %v2263 = vpop.xlane.xlu0 %2262
        %v2264 = vsel %vm1531, %v2231, 0.0
        %2265 = vadd.xlane.f32.xlu0 %v2264
        %v2266 = vpop.xlane.xlu0 %2265
        %v2267 = vsel %vm1531, %v2233, 0.0
        %2268 = vadd.xlane.f32.xlu0 %v2267
        %v2269 = vpop.xlane.xlu0 %2268
        %v2270 = vsel %vm1531, %v2235, 0.0
        %2271 = vadd.xlane.f32.xlu0 %v2270
        %v2272 = vpop.xlane.xlu0 %2271
        %v2273 = vsel %vm1531, %v2237, 0.0
        %2274 = vadd.xlane.f32.xlu0 %v2273
        %v2275 = vpop.xlane.xlu0 %2274
        %v2276 = vsel %vm1531, %v2239, 0.0
        %2277 = vadd.xlane.f32.xlu0 %v2276
        %v2278 = vpop.xlane.xlu0 %2277
        %v2279 = vsel %vm1531, %v2241, 0.0
        %2280 = vadd.xlane.f32.xlu0 %v2279
        %v2281 = vpop.xlane.xlu0 %2280
        %v2282 = vsel %vm1531, %v2243, 0.0
        %2283 = vadd.xlane.f32.xlu0 %v2282
        %v2284 = vpop.xlane.xlu0 %2283
        %v2285 = vsel %vm1531, %v2245, 0.0
        %2286 = vadd.xlane.f32.xlu0 %v2285
        %v2287 = vpop.xlane.xlu0 %2286
        %v2288 = vsel %vm1531, %v2247, 0.0
        %2289 = vadd.xlane.f32.xlu0 %v2288
        %v2290 = vpop.xlane.xlu0 %2289
        %v2291 = vsel %vm1531, %v2249, 0.0
        %2292 = vadd.xlane.f32.xlu0 %v2291
        %v2293 = vpop.xlane.xlu0 %2292
        %v2294 = vsel %vm1574, %v2251, 0.0
        %2295 = vadd.xlane.f32.xlu0 %v2294
        %v2296 = vpop.xlane.xlu0 %2295
        %v2297 = vrcp.pop %v2254
        %v2298 = vrcp.pop %v2257
        %v2299 = vrcp.pop %v2260
        %v2300 = vrcp.pop %v2263
        %v2301 = vrcp.pop %v2266
        %v2302 = vrcp.pop %v2269
        %v2303 = vrcp.pop %v2272
        %v2304 = vrcp.pop %v2275
        %v2305 = vrcp.pop %v2278
        %v2306 = vrcp.pop %v2281
        %v2307 = vrcp.pop %v2284
        %v2308 = vrcp.pop %v2287
        %v2309 = vrcp.pop %v2290
        %v2310 = vrcp.pop %v2293
        %v2311 = vrcp.pop %v2296
        %v2312 = vmul.f32 %v2223, %v2297
        %v2313 = vmul.f32 %v2225, %v2298
        %v2314 = vmul.f32 %v2227, %v2299
        %v2315 = vmul.f32 %v2229, %v2300
        %v2316 = vmul.f32 %v2231, %v2301
        %v2317 = vmul.f32 %v2233, %v2302
        %v2318 = vmul.f32 %v2235, %v2303
        %v2319 = vmul.f32 %v2237, %v2304
        %v2320 = vmul.f32 %v2239, %v2305
        %v2321 = vmul.f32 %v2241, %v2306
        %v2322 = vmul.f32 %v2243, %v2307
        %v2323 = vmul.f32 %v2245, %v2308
        %v2324 = vmul.f32 %v2247, %v2309
        %v2325 = vmul.f32 %v2249, %v2310
        %v2326 = vmul.f32 %v2251, %v2311
        %2341 = vrot.lane.b32.xlu0 %v1212, 96
        %v2342 = vpop.permute.xlu0 %2341
        %2343 = vrot.lane.b32.xlu0 %v1217, 96
        %v2344 = vpop.permute.xlu0 %2343
        %2345 = vrot.lane.b32.xlu0 %v1222, 96
        %v2346 = vpop.permute.xlu0 %2345
        %2347 = vrot.lane.b32.xlu0 %v1227, 96
        %v2348 = vpop.permute.xlu0 %2347
        %2349 = vrot.lane.b32.xlu0 %v1232, 96
        %v2350 = vpop.permute.xlu0 %2349
        %2351 = vrot.lane.b32.xlu0 %v1237, 96
        %v2352 = vpop.permute.xlu0 %2351
        %2353 = vrot.lane.b32.xlu0 %v1242, 96
        %v2354 = vpop.permute.xlu0 %2353
        %2355 = vrot.lane.b32.xlu0 %v1247, 96
        %v2356 = vpop.permute.xlu0 %2355
        %2357 = vrot.lane.b32.xlu0 %v1252, 96
        %v2358 = vpop.permute.xlu0 %2357
        %2359 = vrot.lane.b32.xlu0 %v1257, 96
        %v2360 = vpop.permute.xlu0 %2359
        %2361 = vrot.lane.b32.xlu0 %v1262, 96
        %v2362 = vpop.permute.xlu0 %2361
        %2363 = vrot.lane.b32.xlu0 %v1267, 96
        %v2364 = vpop.permute.xlu0 %2363
        %2365 = vrot.lane.b32.xlu0 %v1272, 96
        %v2366 = vpop.permute.xlu0 %2365
        %2367 = vrot.lane.b32.xlu0 %v1277, 96
        %v2368 = vpop.permute.xlu0 %2367
        %2369 = vrot.lane.b32.xlu0 %v1282, 96
        %v2370 = vpop.permute.xlu0 %2369
        %v2386 = vsel %vm1531, %v2312, 0
        %v2389 = vsel %vm1531, %v2313, 0
        %v2392 = vsel %vm1531, %v2314, 0
        %v2395 = vsel %vm1531, %v2315, 0
        %v2398 = vsel %vm1531, %v2316, 0
        %v2401 = vsel %vm1531, %v2317, 0
        %v2404 = vsel %vm1531, %v2318, 0
        %v2407 = vsel %vm1531, %v2319, 0
        %v2410 = vsel %vm1531, %v2320, 0
        %v2413 = vsel %vm1531, %v2321, 0
        %v2416 = vsel %vm1531, %v2322, 0
        %v2419 = vsel %vm1531, %v2323, 0
        %v2422 = vsel %vm1531, %v2324, 0
        %v2425 = vsel %vm1531, %v2325, 0
        %v2428 = vsel %vm1531, %v2326, 0
        %v2430 = vsel %vm1743, %v2370, 0
        %2432 = vmatprep.subr.mxu0 0.0
        %2433 = vmatpush1.msra.mxu0 %v2342
        %2434 = vmatprep.subr.mxu0 0.0
        %2435 = vmatpush1.msra.mxu0 %v2344
        %2436 = vmatprep.subr.mxu0 0.0
        %2437 = vmatpush1.msra.mxu0 %v2346
        %2438 = vmatprep.subr.mxu0 0.0
        %2439 = vmatpush1.msra.mxu0 %v2348
        %2440 = vmatprep.subr.mxu0 0.0
        %2441 = vmatpush1.msra.mxu0 %v2350
        %2442 = vmatprep.subr.mxu0 0.0
        %2443 = vmatpush1.msra.mxu0 %v2352
        %2444 = vmatprep.subr.mxu0 0.0
        %2445 = vmatpush1.msra.mxu0 %v2354
        %2446 = vmatprep.subr.mxu0 0.0
        %2447 = vmatpush1.msra.mxu0 %v2356
        %2448 = vmatprep.subr.mxu0 0.0
        %2449 = vmatpush1.msra.mxu0 %v2358
        %2450 = vmatprep.subr.mxu0 0.0
        %2451 = vmatpush1.msra.mxu0 %v2360
        %2452 = vmatprep.subr.mxu0 0.0
        %2453 = vmatpush1.msra.mxu0 %v2362
        %2454 = vmatprep.subr.mxu0 0.0
        %2455 = vmatpush1.msra.mxu0 %v2364
        %2456 = vmatprep.subr.mxu0 0.0
        %2457 = vmatpush1.msra.mxu0 %v2366
        %2458 = vmatprep.subr.mxu0 0.0
        %2459 = vmatpush1.msra.mxu0 %v2368
        %2460 = vmatprep.subr.mxu0 0.0
        %2461 = vmatpush1.msra.mxu0 %v2430
        %2462 = vmatprep.subr.mxu0 0.0
        %2463 = vmatpush1.msra.mxu0 0.0
        %2464 = vmatprep.subr.mxu0 0.0
        %2465 = vmatpush1.msra.mxu0 0.0
        %2466 = vmatprep.subr.mxu0 0.0
        %2467 = vmatpush1.msra.mxu0 0.0
        %2468 = vmatprep.subr.mxu0 0.0
        %2469 = vmatpush1.msra.mxu0 0.0
        %2470 = vmatprep.subr.mxu0 0.0
        %2471 = vmatpush1.msra.mxu0 0.0
        %2472 = vmatprep.subr.mxu0 0.0
        %2473 = vmatpush1.msra.mxu0 0.0
        %2474 = vmatprep.subr.mxu0 0.0
        %2475 = vmatpush1.msra.mxu0 0.0
        %2476 = vmatprep.subr.mxu0 0.0
        %2477 = vmatpush1.msra.mxu0 0.0
        %2478 = vmatprep.subr.mxu0 0.0
        %2479 = vmatpush1.msra.mxu0 0.0
        %2480 = vmatprep.subr.mxu0 0.0
        %2481 = vmatpush1.msra.mxu0 0.0
        %2482 = vmatprep.subr.mxu0 0.0
        %2483 = vmatpush1.msra.mxu0 0.0
        %2484 = vmatprep.subr.mxu0 0.0
        %2485 = vmatpush1.msra.mxu0 0.0
        %2486 = vmatprep.subr.mxu0 0.0
        %2487 = vmatpush1.msra.mxu0 0.0
        %2488 = vmatprep.subr.mxu0 0.0
        %2489 = vmatpush1.msra.mxu0 0.0
        %2490 = vmatprep.subr.mxu0 0.0
        %2491 = vmatpush1.msra.mxu0 0.0
        %2492 = vmatprep.subr.mxu0 0.0
        %2493 = vmatpush1.msra.mxu0 0.0
        %2494 = vmatprep.subr.mxu0 0.0
        %2495 = vmatpush1.msra.mxu0 0.0
        %2496 = vmatprep.mubr.f32.mxu0 0.0
        %2497 = vmatmul.mubr.f32.gmra.mrb[0].mxu0 %v2386
        %v2498 = vpop.f32.mrb[0].mxu0
        %v2499 = vadd.f32 0.0, %v2498
        %v2500 = vpop.f32.mrb[0].mxu0
        %2501 = vmatprep.mubr.f32.mxu0 0.0
        %2502 = vmatmul.mubr.f32.gmra.mrb[0].mxu0 %v2389
        %v2503 = vpop.f32.mrb[0].mxu0
        %v2504 = vadd.f32 0.0, %v2503
        %v2505 = vpop.f32.mrb[0].mxu0
        %2506 = vmatprep.mubr.f32.mxu0 0.0
        %2507 = vmatmul.mubr.f32.gmra.mrb[0].mxu0 %v2392
        %v2508 = vpop.f32.mrb[0].mxu0
        %v2509 = vadd.f32 0.0, %v2508
        %v2510 = vpop.f32.mrb[0].mxu0
        %2511 = vmatprep.mubr.f32.mxu0 0.0
        %2512 = vmatmul.mubr.f32.gmra.mrb[0].mxu0 %v2395
        %v2513 = vpop.f32.mrb[0].mxu0
        %v2514 = vadd.f32 0.0, %v2513
        %v2515 = vpop.f32.mrb[0].mxu0
        %2516 = vmatprep.mubr.f32.mxu0 0.0
        %2517 = vmatmul.mubr.f32.gmra.mrb[0].mxu0 %v2398
        %v2518 = vpop.f32.mrb[0].mxu0
        %v2519 = vadd.f32 0.0, %v2518
        %v2520 = vpop.f32.mrb[0].mxu0
        %2521 = vmatprep.mubr.f32.mxu0 0.0
        %2522 = vmatmul.mubr.f32.gmra.mrb[0].mxu0 %v2401
        %v2523 = vpop.f32.mrb[0].mxu0
        %v2524 = vadd.f32 0.0, %v2523
        %v2525 = vpop.f32.mrb[0].mxu0
        %2526 = vmatprep.mubr.f32.mxu0 0.0
        %2527 = vmatmul.mubr.f32.gmra.mrb[0].mxu0 %v2404
        %v2528 = vpop.f32.mrb[0].mxu0
        %v2529 = vadd.f32 0.0, %v2528
        %v2530 = vpop.f32.mrb[0].mxu0
        %2531 = vmatprep.mubr.f32.mxu0 0.0
        %2532 = vmatmul.mubr.f32.gmra.mrb[0].mxu0 %v2407
        %v2533 = vpop.f32.mrb[0].mxu0
        %v2534 = vadd.f32 0.0, %v2533
        %v2535 = vpop.f32.mrb[0].mxu0
        %2536 = vmatprep.mubr.f32.mxu0 0.0
        %2537 = vmatmul.mubr.f32.gmra.mrb[0].mxu0 %v2410
        %v2538 = vpop.f32.mrb[0].mxu0
        %v2539 = vadd.f32 0.0, %v2538
        %v2540 = vpop.f32.mrb[0].mxu0
        %2541 = vmatprep.mubr.f32.mxu0 0.0
        %2542 = vmatmul.mubr.f32.gmra.mrb[0].mxu0 %v2413
        %v2543 = vpop.f32.mrb[0].mxu0
        %v2544 = vadd.f32 0.0, %v2543
        %v2545 = vpop.f32.mrb[0].mxu0
        %2546 = vmatprep.mubr.f32.mxu0 0.0
        %2547 = vmatmul.mubr.f32.gmra.mrb[0].mxu0 %v2416
        %v2548 = vpop.f32.mrb[0].mxu0
        %v2549 = vadd.f32 0.0, %v2548
        %v2550 = vpop.f32.mrb[0].mxu0
        %2551 = vmatprep.mubr.f32.mxu0 0.0
        %2552 = vmatmul.mubr.f32.gmra.mrb[0].mxu0 %v2419
        %v2553 = vpop.f32.mrb[0].mxu0
        %v2554 = vadd.f32 0.0, %v2553
        %v2555 = vpop.f32.mrb[0].mxu0
        %2556 = vmatprep.mubr.f32.mxu0 0.0
        %2557 = vmatmul.mubr.f32.gmra.mrb[0].mxu0 %v2422
        %v2558 = vpop.f32.mrb[0].mxu0
        %v2559 = vadd.f32 0.0, %v2558
        %v2560 = vpop.f32.mrb[0].mxu0
        %2561 = vmatprep.mubr.f32.mxu0 0.0
        %2562 = vmatmul.mubr.f32.gmra.mrb[0].mxu0 %v2425
        %v2563 = vpop.f32.mrb[0].mxu0
        %v2564 = vadd.f32 0.0, %v2563
        %v2565 = vpop.f32.mrb[0].mxu0
        %2566 = vmatprep.mubr.f32.mxu0 0.0
        %2567 = vmatmul.mubr.f32.gmra.mrb[0].mxu0 %v2428
        %v2568 = vpop.f32.mrb[0].mxu0
        %v2569 = vadd.f32 0.0, %v2568
        %v2570 = vpop.f32.mrb[0].mxu0
        %2571 = vdwg.mxu0
        %v2573 = vsel %vm1285, %v2499, 0
        %v2576 = vsel %vm1285, %v2504, 0
        %v2579 = vsel %vm1285, %v2509, 0
        %v2582 = vsel %vm1285, %v2514, 0
        %v2585 = vsel %vm1285, %v2519, 0
        %v2588 = vsel %vm1285, %v2524, 0
        %v2591 = vsel %vm1285, %v2529, 0
        %v2594 = vsel %vm1285, %v2534, 0
        %v2597 = vsel %vm1285, %v2539, 0
        %v2600 = vsel %vm1285, %v2544, 0
        %v2603 = vsel %vm1285, %v2549, 0
        %v2606 = vsel %vm1285, %v2554, 0
        %v2609 = vsel %vm1285, %v2559, 0
        %v2612 = vsel %vm1285, %v2564, 0
        %v2615 = vsel %vm1285, %v2569, 0
        %2617 = vmatprep.subr.mxu0 0.0
        %2618 = vmatpush1.msra.mxu0 %v832
        %2619 = vmatprep.subr.mxu0 0.0
        %2620 = vmatpush1.msra.mxu0 %v833
        %2621 = vmatprep.subr.mxu0 0.0
        %2622 = vmatpush1.msra.mxu0 %v834
        %2623 = vmatprep.subr.mxu0 0.0
        %2624 = vmatpush1.msra.mxu0 %v835
        %2625 = vmatprep.subr.mxu0 0.0
        %2626 = vmatpush1.msra.mxu0 0.0
        %2627 = vmatprep.subr.mxu0 0.0
        %2628 = vmatpush1.msra.mxu0 0.0
        %2629 = vmatprep.subr.mxu0 0.0
        %2630 = vmatpush1.msra.mxu0 0.0
        %2631 = vmatprep.subr.mxu0 0.0
        %2632 = vmatpush1.msra.mxu0 0.0
        %2633 = vmatprep.subr.mxu0 0.0
        %2634 = vmatpush1.msra.mxu0 0.0
        %2635 = vmatprep.subr.mxu0 0.0
        %2636 = vmatpush1.msra.mxu0 0.0
        %2637 = vmatprep.subr.mxu0 0.0
        %2638 = vmatpush1.msra.mxu0 0.0
        %2639 = vmatprep.subr.mxu0 0.0
        %2640 = vmatpush1.msra.mxu0 0.0
        %2641 = vmatprep.subr.mxu0 0.0
        %2642 = vmatpush1.msra.mxu0 0.0
        %2643 = vmatprep.subr.mxu0 0.0
        %2644 = vmatpush1.msra.mxu0 0.0
        %2645 = vmatprep.subr.mxu0 0.0
        %2646 = vmatpush1.msra.mxu0 0.0
        %2647 = vmatprep.subr.mxu0 0.0
        %2648 = vmatpush1.msra.mxu0 0.0
        %2649 = vmatprep.subr.mxu0 0.0
        %2650 = vmatpush1.msra.mxu0 0.0
        %2651 = vmatprep.subr.mxu0 0.0
        %2652 = vmatpush1.msra.mxu0 0.0
        %2653 = vmatprep.subr.mxu0 0.0
        %2654 = vmatpush1.msra.mxu0 0.0
        %2655 = vmatprep.subr.mxu0 0.0
        %2656 = vmatpush1.msra.mxu0 0.0
        %2657 = vmatprep.subr.mxu0 0.0
        %2658 = vmatpush1.msra.mxu0 0.0
        %2659 = vmatprep.subr.mxu0 0.0
        %2660 = vmatpush1.msra.mxu0 0.0
        %2661 = vmatprep.subr.mxu0 0.0
        %2662 = vmatpush1.msra.mxu0 0.0
        %2663 = vmatprep.subr.mxu0 0.0
        %2664 = vmatpush1.msra.mxu0 0.0
        %2665 = vmatprep.subr.mxu0 0.0
        %2666 = vmatpush1.msra.mxu0 0.0
        %2667 = vmatprep.subr.mxu0 0.0
        %2668 = vmatpush1.msra.mxu0 0.0
        %2669 = vmatprep.subr.mxu0 0.0
        %2670 = vmatpush1.msra.mxu0 0.0
        %2671 = vmatprep.subr.mxu0 0.0
        %2672 = vmatpush1.msra.mxu0 0.0
        %2673 = vmatprep.subr.mxu0 0.0
        %2674 = vmatpush1.msra.mxu0 0.0
        %2675 = vmatprep.subr.mxu0 0.0
        %2676 = vmatpush1.msra.mxu0 0.0
        %2677 = vmatprep.subr.mxu0 0.0
        %2678 = vmatpush1.msra.mxu0 0.0
        %2679 = vmatprep.subr.mxu0 0.0
        %2680 = vmatpush1.msra.mxu0 0.0
        %2681 = vmatprep.mubr.f32.mxu0 0.0
        %2682 = vmatmul.mubr.f32.gmra.mrb[0].mxu0 %v2573
        %v2683 = vpop.f32.mrb[0].mxu0
        %v2684 = vadd.f32 0.0, %v2683
        %v2685 = vpop.f32.mrb[0].mxu0
        %2686 = vmatprep.mubr.f32.mxu0 0.0
        %2687 = vmatmul.mubr.f32.gmra.mrb[0].mxu0 %v2576
        %v2688 = vpop.f32.mrb[0].mxu0
        %v2689 = vadd.f32 0.0, %v2688
        %v2690 = vpop.f32.mrb[0].mxu0
        %2691 = vmatprep.mubr.f32.mxu0 0.0
        %2692 = vmatmul.mubr.f32.gmra.mrb[0].mxu0 %v2579
        %v2693 = vpop.f32.mrb[0].mxu0
        %v2694 = vadd.f32 0.0, %v2693
        %v2695 = vpop.f32.mrb[0].mxu0
        %2696 = vmatprep.mubr.f32.mxu0 0.0
        %2697 = vmatmul.mubr.f32.gmra.mrb[0].mxu0 %v2582
        %v2698 = vpop.f32.mrb[0].mxu0
        %v2699 = vadd.f32 0.0, %v2698
        %v2700 = vpop.f32.mrb[0].mxu0
        %2701 = vmatprep.mubr.f32.mxu0 0.0
        %2702 = vmatmul.mubr.f32.gmra.mrb[0].mxu0 %v2585
        %v2703 = vpop.f32.mrb[0].mxu0
        %v2704 = vadd.f32 0.0, %v2703
        %v2705 = vpop.f32.mrb[0].mxu0
        %2706 = vmatprep.mubr.f32.mxu0 0.0
        %2707 = vmatmul.mubr.f32.gmra.mrb[0].mxu0 %v2588
        %v2708 = vpop.f32.mrb[0].mxu0
        %v2709 = vadd.f32 0.0, %v2708
        %v2710 = vpop.f32.mrb[0].mxu0
        %2711 = vmatprep.mubr.f32.mxu0 0.0
        %2712 = vmatmul.mubr.f32.gmra.mrb[0].mxu0 %v2591
        %v2713 = vpop.f32.mrb[0].mxu0
        %v2714 = vadd.f32 0.0, %v2713
        %v2715 = vpop.f32.mrb[0].mxu0
        %2716 = vmatprep.mubr.f32.mxu0 0.0
        %2717 = vmatmul.mubr.f32.gmra.mrb[0].mxu0 %v2594
        %v2718 = vpop.f32.mrb[0].mxu0
        %v2719 = vadd.f32 0.0, %v2718
        %v2720 = vpop.f32.mrb[0].mxu0
        %2721 = vmatprep.mubr.f32.mxu0 0.0
        %2722 = vmatmul.mubr.f32.gmra.mrb[0].mxu0 %v2597
        %v2723 = vpop.f32.mrb[0].mxu0
        %v2724 = vadd.f32 0.0, %v2723
        %v2725 = vpop.f32.mrb[0].mxu0
        %2726 = vmatprep.mubr.f32.mxu0 0.0
        %2727 = vmatmul.mubr.f32.gmra.mrb[0].mxu0 %v2600
        %v2728 = vpop.f32.mrb[0].mxu0
        %v2729 = vadd.f32 0.0, %v2728
        %v2730 = vpop.f32.mrb[0].mxu0
        %2731 = vmatprep.mubr.f32.mxu0 0.0
        %2732 = vmatmul.mubr.f32.gmra.mrb[0].mxu0 %v2603
        %v2733 = vpop.f32.mrb[0].mxu0
        %v2734 = vadd.f32 0.0, %v2733
        %v2735 = vpop.f32.mrb[0].mxu0
        %2736 = vmatprep.mubr.f32.mxu0 0.0
        %2737 = vmatmul.mubr.f32.gmra.mrb[0].mxu0 %v2606
        %v2738 = vpop.f32.mrb[0].mxu0
        %v2739 = vadd.f32 0.0, %v2738
        %v2740 = vpop.f32.mrb[0].mxu0
        %2741 = vmatprep.mubr.f32.mxu0 0.0
        %2742 = vmatmul.mubr.f32.gmra.mrb[0].mxu0 %v2609
        %v2743 = vpop.f32.mrb[0].mxu0
        %v2744 = vadd.f32 0.0, %v2743
        %v2745 = vpop.f32.mrb[0].mxu0
        %2746 = vmatprep.mubr.f32.mxu0 0.0
        %2747 = vmatmul.mubr.f32.gmra.mrb[0].mxu0 %v2612
        %v2748 = vpop.f32.mrb[0].mxu0
        %v2749 = vadd.f32 0.0, %v2748
        %v2750 = vpop.f32.mrb[0].mxu0
        %2751 = vmatprep.mubr.f32.mxu0 0.0
        %2752 = vmatmul.mubr.f32.gmra.mrb[0].mxu0 %v2615
        %v2753 = vpop.f32.mrb[0].mxu0
        %v2754 = vadd.f32 0.0, %v2753
        %v2755 = vpop.f32.mrb[0].mxu0
        %2756 = vdwg.mxu0
        %v2758 = vsel %vm1285, %v1814, 0
        %v2761 = vsel %vm1285, %v1819, 0
        %v2764 = vsel %vm1285, %v1824, 0
        %v2767 = vsel %vm1285, %v1829, 0
        %v2770 = vsel %vm1285, %v1834, 0
        %v2773 = vsel %vm1285, %v1839, 0
        %v2776 = vsel %vm1285, %v1844, 0
        %v2779 = vsel %vm1285, %v1849, 0
        %v2782 = vsel %vm1285, %v1854, 0
        %v2785 = vsel %vm1285, %v1859, 0
        %v2788 = vsel %vm1285, %v1864, 0
        %v2791 = vsel %vm1285, %v1869, 0
        %v2794 = vsel %vm1285, %v1874, 0
        %v2797 = vsel %vm1285, %v1879, 0
        %v2800 = vsel %vm1285, %v1884, 0
        %2802 = vmatprep.subr.mxu0 0.0
        %2803 = vmatpush1.msra.mxu0 %v828
        %2804 = vmatprep.subr.mxu0 0.0
        %2805 = vmatpush1.msra.mxu0 %v829
        %2806 = vmatprep.subr.mxu0 0.0
        %2807 = vmatpush1.msra.mxu0 %v830
        %2808 = vmatprep.subr.mxu0 0.0
        %2809 = vmatpush1.msra.mxu0 %v831
        %2810 = vmatprep.subr.mxu0 0.0
        %2811 = vmatpush1.msra.mxu0 0.0
        %2812 = vmatprep.subr.mxu0 0.0
        %2813 = vmatpush1.msra.mxu0 0.0
        %2814 = vmatprep.subr.mxu0 0.0
        %2815 = vmatpush1.msra.mxu0 0.0
        %2816 = vmatprep.subr.mxu0 0.0
        %2817 = vmatpush1.msra.mxu0 0.0
        %2818 = vmatprep.subr.mxu0 0.0
        %2819 = vmatpush1.msra.mxu0 0.0
        %2820 = vmatprep.subr.mxu0 0.0
        %2821 = vmatpush1.msra.mxu0 0.0
        %2822 = vmatprep.subr.mxu0 0.0
        %2823 = vmatpush1.msra.mxu0 0.0
        %2824 = vmatprep.subr.mxu0 0.0
        %2825 = vmatpush1.msra.mxu0 0.0
        %2826 = vmatprep.subr.mxu0 0.0
        %2827 = vmatpush1.msra.mxu0 0.0
        %2828 = vmatprep.subr.mxu0 0.0
        %2829 = vmatpush1.msra.mxu0 0.0
        %2830 = vmatprep.subr.mxu0 0.0
        %2831 = vmatpush1.msra.mxu0 0.0
        %2832 = vmatprep.subr.mxu0 0.0
        %2833 = vmatpush1.msra.mxu0 0.0
        %2834 = vmatprep.subr.mxu0 0.0
        %2835 = vmatpush1.msra.mxu0 0.0
        %2836 = vmatprep.subr.mxu0 0.0
        %2837 = vmatpush1.msra.mxu0 0.0
        %2838 = vmatprep.subr.mxu0 0.0
        %2839 = vmatpush1.msra.mxu0 0.0
        %2840 = vmatprep.subr.mxu0 0.0
        %2841 = vmatpush1.msra.mxu0 0.0
        %2842 = vmatprep.subr.mxu0 0.0
        %2843 = vmatpush1.msra.mxu0 0.0
        %2844 = vmatprep.subr.mxu0 0.0
        %2845 = vmatpush1.msra.mxu0 0.0
        %2846 = vmatprep.subr.mxu0 0.0
        %2847 = vmatpush1.msra.mxu0 0.0
        %2848 = vmatprep.subr.mxu0 0.0
        %2849 = vmatpush1.msra.mxu0 0.0
        %2850 = vmatprep.subr.mxu0 0.0
        %2851 = vmatpush1.msra.mxu0 0.0
        %2852 = vmatprep.subr.mxu0 0.0
        %2853 = vmatpush1.msra.mxu0 0.0
        %2854 = vmatprep.subr.mxu0 0.0
        %2855 = vmatpush1.msra.mxu0 0.0
        %2856 = vmatprep.subr.mxu0 0.0
        %2857 = vmatpush1.msra.mxu0 0.0
        %2858 = vmatprep.subr.mxu0 0.0
        %2859 = vmatpush1.msra.mxu0 0.0
        %2860 = vmatprep.subr.mxu0 0.0
        %2861 = vmatpush1.msra.mxu0 0.0
        %2862 = vmatprep.subr.mxu0 0.0
        %2863 = vmatpush1.msra.mxu0 0.0
        %2864 = vmatprep.subr.mxu0 0.0
        %2865 = vmatpush1.msra.mxu0 0.0
        %2866 = vmatprep.mubr.f32.mxu0 0.0
        %2867 = vmatmul.mubr.f32.gmra.mrb[0].mxu0 %v2758
        %v2868 = vpop.f32.mrb[0].mxu0
        %v2869 = vadd.f32 %v2684, %v2868
        %v2870 = vpop.f32.mrb[0].mxu0
        %2871 = vmatprep.mubr.f32.mxu0 0.0
        %2872 = vmatmul.mubr.f32.gmra.mrb[0].mxu0 %v2761
        %v2873 = vpop.f32.mrb[0].mxu0
        %v2874 = vadd.f32 %v2689, %v2873
        %v2875 = vpop.f32.mrb[0].mxu0
        %2876 = vmatprep.mubr.f32.mxu0 0.0
        %2877 = vmatmul.mubr.f32.gmra.mrb[0].mxu0 %v2764
        %v2878 = vpop.f32.mrb[0].mxu0
        %v2879 = vadd.f32 %v2694, %v2878
        %v2880 = vpop.f32.mrb[0].mxu0
        %2881 = vmatprep.mubr.f32.mxu0 0.0
        %2882 = vmatmul.mubr.f32.gmra.mrb[0].mxu0 %v2767
        %v2883 = vpop.f32.mrb[0].mxu0
        %v2884 = vadd.f32 %v2699, %v2883
        %v2885 = vpop.f32.mrb[0].mxu0
        %2886 = vmatprep.mubr.f32.mxu0 0.0
        %2887 = vmatmul.mubr.f32.gmra.mrb[0].mxu0 %v2770
        %v2888 = vpop.f32.mrb[0].mxu0
        %v2889 = vadd.f32 %v2704, %v2888
        %v2890 = vpop.f32.mrb[0].mxu0
        %2891 = vmatprep.mubr.f32.mxu0 0.0
        %2892 = vmatmul.mubr.f32.gmra.mrb[0].mxu0 %v2773
        %v2893 = vpop.f32.mrb[0].mxu0
        %v2894 = vadd.f32 %v2709, %v2893
        %v2895 = vpop.f32.mrb[0].mxu0
        %2896 = vmatprep.mubr.f32.mxu0 0.0
        %2897 = vmatmul.mubr.f32.gmra.mrb[0].mxu0 %v2776
        %v2898 = vpop.f32.mrb[0].mxu0
        %v2899 = vadd.f32 %v2714, %v2898
        %v2900 = vpop.f32.mrb[0].mxu0
        %2901 = vmatprep.mubr.f32.mxu0 0.0
        %2902 = vmatmul.mubr.f32.gmra.mrb[0].mxu0 %v2779
        %v2903 = vpop.f32.mrb[0].mxu0
        %v2904 = vadd.f32 %v2719, %v2903
        %v2905 = vpop.f32.mrb[0].mxu0
        %2906 = vmatprep.mubr.f32.mxu0 0.0
        %2907 = vmatmul.mubr.f32.gmra.mrb[0].mxu0 %v2782
        %v2908 = vpop.f32.mrb[0].mxu0
        %v2909 = vadd.f32 %v2724, %v2908
        %v2910 = vpop.f32.mrb[0].mxu0
        %2911 = vmatprep.mubr.f32.mxu0 0.0
        %2912 = vmatmul.mubr.f32.gmra.mrb[0].mxu0 %v2785
        %v2913 = vpop.f32.mrb[0].mxu0
        %v2914 = vadd.f32 %v2729, %v2913
        %v2915 = vpop.f32.mrb[0].mxu0
        %2916 = vmatprep.mubr.f32.mxu0 0.0
        %2917 = vmatmul.mubr.f32.gmra.mrb[0].mxu0 %v2788
        %v2918 = vpop.f32.mrb[0].mxu0
        %v2919 = vadd.f32 %v2734, %v2918
        %v2920 = vpop.f32.mrb[0].mxu0
        %2921 = vmatprep.mubr.f32.mxu0 0.0
        %2922 = vmatmul.mubr.f32.gmra.mrb[0].mxu0 %v2791
        %v2923 = vpop.f32.mrb[0].mxu0
        %v2924 = vadd.f32 %v2739, %v2923
        %v2925 = vpop.f32.mrb[0].mxu0
        %2926 = vmatprep.mubr.f32.mxu0 0.0
        %2927 = vmatmul.mubr.f32.gmra.mrb[0].mxu0 %v2794
        %v2928 = vpop.f32.mrb[0].mxu0
        %v2929 = vadd.f32 %v2744, %v2928
        %v2930 = vpop.f32.mrb[0].mxu0
        %2931 = vmatprep.mubr.f32.mxu0 0.0
        %2932 = vmatmul.mubr.f32.gmra.mrb[0].mxu0 %v2797
        %v2933 = vpop.f32.mrb[0].mxu0
        %v2934 = vadd.f32 %v2749, %v2933
        %v2935 = vpop.f32.mrb[0].mxu0
        %2936 = vmatprep.mubr.f32.mxu0 0.0
        %2937 = vmatmul.mubr.f32.gmra.mrb[0].mxu0 %v2800
        %v2938 = vpop.f32.mrb[0].mxu0
        %v2939 = vadd.f32 %v2754, %v2938
        %v2940 = vpop.f32.mrb[0].mxu0
        %2941 = vdwg.mxu0
        %2942 = vrot.lane.b32.xlu0 %v918, 64
        %v2943 = vpop.permute.xlu0 %2942
        %2944 = vrot.lane.b32.xlu0 %v923, 64
        %v2945 = vpop.permute.xlu0 %2944
        %2946 = vrot.lane.b32.xlu0 %v928, 64
        %v2947 = vpop.permute.xlu0 %2946
        %2948 = vrot.lane.b32.xlu0 %v933, 64
        %v2949 = vpop.permute.xlu0 %2948
        %2950 = vrot.lane.b32.xlu0 %v938, 64
        %v2951 = vpop.permute.xlu0 %2950
        %2952 = vrot.lane.b32.xlu0 %v943, 64
        %v2953 = vpop.permute.xlu0 %2952
        %2954 = vrot.lane.b32.xlu0 %v948, 64
        %v2955 = vpop.permute.xlu0 %2954
        %2956 = vrot.lane.b32.xlu0 %v953, 64
        %v2957 = vpop.permute.xlu0 %2956
        %2958 = vrot.lane.b32.xlu0 %v958, 64
        %v2959 = vpop.permute.xlu0 %2958
        %2960 = vrot.lane.b32.xlu0 %v963, 64
        %v2961 = vpop.permute.xlu0 %2960
        %2962 = vrot.lane.b32.xlu0 %v968, 64
        %v2963 = vpop.permute.xlu0 %2962
        %2964 = vrot.lane.b32.xlu0 %v973, 64
        %v2965 = vpop.permute.xlu0 %2964
        %2966 = vrot.lane.b32.xlu0 %v978, 64
        %v2967 = vpop.permute.xlu0 %2966
        %2968 = vrot.lane.b32.xlu0 %v983, 64
        %v2969 = vpop.permute.xlu0 %2968
        %2970 = vrot.lane.b32.xlu0 %v988, 64
        %v2971 = vpop.permute.xlu0 %2970
        %2972 = vrot.lane.b32.xlu0 %v1065, 64
        %v2973 = vpop.permute.xlu0 %2972
        %2974 = vrot.lane.b32.xlu0 %v1070, 64
        %v2975 = vpop.permute.xlu0 %2974
        %2976 = vrot.lane.b32.xlu0 %v1075, 64
        %v2977 = vpop.permute.xlu0 %2976
        %2978 = vrot.lane.b32.xlu0 %v1080, 64
        %v2979 = vpop.permute.xlu0 %2978
        %2980 = vrot.lane.b32.xlu0 %v1085, 64
        %v2981 = vpop.permute.xlu0 %2980
        %2982 = vrot.lane.b32.xlu0 %v1090, 64
        %v2983 = vpop.permute.xlu0 %2982
        %2984 = vrot.lane.b32.xlu0 %v1095, 64
        %v2985 = vpop.permute.xlu0 %2984
        %2986 = vrot.lane.b32.xlu0 %v1100, 64
        %v2987 = vpop.permute.xlu0 %2986
        %2988 = vrot.lane.b32.xlu0 %v1105, 64
        %v2989 = vpop.permute.xlu0 %2988
        %2990 = vrot.lane.b32.xlu0 %v1110, 64
        %v2991 = vpop.permute.xlu0 %2990
        %2992 = vrot.lane.b32.xlu0 %v1115, 64
        %v2993 = vpop.permute.xlu0 %2992
        %2994 = vrot.lane.b32.xlu0 %v1120, 64
        %v2995 = vpop.permute.xlu0 %2994
        %2996 = vrot.lane.b32.xlu0 %v1125, 64
        %v2997 = vpop.permute.xlu0 %2996
        %2998 = vrot.lane.b32.xlu0 %v1130, 64
        %v2999 = vpop.permute.xlu0 %2998
        %3000 = vrot.lane.b32.xlu0 %v1135, 64
        %v3001 = vpop.permute.xlu0 %3000
        %v3002 = vsel %vm1285, %v2943, 0
        %v3004 = vsel %vm1285, %v2945, 0
        %v3006 = vsel %vm1285, %v2947, 0
        %v3008 = vsel %vm1285, %v2949, 0
        %v3010 = vsel %vm1285, %v2951, 0
        %v3012 = vsel %vm1285, %v2953, 0
        %v3014 = vsel %vm1285, %v2955, 0
        %v3016 = vsel %vm1285, %v2957, 0
        %v3018 = vsel %vm1285, %v2959, 0
        %v3020 = vsel %vm1285, %v2961, 0
        %v3022 = vsel %vm1285, %v2963, 0
        %v3024 = vsel %vm1285, %v2965, 0
        %v3026 = vsel %vm1285, %v2967, 0
        %v3028 = vsel %vm1285, %v2969, 0
        %v3030 = vsel %vm1285, %v2971, 0
        %v3032 = vsel %vm1285, %v2973, 0
        %v3034 = vsel %vm1285, %v2975, 0
        %v3036 = vsel %vm1285, %v2977, 0
        %v3038 = vsel %vm1285, %v2979, 0
        %v3040 = vsel %vm1285, %v2981, 0
        %v3042 = vsel %vm1285, %v2983, 0
        %v3044 = vsel %vm1285, %v2985, 0
        %v3046 = vsel %vm1285, %v2987, 0
        %v3048 = vsel %vm1285, %v2989, 0
        %v3050 = vsel %vm1285, %v2991, 0
        %v3052 = vsel %vm1285, %v2993, 0
        %v3054 = vsel %vm1285, %v2995, 0
        %v3056 = vsel %vm1285, %v2997, 0
        %v3058 = vsel %vm1285, %v2999, 0
        %v3060 = vsel %vm1285, %v3001, 0
        %3062 = vmatprep.subr.mxu0 0.0
        %3063 = vmatpush1.xpose.msra.mxu0 %v3032
        %3064 = vmatprep.subr.mxu0 0.0
        %3065 = vmatpush1.xpose.msra.mxu0 %v3034
        %3066 = vmatprep.subr.mxu0 0.0
        %3067 = vmatpush1.xpose.msra.mxu0 %v3036
        %3068 = vmatprep.subr.mxu0 0.0
        %3069 = vmatpush1.xpose.msra.mxu0 %v3038
        %3070 = vmatprep.subr.mxu0 0.0
        %3071 = vmatpush1.xpose.msra.mxu0 %v3040
        %3072 = vmatprep.subr.mxu0 0.0
        %3073 = vmatpush1.xpose.msra.mxu0 %v3042
        %3074 = vmatprep.subr.mxu0 0.0
        %3075 = vmatpush1.xpose.msra.mxu0 %v3044
        %3076 = vmatprep.subr.mxu0 0.0
        %3077 = vmatpush1.xpose.msra.mxu0 %v3046
        %3078 = vmatprep.subr.mxu0 0.0
        %3079 = vmatpush1.xpose.msra.mxu0 %v3048
        %3080 = vmatprep.subr.mxu0 0.0
        %3081 = vmatpush1.xpose.msra.mxu0 %v3050
        %3082 = vmatprep.subr.mxu0 0.0
        %3083 = vmatpush1.xpose.msra.mxu0 %v3052
        %3084 = vmatprep.subr.mxu0 0.0
        %3085 = vmatpush1.xpose.msra.mxu0 %v3054
        %3086 = vmatprep.subr.mxu0 0.0
        %3087 = vmatpush1.xpose.msra.mxu0 %v3056
        %3088 = vmatprep.subr.mxu0 0.0
        %3089 = vmatpush1.xpose.msra.mxu0 %v3058
        %3090 = vmatprep.subr.mxu0 0.0
        %3091 = vmatpush1.xpose.msra.mxu0 %v3060
        %3092 = vmatprep.subr.mxu0 0.0
        %3093 = vmatpush1.xpose.msra.mxu0 0.0
        %3094 = vmatprep.subr.mxu0 0.0
        %3095 = vmatpush1.xpose.msra.mxu0 0.0
        %3096 = vmatprep.subr.mxu0 0.0
        %3097 = vmatpush1.xpose.msra.mxu0 0.0
        %3098 = vmatprep.subr.mxu0 0.0
        %3099 = vmatpush1.xpose.msra.mxu0 0.0
        %3100 = vmatprep.subr.mxu0 0.0
        %3101 = vmatpush1.xpose.msra.mxu0 0.0
        %3102 = vmatprep.subr.mxu0 0.0
        %3103 = vmatpush1.xpose.msra.mxu0 0.0
        %3104 = vmatprep.subr.mxu0 0.0
        %3105 = vmatpush1.xpose.msra.mxu0 0.0
        %3106 = vmatprep.subr.mxu0 0.0
        %3107 = vmatpush1.xpose.msra.mxu0 0.0
        %3108 = vmatprep.subr.mxu0 0.0
        %3109 = vmatpush1.xpose.msra.mxu0 0.0
        %3110 = vmatprep.subr.mxu0 0.0
        %3111 = vmatpush1.xpose.msra.mxu0 0.0
        %3112 = vmatprep.subr.mxu0 0.0
        %3113 = vmatpush1.xpose.msra.mxu0 0.0
        %3114 = vmatprep.subr.mxu0 0.0
        %3115 = vmatpush1.xpose.msra.mxu0 0.0
        %3116 = vmatprep.subr.mxu0 0.0
        %3117 = vmatpush1.xpose.msra.mxu0 0.0
        %3118 = vmatprep.subr.mxu0 0.0
        %3119 = vmatpush1.xpose.msra.mxu0 0.0
        %3120 = vmatprep.subr.mxu0 0.0
        %3121 = vmatpush1.xpose.msra.mxu0 0.0
        %3122 = vmatprep.subr.mxu0 0.0
        %3123 = vmatpush1.xpose.msra.mxu0 0.0
        %3124 = vmatprep.subr.mxu0 0.0
        %3125 = vmatpush1.xpose.msra.mxu0 0.0
        %3126 = vmatprep.mubr.f32.mxu0 0.0
        %3127 = vmatmul.mubr.f32.gmra.mrb[0].mxu0 %v3002
        %v3128 = vpop.f32.mrb[0].mxu0
        %v3129 = vadd.f32 0.0, %v3128
        %v3130 = vpop.f32.mrb[0].mxu0
        %3131 = vmatprep.mubr.f32.mxu0 0.0
        %3132 = vmatmul.mubr.f32.gmra.mrb[0].mxu0 %v3004
        %v3133 = vpop.f32.mrb[0].mxu0
        %v3134 = vadd.f32 0.0, %v3133
        %v3135 = vpop.f32.mrb[0].mxu0
        %3136 = vmatprep.mubr.f32.mxu0 0.0
        %3137 = vmatmul.mubr.f32.gmra.mrb[0].mxu0 %v3006
        %v3138 = vpop.f32.mrb[0].mxu0
        %v3139 = vadd.f32 0.0, %v3138
        %v3140 = vpop.f32.mrb[0].mxu0
        %3141 = vmatprep.mubr.f32.mxu0 0.0
        %3142 = vmatmul.mubr.f32.gmra.mrb[0].mxu0 %v3008
        %v3143 = vpop.f32.mrb[0].mxu0
        %v3144 = vadd.f32 0.0, %v3143
        %v3145 = vpop.f32.mrb[0].mxu0
        %3146 = vmatprep.mubr.f32.mxu0 0.0
        %3147 = vmatmul.mubr.f32.gmra.mrb[0].mxu0 %v3010
        %v3148 = vpop.f32.mrb[0].mxu0
        %v3149 = vadd.f32 0.0, %v3148
        %v3150 = vpop.f32.mrb[0].mxu0
        %3151 = vmatprep.mubr.f32.mxu0 0.0
        %3152 = vmatmul.mubr.f32.gmra.mrb[0].mxu0 %v3012
        %v3153 = vpop.f32.mrb[0].mxu0
        %v3154 = vadd.f32 0.0, %v3153
        %v3155 = vpop.f32.mrb[0].mxu0
        %3156 = vmatprep.mubr.f32.mxu0 0.0
        %3157 = vmatmul.mubr.f32.gmra.mrb[0].mxu0 %v3014
        %v3158 = vpop.f32.mrb[0].mxu0
        %v3159 = vadd.f32 0.0, %v3158
        %v3160 = vpop.f32.mrb[0].mxu0
        %3161 = vmatprep.mubr.f32.mxu0 0.0
        %3162 = vmatmul.mubr.f32.gmra.mrb[0].mxu0 %v3016
        %v3163 = vpop.f32.mrb[0].mxu0
        %v3164 = vadd.f32 0.0, %v3163
        %v3165 = vpop.f32.mrb[0].mxu0
        %3166 = vmatprep.mubr.f32.mxu0 0.0
        %3167 = vmatmul.mubr.f32.gmra.mrb[0].mxu0 %v3018
        %v3168 = vpop.f32.mrb[0].mxu0
        %v3169 = vadd.f32 0.0, %v3168
        %v3170 = vpop.f32.mrb[0].mxu0
        %3171 = vmatprep.mubr.f32.mxu0 0.0
        %3172 = vmatmul.mubr.f32.gmra.mrb[0].mxu0 %v3020
        %v3173 = vpop.f32.mrb[0].mxu0
        %v3174 = vadd.f32 0.0, %v3173
        %v3175 = vpop.f32.mrb[0].mxu0
        %3176 = vmatprep.mubr.f32.mxu0 0.0
        %3177 = vmatmul.mubr.f32.gmra.mrb[0].mxu0 %v3022
        %v3178 = vpop.f32.mrb[0].mxu0
        %v3179 = vadd.f32 0.0, %v3178
        %v3180 = vpop.f32.mrb[0].mxu0
        %3181 = vmatprep.mubr.f32.mxu0 0.0
        %3182 = vmatmul.mubr.f32.gmra.mrb[0].mxu0 %v3024
        %v3183 = vpop.f32.mrb[0].mxu0
        %v3184 = vadd.f32 0.0, %v3183
        %v3185 = vpop.f32.mrb[0].mxu0
        %3186 = vmatprep.mubr.f32.mxu0 0.0
        %3187 = vmatmul.mubr.f32.gmra.mrb[0].mxu0 %v3026
        %v3188 = vpop.f32.mrb[0].mxu0
        %v3189 = vadd.f32 0.0, %v3188
        %v3190 = vpop.f32.mrb[0].mxu0
        %3191 = vmatprep.mubr.f32.mxu0 0.0
        %3192 = vmatmul.mubr.f32.gmra.mrb[0].mxu0 %v3028
        %v3193 = vpop.f32.mrb[0].mxu0
        %v3194 = vadd.f32 0.0, %v3193
        %v3195 = vpop.f32.mrb[0].mxu0
        %3196 = vmatprep.mubr.f32.mxu0 0.0
        %3197 = vmatmul.mubr.f32.gmra.mrb[0].mxu0 %v3030
        %v3198 = vpop.f32.mrb[0].mxu0
        %v3199 = vadd.f32 0.0, %v3198
        %v3200 = vpop.f32.mrb[0].mxu0
        %3201 = vdwg.mxu0
        %v3202 = vmul.f32 %v3129, 0.17677669
        %v3203 = vmul.f32 %v3134, 0.17677669
        %v3204 = vmul.f32 %v3139, 0.17677669
        %v3205 = vmul.f32 %v3144, 0.17677669
        %v3206 = vmul.f32 %v3149, 0.17677669
        %v3207 = vmul.f32 %v3154, 0.17677669
        %v3208 = vmul.f32 %v3159, 0.17677669
        %v3209 = vmul.f32 %v3164, 0.17677669
        %v3210 = vmul.f32 %v3169, 0.17677669
        %v3211 = vmul.f32 %v3174, 0.17677669
        %v3212 = vmul.f32 %v3179, 0.17677669
        %v3213 = vmul.f32 %v3184, 0.17677669
        %v3214 = vmul.f32 %v3189, 0.17677669
        %v3215 = vmul.f32 %v3194, 0.17677669
        %v3216 = vmul.f32 %v3199, 0.17677669
        %v3217 = vsel %vm1531, %v3202, -inf
        %3218 = vmax.xlane.f32.xlu0 %v3217
        %v3219 = vpop.xlane.xlu0 %3218
        %v3220 = vsel %vm1531, %v3203, -inf
        %3221 = vmax.xlane.f32.xlu0 %v3220
        %v3222 = vpop.xlane.xlu0 %3221
        %v3223 = vsel %vm1531, %v3204, -inf
        %3224 = vmax.xlane.f32.xlu0 %v3223
        %v3225 = vpop.xlane.xlu0 %3224
        %v3226 = vsel %vm1531, %v3205, -inf
        %3227 = vmax.xlane.f32.xlu0 %v3226
        %v3228 = vpop.xlane.xlu0 %3227
        %v3229 = vsel %vm1531, %v3206, -inf
        %3230 = vmax.xlane.f32.xlu0 %v3229
        %v3231 = vpop.xlane.xlu0 %3230
        %v3232 = vsel %vm1531, %v3207, -inf
        %3233 = vmax.xlane.f32.xlu0 %v3232
        %v3234 = vpop.xlane.xlu0 %3233
        %v3235 = vsel %vm1531, %v3208, -inf
        %3236 = vmax.xlane.f32.xlu0 %v3235
        %v3237 = vpop.xlane.xlu0 %3236
        %v3238 = vsel %vm1531, %v3209, -inf
        %3239 = vmax.xlane.f32.xlu0 %v3238
        %v3240 = vpop.xlane.xlu0 %3239
        %v3241 = vsel %vm1531, %v3210, -inf
        %3242 = vmax.xlane.f32.xlu0 %v3241
        %v3243 = vpop.xlane.xlu0 %3242
        %v3244 = vsel %vm1531, %v3211, -inf
        %3245 = vmax.xlane.f32.xlu0 %v3244
        %v3246 = vpop.xlane.xlu0 %3245
        %v3247 = vsel %vm1531, %v3212, -inf
        %3248 = vmax.xlane.f32.xlu0 %v3247
        %v3249 = vpop.xlane.xlu0 %3248
        %v3250 = vsel %vm1531, %v3213, -inf
        %3251 = vmax.xlane.f32.xlu0 %v3250
        %v3252 = vpop.xlane.xlu0 %3251
        %v3253 = vsel %vm1531, %v3214, -inf
        %3254 = vmax.xlane.f32.xlu0 %v3253
        %v3255 = vpop.xlane.xlu0 %3254
        %v3256 = vsel %vm1531, %v3215, -inf
        %3257 = vmax.xlane.f32.xlu0 %v3256
        %v3258 = vpop.xlane.xlu0 %3257
        %v3259 = vsel %vm1574, %v3216, -inf
        %3260 = vmax.xlane.f32.xlu0 %v3259
        %v3261 = vpop.xlane.xlu0 %3260
        %v3262 = vsub.f32 %v3202, %v3219
        %v3263 = vsub.f32 %v3203, %v3222
        %v3264 = vsub.f32 %v3204, %v3225
        %v3265 = vsub.f32 %v3205, %v3228
        %v3266 = vsub.f32 %v3206, %v3231
        %v3267 = vsub.f32 %v3207, %v3234
        %v3268 = vsub.f32 %v3208, %v3237
        %v3269 = vsub.f32 %v3209, %v3240
        %v3270 = vsub.f32 %v3210, %v3243
        %v3271 = vsub.f32 %v3211, %v3246
        %v3272 = vsub.f32 %v3212, %v3249
        %v3273 = vsub.f32 %v3213, %v3252
        %v3274 = vsub.f32 %v3214, %v3255
        %v3275 = vsub.f32 %v3215, %v3258
        %v3276 = vsub.f32 %v3216, %v3261
        %v3277 = vmul.f32 %v3262, 1.442695
        %v3278 = vpow.pop %v3277
        %v3279 = vmul.f32 %v3263, 1.442695
        %v3280 = vpow.pop %v3279
        %v3281 = vmul.f32 %v3264, 1.442695
        %v3282 = vpow.pop %v3281
        %v3283 = vmul.f32 %v3265, 1.442695
        %v3284 = vpow.pop %v3283
        %v3285 = vmul.f32 %v3266, 1.442695
        %v3286 = vpow.pop %v3285
        %v3287 = vmul.f32 %v3267, 1.442695
        %v3288 = vpow.pop %v3287
        %v3289 = vmul.f32 %v3268, 1.442695
        %v3290 = vpow.pop %v3289
        %v3291 = vmul.f32 %v3269, 1.442695
        %v3292 = vpow.pop %v3291
        %v3293 = vmul.f32 %v3270, 1.442695
        %v3294 = vpow.pop %v3293
        %v3295 = vmul.f32 %v3271, 1.442695
        %v3296 = vpow.pop %v3295
        %v3297 = vmul.f32 %v3272, 1.442695
        %v3298 = vpow.pop %v3297
        %v3299 = vmul.f32 %v3273, 1.442695
        %v3300 = vpow.pop %v3299
        %v3301 = vmul.f32 %v3274, 1.442695
        %v3302 = vpow.pop %v3301
        %v3303 = vmul.f32 %v3275, 1.442695
        %v3304 = vpow.pop %v3303
        %v3305 = vmul.f32 %v3276, 1.442695
        %v3306 = vpow.pop %v3305
        %v3307 = vsel %vm1531, %v3278, 0.0
        %3308 = vadd.xlane.f32.xlu0 %v3307
        %v3309 = vpop.xlane.xlu0 %3308
        %v3310 = vsel %vm1531, %v3280, 0.0
        %3311 = vadd.xlane.f32.xlu0 %v3310
        %v3312 = vpop.xlane.xlu0 %3311
        %v3313 = vsel %vm1531, %v3282, 0.0
        %3314 = vadd.xlane.f32.xlu0 %v3313
        %v3315 = vpop.xlane.xlu0 %3314
        %v3316 = vsel %vm1531, %v3284, 0.0
        %3317 = vadd.xlane.f32.xlu0 %v3316
        %v3318 = vpop.xlane.xlu0 %3317
        %v3319 = vsel %vm1531, %v3286, 0.0
        %3320 = vadd.xlane.f32.xlu0 %v3319
        %v3321 = vpop.xlane.xlu0 %3320
        %v3322 = vsel %vm1531, %v3288, 0.0
        %3323 = vadd.xlane.f32.xlu0 %v3322
        %v3324 = vpop.xlane.xlu0 %3323
        %v3325 = vsel %vm1531, %v3290, 0.0
        %3326 = vadd.xlane.f32.xlu0 %v3325
        %v3327 = vpop.xlane.xlu0 %3326
        %v3328 = vsel %vm1531, %v3292, 0.0
        %3329 = vadd.xlane.f32.xlu0 %v3328
        %v3330 = vpop.xlane.xlu0 %3329
        %v3331 = vsel %vm1531, %v3294, 0.0
        %3332 = vadd.xlane.f32.xlu0 %v3331
        %v3333 = vpop.xlane.xlu0 %3332
        %v3334 = vsel %vm1531, %v3296, 0.0
        %3335 = vadd.xlane.f32.xlu0 %v3334
        %v3336 = vpop.xlane.xlu0 %3335
        %v3337 = vsel %vm1531, %v3298, 0.0
        %3338 = vadd.xlane.f32.xlu0 %v3337
        %v3339 = vpop.xlane.xlu0 %3338
        %v3340 = vsel %vm1531, %v3300, 0.0
        %3341 = vadd.xlane.f32.xlu0 %v3340
        %v3342 = vpop.xlane.xlu0 %3341
        %v3343 = vsel %vm1531, %v3302, 0.0
        %3344 = vadd.xlane.f32.xlu0 %v3343
        %v3345 = vpop.xlane.xlu0 %3344
        %v3346 = vsel %vm1531, %v3304, 0.0
        %3347 = vadd.xlane.f32.xlu0 %v3346
        %v3348 = vpop.xlane.xlu0 %3347
        %v3349 = vsel %vm1574, %v3306, 0.0
        %3350 = vadd.xlane.f32.xlu0 %v3349
        %v3351 = vpop.xlane.xlu0 %3350
        %v3352 = vrcp.pop %v3309
        %v3353 = vrcp.pop %v3312
        %v3354 = vrcp.pop %v3315
        %v3355 = vrcp.pop %v3318
        %v3356 = vrcp.pop %v3321
        %v3357 = vrcp.pop %v3324
        %v3358 = vrcp.pop %v3327
        %v3359 = vrcp.pop %v3330
        %v3360 = vrcp.pop %v3333
        %v3361 = vrcp.pop %v3336
        %v3362 = vrcp.pop %v3339
        %v3363 = vrcp.pop %v3342
        %v3364 = vrcp.pop %v3345
        %v3365 = vrcp.pop %v3348
        %v3366 = vrcp.pop %v3351
        %v3367 = vmul.f32 %v3278, %v3352
        %v3368 = vmul.f32 %v3280, %v3353
        %v3369 = vmul.f32 %v3282, %v3354
        %v3370 = vmul.f32 %v3284, %v3355
        %v3371 = vmul.f32 %v3286, %v3356
        %v3372 = vmul.f32 %v3288, %v3357
        %v3373 = vmul.f32 %v3290, %v3358
        %v3374 = vmul.f32 %v3292, %v3359
        %v3375 = vmul.f32 %v3294, %v3360
        %v3376 = vmul.f32 %v3296, %v3361
        %v3377 = vmul.f32 %v3298, %v3362
        %v3378 = vmul.f32 %v3300, %v3363
        %v3379 = vmul.f32 %v3302, %v3364
        %v3380 = vmul.f32 %v3304, %v3365
        %v3381 = vmul.f32 %v3306, %v3366
        %3382 = vrot.lane.b32.xlu0 %v1212, 64
        %v3383 = vpop.permute.xlu0 %3382
        %3384 = vrot.lane.b32.xlu0 %v1217, 64
        %v3385 = vpop.permute.xlu0 %3384
        %3386 = vrot.lane.b32.xlu0 %v1222, 64
        %v3387 = vpop.permute.xlu0 %3386
        %3388 = vrot.lane.b32.xlu0 %v1227, 64
        %v3389 = vpop.permute.xlu0 %3388
        %3390 = vrot.lane.b32.xlu0 %v1232, 64
        %v3391 = vpop.permute.xlu0 %3390
        %3392 = vrot.lane.b32.xlu0 %v1237, 64
        %v3393 = vpop.permute.xlu0 %3392
        %3394 = vrot.lane.b32.xlu0 %v1242, 64
        %v3395 = vpop.permute.xlu0 %3394
        %3396 = vrot.lane.b32.xlu0 %v1247, 64
        %v3397 = vpop.permute.xlu0 %3396
        %3398 = vrot.lane.b32.xlu0 %v1252, 64
        %v3399 = vpop.permute.xlu0 %3398
        %3400 = vrot.lane.b32.xlu0 %v1257, 64
        %v3401 = vpop.permute.xlu0 %3400
        %3402 = vrot.lane.b32.xlu0 %v1262, 64
        %v3403 = vpop.permute.xlu0 %3402
        %3404 = vrot.lane.b32.xlu0 %v1267, 64
        %v3405 = vpop.permute.xlu0 %3404
        %3406 = vrot.lane.b32.xlu0 %v1272, 64
        %v3407 = vpop.permute.xlu0 %3406
        %3408 = vrot.lane.b32.xlu0 %v1277, 64
        %v3409 = vpop.permute.xlu0 %3408
        %3410 = vrot.lane.b32.xlu0 %v1282, 64
        %v3411 = vpop.permute.xlu0 %3410
        %v3427 = vsel %vm1531, %v3367, 0
        %v3430 = vsel %vm1531, %v3368, 0
        %v3433 = vsel %vm1531, %v3369, 0
        %v3436 = vsel %vm1531, %v3370, 0
        %v3439 = vsel %vm1531, %v3371, 0
        %v3442 = vsel %vm1531, %v3372, 0
        %v3445 = vsel %vm1531, %v3373, 0
        %v3448 = vsel %vm1531, %v3374, 0
        %v3451 = vsel %vm1531, %v3375, 0
        %v3454 = vsel %vm1531, %v3376, 0
        %v3457 = vsel %vm1531, %v3377, 0
        %v3460 = vsel %vm1531, %v3378, 0
        %v3463 = vsel %vm1531, %v3379, 0
        %v3466 = vsel %vm1531, %v3380, 0
        %v3469 = vsel %vm1531, %v3381, 0
        %v3471 = vsel %vm1743, %v3411, 0
        %3473 = vmatprep.subr.mxu0 0.0
        %3474 = vmatpush1.msra.mxu0 %v3383
        %3475 = vmatprep.subr.mxu0 0.0
        %3476 = vmatpush1.msra.mxu0 %v3385
        %3477 = vmatprep.subr.mxu0 0.0
        %3478 = vmatpush1.msra.mxu0 %v3387
        %3479 = vmatprep.subr.mxu0 0.0
        %3480 = vmatpush1.msra.mxu0 %v3389
        %3481 = vmatprep.subr.mxu0 0.0
        %3482 = vmatpush1.msra.mxu0 %v3391
        %3483 = vmatprep.subr.mxu0 0.0
        %3484 = vmatpush1.msra.mxu0 %v3393
        %3485 = vmatprep.subr.mxu0 0.0
        %3486 = vmatpush1.msra.mxu0 %v3395
        %3487 = vmatprep.subr.mxu0 0.0
        %3488 = vmatpush1.msra.mxu0 %v3397
        %3489 = vmatprep.subr.mxu0 0.0
        %3490 = vmatpush1.msra.mxu0 %v3399
        %3491 = vmatprep.subr.mxu0 0.0
        %3492 = vmatpush1.msra.mxu0 %v3401
        %3493 = vmatprep.subr.mxu0 0.0
        %3494 = vmatpush1.msra.mxu0 %v3403
        %3495 = vmatprep.subr.mxu0 0.0
        %3496 = vmatpush1.msra.mxu0 %v3405
        %3497 = vmatprep.subr.mxu0 0.0
        %3498 = vmatpush1.msra.mxu0 %v3407
        %3499 = vmatprep.subr.mxu0 0.0
        %3500 = vmatpush1.msra.mxu0 %v3409
        %3501 = vmatprep.subr.mxu0 0.0
        %3502 = vmatpush1.msra.mxu0 %v3471
        %3503 = vmatprep.subr.mxu0 0.0
        %3504 = vmatpush1.msra.mxu0 0.0
        %3505 = vmatprep.subr.mxu0 0.0
        %3506 = vmatpush1.msra.mxu0 0.0
        %3507 = vmatprep.subr.mxu0 0.0
        %3508 = vmatpush1.msra.mxu0 0.0
        %3509 = vmatprep.subr.mxu0 0.0
        %3510 = vmatpush1.msra.mxu0 0.0
        %3511 = vmatprep.subr.mxu0 0.0
        %3512 = vmatpush1.msra.mxu0 0.0
        %3513 = vmatprep.subr.mxu0 0.0
        %3514 = vmatpush1.msra.mxu0 0.0
        %3515 = vmatprep.subr.mxu0 0.0
        %3516 = vmatpush1.msra.mxu0 0.0
        %3517 = vmatprep.subr.mxu0 0.0
        %3518 = vmatpush1.msra.mxu0 0.0
        %3519 = vmatprep.subr.mxu0 0.0
        %3520 = vmatpush1.msra.mxu0 0.0
        %3521 = vmatprep.subr.mxu0 0.0
        %3522 = vmatpush1.msra.mxu0 0.0
        %3523 = vmatprep.subr.mxu0 0.0
        %3524 = vmatpush1.msra.mxu0 0.0
        %3525 = vmatprep.subr.mxu0 0.0
        %3526 = vmatpush1.msra.mxu0 0.0
        %3527 = vmatprep.subr.mxu0 0.0
        %3528 = vmatpush1.msra.mxu0 0.0
        %3529 = vmatprep.subr.mxu0 0.0
        %3530 = vmatpush1.msra.mxu0 0.0
        %3531 = vmatprep.subr.mxu0 0.0
        %3532 = vmatpush1.msra.mxu0 0.0
        %3533 = vmatprep.subr.mxu0 0.0
        %3534 = vmatpush1.msra.mxu0 0.0
        %3535 = vmatprep.subr.mxu0 0.0
        %3536 = vmatpush1.msra.mxu0 0.0
        %3537 = vmatprep.mubr.f32.mxu0 0.0
        %3538 = vmatmul.mubr.f32.gmra.mrb[0].mxu0 %v3427
        %v3539 = vpop.f32.mrb[0].mxu0
        %v3540 = vadd.f32 0.0, %v3539
        %v3541 = vpop.f32.mrb[0].mxu0
        %3542 = vmatprep.mubr.f32.mxu0 0.0
        %3543 = vmatmul.mubr.f32.gmra.mrb[0].mxu0 %v3430
        %v3544 = vpop.f32.mrb[0].mxu0
        %v3545 = vadd.f32 0.0, %v3544
        %v3546 = vpop.f32.mrb[0].mxu0
        %3547 = vmatprep.mubr.f32.mxu0 0.0
        %3548 = vmatmul.mubr.f32.gmra.mrb[0].mxu0 %v3433
        %v3549 = vpop.f32.mrb[0].mxu0
        %v3550 = vadd.f32 0.0, %v3549
        %v3551 = vpop.f32.mrb[0].mxu0
        %3552 = vmatprep.mubr.f32.mxu0 0.0
        %3553 = vmatmul.mubr.f32.gmra.mrb[0].mxu0 %v3436
        %v3554 = vpop.f32.mrb[0].mxu0
        %v3555 = vadd.f32 0.0, %v3554
        %v3556 = vpop.f32.mrb[0].mxu0
        %3557 = vmatprep.mubr.f32.mxu0 0.0
        %3558 = vmatmul.mubr.f32.gmra.mrb[0].mxu0 %v3439
        %v3559 = vpop.f32.mrb[0].mxu0
        %v3560 = vadd.f32 0.0, %v3559
        %v3561 = vpop.f32.mrb[0].mxu0
        %3562 = vmatprep.mubr.f32.mxu0 0.0
        %3563 = vmatmul.mubr.f32.gmra.mrb[0].mxu0 %v3442
        %v3564 = vpop.f32.mrb[0].mxu0
        %v3565 = vadd.f32 0.0, %v3564
        %v3566 = vpop.f32.mrb[0].mxu0
        %3567 = vmatprep.mubr.f32.mxu0 0.0
        %3568 = vmatmul.mubr.f32.gmra.mrb[0].mxu0 %v3445
        %v3569 = vpop.f32.mrb[0].mxu0
        %v3570 = vadd.f32 0.0, %v3569
        %v3571 = vpop.f32.mrb[0].mxu0
        %3572 = vmatprep.mubr.f32.mxu0 0.0
        %3573 = vmatmul.mubr.f32.gmra.mrb[0].mxu0 %v3448
        %v3574 = vpop.f32.mrb[0].mxu0
        %v3575 = vadd.f32 0.0, %v3574
        %v3576 = vpop.f32.mrb[0].mxu0
        %3577 = vmatprep.mubr.f32.mxu0 0.0
        %3578 = vmatmul.mubr.f32.gmra.mrb[0].mxu0 %v3451
        %v3579 = vpop.f32.mrb[0].mxu0
        %v3580 = vadd.f32 0.0, %v3579
        %v3581 = vpop.f32.mrb[0].mxu0
        %3582 = vmatprep.mubr.f32.mxu0 0.0
        %3583 = vmatmul.mubr.f32.gmra.mrb[0].mxu0 %v3454
        %v3584 = vpop.f32.mrb[0].mxu0
        %v3585 = vadd.f32 0.0, %v3584
        %v3586 = vpop.f32.mrb[0].mxu0
        %3587 = vmatprep.mubr.f32.mxu0 0.0
        %3588 = vmatmul.mubr.f32.gmra.mrb[0].mxu0 %v3457
        %v3589 = vpop.f32.mrb[0].mxu0
        %v3590 = vadd.f32 0.0, %v3589
        %v3591 = vpop.f32.mrb[0].mxu0
        %3592 = vmatprep.mubr.f32.mxu0 0.0
        %3593 = vmatmul.mubr.f32.gmra.mrb[0].mxu0 %v3460
        %v3594 = vpop.f32.mrb[0].mxu0
        %v3595 = vadd.f32 0.0, %v3594
        %v3596 = vpop.f32.mrb[0].mxu0
        %3597 = vmatprep.mubr.f32.mxu0 0.0
        %3598 = vmatmul.mubr.f32.gmra.mrb[0].mxu0 %v3463
        %v3599 = vpop.f32.mrb[0].mxu0
        %v3600 = vadd.f32 0.0, %v3599
        %v3601 = vpop.f32.mrb[0].mxu0
        %3602 = vmatprep.mubr.f32.mxu0 0.0
        %3603 = vmatmul.mubr.f32.gmra.mrb[0].mxu0 %v3466
        %v3604 = vpop.f32.mrb[0].mxu0
        %v3605 = vadd.f32 0.0, %v3604
        %v3606 = vpop.f32.mrb[0].mxu0
        %3607 = vmatprep.mubr.f32.mxu0 0.0
        %3608 = vmatmul.mubr.f32.gmra.mrb[0].mxu0 %v3469
        %v3609 = vpop.f32.mrb[0].mxu0
        %v3610 = vadd.f32 0.0, %v3609
        %v3611 = vpop.f32.mrb[0].mxu0
        %3612 = vdwg.mxu0
        %v3614 = vsel %vm1285, %v3540, 0
        %v3617 = vsel %vm1285, %v3545, 0
        %v3620 = vsel %vm1285, %v3550, 0
        %v3623 = vsel %vm1285, %v3555, 0
        %v3626 = vsel %vm1285, %v3560, 0
        %v3629 = vsel %vm1285, %v3565, 0
        %v3632 = vsel %vm1285, %v3570, 0
        %v3635 = vsel %vm1285, %v3575, 0
        %v3638 = vsel %vm1285, %v3580, 0
        %v3641 = vsel %vm1285, %v3585, 0
        %v3644 = vsel %vm1285, %v3590, 0
        %v3647 = vsel %vm1285, %v3595, 0
        %v3650 = vsel %vm1285, %v3600, 0
        %v3653 = vsel %vm1285, %v3605, 0
        %v3656 = vsel %vm1285, %v3610, 0
        %3658 = vmatprep.subr.mxu0 0.0
        %3659 = vmatpush1.msra.mxu0 %v836
        %3660 = vmatprep.subr.mxu0 0.0
        %3661 = vmatpush1.msra.mxu0 %v837
        %3662 = vmatprep.subr.mxu0 0.0
        %3663 = vmatpush1.msra.mxu0 %v838
        %3664 = vmatprep.subr.mxu0 0.0
        %3665 = vmatpush1.msra.mxu0 %v839
        %3666 = vmatprep.subr.mxu0 0.0
        %3667 = vmatpush1.msra.mxu0 0.0
        %3668 = vmatprep.subr.mxu0 0.0
        %3669 = vmatpush1.msra.mxu0 0.0
        %3670 = vmatprep.subr.mxu0 0.0
        %3671 = vmatpush1.msra.mxu0 0.0
        %3672 = vmatprep.subr.mxu0 0.0
        %3673 = vmatpush1.msra.mxu0 0.0
        %3674 = vmatprep.subr.mxu0 0.0
        %3675 = vmatpush1.msra.mxu0 0.0
        %3676 = vmatprep.subr.mxu0 0.0
        %3677 = vmatpush1.msra.mxu0 0.0
        %3678 = vmatprep.subr.mxu0 0.0
        %3679 = vmatpush1.msra.mxu0 0.0
        %3680 = vmatprep.subr.mxu0 0.0
        %3681 = vmatpush1.msra.mxu0 0.0
        %3682 = vmatprep.subr.mxu0 0.0
        %3683 = vmatpush1.msra.mxu0 0.0
        %3684 = vmatprep.subr.mxu0 0.0
        %3685 = vmatpush1.msra.mxu0 0.0
        %3686 = vmatprep.subr.mxu0 0.0
        %3687 = vmatpush1.msra.mxu0 0.0
        %3688 = vmatprep.subr.mxu0 0.0
        %3689 = vmatpush1.msra.mxu0 0.0
        %3690 = vmatprep.subr.mxu0 0.0
        %3691 = vmatpush1.msra.mxu0 0.0
        %3692 = vmatprep.subr.mxu0 0.0
        %3693 = vmatpush1.msra.mxu0 0.0
        %3694 = vmatprep.subr.mxu0 0.0
        %3695 = vmatpush1.msra.mxu0 0.0
        %3696 = vmatprep.subr.mxu0 0.0
        %3697 = vmatpush1.msra.mxu0 0.0
        %3698 = vmatprep.subr.mxu0 0.0
        %3699 = vmatpush1.msra.mxu0 0.0
        %3700 = vmatprep.subr.mxu0 0.0
        %3701 = vmatpush1.msra.mxu0 0.0
        %3702 = vmatprep.subr.mxu0 0.0
        %3703 = vmatpush1.msra.mxu0 0.0
        %3704 = vmatprep.subr.mxu0 0.0
        %3705 = vmatpush1.msra.mxu0 0.0
        %3706 = vmatprep.subr.mxu0 0.0
        %3707 = vmatpush1.msra.mxu0 0.0
        %3708 = vmatprep.subr.mxu0 0.0
        %3709 = vmatpush1.msra.mxu0 0.0
        %3710 = vmatprep.subr.mxu0 0.0
        %3711 = vmatpush1.msra.mxu0 0.0
        %3712 = vmatprep.subr.mxu0 0.0
        %3713 = vmatpush1.msra.mxu0 0.0
        %3714 = vmatprep.subr.mxu0 0.0
        %3715 = vmatpush1.msra.mxu0 0.0
        %3716 = vmatprep.subr.mxu0 0.0
        %3717 = vmatpush1.msra.mxu0 0.0
        %3718 = vmatprep.subr.mxu0 0.0
        %3719 = vmatpush1.msra.mxu0 0.0
        %3720 = vmatprep.subr.mxu0 0.0
        %3721 = vmatpush1.msra.mxu0 0.0
        %3722 = vmatprep.mubr.f32.mxu0 0.0
        %3723 = vmatmul.mubr.f32.gmra.mrb[0].mxu0 %v3614
        %v3724 = vpop.f32.mrb[0].mxu0
        %v3725 = vadd.f32 0.0, %v3724
        %v3726 = vpop.f32.mrb[0].mxu0
        %3727 = vmatprep.mubr.f32.mxu0 0.0
        %3728 = vmatmul.mubr.f32.gmra.mrb[0].mxu0 %v3617
        %v3729 = vpop.f32.mrb[0].mxu0
        %v3730 = vadd.f32 0.0, %v3729
        %v3731 = vpop.f32.mrb[0].mxu0
        %3732 = vmatprep.mubr.f32.mxu0 0.0
        %3733 = vmatmul.mubr.f32.gmra.mrb[0].mxu0 %v3620
        %v3734 = vpop.f32.mrb[0].mxu0
        %v3735 = vadd.f32 0.0, %v3734
        %v3736 = vpop.f32.mrb[0].mxu0
        %3737 = vmatprep.mubr.f32.mxu0 0.0
        %3738 = vmatmul.mubr.f32.gmra.mrb[0].mxu0 %v3623
        %v3739 = vpop.f32.mrb[0].mxu0
        %v3740 = vadd.f32 0.0, %v3739
        %v3741 = vpop.f32.mrb[0].mxu0
        %3742 = vmatprep.mubr.f32.mxu0 0.0
        %3743 = vmatmul.mubr.f32.gmra.mrb[0].mxu0 %v3626
        %v3744 = vpop.f32.mrb[0].mxu0
        %v3745 = vadd.f32 0.0, %v3744
        %v3746 = vpop.f32.mrb[0].mxu0
        %3747 = vmatprep.mubr.f32.mxu0 0.0
        %3748 = vmatmul.mubr.f32.gmra.mrb[0].mxu0 %v3629
        %v3749 = vpop.f32.mrb[0].mxu0
        %v3750 = vadd.f32 0.0, %v3749
        %v3751 = vpop.f32.mrb[0].mxu0
        %3752 = vmatprep.mubr.f32.mxu0 0.0
        %3753 = vmatmul.mubr.f32.gmra.mrb[0].mxu0 %v3632
        %v3754 = vpop.f32.mrb[0].mxu0
        %v3755 = vadd.f32 0.0, %v3754
        %v3756 = vpop.f32.mrb[0].mxu0
        %3757 = vmatprep.mubr.f32.mxu0 0.0
        %3758 = vmatmul.mubr.f32.gmra.mrb[0].mxu0 %v3635
        %v3759 = vpop.f32.mrb[0].mxu0
        %v3760 = vadd.f32 0.0, %v3759
        %v3761 = vpop.f32.mrb[0].mxu0
        %3762 = vmatprep.mubr.f32.mxu0 0.0
        %3763 = vmatmul.mubr.f32.gmra.mrb[0].mxu0 %v3638
        %v3764 = vpop.f32.mrb[0].mxu0
        %v3765 = vadd.f32 0.0, %v3764
        %v3766 = vpop.f32.mrb[0].mxu0
        %3767 = vmatprep.mubr.f32.mxu0 0.0
        %3768 = vmatmul.mubr.f32.gmra.mrb[0].mxu0 %v3641
        %v3769 = vpop.f32.mrb[0].mxu0
        %v3770 = vadd.f32 0.0, %v3769
        %v3771 = vpop.f32.mrb[0].mxu0
        %3772 = vmatprep.mubr.f32.mxu0 0.0
        %3773 = vmatmul.mubr.f32.gmra.mrb[0].mxu0 %v3644
        %v3774 = vpop.f32.mrb[0].mxu0
        %v3775 = vadd.f32 0.0, %v3774
        %v3776 = vpop.f32.mrb[0].mxu0
        %3777 = vmatprep.mubr.f32.mxu0 0.0
        %3778 = vmatmul.mubr.f32.gmra.mrb[0].mxu0 %v3647
        %v3779 = vpop.f32.mrb[0].mxu0
        %v3780 = vadd.f32 0.0, %v3779
        %v3781 = vpop.f32.mrb[0].mxu0
        %3782 = vmatprep.mubr.f32.mxu0 0.0
        %3783 = vmatmul.mubr.f32.gmra.mrb[0].mxu0 %v3650
        %v3784 = vpop.f32.mrb[0].mxu0
        %v3785 = vadd.f32 0.0, %v3784
        %v3786 = vpop.f32.mrb[0].mxu0
        %3787 = vmatprep.mubr.f32.mxu0 0.0
        %3788 = vmatmul.mubr.f32.gmra.mrb[0].mxu0 %v3653
        %v3789 = vpop.f32.mrb[0].mxu0
        %v3790 = vadd.f32 0.0, %v3789
        %v3791 = vpop.f32.mrb[0].mxu0
        %3792 = vmatprep.mubr.f32.mxu0 0.0
        %3793 = vmatmul.mubr.f32.gmra.mrb[0].mxu0 %v3656
        %v3794 = vpop.f32.mrb[0].mxu0
        %v3795 = vadd.f32 0.0, %v3794
        %v3796 = vpop.f32.mrb[0].mxu0
        %3797 = vdwg.mxu0
        %v3798 = vadd.f32 %v2869, %v3725
        %v3799 = vadd.f32 %v2874, %v3730
        %v3800 = vadd.f32 %v2879, %v3735
        %v3801 = vadd.f32 %v2884, %v3740
        %v3802 = vadd.f32 %v2889, %v3745
        %v3803 = vadd.f32 %v2894, %v3750
        %v3804 = vadd.f32 %v2899, %v3755
        %v3805 = vadd.f32 %v2904, %v3760
        %v3806 = vadd.f32 %v2909, %v3765
        %v3807 = vadd.f32 %v2914, %v3770
        %v3808 = vadd.f32 %v2919, %v3775
        %v3809 = vadd.f32 %v2924, %v3780
        %v3810 = vadd.f32 %v2929, %v3785
        %v3811 = vadd.f32 %v2934, %v3790
        %v3812 = vadd.f32 %v2939, %v3795
        %3813 = vrot.lane.b32.xlu0 %v918, 32
        %v3814 = vpop.permute.xlu0 %3813
        %3815 = vrot.lane.b32.xlu0 %v923, 32
        %v3816 = vpop.permute.xlu0 %3815
        %3817 = vrot.lane.b32.xlu0 %v928, 32
        %v3818 = vpop.permute.xlu0 %3817
        %3819 = vrot.lane.b32.xlu0 %v933, 32
        %v3820 = vpop.permute.xlu0 %3819
        %3821 = vrot.lane.b32.xlu0 %v938, 32
        %v3822 = vpop.permute.xlu0 %3821
        %3823 = vrot.lane.b32.xlu0 %v943, 32
        %v3824 = vpop.permute.xlu0 %3823
        %3825 = vrot.lane.b32.xlu0 %v948, 32
        %v3826 = vpop.permute.xlu0 %3825
        %3827 = vrot.lane.b32.xlu0 %v953, 32
        %v3828 = vpop.permute.xlu0 %3827
        %3829 = vrot.lane.b32.xlu0 %v958, 32
        %v3830 = vpop.permute.xlu0 %3829
        %3831 = vrot.lane.b32.xlu0 %v963, 32
        %v3832 = vpop.permute.xlu0 %3831
        %3833 = vrot.lane.b32.xlu0 %v968, 32
        %v3834 = vpop.permute.xlu0 %3833
        %3835 = vrot.lane.b32.xlu0 %v973, 32
        %v3836 = vpop.permute.xlu0 %3835
        %3837 = vrot.lane.b32.xlu0 %v978, 32
        %v3838 = vpop.permute.xlu0 %3837
        %3839 = vrot.lane.b32.xlu0 %v983, 32
        %v3840 = vpop.permute.xlu0 %3839
        %3841 = vrot.lane.b32.xlu0 %v988, 32
        %v3842 = vpop.permute.xlu0 %3841
        %3843 = vrot.lane.b32.xlu0 %v1065, 32
        %v3844 = vpop.permute.xlu0 %3843
        %3845 = vrot.lane.b32.xlu0 %v1070, 32
        %v3846 = vpop.permute.xlu0 %3845
        %3847 = vrot.lane.b32.xlu0 %v1075, 32
        %v3848 = vpop.permute.xlu0 %3847
        %3849 = vrot.lane.b32.xlu0 %v1080, 32
        %v3850 = vpop.permute.xlu0 %3849
        %3851 = vrot.lane.b32.xlu0 %v1085, 32
        %v3852 = vpop.permute.xlu0 %3851
        %3853 = vrot.lane.b32.xlu0 %v1090, 32
        %v3854 = vpop.permute.xlu0 %3853
        %3855 = vrot.lane.b32.xlu0 %v1095, 32
        %v3856 = vpop.permute.xlu0 %3855
        %3857 = vrot.lane.b32.xlu0 %v1100, 32
        %v3858 = vpop.permute.xlu0 %3857
        %3859 = vrot.lane.b32.xlu0 %v1105, 32
        %v3860 = vpop.permute.xlu0 %3859
        %3861 = vrot.lane.b32.xlu0 %v1110, 32
        %v3862 = vpop.permute.xlu0 %3861
        %3863 = vrot.lane.b32.xlu0 %v1115, 32
        %v3864 = vpop.permute.xlu0 %3863
        %3865 = vrot.lane.b32.xlu0 %v1120, 32
        %v3866 = vpop.permute.xlu0 %3865
        %3867 = vrot.lane.b32.xlu0 %v1125, 32
        %v3868 = vpop.permute.xlu0 %3867
        %3869 = vrot.lane.b32.xlu0 %v1130, 32
        %v3870 = vpop.permute.xlu0 %3869
        %3871 = vrot.lane.b32.xlu0 %v1135, 32
        %v3872 = vpop.permute.xlu0 %3871
        %v3873 = vsel %vm1285, %v3814, 0
        %v3875 = vsel %vm1285, %v3816, 0
        %v3877 = vsel %vm1285, %v3818, 0
        %v3879 = vsel %vm1285, %v3820, 0
        %v3881 = vsel %vm1285, %v3822, 0
        %v3883 = vsel %vm1285, %v3824, 0
        %v3885 = vsel %vm1285, %v3826, 0
        %v3887 = vsel %vm1285, %v3828, 0
        %v3889 = vsel %vm1285, %v3830, 0
        %v3891 = vsel %vm1285, %v3832, 0
        %v3893 = vsel %vm1285, %v3834, 0
        %v3895 = vsel %vm1285, %v3836, 0
        %v3897 = vsel %vm1285, %v3838, 0
        %v3899 = vsel %vm1285, %v3840, 0
        %v3901 = vsel %vm1285, %v3842, 0
        %v3903 = vsel %vm1285, %v3844, 0
        %v3905 = vsel %vm1285, %v3846, 0
        %v3907 = vsel %vm1285, %v3848, 0
        %v3909 = vsel %vm1285, %v3850, 0
        %v3911 = vsel %vm1285, %v3852, 0
        %v3913 = vsel %vm1285, %v3854, 0
        %v3915 = vsel %vm1285, %v3856, 0
        %v3917 = vsel %vm1285, %v3858, 0
        %v3919 = vsel %vm1285, %v3860, 0
        %v3921 = vsel %vm1285, %v3862, 0
        %v3923 = vsel %vm1285, %v3864, 0
        %v3925 = vsel %vm1285, %v3866, 0
        %v3927 = vsel %vm1285, %v3868, 0
        %v3929 = vsel %vm1285, %v3870, 0
        %v3931 = vsel %vm1285, %v3872, 0
        %3933 = vmatprep.subr.mxu0 0.0
        %3934 = vmatpush1.xpose.msra.mxu0 %v3903
        %3935 = vmatprep.subr.mxu0 0.0
        %3936 = vmatpush1.xpose.msra.mxu0 %v3905
        %3937 = vmatprep.subr.mxu0 0.0
        %3938 = vmatpush1.xpose.msra.mxu0 %v3907
        %3939 = vmatprep.subr.mxu0 0.0
        %3940 = vmatpush1.xpose.msra.mxu0 %v3909
        %3941 = vmatprep.subr.mxu0 0.0
        %3942 = vmatpush1.xpose.msra.mxu0 %v3911
        %3943 = vmatprep.subr.mxu0 0.0
        %3944 = vmatpush1.xpose.msra.mxu0 %v3913
        %3945 = vmatprep.subr.mxu0 0.0
        %3946 = vmatpush1.xpose.msra.mxu0 %v3915
        %3947 = vmatprep.subr.mxu0 0.0
        %3948 = vmatpush1.xpose.msra.mxu0 %v3917
        %3949 = vmatprep.subr.mxu0 0.0
        %3950 = vmatpush1.xpose.msra.mxu0 %v3919
        %3951 = vmatprep.subr.mxu0 0.0
        %3952 = vmatpush1.xpose.msra.mxu0 %v3921
        %3953 = vmatprep.subr.mxu0 0.0
        %3954 = vmatpush1.xpose.msra.mxu0 %v3923
        %3955 = vmatprep.subr.mxu0 0.0
        %3956 = vmatpush1.xpose.msra.mxu0 %v3925
        %3957 = vmatprep.subr.mxu0 0.0
        %3958 = vmatpush1.xpose.msra.mxu0 %v3927
        %3959 = vmatprep.subr.mxu0 0.0
        %3960 = vmatpush1.xpose.msra.mxu0 %v3929
        %3961 = vmatprep.subr.mxu0 0.0
        %3962 = vmatpush1.xpose.msra.mxu0 %v3931
        %3963 = vmatprep.subr.mxu0 0.0
        %3964 = vmatpush1.xpose.msra.mxu0 0.0
        %3965 = vmatprep.subr.mxu0 0.0
        %3966 = vmatpush1.xpose.msra.mxu0 0.0
        %3967 = vmatprep.subr.mxu0 0.0
        %3968 = vmatpush1.xpose.msra.mxu0 0.0
        %3969 = vmatprep.subr.mxu0 0.0
        %3970 = vmatpush1.xpose.msra.mxu0 0.0
        %3971 = vmatprep.subr.mxu0 0.0
        %3972 = vmatpush1.xpose.msra.mxu0 0.0
        %3973 = vmatprep.subr.mxu0 0.0
        %3974 = vmatpush1.xpose.msra.mxu0 0.0
        %3975 = vmatprep.subr.mxu0 0.0
        %3976 = vmatpush1.xpose.msra.mxu0 0.0
        %3977 = vmatprep.subr.mxu0 0.0
        %3978 = vmatpush1.xpose.msra.mxu0 0.0
        %3979 = vmatprep.subr.mxu0 0.0
        %3980 = vmatpush1.xpose.msra.mxu0 0.0
        %3981 = vmatprep.subr.mxu0 0.0
        %3982 = vmatpush1.xpose.msra.mxu0 0.0
        %3983 = vmatprep.subr.mxu0 0.0
        %3984 = vmatpush1.xpose.msra.mxu0 0.0
        %3985 = vmatprep.subr.mxu0 0.0
        %3986 = vmatpush1.xpose.msra.mxu0 0.0
        %3987 = vmatprep.subr.mxu0 0.0
        %3988 = vmatpush1.xpose.msra.mxu0 0.0
        %3989 = vmatprep.subr.mxu0 0.0
        %3990 = vmatpush1.xpose.msra.mxu0 0.0
        %3991 = vmatprep.subr.mxu0 0.0
        %3992 = vmatpush1.xpose.msra.mxu0 0.0
        %3993 = vmatprep.subr.mxu0 0.0
        %3994 = vmatpush1.xpose.msra.mxu0 0.0
        %3995 = vmatprep.subr.mxu0 0.0
        %3996 = vmatpush1.xpose.msra.mxu0 0.0
        %3997 = vmatprep.mubr.f32.mxu0 0.0
        %3998 = vmatmul.mubr.f32.gmra.mrb[0].mxu0 %v3873
        %v3999 = vpop.f32.mrb[0].mxu0
        %v4000 = vadd.f32 0.0, %v3999
        %v4001 = vpop.f32.mrb[0].mxu0
        %4002 = vmatprep.mubr.f32.mxu0 0.0
        %4003 = vmatmul.mubr.f32.gmra.mrb[0].mxu0 %v3875
        %v4004 = vpop.f32.mrb[0].mxu0
        %v4005 = vadd.f32 0.0, %v4004
        %v4006 = vpop.f32.mrb[0].mxu0
        %4007 = vmatprep.mubr.f32.mxu0 0.0
        %4008 = vmatmul.mubr.f32.gmra.mrb[0].mxu0 %v3877
        %v4009 = vpop.f32.mrb[0].mxu0
        %v4010 = vadd.f32 0.0, %v4009
        %v4011 = vpop.f32.mrb[0].mxu0
        %4012 = vmatprep.mubr.f32.mxu0 0.0
        %4013 = vmatmul.mubr.f32.gmra.mrb[0].mxu0 %v3879
        %v4014 = vpop.f32.mrb[0].mxu0
        %v4015 = vadd.f32 0.0, %v4014
        %v4016 = vpop.f32.mrb[0].mxu0
        %4017 = vmatprep.mubr.f32.mxu0 0.0
        %4018 = vmatmul.mubr.f32.gmra.mrb[0].mxu0 %v3881
        %v4019 = vpop.f32.mrb[0].mxu0
        %v4020 = vadd.f32 0.0, %v4019
        %v4021 = vpop.f32.mrb[0].mxu0
        %4022 = vmatprep.mubr.f32.mxu0 0.0
        %4023 = vmatmul.mubr.f32.gmra.mrb[0].mxu0 %v3883
        %v4024 = vpop.f32.mrb[0].mxu0
        %v4025 = vadd.f32 0.0, %v4024
        %v4026 = vpop.f32.mrb[0].mxu0
        %4027 = vmatprep.mubr.f32.mxu0 0.0
        %4028 = vmatmul.mubr.f32.gmra.mrb[0].mxu0 %v3885
        %v4029 = vpop.f32.mrb[0].mxu0
        %v4030 = vadd.f32 0.0, %v4029
        %v4031 = vpop.f32.mrb[0].mxu0
        %4032 = vmatprep.mubr.f32.mxu0 0.0
        %4033 = vmatmul.mubr.f32.gmra.mrb[0].mxu0 %v3887
        %v4034 = vpop.f32.mrb[0].mxu0
        %v4035 = vadd.f32 0.0, %v4034
        %v4036 = vpop.f32.mrb[0].mxu0
        %4037 = vmatprep.mubr.f32.mxu0 0.0
        %4038 = vmatmul.mubr.f32.gmra.mrb[0].mxu0 %v3889
        %v4039 = vpop.f32.mrb[0].mxu0
        %v4040 = vadd.f32 0.0, %v4039
        %v4041 = vpop.f32.mrb[0].mxu0
        %4042 = vmatprep.mubr.f32.mxu0 0.0
        %4043 = vmatmul.mubr.f32.gmra.mrb[0].mxu0 %v3891
        %v4044 = vpop.f32.mrb[0].mxu0
        %v4045 = vadd.f32 0.0, %v4044
        %v4046 = vpop.f32.mrb[0].mxu0
        %4047 = vmatprep.mubr.f32.mxu0 0.0
        %4048 = vmatmul.mubr.f32.gmra.mrb[0].mxu0 %v3893
        %v4049 = vpop.f32.mrb[0].mxu0
        %v4050 = vadd.f32 0.0, %v4049
        %v4051 = vpop.f32.mrb[0].mxu0
        %4052 = vmatprep.mubr.f32.mxu0 0.0
        %4053 = vmatmul.mubr.f32.gmra.mrb[0].mxu0 %v3895
        %v4054 = vpop.f32.mrb[0].mxu0
        %v4055 = vadd.f32 0.0, %v4054
        %v4056 = vpop.f32.mrb[0].mxu0
        %4057 = vmatprep.mubr.f32.mxu0 0.0
        %4058 = vmatmul.mubr.f32.gmra.mrb[0].mxu0 %v3897
        %v4059 = vpop.f32.mrb[0].mxu0
        %v4060 = vadd.f32 0.0, %v4059
        %v4061 = vpop.f32.mrb[0].mxu0
        %4062 = vmatprep.mubr.f32.mxu0 0.0
        %4063 = vmatmul.mubr.f32.gmra.mrb[0].mxu0 %v3899
        %v4064 = vpop.f32.mrb[0].mxu0
        %v4065 = vadd.f32 0.0, %v4064
        %v4066 = vpop.f32.mrb[0].mxu0
        %4067 = vmatprep.mubr.f32.mxu0 0.0
        %4068 = vmatmul.mubr.f32.gmra.mrb[0].mxu0 %v3901
        %v4069 = vpop.f32.mrb[0].mxu0
        %v4070 = vadd.f32 0.0, %v4069
        %v4071 = vpop.f32.mrb[0].mxu0
        %4072 = vdwg.mxu0
        %v4073 = vmul.f32 %v4000, 0.17677669
        %v4074 = vmul.f32 %v4005, 0.17677669
        %v4075 = vmul.f32 %v4010, 0.17677669
        %v4076 = vmul.f32 %v4015, 0.17677669
        %v4077 = vmul.f32 %v4020, 0.17677669
        %v4078 = vmul.f32 %v4025, 0.17677669
        %v4079 = vmul.f32 %v4030, 0.17677669
        %v4080 = vmul.f32 %v4035, 0.17677669
        %v4081 = vmul.f32 %v4040, 0.17677669
        %v4082 = vmul.f32 %v4045, 0.17677669
        %v4083 = vmul.f32 %v4050, 0.17677669
        %v4084 = vmul.f32 %v4055, 0.17677669
        %v4085 = vmul.f32 %v4060, 0.17677669
        %v4086 = vmul.f32 %v4065, 0.17677669
        %v4087 = vmul.f32 %v4070, 0.17677669
        %v4088 = vsel %vm1531, %v4073, -inf
        %4089 = vmax.xlane.f32.xlu0 %v4088
        %v4090 = vpop.xlane.xlu0 %4089
        %v4091 = vsel %vm1531, %v4074, -inf
        %4092 = vmax.xlane.f32.xlu0 %v4091
        %v4093 = vpop.xlane.xlu0 %4092
        %v4094 = vsel %vm1531, %v4075, -inf
        %4095 = vmax.xlane.f32.xlu0 %v4094
        %v4096 = vpop.xlane.xlu0 %4095
        %v4097 = vsel %vm1531, %v4076, -inf
        %4098 = vmax.xlane.f32.xlu0 %v4097
        %v4099 = vpop.xlane.xlu0 %4098
        %v4100 = vsel %vm1531, %v4077, -inf
        %4101 = vmax.xlane.f32.xlu0 %v4100
        %v4102 = vpop.xlane.xlu0 %4101
        %v4103 = vsel %vm1531, %v4078, -inf
        %4104 = vmax.xlane.f32.xlu0 %v4103
        %v4105 = vpop.xlane.xlu0 %4104
        %v4106 = vsel %vm1531, %v4079, -inf
        %4107 = vmax.xlane.f32.xlu0 %v4106
        %v4108 = vpop.xlane.xlu0 %4107
        %v4109 = vsel %vm1531, %v4080, -inf
        %4110 = vmax.xlane.f32.xlu0 %v4109
        %v4111 = vpop.xlane.xlu0 %4110
        %v4112 = vsel %vm1531, %v4081, -inf
        %4113 = vmax.xlane.f32.xlu0 %v4112
        %v4114 = vpop.xlane.xlu0 %4113
        %v4115 = vsel %vm1531, %v4082, -inf
        %4116 = vmax.xlane.f32.xlu0 %v4115
        %v4117 = vpop.xlane.xlu0 %4116
        %v4118 = vsel %vm1531, %v4083, -inf
        %4119 = vmax.xlane.f32.xlu0 %v4118
        %v4120 = vpop.xlane.xlu0 %4119
        %v4121 = vsel %vm1531, %v4084, -inf
        %4122 = vmax.xlane.f32.xlu0 %v4121
        %v4123 = vpop.xlane.xlu0 %4122
        %v4124 = vsel %vm1531, %v4085, -inf
        %4125 = vmax.xlane.f32.xlu0 %v4124
        %v4126 = vpop.xlane.xlu0 %4125
        %v4127 = vsel %vm1531, %v4086, -inf
        %4128 = vmax.xlane.f32.xlu0 %v4127
        %v4129 = vpop.xlane.xlu0 %4128
        %v4130 = vsel %vm1574, %v4087, -inf
        %4131 = vmax.xlane.f32.xlu0 %v4130
        %v4132 = vpop.xlane.xlu0 %4131
        %v4133 = vsub.f32 %v4073, %v4090
        %v4134 = vsub.f32 %v4074, %v4093
        %v4135 = vsub.f32 %v4075, %v4096
        %v4136 = vsub.f32 %v4076, %v4099
        %v4137 = vsub.f32 %v4077, %v4102
        %v4138 = vsub.f32 %v4078, %v4105
        %v4139 = vsub.f32 %v4079, %v4108
        %v4140 = vsub.f32 %v4080, %v4111
        %v4141 = vsub.f32 %v4081, %v4114
        %v4142 = vsub.f32 %v4082, %v4117
        %v4143 = vsub.f32 %v4083, %v4120
        %v4144 = vsub.f32 %v4084, %v4123
        %v4145 = vsub.f32 %v4085, %v4126
        %v4146 = vsub.f32 %v4086, %v4129
        %v4147 = vsub.f32 %v4087, %v4132
        %v4148 = vmul.f32 %v4133, 1.442695
        %v4149 = vpow.pop %v4148
        %v4150 = vmul.f32 %v4134, 1.442695
        %v4151 = vpow.pop %v4150
        %v4152 = vmul.f32 %v4135, 1.442695
        %v4153 = vpow.pop %v4152
        %v4154 = vmul.f32 %v4136, 1.442695
        %v4155 = vpow.pop %v4154
        %v4156 = vmul.f32 %v4137, 1.442695
        %v4157 = vpow.pop %v4156
        %v4158 = vmul.f32 %v4138, 1.442695
        %v4159 = vpow.pop %v4158
        %v4160 = vmul.f32 %v4139, 1.442695
        %v4161 = vpow.pop %v4160
        %v4162 = vmul.f32 %v4140, 1.442695
        %v4163 = vpow.pop %v4162
        %v4164 = vmul.f32 %v4141, 1.442695
        %v4165 = vpow.pop %v4164
        %v4166 = vmul.f32 %v4142, 1.442695
        %v4167 = vpow.pop %v4166
        %v4168 = vmul.f32 %v4143, 1.442695
        %v4169 = vpow.pop %v4168
        %v4170 = vmul.f32 %v4144, 1.442695
        %v4171 = vpow.pop %v4170
        %v4172 = vmul.f32 %v4145, 1.442695
        %v4173 = vpow.pop %v4172
        %v4174 = vmul.f32 %v4146, 1.442695
        %v4175 = vpow.pop %v4174
        %v4176 = vmul.f32 %v4147, 1.442695
        %v4177 = vpow.pop %v4176
        %v4178 = vsel %vm1531, %v4149, 0.0
        %4179 = vadd.xlane.f32.xlu0 %v4178
        %v4180 = vpop.xlane.xlu0 %4179
        %v4181 = vsel %vm1531, %v4151, 0.0
        %4182 = vadd.xlane.f32.xlu0 %v4181
        %v4183 = vpop.xlane.xlu0 %4182
        %v4184 = vsel %vm1531, %v4153, 0.0
        %4185 = vadd.xlane.f32.xlu0 %v4184
        %v4186 = vpop.xlane.xlu0 %4185
        %v4187 = vsel %vm1531, %v4155, 0.0
        %4188 = vadd.xlane.f32.xlu0 %v4187
        %v4189 = vpop.xlane.xlu0 %4188
        %v4190 = vsel %vm1531, %v4157, 0.0
        %4191 = vadd.xlane.f32.xlu0 %v4190
        %v4192 = vpop.xlane.xlu0 %4191
        %v4193 = vsel %vm1531, %v4159, 0.0
        %4194 = vadd.xlane.f32.xlu0 %v4193
        %v4195 = vpop.xlane.xlu0 %4194
        %v4196 = vsel %vm1531, %v4161, 0.0
        %4197 = vadd.xlane.f32.xlu0 %v4196
        %v4198 = vpop.xlane.xlu0 %4197
        %v4199 = vsel %vm1531, %v4163, 0.0
        %4200 = vadd.xlane.f32.xlu0 %v4199
        %v4201 = vpop.xlane.xlu0 %4200
        %v4202 = vsel %vm1531, %v4165, 0.0
        %4203 = vadd.xlane.f32.xlu0 %v4202
        %v4204 = vpop.xlane.xlu0 %4203
        %v4205 = vsel %vm1531, %v4167, 0.0
        %4206 = vadd.xlane.f32.xlu0 %v4205
        %v4207 = vpop.xlane.xlu0 %4206
        %v4208 = vsel %vm1531, %v4169, 0.0
        %4209 = vadd.xlane.f32.xlu0 %v4208
        %v4210 = vpop.xlane.xlu0 %4209
        %v4211 = vsel %vm1531, %v4171, 0.0
        %4212 = vadd.xlane.f32.xlu0 %v4211
        %v4213 = vpop.xlane.xlu0 %4212
        %v4214 = vsel %vm1531, %v4173, 0.0
        %4215 = vadd.xlane.f32.xlu0 %v4214
        %v4216 = vpop.xlane.xlu0 %4215
        %v4217 = vsel %vm1531, %v4175, 0.0
        %4218 = vadd.xlane.f32.xlu0 %v4217
        %v4219 = vpop.xlane.xlu0 %4218
        %v4220 = vsel %vm1574, %v4177, 0.0
        %4221 = vadd.xlane.f32.xlu0 %v4220
        %v4222 = vpop.xlane.xlu0 %4221
        %v4223 = vrcp.pop %v4180
        %v4224 = vrcp.pop %v4183
        %v4225 = vrcp.pop %v4186
        %v4226 = vrcp.pop %v4189
        %v4227 = vrcp.pop %v4192
        %v4228 = vrcp.pop %v4195
        %v4229 = vrcp.pop %v4198
        %v4230 = vrcp.pop %v4201
        %v4231 = vrcp.pop %v4204
        %v4232 = vrcp.pop %v4207
        %v4233 = vrcp.pop %v4210
        %v4234 = vrcp.pop %v4213
        %v4235 = vrcp.pop %v4216
        %v4236 = vrcp.pop %v4219
        %v4237 = vrcp.pop %v4222
        %v4238 = vmul.f32 %v4149, %v4223
        %v4239 = vmul.f32 %v4151, %v4224
        %v4240 = vmul.f32 %v4153, %v4225
        %v4241 = vmul.f32 %v4155, %v4226
        %v4242 = vmul.f32 %v4157, %v4227
        %v4243 = vmul.f32 %v4159, %v4228
        %v4244 = vmul.f32 %v4161, %v4229
        %v4245 = vmul.f32 %v4163, %v4230
        %v4246 = vmul.f32 %v4165, %v4231
        %v4247 = vmul.f32 %v4167, %v4232
        %v4248 = vmul.f32 %v4169, %v4233
        %v4249 = vmul.f32 %v4171, %v4234
        %v4250 = vmul.f32 %v4173, %v4235
        %v4251 = vmul.f32 %v4175, %v4236
        %v4252 = vmul.f32 %v4177, %v4237
        %4253 = vrot.lane.b32.xlu0 %v1212, 32
        %v4254 = vpop.permute.xlu0 %4253
        %4255 = vrot.lane.b32.xlu0 %v1217, 32
        %v4256 = vpop.permute.xlu0 %4255
        %4257 = vrot.lane.b32.xlu0 %v1222, 32
        %v4258 = vpop.permute.xlu0 %4257
        %4259 = vrot.lane.b32.xlu0 %v1227, 32
        %v4260 = vpop.permute.xlu0 %4259
        %4261 = vrot.lane.b32.xlu0 %v1232, 32
        %v4262 = vpop.permute.xlu0 %4261
        %4263 = vrot.lane.b32.xlu0 %v1237, 32
        %v4264 = vpop.permute.xlu0 %4263
        %4265 = vrot.lane.b32.xlu0 %v1242, 32
        %v4266 = vpop.permute.xlu0 %4265
        %4267 = vrot.lane.b32.xlu0 %v1247, 32
        %v4268 = vpop.permute.xlu0 %4267
        %4269 = vrot.lane.b32.xlu0 %v1252, 32
        %v4270 = vpop.permute.xlu0 %4269
        %4271 = vrot.lane.b32.xlu0 %v1257, 32
        %v4272 = vpop.permute.xlu0 %4271
        %4273 = vrot.lane.b32.xlu0 %v1262, 32
        %v4274 = vpop.permute.xlu0 %4273
        %4275 = vrot.lane.b32.xlu0 %v1267, 32
        %v4276 = vpop.permute.xlu0 %4275
        %4277 = vrot.lane.b32.xlu0 %v1272, 32
        %v4278 = vpop.permute.xlu0 %4277
        %4279 = vrot.lane.b32.xlu0 %v1277, 32
        %v4280 = vpop.permute.xlu0 %4279
        %4281 = vrot.lane.b32.xlu0 %v1282, 32
        %v4282 = vpop.permute.xlu0 %4281
        %v4298 = vsel %vm1531, %v4238, 0
        %v4301 = vsel %vm1531, %v4239, 0
        %v4304 = vsel %vm1531, %v4240, 0
        %v4307 = vsel %vm1531, %v4241, 0
        %v4310 = vsel %vm1531, %v4242, 0
        %v4313 = vsel %vm1531, %v4243, 0
        %v4316 = vsel %vm1531, %v4244, 0
        %v4319 = vsel %vm1531, %v4245, 0
        %v4322 = vsel %vm1531, %v4246, 0
        %v4325 = vsel %vm1531, %v4247, 0
        %v4328 = vsel %vm1531, %v4248, 0
        %v4331 = vsel %vm1531, %v4249, 0
        %v4334 = vsel %vm1531, %v4250, 0
        %v4337 = vsel %vm1531, %v4251, 0
        %v4340 = vsel %vm1531, %v4252, 0
        %v4342 = vsel %vm1743, %v4282, 0
        %4344 = vmatprep.subr.mxu0 0.0
        %4345 = vmatpush1.msra.mxu0 %v4254
        %4346 = vmatprep.subr.mxu0 0.0
        %4347 = vmatpush1.msra.mxu0 %v4256
        %4348 = vmatprep.subr.mxu0 0.0
        %4349 = vmatpush1.msra.mxu0 %v4258
        %4350 = vmatprep.subr.mxu0 0.0
        %4351 = vmatpush1.msra.mxu0 %v4260
        %4352 = vmatprep.subr.mxu0 0.0
        %4353 = vmatpush1.msra.mxu0 %v4262
        %4354 = vmatprep.subr.mxu0 0.0
        %4355 = vmatpush1.msra.mxu0 %v4264
        %4356 = vmatprep.subr.mxu0 0.0
        %4357 = vmatpush1.msra.mxu0 %v4266
        %4358 = vmatprep.subr.mxu0 0.0
        %4359 = vmatpush1.msra.mxu0 %v4268
        %4360 = vmatprep.subr.mxu0 0.0
        %4361 = vmatpush1.msra.mxu0 %v4270
        %4362 = vmatprep.subr.mxu0 0.0
        %4363 = vmatpush1.msra.mxu0 %v4272
        %4364 = vmatprep.subr.mxu0 0.0
        %4365 = vmatpush1.msra.mxu0 %v4274
        %4366 = vmatprep.subr.mxu0 0.0
        %4367 = vmatpush1.msra.mxu0 %v4276
        %4368 = vmatprep.subr.mxu0 0.0
        %4369 = vmatpush1.msra.mxu0 %v4278
        %4370 = vmatprep.subr.mxu0 0.0
        %4371 = vmatpush1.msra.mxu0 %v4280
        %4372 = vmatprep.subr.mxu0 0.0
        %4373 = vmatpush1.msra.mxu0 %v4342
        %4374 = vmatprep.subr.mxu0 0.0
        %4375 = vmatpush1.msra.mxu0 0.0
        %4376 = vmatprep.subr.mxu0 0.0
        %4377 = vmatpush1.msra.mxu0 0.0
        %4378 = vmatprep.subr.mxu0 0.0
        %4379 = vmatpush1.msra.mxu0 0.0
        %4380 = vmatprep.subr.mxu0 0.0
        %4381 = vmatpush1.msra.mxu0 0.0
        %4382 = vmatprep.subr.mxu0 0.0
        %4383 = vmatpush1.msra.mxu0 0.0
        %4384 = vmatprep.subr.mxu0 0.0
        %4385 = vmatpush1.msra.mxu0 0.0
        %4386 = vmatprep.subr.mxu0 0.0
        %4387 = vmatpush1.msra.mxu0 0.0
        %4388 = vmatprep.subr.mxu0 0.0
        %4389 = vmatpush1.msra.mxu0 0.0
        %4390 = vmatprep.subr.mxu0 0.0
        %4391 = vmatpush1.msra.mxu0 0.0
        %4392 = vmatprep.subr.mxu0 0.0
        %4393 = vmatpush1.msra.mxu0 0.0
        %4394 = vmatprep.subr.mxu0 0.0
        %4395 = vmatpush1.msra.mxu0 0.0
        %4396 = vmatprep.subr.mxu0 0.0
        %4397 = vmatpush1.msra.mxu0 0.0
        %4398 = vmatprep.subr.mxu0 0.0
        %4399 = vmatpush1.msra.mxu0 0.0
        %4400 = vmatprep.subr.mxu0 0.0
        %4401 = vmatpush1.msra.mxu0 0.0
        %4402 = vmatprep.subr.mxu0 0.0
        %4403 = vmatpush1.msra.mxu0 0.0
        %4404 = vmatprep.subr.mxu0 0.0
        %4405 = vmatpush1.msra.mxu0 0.0
        %4406 = vmatprep.subr.mxu0 0.0
        %4407 = vmatpush1.msra.mxu0 0.0
        %4408 = vmatprep.mubr.f32.mxu0 0.0
        %4409 = vmatmul.mubr.f32.gmra.mrb[0].mxu0 %v4298
        %v4410 = vpop.f32.mrb[0].mxu0
        %v4411 = vadd.f32 0.0, %v4410
        %v4412 = vpop.f32.mrb[0].mxu0
        %4413 = vmatprep.mubr.f32.mxu0 0.0
        %4414 = vmatmul.mubr.f32.gmra.mrb[0].mxu0 %v4301
        %v4415 = vpop.f32.mrb[0].mxu0
        %v4416 = vadd.f32 0.0, %v4415
        %v4417 = vpop.f32.mrb[0].mxu0
        %4418 = vmatprep.mubr.f32.mxu0 0.0
        %4419 = vmatmul.mubr.f32.gmra.mrb[0].mxu0 %v4304
        %v4420 = vpop.f32.mrb[0].mxu0
        %v4421 = vadd.f32 0.0, %v4420
        %v4422 = vpop.f32.mrb[0].mxu0
        %4423 = vmatprep.mubr.f32.mxu0 0.0
        %4424 = vmatmul.mubr.f32.gmra.mrb[0].mxu0 %v4307
        %v4425 = vpop.f32.mrb[0].mxu0
        %v4426 = vadd.f32 0.0, %v4425
        %v4427 = vpop.f32.mrb[0].mxu0
        %4428 = vmatprep.mubr.f32.mxu0 0.0
        %4429 = vmatmul.mubr.f32.gmra.mrb[0].mxu0 %v4310
        %v4430 = vpop.f32.mrb[0].mxu0
        %v4431 = vadd.f32 0.0, %v4430
        %v4432 = vpop.f32.mrb[0].mxu0
        %4433 = vmatprep.mubr.f32.mxu0 0.0
        %4434 = vmatmul.mubr.f32.gmra.mrb[0].mxu0 %v4313
        %v4435 = vpop.f32.mrb[0].mxu0
        %v4436 = vadd.f32 0.0, %v4435
        %v4437 = vpop.f32.mrb[0].mxu0
        %4438 = vmatprep.mubr.f32.mxu0 0.0
        %4439 = vmatmul.mubr.f32.gmra.mrb[0].mxu0 %v4316
        %v4440 = vpop.f32.mrb[0].mxu0
        %v4441 = vadd.f32 0.0, %v4440
        %v4442 = vpop.f32.mrb[0].mxu0
        %4443 = vmatprep.mubr.f32.mxu0 0.0
        %4444 = vmatmul.mubr.f32.gmra.mrb[0].mxu0 %v4319
        %v4445 = vpop.f32.mrb[0].mxu0
        %v4446 = vadd.f32 0.0, %v4445
        %v4447 = vpop.f32.mrb[0].mxu0
        %4448 = vmatprep.mubr.f32.mxu0 0.0
        %4449 = vmatmul.mubr.f32.gmra.mrb[0].mxu0 %v4322
        %v4450 = vpop.f32.mrb[0].mxu0
        %v4451 = vadd.f32 0.0, %v4450
        %v4452 = vpop.f32.mrb[0].mxu0
        %4453 = vmatprep.mubr.f32.mxu0 0.0
        %4454 = vmatmul.mubr.f32.gmra.mrb[0].mxu0 %v4325
        %v4455 = vpop.f32.mrb[0].mxu0
        %v4456 = vadd.f32 0.0, %v4455
        %v4457 = vpop.f32.mrb[0].mxu0
        %4458 = vmatprep.mubr.f32.mxu0 0.0
        %4459 = vmatmul.mubr.f32.gmra.mrb[0].mxu0 %v4328
        %v4460 = vpop.f32.mrb[0].mxu0
        %v4461 = vadd.f32 0.0, %v4460
        %v4462 = vpop.f32.mrb[0].mxu0
        %4463 = vmatprep.mubr.f32.mxu0 0.0
        %4464 = vmatmul.mubr.f32.gmra.mrb[0].mxu0 %v4331
        %v4465 = vpop.f32.mrb[0].mxu0
        %v4466 = vadd.f32 0.0, %v4465
        %v4467 = vpop.f32.mrb[0].mxu0
        %4468 = vmatprep.mubr.f32.mxu0 0.0
        %4469 = vmatmul.mubr.f32.gmra.mrb[0].mxu0 %v4334
        %v4470 = vpop.f32.mrb[0].mxu0
        %v4471 = vadd.f32 0.0, %v4470
        %v4472 = vpop.f32.mrb[0].mxu0
        %4473 = vmatprep.mubr.f32.mxu0 0.0
        %4474 = vmatmul.mubr.f32.gmra.mrb[0].mxu0 %v4337
        %v4475 = vpop.f32.mrb[0].mxu0
        %v4476 = vadd.f32 0.0, %v4475
        %v4477 = vpop.f32.mrb[0].mxu0
        %4478 = vmatprep.mubr.f32.mxu0 0.0
        %4479 = vmatmul.mubr.f32.gmra.mrb[0].mxu0 %v4340
        %v4480 = vpop.f32.mrb[0].mxu0
        %v4481 = vadd.f32 0.0, %v4480
        %v4482 = vpop.f32.mrb[0].mxu0
        %4483 = vdwg.mxu0
        %v4485 = vsel %vm1285, %v4411, 0
        %v4488 = vsel %vm1285, %v4416, 0
        %v4491 = vsel %vm1285, %v4421, 0
        %v4494 = vsel %vm1285, %v4426, 0
        %v4497 = vsel %vm1285, %v4431, 0
        %v4500 = vsel %vm1285, %v4436, 0
        %v4503 = vsel %vm1285, %v4441, 0
        %v4506 = vsel %vm1285, %v4446, 0
        %v4509 = vsel %vm1285, %v4451, 0
        %v4512 = vsel %vm1285, %v4456, 0
        %v4515 = vsel %vm1285, %v4461, 0
        %v4518 = vsel %vm1285, %v4466, 0
        %v4521 = vsel %vm1285, %v4471, 0
        %v4524 = vsel %vm1285, %v4476, 0
        %v4527 = vsel %vm1285, %v4481, 0
        %4529 = vmatprep.subr.mxu0 0.0
        %4530 = vmatpush1.msra.mxu0 %v840
        %4531 = vmatprep.subr.mxu0 0.0
        %4532 = vmatpush1.msra.mxu0 %v841
        %4533 = vmatprep.subr.mxu0 0.0
        %4534 = vmatpush1.msra.mxu0 %v842
        %4535 = vmatprep.subr.mxu0 0.0
        %4536 = vmatpush1.msra.mxu0 %v843
        %4537 = vmatprep.subr.mxu0 0.0
        %4538 = vmatpush1.msra.mxu0 0.0
        %4539 = vmatprep.subr.mxu0 0.0
        %4540 = vmatpush1.msra.mxu0 0.0
        %4541 = vmatprep.subr.mxu0 0.0
        %4542 = vmatpush1.msra.mxu0 0.0
        %4543 = vmatprep.subr.mxu0 0.0
        %4544 = vmatpush1.msra.mxu0 0.0
        %4545 = vmatprep.subr.mxu0 0.0
        %4546 = vmatpush1.msra.mxu0 0.0
        %4547 = vmatprep.subr.mxu0 0.0
        %4548 = vmatpush1.msra.mxu0 0.0
        %4549 = vmatprep.subr.mxu0 0.0
        %4550 = vmatpush1.msra.mxu0 0.0
        %4551 = vmatprep.subr.mxu0 0.0
        %4552 = vmatpush1.msra.mxu0 0.0
        %4553 = vmatprep.subr.mxu0 0.0
        %4554 = vmatpush1.msra.mxu0 0.0
        %4555 = vmatprep.subr.mxu0 0.0
        %4556 = vmatpush1.msra.mxu0 0.0
        %4557 = vmatprep.subr.mxu0 0.0
        %4558 = vmatpush1.msra.mxu0 0.0
        %4559 = vmatprep.subr.mxu0 0.0
        %4560 = vmatpush1.msra.mxu0 0.0
        %4561 = vmatprep.subr.mxu0 0.0
        %4562 = vmatpush1.msra.mxu0 0.0
        %4563 = vmatprep.subr.mxu0 0.0
        %4564 = vmatpush1.msra.mxu0 0.0
        %4565 = vmatprep.subr.mxu0 0.0
        %4566 = vmatpush1.msra.mxu0 0.0
        %4567 = vmatprep.subr.mxu0 0.0
        %4568 = vmatpush1.msra.mxu0 0.0
        %4569 = vmatprep.subr.mxu0 0.0
        %4570 = vmatpush1.msra.mxu0 0.0
        %4571 = vmatprep.subr.mxu0 0.0
        %4572 = vmatpush1.msra.mxu0 0.0
        %4573 = vmatprep.subr.mxu0 0.0
        %4574 = vmatpush1.msra.mxu0 0.0
        %4575 = vmatprep.subr.mxu0 0.0
        %4576 = vmatpush1.msra.mxu0 0.0
        %4577 = vmatprep.subr.mxu0 0.0
        %4578 = vmatpush1.msra.mxu0 0.0
        %4579 = vmatprep.subr.mxu0 0.0
        %4580 = vmatpush1.msra.mxu0 0.0
        %4581 = vmatprep.subr.mxu0 0.0
        %4582 = vmatpush1.msra.mxu0 0.0
        %4583 = vmatprep.subr.mxu0 0.0
        %4584 = vmatpush1.msra.mxu0 0.0
        %4585 = vmatprep.subr.mxu0 0.0
        %4586 = vmatpush1.msra.mxu0 0.0
        %4587 = vmatprep.subr.mxu0 0.0
        %4588 = vmatpush1.msra.mxu0 0.0
        %4589 = vmatprep.subr.mxu0 0.0
        %4590 = vmatpush1.msra.mxu0 0.0
        %4591 = vmatprep.subr.mxu0 0.0
        %4592 = vmatpush1.msra.mxu0 0.0
        %4593 = vmatprep.mubr.f32.mxu0 0.0
        %4594 = vmatmul.mubr.f32.gmra.mrb[0].mxu0 %v4485
        %v4595 = vpop.f32.mrb[0].mxu0
        %v4596 = vadd.f32 0.0, %v4595
        %v4597 = vpop.f32.mrb[0].mxu0
        %4598 = vmatprep.mubr.f32.mxu0 0.0
        %4599 = vmatmul.mubr.f32.gmra.mrb[0].mxu0 %v4488
        %v4600 = vpop.f32.mrb[0].mxu0
        %v4601 = vadd.f32 0.0, %v4600
        %v4602 = vpop.f32.mrb[0].mxu0
        %4603 = vmatprep.mubr.f32.mxu0 0.0
        %4604 = vmatmul.mubr.f32.gmra.mrb[0].mxu0 %v4491
        %v4605 = vpop.f32.mrb[0].mxu0
        %v4606 = vadd.f32 0.0, %v4605
        %v4607 = vpop.f32.mrb[0].mxu0
        %4608 = vmatprep.mubr.f32.mxu0 0.0
        %4609 = vmatmul.mubr.f32.gmra.mrb[0].mxu0 %v4494
        %v4610 = vpop.f32.mrb[0].mxu0
        %v4611 = vadd.f32 0.0, %v4610
        %v4612 = vpop.f32.mrb[0].mxu0
        %4613 = vmatprep.mubr.f32.mxu0 0.0
        %4614 = vmatmul.mubr.f32.gmra.mrb[0].mxu0 %v4497
        %v4615 = vpop.f32.mrb[0].mxu0
        %v4616 = vadd.f32 0.0, %v4615
        %v4617 = vpop.f32.mrb[0].mxu0
        %4618 = vmatprep.mubr.f32.mxu0 0.0
        %4619 = vmatmul.mubr.f32.gmra.mrb[0].mxu0 %v4500
        %v4620 = vpop.f32.mrb[0].mxu0
        %v4621 = vadd.f32 0.0, %v4620
        %v4622 = vpop.f32.mrb[0].mxu0
        %4623 = vmatprep.mubr.f32.mxu0 0.0
        %4624 = vmatmul.mubr.f32.gmra.mrb[0].mxu0 %v4503
        %v4625 = vpop.f32.mrb[0].mxu0
        %v4626 = vadd.f32 0.0, %v4625
        %v4627 = vpop.f32.mrb[0].mxu0
        %4628 = vmatprep.mubr.f32.mxu0 0.0
        %4629 = vmatmul.mubr.f32.gmra.mrb[0].mxu0 %v4506
        %v4630 = vpop.f32.mrb[0].mxu0
        %v4631 = vadd.f32 0.0, %v4630
        %v4632 = vpop.f32.mrb[0].mxu0
        %4633 = vmatprep.mubr.f32.mxu0 0.0
        %4634 = vmatmul.mubr.f32.gmra.mrb[0].mxu0 %v4509
        %v4635 = vpop.f32.mrb[0].mxu0
        %v4636 = vadd.f32 0.0, %v4635
        %v4637 = vpop.f32.mrb[0].mxu0
        %4638 = vmatprep.mubr.f32.mxu0 0.0
        %4639 = vmatmul.mubr.f32.gmra.mrb[0].mxu0 %v4512
        %v4640 = vpop.f32.mrb[0].mxu0
        %v4641 = vadd.f32 0.0, %v4640
        %v4642 = vpop.f32.mrb[0].mxu0
        %4643 = vmatprep.mubr.f32.mxu0 0.0
        %4644 = vmatmul.mubr.f32.gmra.mrb[0].mxu0 %v4515
        %v4645 = vpop.f32.mrb[0].mxu0
        %v4646 = vadd.f32 0.0, %v4645
        %v4647 = vpop.f32.mrb[0].mxu0
        %4648 = vmatprep.mubr.f32.mxu0 0.0
        %4649 = vmatmul.mubr.f32.gmra.mrb[0].mxu0 %v4518
        %v4650 = vpop.f32.mrb[0].mxu0
        %v4651 = vadd.f32 0.0, %v4650
        %v4652 = vpop.f32.mrb[0].mxu0
        %4653 = vmatprep.mubr.f32.mxu0 0.0
        %4654 = vmatmul.mubr.f32.gmra.mrb[0].mxu0 %v4521
        %v4655 = vpop.f32.mrb[0].mxu0
        %v4656 = vadd.f32 0.0, %v4655
        %v4657 = vpop.f32.mrb[0].mxu0
        %4658 = vmatprep.mubr.f32.mxu0 0.0
        %4659 = vmatmul.mubr.f32.gmra.mrb[0].mxu0 %v4524
        %v4660 = vpop.f32.mrb[0].mxu0
        %v4661 = vadd.f32 0.0, %v4660
        %v4662 = vpop.f32.mrb[0].mxu0
        %4663 = vmatprep.mubr.f32.mxu0 0.0
        %4664 = vmatmul.mubr.f32.gmra.mrb[0].mxu0 %v4527
        %v4665 = vpop.f32.mrb[0].mxu0
        %v4666 = vadd.f32 0.0, %v4665
        %v4667 = vpop.f32.mrb[0].mxu0
        %4668 = vdwg.mxu0
        %v4669 = vadd.f32 %v3798, %v4596
        %v4670 = vadd.f32 %v3799, %v4601
        %v4671 = vadd.f32 %v3800, %v4606
        %v4672 = vadd.f32 %v3801, %v4611
        %v4673 = vadd.f32 %v3802, %v4616
        %v4674 = vadd.f32 %v3803, %v4621
        %v4675 = vadd.f32 %v3804, %v4626
        %v4676 = vadd.f32 %v3805, %v4631
        %v4677 = vadd.f32 %v3806, %v4636
        %v4678 = vadd.f32 %v3807, %v4641
        %v4679 = vadd.f32 %v3808, %v4646
        %v4680 = vadd.f32 %v3809, %v4651
        %v4681 = vadd.f32 %v3810, %v4656
        %v4682 = vadd.f32 %v3811, %v4661
        %v4683 = vadd.f32 %v3812, %v4666
        %v4684 = vld [vmem:[#allocation7] sm:$0x1]
        %v4686 = vlaneseq
        %v4687 = vshrl.u32 %v4686, 7
        %v4688 = vsub.s32 0, %v4687
        %v4689 = vrot.slane %v4684, %v4688
        %v4691 = vadd.f32 %v4669, %v4689
        %v4692 = vadd.f32 %v4670, %v4689
        %v4693 = vadd.f32 %v4671, %v4689
        %v4694 = vadd.f32 %v4672, %v4689
        %v4695 = vadd.f32 %v4673, %v4689
        %v4696 = vadd.f32 %v4674, %v4689
        %v4697 = vadd.f32 %v4675, %v4689
        %v4698 = vadd.f32 %v4676, %v4689
        %v4699 = vadd.f32 %v4677, %v4689
        %v4700 = vadd.f32 %v4678, %v4689
        %v4701 = vadd.f32 %v4679, %v4689
        %v4702 = vadd.f32 %v4680, %v4689
        %v4703 = vadd.f32 %v4681, %v4689
        %v4704 = vadd.f32 %v4682, %v4689
        %v4705 = vadd.f32 %v4683, %v4689
        %v4706 = vadd.f32 %v4691, %v760
        %v4707 = vadd.f32 %v4692, %v761
        %v4708 = vadd.f32 %v4693, %v762
        %v4709 = vadd.f32 %v4694, %v763
        %v4710 = vadd.f32 %v4695, %v764
        %v4711 = vadd.f32 %v4696, %v765
        %v4712 = vadd.f32 %v4697, %v766
        %v4713 = vadd.f32 %v4698, %v767
        %v4714 = vadd.f32 %v4699, %v768
        %v4715 = vadd.f32 %v4700, %v769
        %v4716 = vadd.f32 %v4701, %v770
        %v4717 = vadd.f32 %v4702, %v771
        %v4718 = vadd.f32 %v4703, %v772
        %v4719 = vadd.f32 %v4704, %v773
        %v4720 = vadd.f32 %v4705, %v774
        %v4721 = vld [vmem:[#allocation8] sm:$0x1]
        %v4722 = vld [vmem:[#allocation10] sm:$0x1]
        %4723 = vadd.xlane.f32.xlu0 %v4706
        %v4724 = vpop.xlane.xlu0 %4723
        %4725 = vadd.xlane.f32.xlu0 %v4707
        %v4726 = vpop.xlane.xlu0 %4725
        %4727 = vadd.xlane.f32.xlu0 %v4708
        %v4728 = vpop.xlane.xlu0 %4727
        %4729 = vadd.xlane.f32.xlu0 %v4709
        %v4730 = vpop.xlane.xlu0 %4729
        %4731 = vadd.xlane.f32.xlu0 %v4710
        %v4732 = vpop.xlane.xlu0 %4731
        %4733 = vadd.xlane.f32.xlu0 %v4711
        %v4734 = vpop.xlane.xlu0 %4733
        %4735 = vadd.xlane.f32.xlu0 %v4712
        %v4736 = vpop.xlane.xlu0 %4735
        %4737 = vadd.xlane.f32.xlu0 %v4713
        %v4738 = vpop.xlane.xlu0 %4737
        %4739 = vadd.xlane.f32.xlu0 %v4714
        %v4740 = vpop.xlane.xlu0 %4739
        %4741 = vadd.xlane.f32.xlu0 %v4715
        %v4742 = vpop.xlane.xlu0 %4741
        %4743 = vadd.xlane.f32.xlu0 %v4716
        %v4744 = vpop.xlane.xlu0 %4743
        %4745 = vadd.xlane.f32.xlu0 %v4717
        %v4746 = vpop.xlane.xlu0 %4745
        %4747 = vadd.xlane.f32.xlu0 %v4718
        %v4748 = vpop.xlane.xlu0 %4747
        %4749 = vadd.xlane.f32.xlu0 %v4719
        %v4750 = vpop.xlane.xlu0 %4749
        %v4751 = vsel %vm1743, %v4720, 0.0
        %4752 = vadd.xlane.f32.xlu0 %v4751
        %v4753 = vpop.xlane.xlu0 %4752
        %v4754 = vmul.f32 %v4724, 0.00862069
        %v4755 = vmul.f32 %v4726, 0.00862069
        %v4756 = vmul.f32 %v4728, 0.00862069
        %v4757 = vmul.f32 %v4730, 0.00862069
        %v4758 = vmul.f32 %v4732, 0.00862069
        %v4759 = vmul.f32 %v4734, 0.00862069
        %v4760 = vmul.f32 %v4736, 0.00862069
        %v4761 = vmul.f32 %v4738, 0.00862069
        %v4762 = vmul.f32 %v4740, 0.00862069
        %v4763 = vmul.f32 %v4742, 0.00862069
        %v4764 = vmul.f32 %v4744, 0.00862069
        %v4765 = vmul.f32 %v4746, 0.00862069
        %v4766 = vmul.f32 %v4748, 0.00862069
        %v4767 = vmul.f32 %v4750, 0.00862069
        %v4768 = vmul.f32 %v4753, 0.00862069
        %v4769 = vsub.f32 %v4706, %v4754
        %v4770 = vsub.f32 %v4707, %v4755
        %v4771 = vsub.f32 %v4708, %v4756
        %v4772 = vsub.f32 %v4709, %v4757
        %v4773 = vsub.f32 %v4710, %v4758
        %v4774 = vsub.f32 %v4711, %v4759
        %v4775 = vsub.f32 %v4712, %v4760
        %v4776 = vsub.f32 %v4713, %v4761
        %v4777 = vsub.f32 %v4714, %v4762
        %v4778 = vsub.f32 %v4715, %v4763
        %v4779 = vsub.f32 %v4716, %v4764
        %v4780 = vsub.f32 %v4717, %v4765
        %v4781 = vsub.f32 %v4718, %v4766
        %v4782 = vsub.f32 %v4719, %v4767
        %v4783 = vsub.f32 %v4720, %v4768
        %v4784 = vmul.f32 %v4769, %v779
        %v4785 = vmul.f32 %v4770, %v779
        %v4786 = vmul.f32 %v4771, %v779
        %v4787 = vmul.f32 %v4772, %v779
        %v4788 = vmul.f32 %v4773, %v779
        %v4789 = vmul.f32 %v4774, %v779
        %v4790 = vmul.f32 %v4775, %v779
        %v4791 = vmul.f32 %v4776, %v779
        %v4792 = vmul.f32 %v4777, %v779
        %v4793 = vmul.f32 %v4778, %v779
        %v4794 = vmul.f32 %v4779, %v779
        %v4795 = vmul.f32 %v4780, %v779
        %v4796 = vmul.f32 %v4781, %v779
        %v4797 = vmul.f32 %v4782, %v779
        %v4798 = vmul.f32 %v4783, %v779
        %v4799 = vmul.f32 %v4784, %v4784
        %v4800 = vmul.f32 %v4785, %v4785
        %v4801 = vmul.f32 %v4786, %v4786
        %v4802 = vmul.f32 %v4787, %v4787
        %v4803 = vmul.f32 %v4788, %v4788
        %v4804 = vmul.f32 %v4789, %v4789
        %v4805 = vmul.f32 %v4790, %v4790
        %v4806 = vmul.f32 %v4791, %v4791
        %v4807 = vmul.f32 %v4792, %v4792
        %v4808 = vmul.f32 %v4793, %v4793
        %v4809 = vmul.f32 %v4794, %v4794
        %v4810 = vmul.f32 %v4795, %v4795
        %v4811 = vmul.f32 %v4796, %v4796
        %v4812 = vmul.f32 %v4797, %v4797
        %v4813 = vmul.f32 %v4798, %v4798
        %4814 = vadd.xlane.f32.xlu0 %v4799
        %v4815 = vpop.xlane.xlu0 %4814
        %4816 = vadd.xlane.f32.xlu0 %v4800
        %v4817 = vpop.xlane.xlu0 %4816
        %4818 = vadd.xlane.f32.xlu0 %v4801
        %v4819 = vpop.xlane.xlu0 %4818
        %4820 = vadd.xlane.f32.xlu0 %v4802
        %v4821 = vpop.xlane.xlu0 %4820
        %4822 = vadd.xlane.f32.xlu0 %v4803
        %v4823 = vpop.xlane.xlu0 %4822
        %4824 = vadd.xlane.f32.xlu0 %v4804
        %v4825 = vpop.xlane.xlu0 %4824
        %4826 = vadd.xlane.f32.xlu0 %v4805
        %v4827 = vpop.xlane.xlu0 %4826
        %4828 = vadd.xlane.f32.xlu0 %v4806
        %v4829 = vpop.xlane.xlu0 %4828
        %4830 = vadd.xlane.f32.xlu0 %v4807
        %v4831 = vpop.xlane.xlu0 %4830
        %4832 = vadd.xlane.f32.xlu0 %v4808
        %v4833 = vpop.xlane.xlu0 %4832
        %4834 = vadd.xlane.f32.xlu0 %v4809
        %v4835 = vpop.xlane.xlu0 %4834
        %4836 = vadd.xlane.f32.xlu0 %v4810
        %v4837 = vpop.xlane.xlu0 %4836
        %4838 = vadd.xlane.f32.xlu0 %v4811
        %v4839 = vpop.xlane.xlu0 %4838
        %4840 = vadd.xlane.f32.xlu0 %v4812
        %v4841 = vpop.xlane.xlu0 %4840
        %v4842 = vsel %vm1743, %v4813, 0.0
        %4843 = vadd.xlane.f32.xlu0 %v4842
        %v4844 = vpop.xlane.xlu0 %4843
        %v4845 = vmul.f32 %v4815, 0.00862069
        %v4846 = vmul.f32 %v4817, 0.00862069
        %v4847 = vmul.f32 %v4819, 0.00862069
        %v4848 = vmul.f32 %v4821, 0.00862069
        %v4849 = vmul.f32 %v4823, 0.00862069
        %v4850 = vmul.f32 %v4825, 0.00862069
        %v4851 = vmul.f32 %v4827, 0.00862069
        %v4852 = vmul.f32 %v4829, 0.00862069
        %v4853 = vmul.f32 %v4831, 0.00862069
        %v4854 = vmul.f32 %v4833, 0.00862069
        %v4855 = vmul.f32 %v4835, 0.00862069
        %v4856 = vmul.f32 %v4837, 0.00862069
        %v4857 = vmul.f32 %v4839, 0.00862069
        %v4858 = vmul.f32 %v4841, 0.00862069
        %v4859 = vmul.f32 %v4844, 0.00862069
        %v4860 = vadd.f32 %v4845, 1e-05
        %v4861 = vadd.f32 %v4846, 1e-05
        %v4862 = vadd.f32 %v4847, 1e-05
        %v4863 = vadd.f32 %v4848, 1e-05
        %v4864 = vadd.f32 %v4849, 1e-05
        %v4865 = vadd.f32 %v4850, 1e-05
        %v4866 = vadd.f32 %v4851, 1e-05
        %v4867 = vadd.f32 %v4852, 1e-05
        %v4868 = vadd.f32 %v4853, 1e-05
        %v4869 = vadd.f32 %v4854, 1e-05
        %v4870 = vadd.f32 %v4855, 1e-05
        %v4871 = vadd.f32 %v4856, 1e-05
        %v4872 = vadd.f32 %v4857, 1e-05
        %v4873 = vadd.f32 %v4858, 1e-05
        %v4874 = vadd.f32 %v4859, 1e-05
        %v4875 = vrsqrt.pop %v4860
        %v4876 = vrsqrt.pop %v4861
        %v4877 = vrsqrt.pop %v4862
        %v4878 = vrsqrt.pop %v4863
        %v4879 = vrsqrt.pop %v4864
        %v4880 = vrsqrt.pop %v4865
        %v4881 = vrsqrt.pop %v4866
        %v4882 = vrsqrt.pop %v4867
        %v4883 = vrsqrt.pop %v4868
        %v4884 = vrsqrt.pop %v4869
        %v4885 = vrsqrt.pop %v4870
        %v4886 = vrsqrt.pop %v4871
        %v4887 = vrsqrt.pop %v4872
        %v4888 = vrsqrt.pop %v4873
        %v4889 = vrsqrt.pop %v4874
        %v4890 = vmul.f32 %v4784, %v4875
        %v4891 = vmul.f32 %v4785, %v4876
        %v4892 = vmul.f32 %v4786, %v4877
        %v4893 = vmul.f32 %v4787, %v4878
        %v4894 = vmul.f32 %v4788, %v4879
        %v4895 = vmul.f32 %v4789, %v4880
        %v4896 = vmul.f32 %v4790, %v4881
        %v4897 = vmul.f32 %v4791, %v4882
        %v4898 = vmul.f32 %v4792, %v4883
        %v4899 = vmul.f32 %v4793, %v4884
        %v4900 = vmul.f32 %v4794, %v4885
        %v4901 = vmul.f32 %v4795, %v4886
        %v4902 = vmul.f32 %v4796, %v4887
        %v4903 = vmul.f32 %v4797, %v4888
        %v4904 = vmul.f32 %v4798, %v4889
        %v4906 = vlaneseq
        %v4907 = vshrl.u32 %v4906, 7
        %v4908 = vsub.s32 0, %v4907
        %v4909 = vrot.slane %v4721, %v4908
        %v4911 = vmul.f32 %v4890, %v4909
        %v4912 = vmul.f32 %v4891, %v4909
        %v4913 = vmul.f32 %v4892, %v4909
        %v4914 = vmul.f32 %v4893, %v4909
        %v4915 = vmul.f32 %v4894, %v4909
        %v4916 = vmul.f32 %v4895, %v4909
        %v4917 = vmul.f32 %v4896, %v4909
        %v4918 = vmul.f32 %v4897, %v4909
        %v4919 = vmul.f32 %v4898, %v4909
        %v4920 = vmul.f32 %v4899, %v4909
        %v4921 = vmul.f32 %v4900, %v4909
        %v4922 = vmul.f32 %v4901, %v4909
        %v4923 = vmul.f32 %v4902, %v4909
        %v4924 = vmul.f32 %v4903, %v4909
        %v4925 = vmul.f32 %v4904, %v4909
        %v4927 = vlaneseq
        %v4928 = vshrl.u32 %v4927, 7
        %v4929 = vsub.s32 0, %v4928
        %v4930 = vrot.slane %v4722, %v4929
        %v4932 = vadd.f32 %v4911, %v4930
        %v4933 = vadd.f32 %v4912, %v4930
        %v4934 = vadd.f32 %v4913, %v4930
        %v4935 = vadd.f32 %v4914, %v4930
        %v4936 = vadd.f32 %v4915, %v4930
        %v4937 = vadd.f32 %v4916, %v4930
        %v4938 = vadd.f32 %v4917, %v4930
        %v4939 = vadd.f32 %v4918, %v4930
        %v4940 = vadd.f32 %v4919, %v4930
        %v4941 = vadd.f32 %v4920, %v4930
        %v4942 = vadd.f32 %v4921, %v4930
        %v4943 = vadd.f32 %v4922, %v4930
        %v4944 = vadd.f32 %v4923, %v4930
        %v4945 = vadd.f32 %v4924, %v4930
        %v4946 = vadd.f32 %v4925, %v4930
        %v4947 = vld [vmem:[#allocation11] sm:$0xff]
        %v4948 = vld [vmem:[#allocation11 + $0x8] sm:$0xff]
        %v4949 = vld [vmem:[#allocation11 + $0x10] sm:$0xff]
        %v4950 = vld [vmem:[#allocation11 + $0x18] sm:$0xff]
        %v4951 = vld [vmem:[#allocation11 + $0x20] sm:$0xff]
        %v4952 = vld [vmem:[#allocation11 + $0x28] sm:$0xff]
        %v4953 = vld [vmem:[#allocation11 + $0x30] sm:$0xff]
        %v4954 = vld [vmem:[#allocation11 + $0x38] sm:$0xff]
        %v4955 = vld [vmem:[#allocation11 + $0x40] sm:$0xff]
        %v4956 = vld [vmem:[#allocation11 + $0x48] sm:$0xff]
        %v4957 = vld [vmem:[#allocation11 + $0x50] sm:$0xff]
        %v4958 = vld [vmem:[#allocation11 + $0x58] sm:$0xff]
        %v4959 = vld [vmem:[#allocation11 + $0x60] sm:$0xff]
        %v4960 = vld [vmem:[#allocation11 + $0x68] sm:$0xff]
        %v4961 = vld [vmem:[#allocation11 + $0x70] sm:$0xff]
        %v4962 = vld [vmem:[#allocation11 + $0x78] sm:$0xff]
        %v4963 = vld [vmem:[#allocation13] sm:$0x1]
        %v4965 = vlaneseq
        %v4966 = vshrl.u32 %v4965, 7
        %v4967 = vsub.s32 0, %v4966
        %v4968 = vrot.slane %v4963, %v4967
        %4970 = vmatprep.subr.mxu0 0.0
        %4971 = vmatpush1.msra.mxu0 %v4947
        %4972 = vmatprep.subr.mxu0 0.0
        %4973 = vmatpush1.msra.mxu0 %v4948
        %4974 = vmatprep.subr.mxu0 0.0
        %4975 = vmatpush1.msra.mxu0 %v4949
        %4976 = vmatprep.subr.mxu0 0.0
        %4977 = vmatpush1.msra.mxu0 %v4950
        %4978 = vmatprep.subr.mxu0 0.0
        %4979 = vmatpush1.msra.mxu0 %v4951
        %4980 = vmatprep.subr.mxu0 0.0
        %4981 = vmatpush1.msra.mxu0 %v4952
        %4982 = vmatprep.subr.mxu0 0.0
        %4983 = vmatpush1.msra.mxu0 %v4953
        %4984 = vmatprep.subr.mxu0 0.0
        %4985 = vmatpush1.msra.mxu0 %v4954
        %4986 = vmatprep.subr.mxu0 0.0
        %4987 = vmatpush1.msra.mxu0 %v4955
        %4988 = vmatprep.subr.mxu0 0.0
        %4989 = vmatpush1.msra.mxu0 %v4956
        %4990 = vmatprep.subr.mxu0 0.0
        %4991 = vmatpush1.msra.mxu0 %v4957
        %4992 = vmatprep.subr.mxu0 0.0
        %4993 = vmatpush1.msra.mxu0 %v4958
        %4994 = vmatprep.subr.mxu0 0.0
        %4995 = vmatpush1.msra.mxu0 %v4959
        %4996 = vmatprep.subr.mxu0 0.0
        %4997 = vmatpush1.msra.mxu0 %v4960
        %4998 = vmatprep.subr.mxu0 0.0
        %4999 = vmatpush1.msra.mxu0 %v4961
        %5000 = vmatprep.subr.mxu0 0.0
        %5001 = vmatpush1.msra.mxu0 %v4962
        %5002 = vmatprep.subr.mxu0 0.0
        %5003 = vmatpush1.msra.mxu0 0.0
        %5004 = vmatprep.subr.mxu0 0.0
        %5005 = vmatpush1.msra.mxu0 0.0
        %5006 = vmatprep.subr.mxu0 0.0
        %5007 = vmatpush1.msra.mxu0 0.0
        %5008 = vmatprep.subr.mxu0 0.0
        %5009 = vmatpush1.msra.mxu0 0.0
        %5010 = vmatprep.subr.mxu0 0.0
        %5011 = vmatpush1.msra.mxu0 0.0
        %5012 = vmatprep.subr.mxu0 0.0
        %5013 = vmatpush1.msra.mxu0 0.0
        %5014 = vmatprep.subr.mxu0 0.0
        %5015 = vmatpush1.msra.mxu0 0.0
        %5016 = vmatprep.subr.mxu0 0.0
        %5017 = vmatpush1.msra.mxu0 0.0
        %5018 = vmatprep.subr.mxu0 0.0
        %5019 = vmatpush1.msra.mxu0 0.0
        %5020 = vmatprep.subr.mxu0 0.0
        %5021 = vmatpush1.msra.mxu0 0.0
        %5022 = vmatprep.subr.mxu0 0.0
        %5023 = vmatpush1.msra.mxu0 0.0
        %5024 = vmatprep.subr.mxu0 0.0
        %5025 = vmatpush1.msra.mxu0 0.0
        %5026 = vmatprep.subr.mxu0 0.0
        %5027 = vmatpush1.msra.mxu0 0.0
        %5028 = vmatprep.subr.mxu0 0.0
        %5029 = vmatpush1.msra.mxu0 0.0
        %5030 = vmatprep.subr.mxu0 0.0
        %5031 = vmatpush1.msra.mxu0 0.0
        %5032 = vmatprep.subr.mxu0 0.0
        %5033 = vmatpush1.msra.mxu0 0.0
        %5034 = vmatprep.mubr.f32.mxu0 0.0
        %5035 = vmatmul.mubr.f32.gmra.mrb[0].mxu0 %v4932
        %v5036 = vpop.f32.mrb[0].mxu0
        %v5037 = vadd.f32 %v4968, %v5036
        %v5038 = vpop.f32.mrb[0].mxu0
        %5039 = vmatprep.mubr.f32.mxu0 0.0
        %5040 = vmatmul.mubr.f32.gmra.mrb[0].mxu0 %v4933
        %v5041 = vpop.f32.mrb[0].mxu0
        %v5042 = vadd.f32 %v4968, %v5041
        %v5043 = vpop.f32.mrb[0].mxu0
        %5044 = vmatprep.mubr.f32.mxu0 0.0
        %5045 = vmatmul.mubr.f32.gmra.mrb[0].mxu0 %v4934
        %v5046 = vpop.f32.mrb[0].mxu0
        %v5047 = vadd.f32 %v4968, %v5046
        %v5048 = vpop.f32.mrb[0].mxu0
        %5049 = vmatprep.mubr.f32.mxu0 0.0
        %5050 = vmatmul.mubr.f32.gmra.mrb[0].mxu0 %v4935
        %v5051 = vpop.f32.mrb[0].mxu0
        %v5052 = vadd.f32 %v4968, %v5051
        %v5053 = vpop.f32.mrb[0].mxu0
        %5054 = vmatprep.mubr.f32.mxu0 0.0
        %5055 = vmatmul.mubr.f32.gmra.mrb[0].mxu0 %v4936
        %v5056 = vpop.f32.mrb[0].mxu0
        %v5057 = vadd.f32 %v4968, %v5056
        %v5058 = vpop.f32.mrb[0].mxu0
        %5059 = vmatprep.mubr.f32.mxu0 0.0
        %5060 = vmatmul.mubr.f32.gmra.mrb[0].mxu0 %v4937
        %v5061 = vpop.f32.mrb[0].mxu0
        %v5062 = vadd.f32 %v4968, %v5061
        %v5063 = vpop.f32.mrb[0].mxu0
        %5064 = vmatprep.mubr.f32.mxu0 0.0
        %5065 = vmatmul.mubr.f32.gmra.mrb[0].mxu0 %v4938
        %v5066 = vpop.f32.mrb[0].mxu0
        %v5067 = vadd.f32 %v4968, %v5066
        %v5068 = vpop.f32.mrb[0].mxu0
        %5069 = vmatprep.mubr.f32.mxu0 0.0
        %5070 = vmatmul.mubr.f32.gmra.mrb[0].mxu0 %v4939
        %v5071 = vpop.f32.mrb[0].mxu0
        %v5072 = vadd.f32 %v4968, %v5071
        %v5073 = vpop.f32.mrb[0].mxu0
        %5074 = vmatprep.mubr.f32.mxu0 0.0
        %5075 = vmatmul.mubr.f32.gmra.mrb[0].mxu0 %v4940
        %v5076 = vpop.f32.mrb[0].mxu0
        %v5077 = vadd.f32 %v4968, %v5076
        %v5078 = vpop.f32.mrb[0].mxu0
        %5079 = vmatprep.mubr.f32.mxu0 0.0
        %5080 = vmatmul.mubr.f32.gmra.mrb[0].mxu0 %v4941
        %v5081 = vpop.f32.mrb[0].mxu0
        %v5082 = vadd.f32 %v4968, %v5081
        %v5083 = vpop.f32.mrb[0].mxu0
        %5084 = vmatprep.mubr.f32.mxu0 0.0
        %5085 = vmatmul.mubr.f32.gmra.mrb[0].mxu0 %v4942
        %v5086 = vpop.f32.mrb[0].mxu0
        %v5087 = vadd.f32 %v4968, %v5086
        %v5088 = vpop.f32.mrb[0].mxu0
        %5089 = vmatprep.mubr.f32.mxu0 0.0
        %5090 = vmatmul.mubr.f32.gmra.mrb[0].mxu0 %v4943
        %v5091 = vpop.f32.mrb[0].mxu0
        %v5092 = vadd.f32 %v4968, %v5091
        %v5093 = vpop.f32.mrb[0].mxu0
        %5094 = vmatprep.mubr.f32.mxu0 0.0
        %5095 = vmatmul.mubr.f32.gmra.mrb[0].mxu0 %v4944
        %v5096 = vpop.f32.mrb[0].mxu0
        %v5097 = vadd.f32 %v4968, %v5096
        %v5098 = vpop.f32.mrb[0].mxu0
        %5099 = vmatprep.mubr.f32.mxu0 0.0
        %5100 = vmatmul.mubr.f32.gmra.mrb[0].mxu0 %v4945
        %v5101 = vpop.f32.mrb[0].mxu0
        %v5102 = vadd.f32 %v4968, %v5101
        %v5103 = vpop.f32.mrb[0].mxu0
        %5104 = vmatprep.mubr.f32.mxu0 0.0
        %5105 = vmatmul.mubr.f32.gmra.mrb[0].mxu0 %v4946
        %v5106 = vpop.f32.mrb[0].mxu0
        %v5107 = vadd.f32 %v4968, %v5106
        %v5108 = vpop.f32.mrb[0].mxu0
        %5109 = vdwg.mxu0
        %v5110 = vmax.f32 %v5037, 0.0
        %v5111 = vmax.f32 %v5042, 0.0
        %v5112 = vmax.f32 %v5047, 0.0
        %v5113 = vmax.f32 %v5052, 0.0
        %v5114 = vmax.f32 %v5057, 0.0
        %v5115 = vmax.f32 %v5062, 0.0
        %v5116 = vmax.f32 %v5067, 0.0
        %v5117 = vmax.f32 %v5072, 0.0
        %v5118 = vmax.f32 %v5077, 0.0
        %v5119 = vmax.f32 %v5082, 0.0
        %v5120 = vmax.f32 %v5087, 0.0
        %v5121 = vmax.f32 %v5092, 0.0
        %v5122 = vmax.f32 %v5097, 0.0
        %v5123 = vmax.f32 %v5102, 0.0
        %v5124 = vmax.f32 %v5107, 0.0
        %v5125 = vld [vmem:[#allocation14] sm:$0xff]
        %v5126 = vld [vmem:[#allocation14 + $0x8] sm:$0xff]
        %v5127 = vld [vmem:[#allocation14 + $0x10] sm:$0xff]
        %v5128 = vld [vmem:[#allocation14 + $0x18] sm:$0xff]
        %v5129 = vld [vmem:[#allocation14 + $0x20] sm:$0xff]
        %v5130 = vld [vmem:[#allocation14 + $0x28] sm:$0xff]
        %v5131 = vld [vmem:[#allocation14 + $0x30] sm:$0xff]
        %v5132 = vld [vmem:[#allocation14 + $0x38] sm:$0xff]
        %v5133 = vld [vmem:[#allocation14 + $0x40] sm:$0xff]
        %v5134 = vld [vmem:[#allocation14 + $0x48] sm:$0xff]
        %v5135 = vld [vmem:[#allocation14 + $0x50] sm:$0xff]
        %v5136 = vld [vmem:[#allocation14 + $0x58] sm:$0xff]
        %v5137 = vld [vmem:[#allocation14 + $0x60] sm:$0xff]
        %v5138 = vld [vmem:[#allocation14 + $0x68] sm:$0xff]
        %v5139 = vld [vmem:[#allocation14 + $0x70] sm:$0xff]
        %v5140 = vld [vmem:[#allocation14 + $0x78] sm:$0xff]
        %v5141 = vld [vmem:[#allocation16] sm:$0x1]
        %v5143 = vlaneseq
        %v5144 = vshrl.u32 %v5143, 7
        %v5145 = vsub.s32 0, %v5144
        %v5146 = vrot.slane %v5141, %v5145
        %5148 = vmatprep.subr.mxu0 0.0
        %5149 = vmatpush1.msra.mxu0 %v5125
        %5150 = vmatprep.subr.mxu0 0.0
        %5151 = vmatpush1.msra.mxu0 %v5126
        %5152 = vmatprep.subr.mxu0 0.0
        %5153 = vmatpush1.msra.mxu0 %v5127
        %5154 = vmatprep.subr.mxu0 0.0
        %5155 = vmatpush1.msra.mxu0 %v5128
        %5156 = vmatprep.subr.mxu0 0.0
        %5157 = vmatpush1.msra.mxu0 %v5129
        %5158 = vmatprep.subr.mxu0 0.0
        %5159 = vmatpush1.msra.mxu0 %v5130
        %5160 = vmatprep.subr.mxu0 0.0
        %5161 = vmatpush1.msra.mxu0 %v5131
        %5162 = vmatprep.subr.mxu0 0.0
        %5163 = vmatpush1.msra.mxu0 %v5132
        %5164 = vmatprep.subr.mxu0 0.0
        %5165 = vmatpush1.msra.mxu0 %v5133
        %5166 = vmatprep.subr.mxu0 0.0
        %5167 = vmatpush1.msra.mxu0 %v5134
        %5168 = vmatprep.subr.mxu0 0.0
        %5169 = vmatpush1.msra.mxu0 %v5135
        %5170 = vmatprep.subr.mxu0 0.0
        %5171 = vmatpush1.msra.mxu0 %v5136
        %5172 = vmatprep.subr.mxu0 0.0
        %5173 = vmatpush1.msra.mxu0 %v5137
        %5174 = vmatprep.subr.mxu0 0.0
        %5175 = vmatpush1.msra.mxu0 %v5138
        %5176 = vmatprep.subr.mxu0 0.0
        %5177 = vmatpush1.msra.mxu0 %v5139
        %5178 = vmatprep.subr.mxu0 0.0
        %5179 = vmatpush1.msra.mxu0 %v5140
        %5180 = vmatprep.subr.mxu0 0.0
        %5181 = vmatpush1.msra.mxu0 0.0
        %5182 = vmatprep.subr.mxu0 0.0
        %5183 = vmatpush1.msra.mxu0 0.0
        %5184 = vmatprep.subr.mxu0 0.0
        %5185 = vmatpush1.msra.mxu0 0.0
        %5186 = vmatprep.subr.mxu0 0.0
        %5187 = vmatpush1.msra.mxu0 0.0
        %5188 = vmatprep.subr.mxu0 0.0
        %5189 = vmatpush1.msra.mxu0 0.0
        %5190 = vmatprep.subr.mxu0 0.0
        %5191 = vmatpush1.msra.mxu0 0.0
        %5192 = vmatprep.subr.mxu0 0.0
        %5193 = vmatpush1.msra.mxu0 0.0
        %5194 = vmatprep.subr.mxu0 0.0
        %5195 = vmatpush1.msra.mxu0 0.0
        %5196 = vmatprep.subr.mxu0 0.0
        %5197 = vmatpush1.msra.mxu0 0.0
        %5198 = vmatprep.subr.mxu0 0.0
        %5199 = vmatpush1.msra.mxu0 0.0
        %5200 = vmatprep.subr.mxu0 0.0
        %5201 = vmatpush1.msra.mxu0 0.0
        %5202 = vmatprep.subr.mxu0 0.0
        %5203 = vmatpush1.msra.mxu0 0.0
        %5204 = vmatprep.subr.mxu0 0.0
        %5205 = vmatpush1.msra.mxu0 0.0
        %5206 = vmatprep.subr.mxu0 0.0
        %5207 = vmatpush1.msra.mxu0 0.0
        %5208 = vmatprep.subr.mxu0 0.0
        %5209 = vmatpush1.msra.mxu0 0.0
        %5210 = vmatprep.subr.mxu0 0.0
        %5211 = vmatpush1.msra.mxu0 0.0
        %5212 = vmatprep.mubr.f32.mxu0 0.0
        %5213 = vmatmul.mubr.f32.gmra.mrb[0].mxu0 %v5110
        %v5214 = vpop.f32.mrb[0].mxu0
        %v5215 = vadd.f32 %v5146, %v5214
        %v5216 = vpop.f32.mrb[0].mxu0
        %5217 = vmatprep.mubr.f32.mxu0 0.0
        %5218 = vmatmul.mubr.f32.gmra.mrb[0].mxu0 %v5111
        %v5219 = vpop.f32.mrb[0].mxu0
        %v5220 = vadd.f32 %v5146, %v5219
        %v5221 = vpop.f32.mrb[0].mxu0
        %5222 = vmatprep.mubr.f32.mxu0 0.0
        %5223 = vmatmul.mubr.f32.gmra.mrb[0].mxu0 %v5112
        %v5224 = vpop.f32.mrb[0].mxu0
        %v5225 = vadd.f32 %v5146, %v5224
        %v5226 = vpop.f32.mrb[0].mxu0
        %5227 = vmatprep.mubr.f32.mxu0 0.0
        %5228 = vmatmul.mubr.f32.gmra.mrb[0].mxu0 %v5113
        %v5229 = vpop.f32.mrb[0].mxu0
        %v5230 = vadd.f32 %v5146, %v5229
        %v5231 = vpop.f32.mrb[0].mxu0
        %5232 = vmatprep.mubr.f32.mxu0 0.0
        %5233 = vmatmul.mubr.f32.gmra.mrb[0].mxu0 %v5114
        %v5234 = vpop.f32.mrb[0].mxu0
        %v5235 = vadd.f32 %v5146, %v5234
        %v5236 = vpop.f32.mrb[0].mxu0
        %5237 = vmatprep.mubr.f32.mxu0 0.0
        %5238 = vmatmul.mubr.f32.gmra.mrb[0].mxu0 %v5115
        %v5239 = vpop.f32.mrb[0].mxu0
        %v5240 = vadd.f32 %v5146, %v5239
        %v5241 = vpop.f32.mrb[0].mxu0
        %5242 = vmatprep.mubr.f32.mxu0 0.0
        %5243 = vmatmul.mubr.f32.gmra.mrb[0].mxu0 %v5116
        %v5244 = vpop.f32.mrb[0].mxu0
        %v5245 = vadd.f32 %v5146, %v5244
        %v5246 = vpop.f32.mrb[0].mxu0
        %5247 = vmatprep.mubr.f32.mxu0 0.0
        %5248 = vmatmul.mubr.f32.gmra.mrb[0].mxu0 %v5117
        %v5249 = vpop.f32.mrb[0].mxu0
        %v5250 = vadd.f32 %v5146, %v5249
        %v5251 = vpop.f32.mrb[0].mxu0
        %5252 = vmatprep.mubr.f32.mxu0 0.0
        %5253 = vmatmul.mubr.f32.gmra.mrb[0].mxu0 %v5118
        %v5254 = vpop.f32.mrb[0].mxu0
        %v5255 = vadd.f32 %v5146, %v5254
        %v5256 = vpop.f32.mrb[0].mxu0
        %5257 = vmatprep.mubr.f32.mxu0 0.0
        %5258 = vmatmul.mubr.f32.gmra.mrb[0].mxu0 %v5119
        %v5259 = vpop.f32.mrb[0].mxu0
        %v5260 = vadd.f32 %v5146, %v5259
        %v5261 = vpop.f32.mrb[0].mxu0
        %5262 = vmatprep.mubr.f32.mxu0 0.0
        %5263 = vmatmul.mubr.f32.gmra.mrb[0].mxu0 %v5120
        %v5264 = vpop.f32.mrb[0].mxu0
        %v5265 = vadd.f32 %v5146, %v5264
        %v5266 = vpop.f32.mrb[0].mxu0
        %5267 = vmatprep.mubr.f32.mxu0 0.0
        %5268 = vmatmul.mubr.f32.gmra.mrb[0].mxu0 %v5121
        %v5269 = vpop.f32.mrb[0].mxu0
        %v5270 = vadd.f32 %v5146, %v5269
        %v5271 = vpop.f32.mrb[0].mxu0
        %5272 = vmatprep.mubr.f32.mxu0 0.0
        %5273 = vmatmul.mubr.f32.gmra.mrb[0].mxu0 %v5122
        %v5274 = vpop.f32.mrb[0].mxu0
        %v5275 = vadd.f32 %v5146, %v5274
        %v5276 = vpop.f32.mrb[0].mxu0
        %5277 = vmatprep.mubr.f32.mxu0 0.0
        %5278 = vmatmul.mubr.f32.gmra.mrb[0].mxu0 %v5123
        %v5279 = vpop.f32.mrb[0].mxu0
        %v5280 = vadd.f32 %v5146, %v5279
        %v5281 = vpop.f32.mrb[0].mxu0
        %5282 = vmatprep.mubr.f32.mxu0 0.0
        %5283 = vmatmul.mubr.f32.gmra.mrb[0].mxu0 %v5124
        %v5284 = vpop.f32.mrb[0].mxu0
        %v5285 = vadd.f32 %v5146, %v5284
        %v5286 = vpop.f32.mrb[0].mxu0
        %5287 = vdwg.mxu0
        %v5288 = vadd.f32 %v5215, %v4932
        %v5289 = vadd.f32 %v5220, %v4933
        %v5290 = vadd.f32 %v5225, %v4934
        %v5291 = vadd.f32 %v5230, %v4935
        %v5292 = vadd.f32 %v5235, %v4936
        %v5293 = vadd.f32 %v5240, %v4937
        %v5294 = vadd.f32 %v5245, %v4938
        %v5295 = vadd.f32 %v5250, %v4939
        %v5296 = vadd.f32 %v5255, %v4940
        %v5297 = vadd.f32 %v5260, %v4941
        %v5298 = vadd.f32 %v5265, %v4942
        %v5299 = vadd.f32 %v5270, %v4943
        %v5300 = vadd.f32 %v5275, %v4944
        %v5301 = vadd.f32 %v5280, %v4945
        %v5302 = vadd.f32 %v5285, %v4946
        %v5303 = vld [vmem:[#allocation17] sm:$0x1]
        %v5304 = vld [vmem:[#allocation19] sm:$0x1]
        %5305 = vadd.xlane.f32.xlu0 %v5288
        %v5306 = vpop.xlane.xlu0 %5305
        %5307 = vadd.xlane.f32.xlu0 %v5289
        %v5308 = vpop.xlane.xlu0 %5307
        %5309 = vadd.xlane.f32.xlu0 %v5290
        %v5310 = vpop.xlane.xlu0 %5309
        %5311 = vadd.xlane.f32.xlu0 %v5291
        %v5312 = vpop.xlane.xlu0 %5311
        %5313 = vadd.xlane.f32.xlu0 %v5292
        %v5314 = vpop.xlane.xlu0 %5313
        %5315 = vadd.xlane.f32.xlu0 %v5293
        %v5316 = vpop.xlane.xlu0 %5315
        %5317 = vadd.xlane.f32.xlu0 %v5294
        %v5318 = vpop.xlane.xlu0 %5317
        %5319 = vadd.xlane.f32.xlu0 %v5295
        %v5320 = vpop.xlane.xlu0 %5319
        %5321 = vadd.xlane.f32.xlu0 %v5296
        %v5322 = vpop.xlane.xlu0 %5321
        %5323 = vadd.xlane.f32.xlu0 %v5297
        %v5324 = vpop.xlane.xlu0 %5323
        %5325 = vadd.xlane.f32.xlu0 %v5298
        %v5326 = vpop.xlane.xlu0 %5325
        %5327 = vadd.xlane.f32.xlu0 %v5299
        %v5328 = vpop.xlane.xlu0 %5327
        %5329 = vadd.xlane.f32.xlu0 %v5300
        %v5330 = vpop.xlane.xlu0 %5329
        %5331 = vadd.xlane.f32.xlu0 %v5301
        %v5332 = vpop.xlane.xlu0 %5331
        %v5333 = vsel %vm1743, %v5302, 0.0
        %5334 = vadd.xlane.f32.xlu0 %v5333
        %v5335 = vpop.xlane.xlu0 %5334
        %v5336 = vmul.f32 %v5306, 0.00862069
        %v5337 = vmul.f32 %v5308, 0.00862069
        %v5338 = vmul.f32 %v5310, 0.00862069
        %v5339 = vmul.f32 %v5312, 0.00862069
        %v5340 = vmul.f32 %v5314, 0.00862069
        %v5341 = vmul.f32 %v5316, 0.00862069
        %v5342 = vmul.f32 %v5318, 0.00862069
        %v5343 = vmul.f32 %v5320, 0.00862069
        %v5344 = vmul.f32 %v5322, 0.00862069
        %v5345 = vmul.f32 %v5324, 0.00862069
        %v5346 = vmul.f32 %v5326, 0.00862069
        %v5347 = vmul.f32 %v5328, 0.00862069
        %v5348 = vmul.f32 %v5330, 0.00862069
        %v5349 = vmul.f32 %v5332, 0.00862069
        %v5350 = vmul.f32 %v5335, 0.00862069
        %v5351 = vsub.f32 %v5288, %v5336
        %v5352 = vsub.f32 %v5289, %v5337
        %v5353 = vsub.f32 %v5290, %v5338
        %v5354 = vsub.f32 %v5291, %v5339
        %v5355 = vsub.f32 %v5292, %v5340
        %v5356 = vsub.f32 %v5293, %v5341
        %v5357 = vsub.f32 %v5294, %v5342
        %v5358 = vsub.f32 %v5295, %v5343
        %v5359 = vsub.f32 %v5296, %v5344
        %v5360 = vsub.f32 %v5297, %v5345
        %v5361 = vsub.f32 %v5298, %v5346
        %v5362 = vsub.f32 %v5299, %v5347
        %v5363 = vsub.f32 %v5300, %v5348
        %v5364 = vsub.f32 %v5301, %v5349
        %v5365 = vsub.f32 %v5302, %v5350
        %v5366 = vmul.f32 %v5351, %v779
        %v5367 = vmul.f32 %v5352, %v779
        %v5368 = vmul.f32 %v5353, %v779
        %v5369 = vmul.f32 %v5354, %v779
        %v5370 = vmul.f32 %v5355, %v779
        %v5371 = vmul.f32 %v5356, %v779
        %v5372 = vmul.f32 %v5357, %v779
        %v5373 = vmul.f32 %v5358, %v779
        %v5374 = vmul.f32 %v5359, %v779
        %v5375 = vmul.f32 %v5360, %v779
        %v5376 = vmul.f32 %v5361, %v779
        %v5377 = vmul.f32 %v5362, %v779
        %v5378 = vmul.f32 %v5363, %v779
        %v5379 = vmul.f32 %v5364, %v779
        %v5380 = vmul.f32 %v5365, %v779
        %v5381 = vmul.f32 %v5366, %v5366
        %v5382 = vmul.f32 %v5367, %v5367
        %v5383 = vmul.f32 %v5368, %v5368
        %v5384 = vmul.f32 %v5369, %v5369
        %v5385 = vmul.f32 %v5370, %v5370
        %v5386 = vmul.f32 %v5371, %v5371
        %v5387 = vmul.f32 %v5372, %v5372
        %v5388 = vmul.f32 %v5373, %v5373
        %v5389 = vmul.f32 %v5374, %v5374
        %v5390 = vmul.f32 %v5375, %v5375
        %v5391 = vmul.f32 %v5376, %v5376
        %v5392 = vmul.f32 %v5377, %v5377
        %v5393 = vmul.f32 %v5378, %v5378
        %v5394 = vmul.f32 %v5379, %v5379
        %v5395 = vmul.f32 %v5380, %v5380
        %5396 = vadd.xlane.f32.xlu0 %v5381
        %v5397 = vpop.xlane.xlu0 %5396
        %5398 = vadd.xlane.f32.xlu0 %v5382
        %v5399 = vpop.xlane.xlu0 %5398
        %5400 = vadd.xlane.f32.xlu0 %v5383
        %v5401 = vpop.xlane.xlu0 %5400
        %5402 = vadd.xlane.f32.xlu0 %v5384
        %v5403 = vpop.xlane.xlu0 %5402
        %5404 = vadd.xlane.f32.xlu0 %v5385
        %v5405 = vpop.xlane.xlu0 %5404
        %5406 = vadd.xlane.f32.xlu0 %v5386
        %v5407 = vpop.xlane.xlu0 %5406
        %5408 = vadd.xlane.f32.xlu0 %v5387
        %v5409 = vpop.xlane.xlu0 %5408
        %5410 = vadd.xlane.f32.xlu0 %v5388
        %v5411 = vpop.xlane.xlu0 %5410
        %5412 = vadd.xlane.f32.xlu0 %v5389
        %v5413 = vpop.xlane.xlu0 %5412
        %5414 = vadd.xlane.f32.xlu0 %v5390
        %v5415 = vpop.xlane.xlu0 %5414
        %5416 = vadd.xlane.f32.xlu0 %v5391
        %v5417 = vpop.xlane.xlu0 %5416
        %5418 = vadd.xlane.f32.xlu0 %v5392
        %v5419 = vpop.xlane.xlu0 %5418
        %5420 = vadd.xlane.f32.xlu0 %v5393
        %v5421 = vpop.xlane.xlu0 %5420
        %5422 = vadd.xlane.f32.xlu0 %v5394
        %v5423 = vpop.xlane.xlu0 %5422
        %v5424 = vsel %vm1743, %v5395, 0.0
        %5425 = vadd.xlane.f32.xlu0 %v5424
        %v5426 = vpop.xlane.xlu0 %5425
        %v5427 = vmul.f32 %v5397, 0.00862069
        %v5428 = vmul.f32 %v5399, 0.00862069
        %v5429 = vmul.f32 %v5401, 0.00862069
        %v5430 = vmul.f32 %v5403, 0.00862069
        %v5431 = vmul.f32 %v5405, 0.00862069
        %v5432 = vmul.f32 %v5407, 0.00862069
        %v5433 = vmul.f32 %v5409, 0.00862069
        %v5434 = vmul.f32 %v5411, 0.00862069
        %v5435 = vmul.f32 %v5413, 0.00862069
        %v5436 = vmul.f32 %v5415, 0.00862069
        %v5437 = vmul.f32 %v5417, 0.00862069
        %v5438 = vmul.f32 %v5419, 0.00862069
        %v5439 = vmul.f32 %v5421, 0.00862069
        %v5440 = vmul.f32 %v5423, 0.00862069
        %v5441 = vmul.f32 %v5426, 0.00862069
        %v5442 = vadd.f32 %v5427, 1e-05
        %v5443 = vadd.f32 %v5428, 1e-05
        %v5444 = vadd.f32 %v5429, 1e-05
        %v5445 = vadd.f32 %v5430, 1e-05
        %v5446 = vadd.f32 %v5431, 1e-05
        %v5447 = vadd.f32 %v5432, 1e-05
        %v5448 = vadd.f32 %v5433, 1e-05
        %v5449 = vadd.f32 %v5434, 1e-05
        %v5450 = vadd.f32 %v5435, 1e-05
        %v5451 = vadd.f32 %v5436, 1e-05
        %v5452 = vadd.f32 %v5437, 1e-05
        %v5453 = vadd.f32 %v5438, 1e-05
        %v5454 = vadd.f32 %v5439, 1e-05
        %v5455 = vadd.f32 %v5440, 1e-05
        %v5456 = vadd.f32 %v5441, 1e-05
        %v5457 = vrsqrt.pop %v5442
        %v5458 = vrsqrt.pop %v5443
        %v5459 = vrsqrt.pop %v5444
        %v5460 = vrsqrt.pop %v5445
        %v5461 = vrsqrt.pop %v5446
        %v5462 = vrsqrt.pop %v5447
        %v5463 = vrsqrt.pop %v5448
        %v5464 = vrsqrt.pop %v5449
        %v5465 = vrsqrt.pop %v5450
        %v5466 = vrsqrt.pop %v5451
        %v5467 = vrsqrt.pop %v5452
        %v5468 = vrsqrt.pop %v5453
        %v5469 = vrsqrt.pop %v5454
        %v5470 = vrsqrt.pop %v5455
        %v5471 = vrsqrt.pop %v5456
        %v5472 = vmul.f32 %v5366, %v5457
        %v5473 = vmul.f32 %v5367, %v5458
        %v5474 = vmul.f32 %v5368, %v5459
        %v5475 = vmul.f32 %v5369, %v5460
        %v5476 = vmul.f32 %v5370, %v5461
        %v5477 = vmul.f32 %v5371, %v5462
        %v5478 = vmul.f32 %v5372, %v5463
        %v5479 = vmul.f32 %v5373, %v5464
        %v5480 = vmul.f32 %v5374, %v5465
        %v5481 = vmul.f32 %v5375, %v5466
        %v5482 = vmul.f32 %v5376, %v5467
        %v5483 = vmul.f32 %v5377, %v5468
        %v5484 = vmul.f32 %v5378, %v5469
        %v5485 = vmul.f32 %v5379, %v5470
        %v5486 = vmul.f32 %v5380, %v5471
        %v5488 = vlaneseq
        %v5489 = vshrl.u32 %v5488, 7
        %v5490 = vsub.s32 0, %v5489
        %v5491 = vrot.slane %v5303, %v5490
        %v5493 = vmul.f32 %v5472, %v5491
        %v5494 = vmul.f32 %v5473, %v5491
        %v5495 = vmul.f32 %v5474, %v5491
        %v5496 = vmul.f32 %v5475, %v5491
        %v5497 = vmul.f32 %v5476, %v5491
        %v5498 = vmul.f32 %v5477, %v5491
        %v5499 = vmul.f32 %v5478, %v5491
        %v5500 = vmul.f32 %v5479, %v5491
        %v5501 = vmul.f32 %v5480, %v5491
        %v5502 = vmul.f32 %v5481, %v5491
        %v5503 = vmul.f32 %v5482, %v5491
        %v5504 = vmul.f32 %v5483, %v5491
        %v5505 = vmul.f32 %v5484, %v5491
        %v5506 = vmul.f32 %v5485, %v5491
        %v5507 = vmul.f32 %v5486, %v5491
        %v5509 = vlaneseq
        %v5510 = vshrl.u32 %v5509, 7
        %v5511 = vsub.s32 0, %v5510
        %v5512 = vrot.slane %v5304, %v5511
        %v5514 = vadd.f32 %v5493, %v5512
        %v5515 = vadd.f32 %v5494, %v5512
        %v5516 = vadd.f32 %v5495, %v5512
        %v5517 = vadd.f32 %v5496, %v5512
        %v5518 = vadd.f32 %v5497, %v5512
        %v5519 = vadd.f32 %v5498, %v5512
        %v5520 = vadd.f32 %v5499, %v5512
        %v5521 = vadd.f32 %v5500, %v5512
        %v5522 = vadd.f32 %v5501, %v5512
        %v5523 = vadd.f32 %v5502, %v5512
        %v5524 = vadd.f32 %v5503, %v5512
        %v5525 = vadd.f32 %v5504, %v5512
        %v5526 = vadd.f32 %v5505, %v5512
        %v5527 = vadd.f32 %v5506, %v5512
        %v5528 = vadd.f32 %v5507, %v5512
        %s5529 = scalar_lea.vmem %s1, 128
        %v5530 = vld [vmem:[%s5529] sm:$0xff]
        %v5531 = vld [vmem:[%s5529 + $0x8] sm:$0xff]
        %v5532 = vld [vmem:[%s5529 + $0x10] sm:$0xff]
        %v5533 = vld [vmem:[%s5529 + $0x18] sm:$0xff]
        %v5534 = vld [vmem:[%s5529 + $0x20] sm:$0xff]
        %v5535 = vld [vmem:[%s5529 + $0x28] sm:$0xff]
        %v5536 = vld [vmem:[%s5529 + $0x30] sm:$0xff]
        %v5537 = vld [vmem:[%s5529 + $0x38] sm:$0xff]
        %v5538 = vld [vmem:[%s5529 + $0x40] sm:$0xff]
        %v5539 = vld [vmem:[%s5529 + $0x48] sm:$0xff]
        %v5540 = vld [vmem:[%s5529 + $0x50] sm:$0xff]
        %v5541 = vld [vmem:[%s5529 + $0x58] sm:$0xff]
        %v5542 = vld [vmem:[%s5529 + $0x60] sm:$0xff]
        %v5543 = vld [vmem:[%s5529 + $0x68] sm:$0xff]
        %v5544 = vld [vmem:[%s5529 + $0x70] sm:$0xff]
        %v5545 = vld [vmem:[%s5529 + $0x78] sm:$0xff]
        %s5546 = scalar_lea.vmem %s3, 128
        %v5547 = vld [vmem:[%s5546] sm:$0xff]
        %v5548 = vld [vmem:[%s5546 + $0x8] sm:$0xff]
        %v5549 = vld [vmem:[%s5546 + $0x10] sm:$0xff]
        %v5550 = vld [vmem:[%s5546 + $0x18] sm:$0xff]
        %v5551 = vld [vmem:[%s5546 + $0x20] sm:$0xff]
        %v5552 = vld [vmem:[%s5546 + $0x28] sm:$0xff]
        %v5553 = vld [vmem:[%s5546 + $0x30] sm:$0xff]
        %v5554 = vld [vmem:[%s5546 + $0x38] sm:$0xff]
        %v5555 = vld [vmem:[%s5546 + $0x40] sm:$0xff]
        %v5556 = vld [vmem:[%s5546 + $0x48] sm:$0xff]
        %v5557 = vld [vmem:[%s5546 + $0x50] sm:$0xff]
        %v5558 = vld [vmem:[%s5546 + $0x58] sm:$0xff]
        %v5559 = vld [vmem:[%s5546 + $0x60] sm:$0xff]
        %v5560 = vld [vmem:[%s5546 + $0x68] sm:$0xff]
        %v5561 = vld [vmem:[%s5546 + $0x70] sm:$0xff]
        %v5562 = vld [vmem:[%s5546 + $0x78] sm:$0xff]
        %s5563 = scalar_lea.vmem %s5, 128
        %v5564 = vld [vmem:[%s5563] sm:$0xff]
        %v5565 = vld [vmem:[%s5563 + $0x8] sm:$0xff]
        %v5566 = vld [vmem:[%s5563 + $0x10] sm:$0xff]
        %v5567 = vld [vmem:[%s5563 + $0x18] sm:$0xff]
        %v5568 = vld [vmem:[%s5563 + $0x20] sm:$0xff]
        %v5569 = vld [vmem:[%s5563 + $0x28] sm:$0xff]
        %v5570 = vld [vmem:[%s5563 + $0x30] sm:$0xff]
        %v5571 = vld [vmem:[%s5563 + $0x38] sm:$0xff]
        %v5572 = vld [vmem:[%s5563 + $0x40] sm:$0xff]
        %v5573 = vld [vmem:[%s5563 + $0x48] sm:$0xff]
        %v5574 = vld [vmem:[%s5563 + $0x50] sm:$0xff]
        %v5575 = vld [vmem:[%s5563 + $0x58] sm:$0xff]
        %v5576 = vld [vmem:[%s5563 + $0x60] sm:$0xff]
        %v5577 = vld [vmem:[%s5563 + $0x68] sm:$0xff]
        %v5578 = vld [vmem:[%s5563 + $0x70] sm:$0xff]
        %v5579 = vld [vmem:[%s5563 + $0x78] sm:$0xff]
        %s5580 = scalar_lea.vmem [#allocation5], 128
        %v5581 = vld [vmem:[%s5580] sm:$0xff]
        %v5582 = vld [vmem:[%s5580 + $0x8] sm:$0xff]
        %v5583 = vld [vmem:[%s5580 + $0x10] sm:$0xff]
        %v5584 = vld [vmem:[%s5580 + $0x18] sm:$0xff]
        %v5585 = vld [vmem:[%s5580 + $0x20] sm:$0xff]
        %v5586 = vld [vmem:[%s5580 + $0x28] sm:$0xff]
        %v5587 = vld [vmem:[%s5580 + $0x30] sm:$0xff]
        %v5588 = vld [vmem:[%s5580 + $0x38] sm:$0xff]
        %v5589 = vld [vmem:[%s5580 + $0x40] sm:$0xff]
        %v5590 = vld [vmem:[%s5580 + $0x48] sm:$0xff]
        %v5591 = vld [vmem:[%s5580 + $0x50] sm:$0xff]
        %v5592 = vld [vmem:[%s5580 + $0x58] sm:$0xff]
        %v5593 = vld [vmem:[%s5580 + $0x60] sm:$0xff]
        %v5594 = vld [vmem:[%s5580 + $0x68] sm:$0xff]
        %v5595 = vld [vmem:[%s5580 + $0x70] sm:$0xff]
        %v5596 = vld [vmem:[%s5580 + $0x78] sm:$0xff]
        %s5597 = scalar_lea.vmem %s2, 1
        %v5598 = vld [vmem:[%s5597] sm:$0x1]
        %v5600 = vlaneseq
        %v5601 = vshrl.u32 %v5600, 7
        %v5602 = vsub.s32 0, %v5601
        %v5603 = vrot.slane %v5598, %v5602
        %5605 = vmatprep.subr.mxu0 0.0
        %5606 = vmatpush1.msra.mxu0 %v5530
        %5607 = vmatprep.subr.mxu0 0.0
        %5608 = vmatpush1.msra.mxu0 %v5531
        %5609 = vmatprep.subr.mxu0 0.0
        %5610 = vmatpush1.msra.mxu0 %v5532
        %5611 = vmatprep.subr.mxu0 0.0
        %5612 = vmatpush1.msra.mxu0 %v5533
        %5613 = vmatprep.subr.mxu0 0.0
        %5614 = vmatpush1.msra.mxu0 %v5534
        %5615 = vmatprep.subr.mxu0 0.0
        %5616 = vmatpush1.msra.mxu0 %v5535
        %5617 = vmatprep.subr.mxu0 0.0
        %5618 = vmatpush1.msra.mxu0 %v5536
        %5619 = vmatprep.subr.mxu0 0.0
        %5620 = vmatpush1.msra.mxu0 %v5537
        %5621 = vmatprep.subr.mxu0 0.0
        %5622 = vmatpush1.msra.mxu0 %v5538
        %5623 = vmatprep.subr.mxu0 0.0
        %5624 = vmatpush1.msra.mxu0 %v5539
        %5625 = vmatprep.subr.mxu0 0.0
        %5626 = vmatpush1.msra.mxu0 %v5540
        %5627 = vmatprep.subr.mxu0 0.0
        %5628 = vmatpush1.msra.mxu0 %v5541
        %5629 = vmatprep.subr.mxu0 0.0
        %5630 = vmatpush1.msra.mxu0 %v5542
        %5631 = vmatprep.subr.mxu0 0.0
        %5632 = vmatpush1.msra.mxu0 %v5543
        %5633 = vmatprep.subr.mxu0 0.0
        %5634 = vmatpush1.msra.mxu0 %v5544
        %5635 = vmatprep.subr.mxu0 0.0
        %5636 = vmatpush1.msra.mxu0 %v5545
        %5637 = vmatprep.subr.mxu0 0.0
        %5638 = vmatpush1.msra.mxu0 0.0
        %5639 = vmatprep.subr.mxu0 0.0
        %5640 = vmatpush1.msra.mxu0 0.0
        %5641 = vmatprep.subr.mxu0 0.0
        %5642 = vmatpush1.msra.mxu0 0.0
        %5643 = vmatprep.subr.mxu0 0.0
        %5644 = vmatpush1.msra.mxu0 0.0
        %5645 = vmatprep.subr.mxu0 0.0
        %5646 = vmatpush1.msra.mxu0 0.0
        %5647 = vmatprep.subr.mxu0 0.0
        %5648 = vmatpush1.msra.mxu0 0.0
        %5649 = vmatprep.subr.mxu0 0.0
        %5650 = vmatpush1.msra.mxu0 0.0
        %5651 = vmatprep.subr.mxu0 0.0
        %5652 = vmatpush1.msra.mxu0 0.0
        %5653 = vmatprep.subr.mxu0 0.0
        %5654 = vmatpush1.msra.mxu0 0.0
        %5655 = vmatprep.subr.mxu0 0.0
        %5656 = vmatpush1.msra.mxu0 0.0
        %5657 = vmatprep.subr.mxu0 0.0
        %5658 = vmatpush1.msra.mxu0 0.0
        %5659 = vmatprep.subr.mxu0 0.0
        %5660 = vmatpush1.msra.mxu0 0.0
        %5661 = vmatprep.subr.mxu0 0.0
        %5662 = vmatpush1.msra.mxu0 0.0
        %5663 = vmatprep.subr.mxu0 0.0
        %5664 = vmatpush1.msra.mxu0 0.0
        %5665 = vmatprep.subr.mxu0 0.0
        %5666 = vmatpush1.msra.mxu0 0.0
        %5667 = vmatprep.subr.mxu0 0.0
        %5668 = vmatpush1.msra.mxu0 0.0
        %5669 = vmatprep.mubr.f32.mxu0 0.0
        %5670 = vmatmul.mubr.f32.gmra.mrb[0].mxu0 %v5514
        %v5671 = vpop.f32.mrb[0].mxu0
        %v5672 = vadd.f32 %v5603, %v5671
        %v5673 = vpop.f32.mrb[0].mxu0
        %5674 = vmatprep.mubr.f32.mxu0 0.0
        %5675 = vmatmul.mubr.f32.gmra.mrb[0].mxu0 %v5515
        %v5676 = vpop.f32.mrb[0].mxu0
        %v5677 = vadd.f32 %v5603, %v5676
        %v5678 = vpop.f32.mrb[0].mxu0
        %5679 = vmatprep.mubr.f32.mxu0 0.0
        %5680 = vmatmul.mubr.f32.gmra.mrb[0].mxu0 %v5516
        %v5681 = vpop.f32.mrb[0].mxu0
        %v5682 = vadd.f32 %v5603, %v5681
        %v5683 = vpop.f32.mrb[0].mxu0
        %5684 = vmatprep.mubr.f32.mxu0 0.0
        %5685 = vmatmul.mubr.f32.gmra.mrb[0].mxu0 %v5517
        %v5686 = vpop.f32.mrb[0].mxu0
        %v5687 = vadd.f32 %v5603, %v5686
        %v5688 = vpop.f32.mrb[0].mxu0
        %5689 = vmatprep.mubr.f32.mxu0 0.0
        %5690 = vmatmul.mubr.f32.gmra.mrb[0].mxu0 %v5518
        %v5691 = vpop.f32.mrb[0].mxu0
        %v5692 = vadd.f32 %v5603, %v5691
        %v5693 = vpop.f32.mrb[0].mxu0
        %5694 = vmatprep.mubr.f32.mxu0 0.0
        %5695 = vmatmul.mubr.f32.gmra.mrb[0].mxu0 %v5519
        %v5696 = vpop.f32.mrb[0].mxu0
        %v5697 = vadd.f32 %v5603, %v5696
        %v5698 = vpop.f32.mrb[0].mxu0
        %5699 = vmatprep.mubr.f32.mxu0 0.0
        %5700 = vmatmul.mubr.f32.gmra.mrb[0].mxu0 %v5520
        %v5701 = vpop.f32.mrb[0].mxu0
        %v5702 = vadd.f32 %v5603, %v5701
        %v5703 = vpop.f32.mrb[0].mxu0
        %5704 = vmatprep.mubr.f32.mxu0 0.0
        %5705 = vmatmul.mubr.f32.gmra.mrb[0].mxu0 %v5521
        %v5706 = vpop.f32.mrb[0].mxu0
        %v5707 = vadd.f32 %v5603, %v5706
        %v5708 = vpop.f32.mrb[0].mxu0
        %5709 = vmatprep.mubr.f32.mxu0 0.0
        %5710 = vmatmul.mubr.f32.gmra.mrb[0].mxu0 %v5522
        %v5711 = vpop.f32.mrb[0].mxu0
        %v5712 = vadd.f32 %v5603, %v5711
        %v5713 = vpop.f32.mrb[0].mxu0
        %5714 = vmatprep.mubr.f32.mxu0 0.0
        %5715 = vmatmul.mubr.f32.gmra.mrb[0].mxu0 %v5523
        %v5716 = vpop.f32.mrb[0].mxu0
        %v5717 = vadd.f32 %v5603, %v5716
        %v5718 = vpop.f32.mrb[0].mxu0
        %5719 = vmatprep.mubr.f32.mxu0 0.0
        %5720 = vmatmul.mubr.f32.gmra.mrb[0].mxu0 %v5524
        %v5721 = vpop.f32.mrb[0].mxu0
        %v5722 = vadd.f32 %v5603, %v5721
        %v5723 = vpop.f32.mrb[0].mxu0
        %5724 = vmatprep.mubr.f32.mxu0 0.0
        %5725 = vmatmul.mubr.f32.gmra.mrb[0].mxu0 %v5525
        %v5726 = vpop.f32.mrb[0].mxu0
        %v5727 = vadd.f32 %v5603, %v5726
        %v5728 = vpop.f32.mrb[0].mxu0
        %5729 = vmatprep.mubr.f32.mxu0 0.0
        %5730 = vmatmul.mubr.f32.gmra.mrb[0].mxu0 %v5526
        %v5731 = vpop.f32.mrb[0].mxu0
        %v5732 = vadd.f32 %v5603, %v5731
        %v5733 = vpop.f32.mrb[0].mxu0
        %5734 = vmatprep.mubr.f32.mxu0 0.0
        %5735 = vmatmul.mubr.f32.gmra.mrb[0].mxu0 %v5527
        %v5736 = vpop.f32.mrb[0].mxu0
        %v5737 = vadd.f32 %v5603, %v5736
        %v5738 = vpop.f32.mrb[0].mxu0
        %5739 = vmatprep.mubr.f32.mxu0 0.0
        %5740 = vmatmul.mubr.f32.gmra.mrb[0].mxu0 %v5528
        %v5741 = vpop.f32.mrb[0].mxu0
        %v5742 = vadd.f32 %v5603, %v5741
        %v5743 = vpop.f32.mrb[0].mxu0
        %5744 = vdwg.mxu0
        %s5745 = scalar_lea.vmem %s4, 1
        %v5746 = vld [vmem:[%s5745] sm:$0x1]
        %v5748 = vlaneseq
        %v5749 = vshrl.u32 %v5748, 7
        %v5750 = vsub.s32 0, %v5749
        %v5751 = vrot.slane %v5746, %v5750
        %5753 = vmatprep.subr.mxu0 0.0
        %5754 = vmatpush1.msra.mxu0 %v5547
        %5755 = vmatprep.subr.mxu0 0.0
        %5756 = vmatpush1.msra.mxu0 %v5548
        %5757 = vmatprep.subr.mxu0 0.0
        %5758 = vmatpush1.msra.mxu0 %v5549
        %5759 = vmatprep.subr.mxu0 0.0
        %5760 = vmatpush1.msra.mxu0 %v5550
        %5761 = vmatprep.subr.mxu0 0.0
        %5762 = vmatpush1.msra.mxu0 %v5551
        %5763 = vmatprep.subr.mxu0 0.0
        %5764 = vmatpush1.msra.mxu0 %v5552
        %5765 = vmatprep.subr.mxu0 0.0
        %5766 = vmatpush1.msra.mxu0 %v5553
        %5767 = vmatprep.subr.mxu0 0.0
        %5768 = vmatpush1.msra.mxu0 %v5554
        %5769 = vmatprep.subr.mxu0 0.0
        %5770 = vmatpush1.msra.mxu0 %v5555
        %5771 = vmatprep.subr.mxu0 0.0
        %5772 = vmatpush1.msra.mxu0 %v5556
        %5773 = vmatprep.subr.mxu0 0.0
        %5774 = vmatpush1.msra.mxu0 %v5557
        %5775 = vmatprep.subr.mxu0 0.0
        %5776 = vmatpush1.msra.mxu0 %v5558
        %5777 = vmatprep.subr.mxu0 0.0
        %5778 = vmatpush1.msra.mxu0 %v5559
        %5779 = vmatprep.subr.mxu0 0.0
        %5780 = vmatpush1.msra.mxu0 %v5560
        %5781 = vmatprep.subr.mxu0 0.0
        %5782 = vmatpush1.msra.mxu0 %v5561
        %5783 = vmatprep.subr.mxu0 0.0
        %5784 = vmatpush1.msra.mxu0 %v5562
        %5785 = vmatprep.subr.mxu0 0.0
        %5786 = vmatpush1.msra.mxu0 0.0
        %5787 = vmatprep.subr.mxu0 0.0
        %5788 = vmatpush1.msra.mxu0 0.0
        %5789 = vmatprep.subr.mxu0 0.0
        %5790 = vmatpush1.msra.mxu0 0.0
        %5791 = vmatprep.subr.mxu0 0.0
        %5792 = vmatpush1.msra.mxu0 0.0
        %5793 = vmatprep.subr.mxu0 0.0
        %5794 = vmatpush1.msra.mxu0 0.0
        %5795 = vmatprep.subr.mxu0 0.0
        %5796 = vmatpush1.msra.mxu0 0.0
        %5797 = vmatprep.subr.mxu0 0.0
        %5798 = vmatpush1.msra.mxu0 0.0
        %5799 = vmatprep.subr.mxu0 0.0
        %5800 = vmatpush1.msra.mxu0 0.0
        %5801 = vmatprep.subr.mxu0 0.0
        %5802 = vmatpush1.msra.mxu0 0.0
        %5803 = vmatprep.subr.mxu0 0.0
        %5804 = vmatpush1.msra.mxu0 0.0
        %5805 = vmatprep.subr.mxu0 0.0
        %5806 = vmatpush1.msra.mxu0 0.0
        %5807 = vmatprep.subr.mxu0 0.0
        %5808 = vmatpush1.msra.mxu0 0.0
        %5809 = vmatprep.subr.mxu0 0.0
        %5810 = vmatpush1.msra.mxu0 0.0
        %5811 = vmatprep.subr.mxu0 0.0
        %5812 = vmatpush1.msra.mxu0 0.0
        %5813 = vmatprep.subr.mxu0 0.0
        %5814 = vmatpush1.msra.mxu0 0.0
        %5815 = vmatprep.subr.mxu0 0.0
        %5816 = vmatpush1.msra.mxu0 0.0
        %5817 = vmatprep.mubr.f32.mxu0 0.0
        %5818 = vmatmul.mubr.f32.gmra.mrb[0].mxu0 %v5514
        %v5819 = vpop.f32.mrb[0].mxu0
        %v5820 = vadd.f32 %v5751, %v5819
        %v5821 = vpop.f32.mrb[0].mxu0
        %5822 = vmatprep.mubr.f32.mxu0 0.0
        %5823 = vmatmul.mubr.f32.gmra.mrb[0].mxu0 %v5515
        %v5824 = vpop.f32.mrb[0].mxu0
        %v5825 = vadd.f32 %v5751, %v5824
        %v5826 = vpop.f32.mrb[0].mxu0
        %5827 = vmatprep.mubr.f32.mxu0 0.0
        %5828 = vmatmul.mubr.f32.gmra.mrb[0].mxu0 %v5516
        %v5829 = vpop.f32.mrb[0].mxu0
        %v5830 = vadd.f32 %v5751, %v5829
        %v5831 = vpop.f32.mrb[0].mxu0
        %5832 = vmatprep.mubr.f32.mxu0 0.0
        %5833 = vmatmul.mubr.f32.gmra.mrb[0].mxu0 %v5517
        %v5834 = vpop.f32.mrb[0].mxu0
        %v5835 = vadd.f32 %v5751, %v5834
        %v5836 = vpop.f32.mrb[0].mxu0
        %5837 = vmatprep.mubr.f32.mxu0 0.0
        %5838 = vmatmul.mubr.f32.gmra.mrb[0].mxu0 %v5518
        %v5839 = vpop.f32.mrb[0].mxu0
        %v5840 = vadd.f32 %v5751, %v5839
        %v5841 = vpop.f32.mrb[0].mxu0
        %5842 = vmatprep.mubr.f32.mxu0 0.0
        %5843 = vmatmul.mubr.f32.gmra.mrb[0].mxu0 %v5519
        %v5844 = vpop.f32.mrb[0].mxu0
        %v5845 = vadd.f32 %v5751, %v5844
        %v5846 = vpop.f32.mrb[0].mxu0
        %5847 = vmatprep.mubr.f32.mxu0 0.0
        %5848 = vmatmul.mubr.f32.gmra.mrb[0].mxu0 %v5520
        %v5849 = vpop.f32.mrb[0].mxu0
        %v5850 = vadd.f32 %v5751, %v5849
        %v5851 = vpop.f32.mrb[0].mxu0
        %5852 = vmatprep.mubr.f32.mxu0 0.0
        %5853 = vmatmul.mubr.f32.gmra.mrb[0].mxu0 %v5521
        %v5854 = vpop.f32.mrb[0].mxu0
        %v5855 = vadd.f32 %v5751, %v5854
        %v5856 = vpop.f32.mrb[0].mxu0
        %5857 = vmatprep.mubr.f32.mxu0 0.0
        %5858 = vmatmul.mubr.f32.gmra.mrb[0].mxu0 %v5522
        %v5859 = vpop.f32.mrb[0].mxu0
        %v5860 = vadd.f32 %v5751, %v5859
        %v5861 = vpop.f32.mrb[0].mxu0
        %5862 = vmatprep.mubr.f32.mxu0 0.0
        %5863 = vmatmul.mubr.f32.gmra.mrb[0].mxu0 %v5523
        %v5864 = vpop.f32.mrb[0].mxu0
        %v5865 = vadd.f32 %v5751, %v5864
        %v5866 = vpop.f32.mrb[0].mxu0
        %5867 = vmatprep.mubr.f32.mxu0 0.0
        %5868 = vmatmul.mubr.f32.gmra.mrb[0].mxu0 %v5524
        %v5869 = vpop.f32.mrb[0].mxu0
        %v5870 = vadd.f32 %v5751, %v5869
        %v5871 = vpop.f32.mrb[0].mxu0
        %5872 = vmatprep.mubr.f32.mxu0 0.0
        %5873 = vmatmul.mubr.f32.gmra.mrb[0].mxu0 %v5525
        %v5874 = vpop.f32.mrb[0].mxu0
        %v5875 = vadd.f32 %v5751, %v5874
        %v5876 = vpop.f32.mrb[0].mxu0
        %5877 = vmatprep.mubr.f32.mxu0 0.0
        %5878 = vmatmul.mubr.f32.gmra.mrb[0].mxu0 %v5526
        %v5879 = vpop.f32.mrb[0].mxu0
        %v5880 = vadd.f32 %v5751, %v5879
        %v5881 = vpop.f32.mrb[0].mxu0
        %5882 = vmatprep.mubr.f32.mxu0 0.0
        %5883 = vmatmul.mubr.f32.gmra.mrb[0].mxu0 %v5527
        %v5884 = vpop.f32.mrb[0].mxu0
        %v5885 = vadd.f32 %v5751, %v5884
        %v5886 = vpop.f32.mrb[0].mxu0
        %5887 = vmatprep.mubr.f32.mxu0 0.0
        %5888 = vmatmul.mubr.f32.gmra.mrb[0].mxu0 %v5528
        %v5889 = vpop.f32.mrb[0].mxu0
        %v5890 = vadd.f32 %v5751, %v5889
        %v5891 = vpop.f32.mrb[0].mxu0
        %5892 = vdwg.mxu0
        %s5893 = scalar_lea.vmem [#allocation2], 1
        %v5894 = vld [vmem:[%s5893] sm:$0x1]
        %v5896 = vlaneseq
        %v5897 = vshrl.u32 %v5896, 7
        %v5898 = vsub.s32 0, %v5897
        %v5899 = vrot.slane %v5894, %v5898
        %5901 = vmatprep.subr.mxu0 0.0
        %5902 = vmatpush1.msra.mxu0 %v5564
        %5903 = vmatprep.subr.mxu0 0.0
        %5904 = vmatpush1.msra.mxu0 %v5565
        %5905 = vmatprep.subr.mxu0 0.0
        %5906 = vmatpush1.msra.mxu0 %v5566
        %5907 = vmatprep.subr.mxu0 0.0
        %5908 = vmatpush1.msra.mxu0 %v5567
        %5909 = vmatprep.subr.mxu0 0.0
        %5910 = vmatpush1.msra.mxu0 %v5568
        %5911 = vmatprep.subr.mxu0 0.0
        %5912 = vmatpush1.msra.mxu0 %v5569
        %5913 = vmatprep.subr.mxu0 0.0
        %5914 = vmatpush1.msra.mxu0 %v5570
        %5915 = vmatprep.subr.mxu0 0.0
        %5916 = vmatpush1.msra.mxu0 %v5571
        %5917 = vmatprep.subr.mxu0 0.0
        %5918 = vmatpush1.msra.mxu0 %v5572
        %5919 = vmatprep.subr.mxu0 0.0
        %5920 = vmatpush1.msra.mxu0 %v5573
        %5921 = vmatprep.subr.mxu0 0.0
        %5922 = vmatpush1.msra.mxu0 %v5574
        %5923 = vmatprep.subr.mxu0 0.0
        %5924 = vmatpush1.msra.mxu0 %v5575
        %5925 = vmatprep.subr.mxu0 0.0
        %5926 = vmatpush1.msra.mxu0 %v5576
        %5927 = vmatprep.subr.mxu0 0.0
        %5928 = vmatpush1.msra.mxu0 %v5577
        %5929 = vmatprep.subr.mxu0 0.0
        %5930 = vmatpush1.msra.mxu0 %v5578
        %5931 = vmatprep.subr.mxu0 0.0
        %5932 = vmatpush1.msra.mxu0 %v5579
        %5933 = vmatprep.subr.mxu0 0.0
        %5934 = vmatpush1.msra.mxu0 0.0
        %5935 = vmatprep.subr.mxu0 0.0
        %5936 = vmatpush1.msra.mxu0 0.0
        %5937 = vmatprep.subr.mxu0 0.0
        %5938 = vmatpush1.msra.mxu0 0.0
        %5939 = vmatprep.subr.mxu0 0.0
        %5940 = vmatpush1.msra.mxu0 0.0
        %5941 = vmatprep.subr.mxu0 0.0
        %5942 = vmatpush1.msra.mxu0 0.0
        %5943 = vmatprep.subr.mxu0 0.0
        %5944 = vmatpush1.msra.mxu0 0.0
        %5945 = vmatprep.subr.mxu0 0.0
        %5946 = vmatpush1.msra.mxu0 0.0
        %5947 = vmatprep.subr.mxu0 0.0
        %5948 = vmatpush1.msra.mxu0 0.0
        %5949 = vmatprep.subr.mxu0 0.0
        %5950 = vmatpush1.msra.mxu0 0.0
        %5951 = vmatprep.subr.mxu0 0.0
        %5952 = vmatpush1.msra.mxu0 0.0
        %5953 = vmatprep.subr.mxu0 0.0
        %5954 = vmatpush1.msra.mxu0 0.0
        %5955 = vmatprep.subr.mxu0 0.0
        %5956 = vmatpush1.msra.mxu0 0.0
        %5957 = vmatprep.subr.mxu0 0.0
        %5958 = vmatpush1.msra.mxu0 0.0
        %5959 = vmatprep.subr.mxu0 0.0
        %5960 = vmatpush1.msra.mxu0 0.0
        %5961 = vmatprep.subr.mxu0 0.0
        %5962 = vmatpush1.msra.mxu0 0.0
        %5963 = vmatprep.subr.mxu0 0.0
        %5964 = vmatpush1.msra.mxu0 0.0
        %5965 = vmatprep.mubr.f32.mxu0 0.0
        %5966 = vmatmul.mubr.f32.gmra.mrb[0].mxu0 %v5514
        %v5967 = vpop.f32.mrb[0].mxu0
        %v5968 = vadd.f32 %v5899, %v5967
        %v5969 = vpop.f32.mrb[0].mxu0
        %5970 = vmatprep.mubr.f32.mxu0 0.0
        %5971 = vmatmul.mubr.f32.gmra.mrb[0].mxu0 %v5515
        %v5972 = vpop.f32.mrb[0].mxu0
        %v5973 = vadd.f32 %v5899, %v5972
        %v5974 = vpop.f32.mrb[0].mxu0
        %5975 = vmatprep.mubr.f32.mxu0 0.0
        %5976 = vmatmul.mubr.f32.gmra.mrb[0].mxu0 %v5516
        %v5977 = vpop.f32.mrb[0].mxu0
        %v5978 = vadd.f32 %v5899, %v5977
        %v5979 = vpop.f32.mrb[0].mxu0
        %5980 = vmatprep.mubr.f32.mxu0 0.0
        %5981 = vmatmul.mubr.f32.gmra.mrb[0].mxu0 %v5517
        %v5982 = vpop.f32.mrb[0].mxu0
        %v5983 = vadd.f32 %v5899, %v5982
        %v5984 = vpop.f32.mrb[0].mxu0
        %5985 = vmatprep.mubr.f32.mxu0 0.0
        %5986 = vmatmul.mubr.f32.gmra.mrb[0].mxu0 %v5518
        %v5987 = vpop.f32.mrb[0].mxu0
        %v5988 = vadd.f32 %v5899, %v5987
        %v5989 = vpop.f32.mrb[0].mxu0
        %5990 = vmatprep.mubr.f32.mxu0 0.0
        %5991 = vmatmul.mubr.f32.gmra.mrb[0].mxu0 %v5519
        %v5992 = vpop.f32.mrb[0].mxu0
        %v5993 = vadd.f32 %v5899, %v5992
        %v5994 = vpop.f32.mrb[0].mxu0
        %5995 = vmatprep.mubr.f32.mxu0 0.0
        %5996 = vmatmul.mubr.f32.gmra.mrb[0].mxu0 %v5520
        %v5997 = vpop.f32.mrb[0].mxu0
        %v5998 = vadd.f32 %v5899, %v5997
        %v5999 = vpop.f32.mrb[0].mxu0
        %6000 = vmatprep.mubr.f32.mxu0 0.0
        %6001 = vmatmul.mubr.f32.gmra.mrb[0].mxu0 %v5521
        %v6002 = vpop.f32.mrb[0].mxu0
        %v6003 = vadd.f32 %v5899, %v6002
        %v6004 = vpop.f32.mrb[0].mxu0
        %6005 = vmatprep.mubr.f32.mxu0 0.0
        %6006 = vmatmul.mubr.f32.gmra.mrb[0].mxu0 %v5522
        %v6007 = vpop.f32.mrb[0].mxu0
        %v6008 = vadd.f32 %v5899, %v6007
        %v6009 = vpop.f32.mrb[0].mxu0
        %6010 = vmatprep.mubr.f32.mxu0 0.0
        %6011 = vmatmul.mubr.f32.gmra.mrb[0].mxu0 %v5523
        %v6012 = vpop.f32.mrb[0].mxu0
        %v6013 = vadd.f32 %v5899, %v6012
        %v6014 = vpop.f32.mrb[0].mxu0
        %6015 = vmatprep.mubr.f32.mxu0 0.0
        %6016 = vmatmul.mubr.f32.gmra.mrb[0].mxu0 %v5524
        %v6017 = vpop.f32.mrb[0].mxu0
        %v6018 = vadd.f32 %v5899, %v6017
        %v6019 = vpop.f32.mrb[0].mxu0
        %6020 = vmatprep.mubr.f32.mxu0 0.0
        %6021 = vmatmul.mubr.f32.gmra.mrb[0].mxu0 %v5525
        %v6022 = vpop.f32.mrb[0].mxu0
        %v6023 = vadd.f32 %v5899, %v6022
        %v6024 = vpop.f32.mrb[0].mxu0
        %6025 = vmatprep.mubr.f32.mxu0 0.0
        %6026 = vmatmul.mubr.f32.gmra.mrb[0].mxu0 %v5526
        %v6027 = vpop.f32.mrb[0].mxu0
        %v6028 = vadd.f32 %v5899, %v6027
        %v6029 = vpop.f32.mrb[0].mxu0
        %6030 = vmatprep.mubr.f32.mxu0 0.0
        %6031 = vmatmul.mubr.f32.gmra.mrb[0].mxu0 %v5527
        %v6032 = vpop.f32.mrb[0].mxu0
        %v6033 = vadd.f32 %v5899, %v6032
        %v6034 = vpop.f32.mrb[0].mxu0
        %6035 = vmatprep.mubr.f32.mxu0 0.0
        %6036 = vmatmul.mubr.f32.gmra.mrb[0].mxu0 %v5528
        %v6037 = vpop.f32.mrb[0].mxu0
        %v6038 = vadd.f32 %v5899, %v6037
        %v6039 = vpop.f32.mrb[0].mxu0
        %6040 = vdwg.mxu0
        %v6042 = vsel %vm1285, %v5672, 0
        %v6045 = vsel %vm1285, %v5677, 0
        %v6048 = vsel %vm1285, %v5682, 0
        %v6051 = vsel %vm1285, %v5687, 0
        %v6054 = vsel %vm1285, %v5692, 0
        %v6057 = vsel %vm1285, %v5697, 0
        %v6060 = vsel %vm1285, %v5702, 0
        %v6063 = vsel %vm1285, %v5707, 0
        %v6066 = vsel %vm1285, %v5712, 0
        %v6069 = vsel %vm1285, %v5717, 0
        %v6072 = vsel %vm1285, %v5722, 0
        %v6075 = vsel %vm1285, %v5727, 0
        %v6078 = vsel %vm1285, %v5732, 0
        %v6081 = vsel %vm1285, %v5737, 0
        %v6084 = vsel %vm1285, %v5742, 0
        %v6087 = vsel %vm1285, %v5820, 0
        %v6090 = vsel %vm1285, %v5825, 0
        %v6093 = vsel %vm1285, %v5830, 0
        %v6096 = vsel %vm1285, %v5835, 0
        %v6099 = vsel %vm1285, %v5840, 0
        %v6102 = vsel %vm1285, %v5845, 0
        %v6105 = vsel %vm1285, %v5850, 0
        %v6108 = vsel %vm1285, %v5855, 0
        %v6111 = vsel %vm1285, %v5860, 0
        %v6114 = vsel %vm1285, %v5865, 0
        %v6117 = vsel %vm1285, %v5870, 0
        %v6120 = vsel %vm1285, %v5875, 0
        %v6123 = vsel %vm1285, %v5880, 0
        %v6126 = vsel %vm1285, %v5885, 0
        %v6129 = vsel %vm1285, %v5890, 0
        %6131 = vmatprep.subr.mxu0 0.0
        %6132 = vmatpush1.xpose.msra.mxu0 %v6087
        %6133 = vmatprep.subr.mxu0 0.0
        %6134 = vmatpush1.xpose.msra.mxu0 %v6090
        %6135 = vmatprep.subr.mxu0 0.0
        %6136 = vmatpush1.xpose.msra.mxu0 %v6093
        %6137 = vmatprep.subr.mxu0 0.0
        %6138 = vmatpush1.xpose.msra.mxu0 %v6096
        %6139 = vmatprep.subr.mxu0 0.0
        %6140 = vmatpush1.xpose.msra.mxu0 %v6099
        %6141 = vmatprep.subr.mxu0 0.0
        %6142 = vmatpush1.xpose.msra.mxu0 %v6102
        %6143 = vmatprep.subr.mxu0 0.0
        %6144 = vmatpush1.xpose.msra.mxu0 %v6105
        %6145 = vmatprep.subr.mxu0 0.0
        %6146 = vmatpush1.xpose.msra.mxu0 %v6108
        %6147 = vmatprep.subr.mxu0 0.0
        %6148 = vmatpush1.xpose.msra.mxu0 %v6111
        %6149 = vmatprep.subr.mxu0 0.0
        %6150 = vmatpush1.xpose.msra.mxu0 %v6114
        %6151 = vmatprep.subr.mxu0 0.0
        %6152 = vmatpush1.xpose.msra.mxu0 %v6117
        %6153 = vmatprep.subr.mxu0 0.0
        %6154 = vmatpush1.xpose.msra.mxu0 %v6120
        %6155 = vmatprep.subr.mxu0 0.0
        %6156 = vmatpush1.xpose.msra.mxu0 %v6123
        %6157 = vmatprep.subr.mxu0 0.0
        %6158 = vmatpush1.xpose.msra.mxu0 %v6126
        %6159 = vmatprep.subr.mxu0 0.0
        %6160 = vmatpush1.xpose.msra.mxu0 %v6129
        %6161 = vmatprep.subr.mxu0 0.0
        %6162 = vmatpush1.xpose.msra.mxu0 0.0
        %6163 = vmatprep.subr.mxu0 0.0
        %6164 = vmatpush1.xpose.msra.mxu0 0.0
        %6165 = vmatprep.subr.mxu0 0.0
        %6166 = vmatpush1.xpose.msra.mxu0 0.0
        %6167 = vmatprep.subr.mxu0 0.0
        %6168 = vmatpush1.xpose.msra.mxu0 0.0
        %6169 = vmatprep.subr.mxu0 0.0
        %6170 = vmatpush1.xpose.msra.mxu0 0.0
        %6171 = vmatprep.subr.mxu0 0.0
        %6172 = vmatpush1.xpose.msra.mxu0 0.0
        %6173 = vmatprep.subr.mxu0 0.0
        %6174 = vmatpush1.xpose.msra.mxu0 0.0
        %6175 = vmatprep.subr.mxu0 0.0
        %6176 = vmatpush1.xpose.msra.mxu0 0.0
        %6177 = vmatprep.subr.mxu0 0.0
        %6178 = vmatpush1.xpose.msra.mxu0 0.0
        %6179 = vmatprep.subr.mxu0 0.0
        %6180 = vmatpush1.xpose.msra.mxu0 0.0
        %6181 = vmatprep.subr.mxu0 0.0
        %6182 = vmatpush1.xpose.msra.mxu0 0.0
        %6183 = vmatprep.subr.mxu0 0.0
        %6184 = vmatpush1.xpose.msra.mxu0 0.0
        %6185 = vmatprep.subr.mxu0 0.0
        %6186 = vmatpush1.xpose.msra.mxu0 0.0
        %6187 = vmatprep.subr.mxu0 0.0
        %6188 = vmatpush1.xpose.msra.mxu0 0.0
        %6189 = vmatprep.subr.mxu0 0.0
        %6190 = vmatpush1.xpose.msra.mxu0 0.0
        %6191 = vmatprep.subr.mxu0 0.0
        %6192 = vmatpush1.xpose.msra.mxu0 0.0
        %6193 = vmatprep.subr.mxu0 0.0
        %6194 = vmatpush1.xpose.msra.mxu0 0.0
        %6195 = vmatprep.mubr.f32.mxu0 0.0
        %6196 = vmatmul.mubr.f32.gmra.mrb[0].mxu0 %v6042
        %v6197 = vpop.f32.mrb[0].mxu0
        %v6198 = vadd.f32 0.0, %v6197
        %v6199 = vpop.f32.mrb[0].mxu0
        %6200 = vmatprep.mubr.f32.mxu0 0.0
        %6201 = vmatmul.mubr.f32.gmra.mrb[0].mxu0 %v6045
        %v6202 = vpop.f32.mrb[0].mxu0
        %v6203 = vadd.f32 0.0, %v6202
        %v6204 = vpop.f32.mrb[0].mxu0
        %6205 = vmatprep.mubr.f32.mxu0 0.0
        %6206 = vmatmul.mubr.f32.gmra.mrb[0].mxu0 %v6048
        %v6207 = vpop.f32.mrb[0].mxu0
        %v6208 = vadd.f32 0.0, %v6207
        %v6209 = vpop.f32.mrb[0].mxu0
        %6210 = vmatprep.mubr.f32.mxu0 0.0
        %6211 = vmatmul.mubr.f32.gmra.mrb[0].mxu0 %v6051
        %v6212 = vpop.f32.mrb[0].mxu0
        %v6213 = vadd.f32 0.0, %v6212
        %v6214 = vpop.f32.mrb[0].mxu0
        %6215 = vmatprep.mubr.f32.mxu0 0.0
        %6216 = vmatmul.mubr.f32.gmra.mrb[0].mxu0 %v6054
        %v6217 = vpop.f32.mrb[0].mxu0
        %v6218 = vadd.f32 0.0, %v6217
        %v6219 = vpop.f32.mrb[0].mxu0
        %6220 = vmatprep.mubr.f32.mxu0 0.0
        %6221 = vmatmul.mubr.f32.gmra.mrb[0].mxu0 %v6057
        %v6222 = vpop.f32.mrb[0].mxu0
        %v6223 = vadd.f32 0.0, %v6222
        %v6224 = vpop.f32.mrb[0].mxu0
        %6225 = vmatprep.mubr.f32.mxu0 0.0
        %6226 = vmatmul.mubr.f32.gmra.mrb[0].mxu0 %v6060
        %v6227 = vpop.f32.mrb[0].mxu0
        %v6228 = vadd.f32 0.0, %v6227
        %v6229 = vpop.f32.mrb[0].mxu0
        %6230 = vmatprep.mubr.f32.mxu0 0.0
        %6231 = vmatmul.mubr.f32.gmra.mrb[0].mxu0 %v6063
        %v6232 = vpop.f32.mrb[0].mxu0
        %v6233 = vadd.f32 0.0, %v6232
        %v6234 = vpop.f32.mrb[0].mxu0
        %6235 = vmatprep.mubr.f32.mxu0 0.0
        %6236 = vmatmul.mubr.f32.gmra.mrb[0].mxu0 %v6066
        %v6237 = vpop.f32.mrb[0].mxu0
        %v6238 = vadd.f32 0.0, %v6237
        %v6239 = vpop.f32.mrb[0].mxu0
        %6240 = vmatprep.mubr.f32.mxu0 0.0
        %6241 = vmatmul.mubr.f32.gmra.mrb[0].mxu0 %v6069
        %v6242 = vpop.f32.mrb[0].mxu0
        %v6243 = vadd.f32 0.0, %v6242
        %v6244 = vpop.f32.mrb[0].mxu0
        %6245 = vmatprep.mubr.f32.mxu0 0.0
        %6246 = vmatmul.mubr.f32.gmra.mrb[0].mxu0 %v6072
        %v6247 = vpop.f32.mrb[0].mxu0
        %v6248 = vadd.f32 0.0, %v6247
        %v6249 = vpop.f32.mrb[0].mxu0
        %6250 = vmatprep.mubr.f32.mxu0 0.0
        %6251 = vmatmul.mubr.f32.gmra.mrb[0].mxu0 %v6075
        %v6252 = vpop.f32.mrb[0].mxu0
        %v6253 = vadd.f32 0.0, %v6252
        %v6254 = vpop.f32.mrb[0].mxu0
        %6255 = vmatprep.mubr.f32.mxu0 0.0
        %6256 = vmatmul.mubr.f32.gmra.mrb[0].mxu0 %v6078
        %v6257 = vpop.f32.mrb[0].mxu0
        %v6258 = vadd.f32 0.0, %v6257
        %v6259 = vpop.f32.mrb[0].mxu0
        %6260 = vmatprep.mubr.f32.mxu0 0.0
        %6261 = vmatmul.mubr.f32.gmra.mrb[0].mxu0 %v6081
        %v6262 = vpop.f32.mrb[0].mxu0
        %v6263 = vadd.f32 0.0, %v6262
        %v6264 = vpop.f32.mrb[0].mxu0
        %6265 = vmatprep.mubr.f32.mxu0 0.0
        %6266 = vmatmul.mubr.f32.gmra.mrb[0].mxu0 %v6084
        %v6267 = vpop.f32.mrb[0].mxu0
        %v6268 = vadd.f32 0.0, %v6267
        %v6269 = vpop.f32.mrb[0].mxu0
        %6270 = vdwg.mxu0
        %v6271 = vmul.f32 %v6198, 0.17677669
        %v6272 = vmul.f32 %v6203, 0.17677669
        %v6273 = vmul.f32 %v6208, 0.17677669
        %v6274 = vmul.f32 %v6213, 0.17677669
        %v6275 = vmul.f32 %v6218, 0.17677669
        %v6276 = vmul.f32 %v6223, 0.17677669
        %v6277 = vmul.f32 %v6228, 0.17677669
        %v6278 = vmul.f32 %v6233, 0.17677669
        %v6279 = vmul.f32 %v6238, 0.17677669
        %v6280 = vmul.f32 %v6243, 0.17677669
        %v6281 = vmul.f32 %v6248, 0.17677669
        %v6282 = vmul.f32 %v6253, 0.17677669
        %v6283 = vmul.f32 %v6258, 0.17677669
        %v6284 = vmul.f32 %v6263, 0.17677669
        %v6285 = vmul.f32 %v6268, 0.17677669
        %v6286 = vsel %vm1531, %v6271, -inf
        %6287 = vmax.xlane.f32.xlu0 %v6286
        %v6288 = vpop.xlane.xlu0 %6287
        %v6289 = vsel %vm1531, %v6272, -inf
        %6290 = vmax.xlane.f32.xlu0 %v6289
        %v6291 = vpop.xlane.xlu0 %6290
        %v6292 = vsel %vm1531, %v6273, -inf
        %6293 = vmax.xlane.f32.xlu0 %v6292
        %v6294 = vpop.xlane.xlu0 %6293
        %v6295 = vsel %vm1531, %v6274, -inf
        %6296 = vmax.xlane.f32.xlu0 %v6295
        %v6297 = vpop.xlane.xlu0 %6296
        %v6298 = vsel %vm1531, %v6275, -inf
        %6299 = vmax.xlane.f32.xlu0 %v6298
        %v6300 = vpop.xlane.xlu0 %6299
        %v6301 = vsel %vm1531, %v6276, -inf
        %6302 = vmax.xlane.f32.xlu0 %v6301
        %v6303 = vpop.xlane.xlu0 %6302
        %v6304 = vsel %vm1531, %v6277, -inf
        %6305 = vmax.xlane.f32.xlu0 %v6304
        %v6306 = vpop.xlane.xlu0 %6305
        %v6307 = vsel %vm1531, %v6278, -inf
        %6308 = vmax.xlane.f32.xlu0 %v6307
        %v6309 = vpop.xlane.xlu0 %6308
        %v6310 = vsel %vm1531, %v6279, -inf
        %6311 = vmax.xlane.f32.xlu0 %v6310
        %v6312 = vpop.xlane.xlu0 %6311
        %v6313 = vsel %vm1531, %v6280, -inf
        %6314 = vmax.xlane.f32.xlu0 %v6313
        %v6315 = vpop.xlane.xlu0 %6314
        %v6316 = vsel %vm1531, %v6281, -inf
        %6317 = vmax.xlane.f32.xlu0 %v6316
        %v6318 = vpop.xlane.xlu0 %6317
        %v6319 = vsel %vm1531, %v6282, -inf
        %6320 = vmax.xlane.f32.xlu0 %v6319
        %v6321 = vpop.xlane.xlu0 %6320
        %v6322 = vsel %vm1531, %v6283, -inf
        %6323 = vmax.xlane.f32.xlu0 %v6322
        %v6324 = vpop.xlane.xlu0 %6323
        %v6325 = vsel %vm1531, %v6284, -inf
        %6326 = vmax.xlane.f32.xlu0 %v6325
        %v6327 = vpop.xlane.xlu0 %6326
        %v6328 = vsel %vm1574, %v6285, -inf
        %6329 = vmax.xlane.f32.xlu0 %v6328
        %v6330 = vpop.xlane.xlu0 %6329
        %v6331 = vsub.f32 %v6271, %v6288
        %v6332 = vsub.f32 %v6272, %v6291
        %v6333 = vsub.f32 %v6273, %v6294
        %v6334 = vsub.f32 %v6274, %v6297
        %v6335 = vsub.f32 %v6275, %v6300
        %v6336 = vsub.f32 %v6276, %v6303
        %v6337 = vsub.f32 %v6277, %v6306
        %v6338 = vsub.f32 %v6278, %v6309
        %v6339 = vsub.f32 %v6279, %v6312
        %v6340 = vsub.f32 %v6280, %v6315
        %v6341 = vsub.f32 %v6281, %v6318
        %v6342 = vsub.f32 %v6282, %v6321
        %v6343 = vsub.f32 %v6283, %v6324
        %v6344 = vsub.f32 %v6284, %v6327
        %v6345 = vsub.f32 %v6285, %v6330
        %v6346 = vmul.f32 %v6331, 1.442695
        %v6347 = vpow.pop %v6346
        %v6348 = vmul.f32 %v6332, 1.442695
        %v6349 = vpow.pop %v6348
        %v6350 = vmul.f32 %v6333, 1.442695
        %v6351 = vpow.pop %v6350
        %v6352 = vmul.f32 %v6334, 1.442695
        %v6353 = vpow.pop %v6352
        %v6354 = vmul.f32 %v6335, 1.442695
        %v6355 = vpow.pop %v6354
        %v6356 = vmul.f32 %v6336, 1.442695
        %v6357 = vpow.pop %v6356
        %v6358 = vmul.f32 %v6337, 1.442695
        %v6359 = vpow.pop %v6358
        %v6360 = vmul.f32 %v6338, 1.442695
        %v6361 = vpow.pop %v6360
        %v6362 = vmul.f32 %v6339, 1.442695
        %v6363 = vpow.pop %v6362
        %v6364 = vmul.f32 %v6340, 1.442695
        %v6365 = vpow.pop %v6364
        %v6366 = vmul.f32 %v6341, 1.442695
        %v6367 = vpow.pop %v6366
        %v6368 = vmul.f32 %v6342, 1.442695
        %v6369 = vpow.pop %v6368
        %v6370 = vmul.f32 %v6343, 1.442695
        %v6371 = vpow.pop %v6370
        %v6372 = vmul.f32 %v6344, 1.442695
        %v6373 = vpow.pop %v6372
        %v6374 = vmul.f32 %v6345, 1.442695
        %v6375 = vpow.pop %v6374
        %v6376 = vsel %vm1531, %v6347, 0.0
        %6377 = vadd.xlane.f32.xlu0 %v6376
        %v6378 = vpop.xlane.xlu0 %6377
        %v6379 = vsel %vm1531, %v6349, 0.0
        %6380 = vadd.xlane.f32.xlu0 %v6379
        %v6381 = vpop.xlane.xlu0 %6380
        %v6382 = vsel %vm1531, %v6351, 0.0
        %6383 = vadd.xlane.f32.xlu0 %v6382
        %v6384 = vpop.xlane.xlu0 %6383
        %v6385 = vsel %vm1531, %v6353, 0.0
        %6386 = vadd.xlane.f32.xlu0 %v6385
        %v6387 = vpop.xlane.xlu0 %6386
        %v6388 = vsel %vm1531, %v6355, 0.0
        %6389 = vadd.xlane.f32.xlu0 %v6388
        %v6390 = vpop.xlane.xlu0 %6389
        %v6391 = vsel %vm1531, %v6357, 0.0
        %6392 = vadd.xlane.f32.xlu0 %v6391
        %v6393 = vpop.xlane.xlu0 %6392
        %v6394 = vsel %vm1531, %v6359, 0.0
        %6395 = vadd.xlane.f32.xlu0 %v6394
        %v6396 = vpop.xlane.xlu0 %6395
        %v6397 = vsel %vm1531, %v6361, 0.0
        %6398 = vadd.xlane.f32.xlu0 %v6397
        %v6399 = vpop.xlane.xlu0 %6398
        %v6400 = vsel %vm1531, %v6363, 0.0
        %6401 = vadd.xlane.f32.xlu0 %v6400
        %v6402 = vpop.xlane.xlu0 %6401
        %v6403 = vsel %vm1531, %v6365, 0.0
        %6404 = vadd.xlane.f32.xlu0 %v6403
        %v6405 = vpop.xlane.xlu0 %6404
        %v6406 = vsel %vm1531, %v6367, 0.0
        %6407 = vadd.xlane.f32.xlu0 %v6406
        %v6408 = vpop.xlane.xlu0 %6407
        %v6409 = vsel %vm1531, %v6369, 0.0
        %6410 = vadd.xlane.f32.xlu0 %v6409
        %v6411 = vpop.xlane.xlu0 %6410
        %v6412 = vsel %vm1531, %v6371, 0.0
        %6413 = vadd.xlane.f32.xlu0 %v6412
        %v6414 = vpop.xlane.xlu0 %6413
        %v6415 = vsel %vm1531, %v6373, 0.0
        %6416 = vadd.xlane.f32.xlu0 %v6415
        %v6417 = vpop.xlane.xlu0 %6416
        %v6418 = vsel %vm1574, %v6375, 0.0
        %6419 = vadd.xlane.f32.xlu0 %v6418
        %v6420 = vpop.xlane.xlu0 %6419
        %v6421 = vrcp.pop %v6378
        %v6422 = vrcp.pop %v6381
        %v6423 = vrcp.pop %v6384
        %v6424 = vrcp.pop %v6387
        %v6425 = vrcp.pop %v6390
        %v6426 = vrcp.pop %v6393
        %v6427 = vrcp.pop %v6396
        %v6428 = vrcp.pop %v6399
        %v6429 = vrcp.pop %v6402
        %v6430 = vrcp.pop %v6405
        %v6431 = vrcp.pop %v6408
        %v6432 = vrcp.pop %v6411
        %v6433 = vrcp.pop %v6414
        %v6434 = vrcp.pop %v6417
        %v6435 = vrcp.pop %v6420
        %v6436 = vmul.f32 %v6347, %v6421
        %v6437 = vmul.f32 %v6349, %v6422
        %v6438 = vmul.f32 %v6351, %v6423
        %v6439 = vmul.f32 %v6353, %v6424
        %v6440 = vmul.f32 %v6355, %v6425
        %v6441 = vmul.f32 %v6357, %v6426
        %v6442 = vmul.f32 %v6359, %v6427
        %v6443 = vmul.f32 %v6361, %v6428
        %v6444 = vmul.f32 %v6363, %v6429
        %v6445 = vmul.f32 %v6365, %v6430
        %v6446 = vmul.f32 %v6367, %v6431
        %v6447 = vmul.f32 %v6369, %v6432
        %v6448 = vmul.f32 %v6371, %v6433
        %v6449 = vmul.f32 %v6373, %v6434
        %v6450 = vmul.f32 %v6375, %v6435
        %v6452 = vsel %vm1531, %v6436, 0
        %v6455 = vsel %vm1531, %v6437, 0
        %v6458 = vsel %vm1531, %v6438, 0
        %v6461 = vsel %vm1531, %v6439, 0
        %v6464 = vsel %vm1531, %v6440, 0
        %v6467 = vsel %vm1531, %v6441, 0
        %v6470 = vsel %vm1531, %v6442, 0
        %v6473 = vsel %vm1531, %v6443, 0
        %v6476 = vsel %vm1531, %v6444, 0
        %v6479 = vsel %vm1531, %v6445, 0
        %v6482 = vsel %vm1531, %v6446, 0
        %v6485 = vsel %vm1531, %v6447, 0
        %v6488 = vsel %vm1531, %v6448, 0
        %v6491 = vsel %vm1531, %v6449, 0
        %v6494 = vsel %vm1531, %v6450, 0
        %v6497 = vsel %vm1743, %v6038, 0
        %6499 = vmatprep.subr.mxu0 0.0
        %6500 = vmatpush1.msra.mxu0 %v5968
        %6501 = vmatprep.subr.mxu0 0.0
        %6502 = vmatpush1.msra.mxu0 %v5973
        %6503 = vmatprep.subr.mxu0 0.0
        %6504 = vmatpush1.msra.mxu0 %v5978
        %6505 = vmatprep.subr.mxu0 0.0
        %6506 = vmatpush1.msra.mxu0 %v5983
        %6507 = vmatprep.subr.mxu0 0.0
        %6508 = vmatpush1.msra.mxu0 %v5988
        %6509 = vmatprep.subr.mxu0 0.0
        %6510 = vmatpush1.msra.mxu0 %v5993
        %6511 = vmatprep.subr.mxu0 0.0
        %6512 = vmatpush1.msra.mxu0 %v5998
        %6513 = vmatprep.subr.mxu0 0.0
        %6514 = vmatpush1.msra.mxu0 %v6003
        %6515 = vmatprep.subr.mxu0 0.0
        %6516 = vmatpush1.msra.mxu0 %v6008
        %6517 = vmatprep.subr.mxu0 0.0
        %6518 = vmatpush1.msra.mxu0 %v6013
        %6519 = vmatprep.subr.mxu0 0.0
        %6520 = vmatpush1.msra.mxu0 %v6018
        %6521 = vmatprep.subr.mxu0 0.0
        %6522 = vmatpush1.msra.mxu0 %v6023
        %6523 = vmatprep.subr.mxu0 0.0
        %6524 = vmatpush1.msra.mxu0 %v6028
        %6525 = vmatprep.subr.mxu0 0.0
        %6526 = vmatpush1.msra.mxu0 %v6033
        %6527 = vmatprep.subr.mxu0 0.0
        %6528 = vmatpush1.msra.mxu0 %v6497
        %6529 = vmatprep.subr.mxu0 0.0
        %6530 = vmatpush1.msra.mxu0 0.0
        %6531 = vmatprep.subr.mxu0 0.0
        %6532 = vmatpush1.msra.mxu0 0.0
        %6533 = vmatprep.subr.mxu0 0.0
        %6534 = vmatpush1.msra.mxu0 0.0
        %6535 = vmatprep.subr.mxu0 0.0
        %6536 = vmatpush1.msra.mxu0 0.0
        %6537 = vmatprep.subr.mxu0 0.0
        %6538 = vmatpush1.msra.mxu0 0.0
        %6539 = vmatprep.subr.mxu0 0.0
        %6540 = vmatpush1.msra.mxu0 0.0
        %6541 = vmatprep.subr.mxu0 0.0
        %6542 = vmatpush1.msra.mxu0 0.0
        %6543 = vmatprep.subr.mxu0 0.0
        %6544 = vmatpush1.msra.mxu0 0.0
        %6545 = vmatprep.subr.mxu0 0.0
        %6546 = vmatpush1.msra.mxu0 0.0
        %6547 = vmatprep.subr.mxu0 0.0
        %6548 = vmatpush1.msra.mxu0 0.0
        %6549 = vmatprep.subr.mxu0 0.0
        %6550 = vmatpush1.msra.mxu0 0.0
        %6551 = vmatprep.subr.mxu0 0.0
        %6552 = vmatpush1.msra.mxu0 0.0
        %6553 = vmatprep.subr.mxu0 0.0
        %6554 = vmatpush1.msra.mxu0 0.0
        %6555 = vmatprep.subr.mxu0 0.0
        %6556 = vmatpush1.msra.mxu0 0.0
        %6557 = vmatprep.subr.mxu0 0.0
        %6558 = vmatpush1.msra.mxu0 0.0
        %6559 = vmatprep.subr.mxu0 0.0
        %6560 = vmatpush1.msra.mxu0 0.0
        %6561 = vmatprep.subr.mxu0 0.0
        %6562 = vmatpush1.msra.mxu0 0.0
        %6563 = vmatprep.mubr.f32.mxu0 0.0
        %6564 = vmatmul.mubr.f32.gmra.mrb[0].mxu0 %v6452
        %v6565 = vpop.f32.mrb[0].mxu0
        %v6566 = vadd.f32 0.0, %v6565
        %v6567 = vpop.f32.mrb[0].mxu0
        %6568 = vmatprep.mubr.f32.mxu0 0.0
        %6569 = vmatmul.mubr.f32.gmra.mrb[0].mxu0 %v6455
        %v6570 = vpop.f32.mrb[0].mxu0
        %v6571 = vadd.f32 0.0, %v6570
        %v6572 = vpop.f32.mrb[0].mxu0
        %6573 = vmatprep.mubr.f32.mxu0 0.0
        %6574 = vmatmul.mubr.f32.gmra.mrb[0].mxu0 %v6458
        %v6575 = vpop.f32.mrb[0].mxu0
        %v6576 = vadd.f32 0.0, %v6575
        %v6577 = vpop.f32.mrb[0].mxu0
        %6578 = vmatprep.mubr.f32.mxu0 0.0
        %6579 = vmatmul.mubr.f32.gmra.mrb[0].mxu0 %v6461
        %v6580 = vpop.f32.mrb[0].mxu0
        %v6581 = vadd.f32 0.0, %v6580
        %v6582 = vpop.f32.mrb[0].mxu0
        %6583 = vmatprep.mubr.f32.mxu0 0.0
        %6584 = vmatmul.mubr.f32.gmra.mrb[0].mxu0 %v6464
        %v6585 = vpop.f32.mrb[0].mxu0
        %v6586 = vadd.f32 0.0, %v6585
        %v6587 = vpop.f32.mrb[0].mxu0
        %6588 = vmatprep.mubr.f32.mxu0 0.0
        %6589 = vmatmul.mubr.f32.gmra.mrb[0].mxu0 %v6467
        %v6590 = vpop.f32.mrb[0].mxu0
        %v6591 = vadd.f32 0.0, %v6590
        %v6592 = vpop.f32.mrb[0].mxu0
        %6593 = vmatprep.mubr.f32.mxu0 0.0
        %6594 = vmatmul.mubr.f32.gmra.mrb[0].mxu0 %v6470
        %v6595 = vpop.f32.mrb[0].mxu0
        %v6596 = vadd.f32 0.0, %v6595
        %v6597 = vpop.f32.mrb[0].mxu0
        %6598 = vmatprep.mubr.f32.mxu0 0.0
        %6599 = vmatmul.mubr.f32.gmra.mrb[0].mxu0 %v6473
        %v6600 = vpop.f32.mrb[0].mxu0
        %v6601 = vadd.f32 0.0, %v6600
        %v6602 = vpop.f32.mrb[0].mxu0
        %6603 = vmatprep.mubr.f32.mxu0 0.0
        %6604 = vmatmul.mubr.f32.gmra.mrb[0].mxu0 %v6476
        %v6605 = vpop.f32.mrb[0].mxu0
        %v6606 = vadd.f32 0.0, %v6605
        %v6607 = vpop.f32.mrb[0].mxu0
        %6608 = vmatprep.mubr.f32.mxu0 0.0
        %6609 = vmatmul.mubr.f32.gmra.mrb[0].mxu0 %v6479
        %v6610 = vpop.f32.mrb[0].mxu0
        %v6611 = vadd.f32 0.0, %v6610
        %v6612 = vpop.f32.mrb[0].mxu0
        %6613 = vmatprep.mubr.f32.mxu0 0.0
        %6614 = vmatmul.mubr.f32.gmra.mrb[0].mxu0 %v6482
        %v6615 = vpop.f32.mrb[0].mxu0
        %v6616 = vadd.f32 0.0, %v6615
        %v6617 = vpop.f32.mrb[0].mxu0
        %6618 = vmatprep.mubr.f32.mxu0 0.0
        %6619 = vmatmul.mubr.f32.gmra.mrb[0].mxu0 %v6485
        %v6620 = vpop.f32.mrb[0].mxu0
        %v6621 = vadd.f32 0.0, %v6620
        %v6622 = vpop.f32.mrb[0].mxu0
        %6623 = vmatprep.mubr.f32.mxu0 0.0
        %6624 = vmatmul.mubr.f32.gmra.mrb[0].mxu0 %v6488
        %v6625 = vpop.f32.mrb[0].mxu0
        %v6626 = vadd.f32 0.0, %v6625
        %v6627 = vpop.f32.mrb[0].mxu0
        %6628 = vmatprep.mubr.f32.mxu0 0.0
        %6629 = vmatmul.mubr.f32.gmra.mrb[0].mxu0 %v6491
        %v6630 = vpop.f32.mrb[0].mxu0
        %v6631 = vadd.f32 0.0, %v6630
        %v6632 = vpop.f32.mrb[0].mxu0
        %6633 = vmatprep.mubr.f32.mxu0 0.0
        %6634 = vmatmul.mubr.f32.gmra.mrb[0].mxu0 %v6494
        %v6635 = vpop.f32.mrb[0].mxu0
        %v6636 = vadd.f32 0.0, %v6635
        %v6637 = vpop.f32.mrb[0].mxu0
        %6638 = vdwg.mxu0
        %6639 = vrot.lane.b32.xlu0 %v5672, 96
        %v6640 = vpop.permute.xlu0 %6639
        %6641 = vrot.lane.b32.xlu0 %v5677, 96
        %v6642 = vpop.permute.xlu0 %6641
        %6643 = vrot.lane.b32.xlu0 %v5682, 96
        %v6644 = vpop.permute.xlu0 %6643
        %6645 = vrot.lane.b32.xlu0 %v5687, 96
        %v6646 = vpop.permute.xlu0 %6645
        %6647 = vrot.lane.b32.xlu0 %v5692, 96
        %v6648 = vpop.permute.xlu0 %6647
        %6649 = vrot.lane.b32.xlu0 %v5697, 96
        %v6650 = vpop.permute.xlu0 %6649
        %6651 = vrot.lane.b32.xlu0 %v5702, 96
        %v6652 = vpop.permute.xlu0 %6651
        %6653 = vrot.lane.b32.xlu0 %v5707, 96
        %v6654 = vpop.permute.xlu0 %6653
        %6655 = vrot.lane.b32.xlu0 %v5712, 96
        %v6656 = vpop.permute.xlu0 %6655
        %6657 = vrot.lane.b32.xlu0 %v5717, 96
        %v6658 = vpop.permute.xlu0 %6657
        %6659 = vrot.lane.b32.xlu0 %v5722, 96
        %v6660 = vpop.permute.xlu0 %6659
        %6661 = vrot.lane.b32.xlu0 %v5727, 96
        %v6662 = vpop.permute.xlu0 %6661
        %6663 = vrot.lane.b32.xlu0 %v5732, 96
        %v6664 = vpop.permute.xlu0 %6663
        %6665 = vrot.lane.b32.xlu0 %v5737, 96
        %v6666 = vpop.permute.xlu0 %6665
        %6667 = vrot.lane.b32.xlu0 %v5742, 96
        %v6668 = vpop.permute.xlu0 %6667
        %6669 = vrot.lane.b32.xlu0 %v5820, 96
        %v6670 = vpop.permute.xlu0 %6669
        %6671 = vrot.lane.b32.xlu0 %v5825, 96
        %v6672 = vpop.permute.xlu0 %6671
        %6673 = vrot.lane.b32.xlu0 %v5830, 96
        %v6674 = vpop.permute.xlu0 %6673
        %6675 = vrot.lane.b32.xlu0 %v5835, 96
        %v6676 = vpop.permute.xlu0 %6675
        %6677 = vrot.lane.b32.xlu0 %v5840, 96
        %v6678 = vpop.permute.xlu0 %6677
        %6679 = vrot.lane.b32.xlu0 %v5845, 96
        %v6680 = vpop.permute.xlu0 %6679
        %6681 = vrot.lane.b32.xlu0 %v5850, 96
        %v6682 = vpop.permute.xlu0 %6681
        %6683 = vrot.lane.b32.xlu0 %v5855, 96
        %v6684 = vpop.permute.xlu0 %6683
        %6685 = vrot.lane.b32.xlu0 %v5860, 96
        %v6686 = vpop.permute.xlu0 %6685
        %6687 = vrot.lane.b32.xlu0 %v5865, 96
        %v6688 = vpop.permute.xlu0 %6687
        %6689 = vrot.lane.b32.xlu0 %v5870, 96
        %v6690 = vpop.permute.xlu0 %6689
        %6691 = vrot.lane.b32.xlu0 %v5875, 96
        %v6692 = vpop.permute.xlu0 %6691
        %6693 = vrot.lane.b32.xlu0 %v5880, 96
        %v6694 = vpop.permute.xlu0 %6693
        %6695 = vrot.lane.b32.xlu0 %v5885, 96
        %v6696 = vpop.permute.xlu0 %6695
        %6697 = vrot.lane.b32.xlu0 %v5890, 96
        %v6698 = vpop.permute.xlu0 %6697
        %v6699 = vsel %vm1285, %v6640, 0
        %v6701 = vsel %vm1285, %v6642, 0
        %v6703 = vsel %vm1285, %v6644, 0
        %v6705 = vsel %vm1285, %v6646, 0
        %v6707 = vsel %vm1285, %v6648, 0
        %v6709 = vsel %vm1285, %v6650, 0
        %v6711 = vsel %vm1285, %v6652, 0
        %v6713 = vsel %vm1285, %v6654, 0
        %v6715 = vsel %vm1285, %v6656, 0
        %v6717 = vsel %vm1285, %v6658, 0
        %v6719 = vsel %vm1285, %v6660, 0
        %v6721 = vsel %vm1285, %v6662, 0
        %v6723 = vsel %vm1285, %v6664, 0
        %v6725 = vsel %vm1285, %v6666, 0
        %v6727 = vsel %vm1285, %v6668, 0
        %v6729 = vsel %vm1285, %v6670, 0
        %v6731 = vsel %vm1285, %v6672, 0
        %v6733 = vsel %vm1285, %v6674, 0
        %v6735 = vsel %vm1285, %v6676, 0
        %v6737 = vsel %vm1285, %v6678, 0
        %v6739 = vsel %vm1285, %v6680, 0
        %v6741 = vsel %vm1285, %v6682, 0
        %v6743 = vsel %vm1285, %v6684, 0
        %v6745 = vsel %vm1285, %v6686, 0
        %v6747 = vsel %vm1285, %v6688, 0
        %v6749 = vsel %vm1285, %v6690, 0
        %v6751 = vsel %vm1285, %v6692, 0
        %v6753 = vsel %vm1285, %v6694, 0
        %v6755 = vsel %vm1285, %v6696, 0
        %v6757 = vsel %vm1285, %v6698, 0
        %6759 = vmatprep.subr.mxu0 0.0
        %6760 = vmatpush1.xpose.msra.mxu0 %v6729
        %6761 = vmatprep.subr.mxu0 0.0
        %6762 = vmatpush1.xpose.msra.mxu0 %v6731
        %6763 = vmatprep.subr.mxu0 0.0
        %6764 = vmatpush1.xpose.msra.mxu0 %v6733
        %6765 = vmatprep.subr.mxu0 0.0
        %6766 = vmatpush1.xpose.msra.mxu0 %v6735
        %6767 = vmatprep.subr.mxu0 0.0
        %6768 = vmatpush1.xpose.msra.mxu0 %v6737
        %6769 = vmatprep.subr.mxu0 0.0
        %6770 = vmatpush1.xpose.msra.mxu0 %v6739
        %6771 = vmatprep.subr.mxu0 0.0
        %6772 = vmatpush1.xpose.msra.mxu0 %v6741
        %6773 = vmatprep.subr.mxu0 0.0
        %6774 = vmatpush1.xpose.msra.mxu0 %v6743
        %6775 = vmatprep.subr.mxu0 0.0
        %6776 = vmatpush1.xpose.msra.mxu0 %v6745
        %6777 = vmatprep.subr.mxu0 0.0
        %6778 = vmatpush1.xpose.msra.mxu0 %v6747
        %6779 = vmatprep.subr.mxu0 0.0
        %6780 = vmatpush1.xpose.msra.mxu0 %v6749
        %6781 = vmatprep.subr.mxu0 0.0
        %6782 = vmatpush1.xpose.msra.mxu0 %v6751
        %6783 = vmatprep.subr.mxu0 0.0
        %6784 = vmatpush1.xpose.msra.mxu0 %v6753
        %6785 = vmatprep.subr.mxu0 0.0
        %6786 = vmatpush1.xpose.msra.mxu0 %v6755
        %6787 = vmatprep.subr.mxu0 0.0
        %6788 = vmatpush1.xpose.msra.mxu0 %v6757
        %6789 = vmatprep.subr.mxu0 0.0
        %6790 = vmatpush1.xpose.msra.mxu0 0.0
        %6791 = vmatprep.subr.mxu0 0.0
        %6792 = vmatpush1.xpose.msra.mxu0 0.0
        %6793 = vmatprep.subr.mxu0 0.0
        %6794 = vmatpush1.xpose.msra.mxu0 0.0
        %6795 = vmatprep.subr.mxu0 0.0
        %6796 = vmatpush1.xpose.msra.mxu0 0.0
        %6797 = vmatprep.subr.mxu0 0.0
        %6798 = vmatpush1.xpose.msra.mxu0 0.0
        %6799 = vmatprep.subr.mxu0 0.0
        %6800 = vmatpush1.xpose.msra.mxu0 0.0
        %6801 = vmatprep.subr.mxu0 0.0
        %6802 = vmatpush1.xpose.msra.mxu0 0.0
        %6803 = vmatprep.subr.mxu0 0.0
        %6804 = vmatpush1.xpose.msra.mxu0 0.0
        %6805 = vmatprep.subr.mxu0 0.0
        %6806 = vmatpush1.xpose.msra.mxu0 0.0
        %6807 = vmatprep.subr.mxu0 0.0
        %6808 = vmatpush1.xpose.msra.mxu0 0.0
        %6809 = vmatprep.subr.mxu0 0.0
        %6810 = vmatpush1.xpose.msra.mxu0 0.0
        %6811 = vmatprep.subr.mxu0 0.0
        %6812 = vmatpush1.xpose.msra.mxu0 0.0
        %6813 = vmatprep.subr.mxu0 0.0
        %6814 = vmatpush1.xpose.msra.mxu0 0.0
        %6815 = vmatprep.subr.mxu0 0.0
        %6816 = vmatpush1.xpose.msra.mxu0 0.0
        %6817 = vmatprep.subr.mxu0 0.0
        %6818 = vmatpush1.xpose.msra.mxu0 0.0
        %6819 = vmatprep.subr.mxu0 0.0
        %6820 = vmatpush1.xpose.msra.mxu0 0.0
        %6821 = vmatprep.subr.mxu0 0.0
        %6822 = vmatpush1.xpose.msra.mxu0 0.0
        %6823 = vmatprep.mubr.f32.mxu0 0.0
        %6824 = vmatmul.mubr.f32.gmra.mrb[0].mxu0 %v6699
        %v6825 = vpop.f32.mrb[0].mxu0
        %v6826 = vadd.f32 0.0, %v6825
        %v6827 = vpop.f32.mrb[0].mxu0
        %6828 = vmatprep.mubr.f32.mxu0 0.0
        %6829 = vmatmul.mubr.f32.gmra.mrb[0].mxu0 %v6701
        %v6830 = vpop.f32.mrb[0].mxu0
        %v6831 = vadd.f32 0.0, %v6830
        %v6832 = vpop.f32.mrb[0].mxu0
        %6833 = vmatprep.mubr.f32.mxu0 0.0
        %6834 = vmatmul.mubr.f32.gmra.mrb[0].mxu0 %v6703
        %v6835 = vpop.f32.mrb[0].mxu0
        %v6836 = vadd.f32 0.0, %v6835
        %v6837 = vpop.f32.mrb[0].mxu0
        %6838 = vmatprep.mubr.f32.mxu0 0.0
        %6839 = vmatmul.mubr.f32.gmra.mrb[0].mxu0 %v6705
        %v6840 = vpop.f32.mrb[0].mxu0
        %v6841 = vadd.f32 0.0, %v6840
        %v6842 = vpop.f32.mrb[0].mxu0
        %6843 = vmatprep.mubr.f32.mxu0 0.0
        %6844 = vmatmul.mubr.f32.gmra.mrb[0].mxu0 %v6707
        %v6845 = vpop.f32.mrb[0].mxu0
        %v6846 = vadd.f32 0.0, %v6845
        %v6847 = vpop.f32.mrb[0].mxu0
        %6848 = vmatprep.mubr.f32.mxu0 0.0
        %6849 = vmatmul.mubr.f32.gmra.mrb[0].mxu0 %v6709
        %v6850 = vpop.f32.mrb[0].mxu0
        %v6851 = vadd.f32 0.0, %v6850
        %v6852 = vpop.f32.mrb[0].mxu0
        %6853 = vmatprep.mubr.f32.mxu0 0.0
        %6854 = vmatmul.mubr.f32.gmra.mrb[0].mxu0 %v6711
        %v6855 = vpop.f32.mrb[0].mxu0
        %v6856 = vadd.f32 0.0, %v6855
        %v6857 = vpop.f32.mrb[0].mxu0
        %6858 = vmatprep.mubr.f32.mxu0 0.0
        %6859 = vmatmul.mubr.f32.gmra.mrb[0].mxu0 %v6713
        %v6860 = vpop.f32.mrb[0].mxu0
        %v6861 = vadd.f32 0.0, %v6860
        %v6862 = vpop.f32.mrb[0].mxu0
        %6863 = vmatprep.mubr.f32.mxu0 0.0
        %6864 = vmatmul.mubr.f32.gmra.mrb[0].mxu0 %v6715
        %v6865 = vpop.f32.mrb[0].mxu0
        %v6866 = vadd.f32 0.0, %v6865
        %v6867 = vpop.f32.mrb[0].mxu0
        %6868 = vmatprep.mubr.f32.mxu0 0.0
        %6869 = vmatmul.mubr.f32.gmra.mrb[0].mxu0 %v6717
        %v6870 = vpop.f32.mrb[0].mxu0
        %v6871 = vadd.f32 0.0, %v6870
        %v6872 = vpop.f32.mrb[0].mxu0
        %6873 = vmatprep.mubr.f32.mxu0 0.0
        %6874 = vmatmul.mubr.f32.gmra.mrb[0].mxu0 %v6719
        %v6875 = vpop.f32.mrb[0].mxu0
        %v6876 = vadd.f32 0.0, %v6875
        %v6877 = vpop.f32.mrb[0].mxu0
        %6878 = vmatprep.mubr.f32.mxu0 0.0
        %6879 = vmatmul.mubr.f32.gmra.mrb[0].mxu0 %v6721
        %v6880 = vpop.f32.mrb[0].mxu0
        %v6881 = vadd.f32 0.0, %v6880
        %v6882 = vpop.f32.mrb[0].mxu0
        %6883 = vmatprep.mubr.f32.mxu0 0.0
        %6884 = vmatmul.mubr.f32.gmra.mrb[0].mxu0 %v6723
        %v6885 = vpop.f32.mrb[0].mxu0
        %v6886 = vadd.f32 0.0, %v6885
        %v6887 = vpop.f32.mrb[0].mxu0
        %6888 = vmatprep.mubr.f32.mxu0 0.0
        %6889 = vmatmul.mubr.f32.gmra.mrb[0].mxu0 %v6725
        %v6890 = vpop.f32.mrb[0].mxu0
        %v6891 = vadd.f32 0.0, %v6890
        %v6892 = vpop.f32.mrb[0].mxu0
        %6893 = vmatprep.mubr.f32.mxu0 0.0
        %6894 = vmatmul.mubr.f32.gmra.mrb[0].mxu0 %v6727
        %v6895 = vpop.f32.mrb[0].mxu0
        %v6896 = vadd.f32 0.0, %v6895
        %v6897 = vpop.f32.mrb[0].mxu0
        %6898 = vdwg.mxu0
        %v6899 = vmul.f32 %v6826, 0.17677669
        %v6900 = vmul.f32 %v6831, 0.17677669
        %v6901 = vmul.f32 %v6836, 0.17677669
        %v6902 = vmul.f32 %v6841, 0.17677669
        %v6903 = vmul.f32 %v6846, 0.17677669
        %v6904 = vmul.f32 %v6851, 0.17677669
        %v6905 = vmul.f32 %v6856, 0.17677669
        %v6906 = vmul.f32 %v6861, 0.17677669
        %v6907 = vmul.f32 %v6866, 0.17677669
        %v6908 = vmul.f32 %v6871, 0.17677669
        %v6909 = vmul.f32 %v6876, 0.17677669
        %v6910 = vmul.f32 %v6881, 0.17677669
        %v6911 = vmul.f32 %v6886, 0.17677669
        %v6912 = vmul.f32 %v6891, 0.17677669
        %v6913 = vmul.f32 %v6896, 0.17677669
        %v6914 = vsel %vm1531, %v6899, -inf
        %6915 = vmax.xlane.f32.xlu0 %v6914
        %v6916 = vpop.xlane.xlu0 %6915
        %v6917 = vsel %vm1531, %v6900, -inf
        %6918 = vmax.xlane.f32.xlu0 %v6917
        %v6919 = vpop.xlane.xlu0 %6918
        %v6920 = vsel %vm1531, %v6901, -inf
        %6921 = vmax.xlane.f32.xlu0 %v6920
        %v6922 = vpop.xlane.xlu0 %6921
        %v6923 = vsel %vm1531, %v6902, -inf
        %6924 = vmax.xlane.f32.xlu0 %v6923
        %v6925 = vpop.xlane.xlu0 %6924
        %v6926 = vsel %vm1531, %v6903, -inf
        %6927 = vmax.xlane.f32.xlu0 %v6926
        %v6928 = vpop.xlane.xlu0 %6927
        %v6929 = vsel %vm1531, %v6904, -inf
        %6930 = vmax.xlane.f32.xlu0 %v6929
        %v6931 = vpop.xlane.xlu0 %6930
        %v6932 = vsel %vm1531, %v6905, -inf
        %6933 = vmax.xlane.f32.xlu0 %v6932
        %v6934 = vpop.xlane.xlu0 %6933
        %v6935 = vsel %vm1531, %v6906, -inf
        %6936 = vmax.xlane.f32.xlu0 %v6935
        %v6937 = vpop.xlane.xlu0 %6936
        %v6938 = vsel %vm1531, %v6907, -inf
        %6939 = vmax.xlane.f32.xlu0 %v6938
        %v6940 = vpop.xlane.xlu0 %6939
        %v6941 = vsel %vm1531, %v6908, -inf
        %6942 = vmax.xlane.f32.xlu0 %v6941
        %v6943 = vpop.xlane.xlu0 %6942
        %v6944 = vsel %vm1531, %v6909, -inf
        %6945 = vmax.xlane.f32.xlu0 %v6944
        %v6946 = vpop.xlane.xlu0 %6945
        %v6947 = vsel %vm1531, %v6910, -inf
        %6948 = vmax.xlane.f32.xlu0 %v6947
        %v6949 = vpop.xlane.xlu0 %6948
        %v6950 = vsel %vm1531, %v6911, -inf
        %6951 = vmax.xlane.f32.xlu0 %v6950
        %v6952 = vpop.xlane.xlu0 %6951
        %v6953 = vsel %vm1531, %v6912, -inf
        %6954 = vmax.xlane.f32.xlu0 %v6953
        %v6955 = vpop.xlane.xlu0 %6954
        %v6956 = vsel %vm1574, %v6913, -inf
        %6957 = vmax.xlane.f32.xlu0 %v6956
        %v6958 = vpop.xlane.xlu0 %6957
        %v6959 = vsub.f32 %v6899, %v6916
        %v6960 = vsub.f32 %v6900, %v6919
        %v6961 = vsub.f32 %v6901, %v6922
        %v6962 = vsub.f32 %v6902, %v6925
        %v6963 = vsub.f32 %v6903, %v6928
        %v6964 = vsub.f32 %v6904, %v6931
        %v6965 = vsub.f32 %v6905, %v6934
        %v6966 = vsub.f32 %v6906, %v6937
        %v6967 = vsub.f32 %v6907, %v6940
        %v6968 = vsub.f32 %v6908, %v6943
        %v6969 = vsub.f32 %v6909, %v6946
        %v6970 = vsub.f32 %v6910, %v6949
        %v6971 = vsub.f32 %v6911, %v6952
        %v6972 = vsub.f32 %v6912, %v6955
        %v6973 = vsub.f32 %v6913, %v6958
        %v6974 = vmul.f32 %v6959, 1.442695
        %v6975 = vpow.pop %v6974
        %v6976 = vmul.f32 %v6960, 1.442695
        %v6977 = vpow.pop %v6976
        %v6978 = vmul.f32 %v6961, 1.442695
        %v6979 = vpow.pop %v6978
        %v6980 = vmul.f32 %v6962, 1.442695
        %v6981 = vpow.pop %v6980
        %v6982 = vmul.f32 %v6963, 1.442695
        %v6983 = vpow.pop %v6982
        %v6984 = vmul.f32 %v6964, 1.442695
        %v6985 = vpow.pop %v6984
        %v6986 = vmul.f32 %v6965, 1.442695
        %v6987 = vpow.pop %v6986
        %v6988 = vmul.f32 %v6966, 1.442695
        %v6989 = vpow.pop %v6988
        %v6990 = vmul.f32 %v6967, 1.442695
        %v6991 = vpow.pop %v6990
        %v6992 = vmul.f32 %v6968, 1.442695
        %v6993 = vpow.pop %v6992
        %v6994 = vmul.f32 %v6969, 1.442695
        %v6995 = vpow.pop %v6994
        %v6996 = vmul.f32 %v6970, 1.442695
        %v6997 = vpow.pop %v6996
        %v6998 = vmul.f32 %v6971, 1.442695
        %v6999 = vpow.pop %v6998
        %v7000 = vmul.f32 %v6972, 1.442695
        %v7001 = vpow.pop %v7000
        %v7002 = vmul.f32 %v6973, 1.442695
        %v7003 = vpow.pop %v7002
        %v7004 = vsel %vm1531, %v6975, 0.0
        %7005 = vadd.xlane.f32.xlu0 %v7004
        %v7006 = vpop.xlane.xlu0 %7005
        %v7007 = vsel %vm1531, %v6977, 0.0
        %7008 = vadd.xlane.f32.xlu0 %v7007
        %v7009 = vpop.xlane.xlu0 %7008
        %v7010 = vsel %vm1531, %v6979, 0.0
        %7011 = vadd.xlane.f32.xlu0 %v7010
        %v7012 = vpop.xlane.xlu0 %7011
        %v7013 = vsel %vm1531, %v6981, 0.0
        %7014 = vadd.xlane.f32.xlu0 %v7013
        %v7015 = vpop.xlane.xlu0 %7014
        %v7016 = vsel %vm1531, %v6983, 0.0
        %7017 = vadd.xlane.f32.xlu0 %v7016
        %v7018 = vpop.xlane.xlu0 %7017
        %v7019 = vsel %vm1531, %v6985, 0.0
        %7020 = vadd.xlane.f32.xlu0 %v7019
        %v7021 = vpop.xlane.xlu0 %7020
        %v7022 = vsel %vm1531, %v6987, 0.0
        %7023 = vadd.xlane.f32.xlu0 %v7022
        %v7024 = vpop.xlane.xlu0 %7023
        %v7025 = vsel %vm1531, %v6989, 0.0
        %7026 = vadd.xlane.f32.xlu0 %v7025
        %v7027 = vpop.xlane.xlu0 %7026
        %v7028 = vsel %vm1531, %v6991, 0.0
        %7029 = vadd.xlane.f32.xlu0 %v7028
        %v7030 = vpop.xlane.xlu0 %7029
        %v7031 = vsel %vm1531, %v6993, 0.0
        %7032 = vadd.xlane.f32.xlu0 %v7031
        %v7033 = vpop.xlane.xlu0 %7032
        %v7034 = vsel %vm1531, %v6995, 0.0
        %7035 = vadd.xlane.f32.xlu0 %v7034
        %v7036 = vpop.xlane.xlu0 %7035
        %v7037 = vsel %vm1531, %v6997, 0.0
        %7038 = vadd.xlane.f32.xlu0 %v7037
        %v7039 = vpop.xlane.xlu0 %7038
        %v7040 = vsel %vm1531, %v6999, 0.0
        %7041 = vadd.xlane.f32.xlu0 %v7040
        %v7042 = vpop.xlane.xlu0 %7041
        %v7043 = vsel %vm1531, %v7001, 0.0
        %7044 = vadd.xlane.f32.xlu0 %v7043
        %v7045 = vpop.xlane.xlu0 %7044
        %v7046 = vsel %vm1574, %v7003, 0.0
        %7047 = vadd.xlane.f32.xlu0 %v7046
        %v7048 = vpop.xlane.xlu0 %7047
        %v7049 = vrcp.pop %v7006
        %v7050 = vrcp.pop %v7009
        %v7051 = vrcp.pop %v7012
        %v7052 = vrcp.pop %v7015
        %v7053 = vrcp.pop %v7018
        %v7054 = vrcp.pop %v7021
        %v7055 = vrcp.pop %v7024
        %v7056 = vrcp.pop %v7027
        %v7057 = vrcp.pop %v7030
        %v7058 = vrcp.pop %v7033
        %v7059 = vrcp.pop %v7036
        %v7060 = vrcp.pop %v7039
        %v7061 = vrcp.pop %v7042
        %v7062 = vrcp.pop %v7045
        %v7063 = vrcp.pop %v7048
        %v7064 = vmul.f32 %v6975, %v7049
        %v7065 = vmul.f32 %v6977, %v7050
        %v7066 = vmul.f32 %v6979, %v7051
        %v7067 = vmul.f32 %v6981, %v7052
        %v7068 = vmul.f32 %v6983, %v7053
        %v7069 = vmul.f32 %v6985, %v7054
        %v7070 = vmul.f32 %v6987, %v7055
        %v7071 = vmul.f32 %v6989, %v7056
        %v7072 = vmul.f32 %v6991, %v7057
        %v7073 = vmul.f32 %v6993, %v7058
        %v7074 = vmul.f32 %v6995, %v7059
        %v7075 = vmul.f32 %v6997, %v7060
        %v7076 = vmul.f32 %v6999, %v7061
        %v7077 = vmul.f32 %v7001, %v7062
        %v7078 = vmul.f32 %v7003, %v7063
        %7093 = vrot.lane.b32.xlu0 %v5968, 96
        %v7094 = vpop.permute.xlu0 %7093
        %7095 = vrot.lane.b32.xlu0 %v5973, 96
        %v7096 = vpop.permute.xlu0 %7095
        %7097 = vrot.lane.b32.xlu0 %v5978, 96
        %v7098 = vpop.permute.xlu0 %7097
        %7099 = vrot.lane.b32.xlu0 %v5983, 96
        %v7100 = vpop.permute.xlu0 %7099
        %7101 = vrot.lane.b32.xlu0 %v5988, 96
        %v7102 = vpop.permute.xlu0 %7101
        %7103 = vrot.lane.b32.xlu0 %v5993, 96
        %v7104 = vpop.permute.xlu0 %7103
        %7105 = vrot.lane.b32.xlu0 %v5998, 96
        %v7106 = vpop.permute.xlu0 %7105
        %7107 = vrot.lane.b32.xlu0 %v6003, 96
        %v7108 = vpop.permute.xlu0 %7107
        %7109 = vrot.lane.b32.xlu0 %v6008, 96
        %v7110 = vpop.permute.xlu0 %7109
        %7111 = vrot.lane.b32.xlu0 %v6013, 96
        %v7112 = vpop.permute.xlu0 %7111
        %7113 = vrot.lane.b32.xlu0 %v6018, 96
        %v7114 = vpop.permute.xlu0 %7113
        %7115 = vrot.lane.b32.xlu0 %v6023, 96
        %v7116 = vpop.permute.xlu0 %7115
        %7117 = vrot.lane.b32.xlu0 %v6028, 96
        %v7118 = vpop.permute.xlu0 %7117
        %7119 = vrot.lane.b32.xlu0 %v6033, 96
        %v7120 = vpop.permute.xlu0 %7119
        %7121 = vrot.lane.b32.xlu0 %v6038, 96
        %v7122 = vpop.permute.xlu0 %7121
        %v7138 = vsel %vm1531, %v7064, 0
        %v7141 = vsel %vm1531, %v7065, 0
        %v7144 = vsel %vm1531, %v7066, 0
        %v7147 = vsel %vm1531, %v7067, 0
        %v7150 = vsel %vm1531, %v7068, 0
        %v7153 = vsel %vm1531, %v7069, 0
        %v7156 = vsel %vm1531, %v7070, 0
        %v7159 = vsel %vm1531, %v7071, 0
        %v7162 = vsel %vm1531, %v7072, 0
        %v7165 = vsel %vm1531, %v7073, 0
        %v7168 = vsel %vm1531, %v7074, 0
        %v7171 = vsel %vm1531, %v7075, 0
        %v7174 = vsel %vm1531, %v7076, 0
        %v7177 = vsel %vm1531, %v7077, 0
        %v7180 = vsel %vm1531, %v7078, 0
        %v7182 = vsel %vm1743, %v7122, 0
        %7184 = vmatprep.subr.mxu0 0.0
        %7185 = vmatpush1.msra.mxu0 %v7094
        %7186 = vmatprep.subr.mxu0 0.0
        %7187 = vmatpush1.msra.mxu0 %v7096
        %7188 = vmatprep.subr.mxu0 0.0
        %7189 = vmatpush1.msra.mxu0 %v7098
        %7190 = vmatprep.subr.mxu0 0.0
        %7191 = vmatpush1.msra.mxu0 %v7100
        %7192 = vmatprep.subr.mxu0 0.0
        %7193 = vmatpush1.msra.mxu0 %v7102
        %7194 = vmatprep.subr.mxu0 0.0
        %7195 = vmatpush1.msra.mxu0 %v7104
        %7196 = vmatprep.subr.mxu0 0.0
        %7197 = vmatpush1.msra.mxu0 %v7106
        %7198 = vmatprep.subr.mxu0 0.0
        %7199 = vmatpush1.msra.mxu0 %v7108
        %7200 = vmatprep.subr.mxu0 0.0
        %7201 = vmatpush1.msra.mxu0 %v7110
        %7202 = vmatprep.subr.mxu0 0.0
        %7203 = vmatpush1.msra.mxu0 %v7112
        %7204 = vmatprep.subr.mxu0 0.0
        %7205 = vmatpush1.msra.mxu0 %v7114
        %7206 = vmatprep.subr.mxu0 0.0
        %7207 = vmatpush1.msra.mxu0 %v7116
        %7208 = vmatprep.subr.mxu0 0.0
        %7209 = vmatpush1.msra.mxu0 %v7118
        %7210 = vmatprep.subr.mxu0 0.0
        %7211 = vmatpush1.msra.mxu0 %v7120
        %7212 = vmatprep.subr.mxu0 0.0
        %7213 = vmatpush1.msra.mxu0 %v7182
        %7214 = vmatprep.subr.mxu0 0.0
        %7215 = vmatpush1.msra.mxu0 0.0
        %7216 = vmatprep.subr.mxu0 0.0
        %7217 = vmatpush1.msra.mxu0 0.0
        %7218 = vmatprep.subr.mxu0 0.0
        %7219 = vmatpush1.msra.mxu0 0.0
        %7220 = vmatprep.subr.mxu0 0.0
        %7221 = vmatpush1.msra.mxu0 0.0
        %7222 = vmatprep.subr.mxu0 0.0
        %7223 = vmatpush1.msra.mxu0 0.0
        %7224 = vmatprep.subr.mxu0 0.0
        %7225 = vmatpush1.msra.mxu0 0.0
        %7226 = vmatprep.subr.mxu0 0.0
        %7227 = vmatpush1.msra.mxu0 0.0
        %7228 = vmatprep.subr.mxu0 0.0
        %7229 = vmatpush1.msra.mxu0 0.0
        %7230 = vmatprep.subr.mxu0 0.0
        %7231 = vmatpush1.msra.mxu0 0.0
        %7232 = vmatprep.subr.mxu0 0.0
        %7233 = vmatpush1.msra.mxu0 0.0
        %7234 = vmatprep.subr.mxu0 0.0
        %7235 = vmatpush1.msra.mxu0 0.0
        %7236 = vmatprep.subr.mxu0 0.0
        %7237 = vmatpush1.msra.mxu0 0.0
        %7238 = vmatprep.subr.mxu0 0.0
        %7239 = vmatpush1.msra.mxu0 0.0
        %7240 = vmatprep.subr.mxu0 0.0
        %7241 = vmatpush1.msra.mxu0 0.0
        %7242 = vmatprep.subr.mxu0 0.0
        %7243 = vmatpush1.msra.mxu0 0.0
        %7244 = vmatprep.subr.mxu0 0.0
        %7245 = vmatpush1.msra.mxu0 0.0
        %7246 = vmatprep.subr.mxu0 0.0
        %7247 = vmatpush1.msra.mxu0 0.0
        %7248 = vmatprep.mubr.f32.mxu0 0.0
        %7249 = vmatmul.mubr.f32.gmra.mrb[0].mxu0 %v7138
        %v7250 = vpop.f32.mrb[0].mxu0
        %v7251 = vadd.f32 0.0, %v7250
        %v7252 = vpop.f32.mrb[0].mxu0
        %7253 = vmatprep.mubr.f32.mxu0 0.0
        %7254 = vmatmul.mubr.f32.gmra.mrb[0].mxu0 %v7141
        %v7255 = vpop.f32.mrb[0].mxu0
        %v7256 = vadd.f32 0.0, %v7255
        %v7257 = vpop.f32.mrb[0].mxu0
        %7258 = vmatprep.mubr.f32.mxu0 0.0
        %7259 = vmatmul.mubr.f32.gmra.mrb[0].mxu0 %v7144
        %v7260 = vpop.f32.mrb[0].mxu0
        %v7261 = vadd.f32 0.0, %v7260
        %v7262 = vpop.f32.mrb[0].mxu0
        %7263 = vmatprep.mubr.f32.mxu0 0.0
        %7264 = vmatmul.mubr.f32.gmra.mrb[0].mxu0 %v7147
        %v7265 = vpop.f32.mrb[0].mxu0
        %v7266 = vadd.f32 0.0, %v7265
        %v7267 = vpop.f32.mrb[0].mxu0
        %7268 = vmatprep.mubr.f32.mxu0 0.0
        %7269 = vmatmul.mubr.f32.gmra.mrb[0].mxu0 %v7150
        %v7270 = vpop.f32.mrb[0].mxu0
        %v7271 = vadd.f32 0.0, %v7270
        %v7272 = vpop.f32.mrb[0].mxu0
        %7273 = vmatprep.mubr.f32.mxu0 0.0
        %7274 = vmatmul.mubr.f32.gmra.mrb[0].mxu0 %v7153
        %v7275 = vpop.f32.mrb[0].mxu0
        %v7276 = vadd.f32 0.0, %v7275
        %v7277 = vpop.f32.mrb[0].mxu0
        %7278 = vmatprep.mubr.f32.mxu0 0.0
        %7279 = vmatmul.mubr.f32.gmra.mrb[0].mxu0 %v7156
        %v7280 = vpop.f32.mrb[0].mxu0
        %v7281 = vadd.f32 0.0, %v7280
        %v7282 = vpop.f32.mrb[0].mxu0
        %7283 = vmatprep.mubr.f32.mxu0 0.0
        %7284 = vmatmul.mubr.f32.gmra.mrb[0].mxu0 %v7159
        %v7285 = vpop.f32.mrb[0].mxu0
        %v7286 = vadd.f32 0.0, %v7285
        %v7287 = vpop.f32.mrb[0].mxu0
        %7288 = vmatprep.mubr.f32.mxu0 0.0
        %7289 = vmatmul.mubr.f32.gmra.mrb[0].mxu0 %v7162
        %v7290 = vpop.f32.mrb[0].mxu0
        %v7291 = vadd.f32 0.0, %v7290
        %v7292 = vpop.f32.mrb[0].mxu0
        %7293 = vmatprep.mubr.f32.mxu0 0.0
        %7294 = vmatmul.mubr.f32.gmra.mrb[0].mxu0 %v7165
        %v7295 = vpop.f32.mrb[0].mxu0
        %v7296 = vadd.f32 0.0, %v7295
        %v7297 = vpop.f32.mrb[0].mxu0
        %7298 = vmatprep.mubr.f32.mxu0 0.0
        %7299 = vmatmul.mubr.f32.gmra.mrb[0].mxu0 %v7168
        %v7300 = vpop.f32.mrb[0].mxu0
        %v7301 = vadd.f32 0.0, %v7300
        %v7302 = vpop.f32.mrb[0].mxu0
        %7303 = vmatprep.mubr.f32.mxu0 0.0
        %7304 = vmatmul.mubr.f32.gmra.mrb[0].mxu0 %v7171
        %v7305 = vpop.f32.mrb[0].mxu0
        %v7306 = vadd.f32 0.0, %v7305
        %v7307 = vpop.f32.mrb[0].mxu0
        %7308 = vmatprep.mubr.f32.mxu0 0.0
        %7309 = vmatmul.mubr.f32.gmra.mrb[0].mxu0 %v7174
        %v7310 = vpop.f32.mrb[0].mxu0
        %v7311 = vadd.f32 0.0, %v7310
        %v7312 = vpop.f32.mrb[0].mxu0
        %7313 = vmatprep.mubr.f32.mxu0 0.0
        %7314 = vmatmul.mubr.f32.gmra.mrb[0].mxu0 %v7177
        %v7315 = vpop.f32.mrb[0].mxu0
        %v7316 = vadd.f32 0.0, %v7315
        %v7317 = vpop.f32.mrb[0].mxu0
        %7318 = vmatprep.mubr.f32.mxu0 0.0
        %7319 = vmatmul.mubr.f32.gmra.mrb[0].mxu0 %v7180
        %v7320 = vpop.f32.mrb[0].mxu0
        %v7321 = vadd.f32 0.0, %v7320
        %v7322 = vpop.f32.mrb[0].mxu0
        %7323 = vdwg.mxu0
        %v7325 = vsel %vm1285, %v7251, 0
        %v7328 = vsel %vm1285, %v7256, 0
        %v7331 = vsel %vm1285, %v7261, 0
        %v7334 = vsel %vm1285, %v7266, 0
        %v7337 = vsel %vm1285, %v7271, 0
        %v7340 = vsel %vm1285, %v7276, 0
        %v7343 = vsel %vm1285, %v7281, 0
        %v7346 = vsel %vm1285, %v7286, 0
        %v7349 = vsel %vm1285, %v7291, 0
        %v7352 = vsel %vm1285, %v7296, 0
        %v7355 = vsel %vm1285, %v7301, 0
        %v7358 = vsel %vm1285, %v7306, 0
        %v7361 = vsel %vm1285, %v7311, 0
        %v7364 = vsel %vm1285, %v7316, 0
        %v7367 = vsel %vm1285, %v7321, 0
        %7369 = vmatprep.subr.mxu0 0.0
        %7370 = vmatpush1.msra.mxu0 %v5585
        %7371 = vmatprep.subr.mxu0 0.0
        %7372 = vmatpush1.msra.mxu0 %v5586
        %7373 = vmatprep.subr.mxu0 0.0
        %7374 = vmatpush1.msra.mxu0 %v5587
        %7375 = vmatprep.subr.mxu0 0.0
        %7376 = vmatpush1.msra.mxu0 %v5588
        %7377 = vmatprep.subr.mxu0 0.0
        %7378 = vmatpush1.msra.mxu0 0.0
        %7379 = vmatprep.subr.mxu0 0.0
        %7380 = vmatpush1.msra.mxu0 0.0
        %7381 = vmatprep.subr.mxu0 0.0
        %7382 = vmatpush1.msra.mxu0 0.0
        %7383 = vmatprep.subr.mxu0 0.0
        %7384 = vmatpush1.msra.mxu0 0.0
        %7385 = vmatprep.subr.mxu0 0.0
        %7386 = vmatpush1.msra.mxu0 0.0
        %7387 = vmatprep.subr.mxu0 0.0
        %7388 = vmatpush1.msra.mxu0 0.0
        %7389 = vmatprep.subr.mxu0 0.0
        %7390 = vmatpush1.msra.mxu0 0.0
        %7391 = vmatprep.subr.mxu0 0.0
        %7392 = vmatpush1.msra.mxu0 0.0
        %7393 = vmatprep.subr.mxu0 0.0
        %7394 = vmatpush1.msra.mxu0 0.0
        %7395 = vmatprep.subr.mxu0 0.0
        %7396 = vmatpush1.msra.mxu0 0.0
        %7397 = vmatprep.subr.mxu0 0.0
        %7398 = vmatpush1.msra.mxu0 0.0
        %7399 = vmatprep.subr.mxu0 0.0
        %7400 = vmatpush1.msra.mxu0 0.0
        %7401 = vmatprep.subr.mxu0 0.0
        %7402 = vmatpush1.msra.mxu0 0.0
        %7403 = vmatprep.subr.mxu0 0.0
        %7404 = vmatpush1.msra.mxu0 0.0
        %7405 = vmatprep.subr.mxu0 0.0
        %7406 = vmatpush1.msra.mxu0 0.0
        %7407 = vmatprep.subr.mxu0 0.0
        %7408 = vmatpush1.msra.mxu0 0.0
        %7409 = vmatprep.subr.mxu0 0.0
        %7410 = vmatpush1.msra.mxu0 0.0
        %7411 = vmatprep.subr.mxu0 0.0
        %7412 = vmatpush1.msra.mxu0 0.0
        %7413 = vmatprep.subr.mxu0 0.0
        %7414 = vmatpush1.msra.mxu0 0.0
        %7415 = vmatprep.subr.mxu0 0.0
        %7416 = vmatpush1.msra.mxu0 0.0
        %7417 = vmatprep.subr.mxu0 0.0
        %7418 = vmatpush1.msra.mxu0 0.0
        %7419 = vmatprep.subr.mxu0 0.0
        %7420 = vmatpush1.msra.mxu0 0.0
        %7421 = vmatprep.subr.mxu0 0.0
        %7422 = vmatpush1.msra.mxu0 0.0
        %7423 = vmatprep.subr.mxu0 0.0
        %7424 = vmatpush1.msra.mxu0 0.0
        %7425 = vmatprep.subr.mxu0 0.0
        %7426 = vmatpush1.msra.mxu0 0.0
        %7427 = vmatprep.subr.mxu0 0.0
        %7428 = vmatpush1.msra.mxu0 0.0
        %7429 = vmatprep.subr.mxu0 0.0
        %7430 = vmatpush1.msra.mxu0 0.0
        %7431 = vmatprep.subr.mxu0 0.0
        %7432 = vmatpush1.msra.mxu0 0.0
        %7433 = vmatprep.mubr.f32.mxu0 0.0
        %7434 = vmatmul.mubr.f32.gmra.mrb[0].mxu0 %v7325
        %v7435 = vpop.f32.mrb[0].mxu0
        %v7436 = vadd.f32 0.0, %v7435
        %v7437 = vpop.f32.mrb[0].mxu0
        %7438 = vmatprep.mubr.f32.mxu0 0.0
        %7439 = vmatmul.mubr.f32.gmra.mrb[0].mxu0 %v7328
        %v7440 = vpop.f32.mrb[0].mxu0
        %v7441 = vadd.f32 0.0, %v7440
        %v7442 = vpop.f32.mrb[0].mxu0
        %7443 = vmatprep.mubr.f32.mxu0 0.0
        %7444 = vmatmul.mubr.f32.gmra.mrb[0].mxu0 %v7331
        %v7445 = vpop.f32.mrb[0].mxu0
        %v7446 = vadd.f32 0.0, %v7445
        %v7447 = vpop.f32.mrb[0].mxu0
        %7448 = vmatprep.mubr.f32.mxu0 0.0
        %7449 = vmatmul.mubr.f32.gmra.mrb[0].mxu0 %v7334
        %v7450 = vpop.f32.mrb[0].mxu0
        %v7451 = vadd.f32 0.0, %v7450
        %v7452 = vpop.f32.mrb[0].mxu0
        %7453 = vmatprep.mubr.f32.mxu0 0.0
        %7454 = vmatmul.mubr.f32.gmra.mrb[0].mxu0 %v7337
        %v7455 = vpop.f32.mrb[0].mxu0
        %v7456 = vadd.f32 0.0, %v7455
        %v7457 = vpop.f32.mrb[0].mxu0
        %7458 = vmatprep.mubr.f32.mxu0 0.0
        %7459 = vmatmul.mubr.f32.gmra.mrb[0].mxu0 %v7340
        %v7460 = vpop.f32.mrb[0].mxu0
        %v7461 = vadd.f32 0.0, %v7460
        %v7462 = vpop.f32.mrb[0].mxu0
        %7463 = vmatprep.mubr.f32.mxu0 0.0
        %7464 = vmatmul.mubr.f32.gmra.mrb[0].mxu0 %v7343
        %v7465 = vpop.f32.mrb[0].mxu0
        %v7466 = vadd.f32 0.0, %v7465
        %v7467 = vpop.f32.mrb[0].mxu0
        %7468 = vmatprep.mubr.f32.mxu0 0.0
        %7469 = vmatmul.mubr.f32.gmra.mrb[0].mxu0 %v7346
        %v7470 = vpop.f32.mrb[0].mxu0
        %v7471 = vadd.f32 0.0, %v7470
        %v7472 = vpop.f32.mrb[0].mxu0
        %7473 = vmatprep.mubr.f32.mxu0 0.0
        %7474 = vmatmul.mubr.f32.gmra.mrb[0].mxu0 %v7349
        %v7475 = vpop.f32.mrb[0].mxu0
        %v7476 = vadd.f32 0.0, %v7475
        %v7477 = vpop.f32.mrb[0].mxu0
        %7478 = vmatprep.mubr.f32.mxu0 0.0
        %7479 = vmatmul.mubr.f32.gmra.mrb[0].mxu0 %v7352
        %v7480 = vpop.f32.mrb[0].mxu0
        %v7481 = vadd.f32 0.0, %v7480
        %v7482 = vpop.f32.mrb[0].mxu0
        %7483 = vmatprep.mubr.f32.mxu0 0.0
        %7484 = vmatmul.mubr.f32.gmra.mrb[0].mxu0 %v7355
        %v7485 = vpop.f32.mrb[0].mxu0
        %v7486 = vadd.f32 0.0, %v7485
        %v7487 = vpop.f32.mrb[0].mxu0
        %7488 = vmatprep.mubr.f32.mxu0 0.0
        %7489 = vmatmul.mubr.f32.gmra.mrb[0].mxu0 %v7358
        %v7490 = vpop.f32.mrb[0].mxu0
        %v7491 = vadd.f32 0.0, %v7490
        %v7492 = vpop.f32.mrb[0].mxu0
        %7493 = vmatprep.mubr.f32.mxu0 0.0
        %7494 = vmatmul.mubr.f32.gmra.mrb[0].mxu0 %v7361
        %v7495 = vpop.f32.mrb[0].mxu0
        %v7496 = vadd.f32 0.0, %v7495
        %v7497 = vpop.f32.mrb[0].mxu0
        %7498 = vmatprep.mubr.f32.mxu0 0.0
        %7499 = vmatmul.mubr.f32.gmra.mrb[0].mxu0 %v7364
        %v7500 = vpop.f32.mrb[0].mxu0
        %v7501 = vadd.f32 0.0, %v7500
        %v7502 = vpop.f32.mrb[0].mxu0
        %7503 = vmatprep.mubr.f32.mxu0 0.0
        %7504 = vmatmul.mubr.f32.gmra.mrb[0].mxu0 %v7367
        %v7505 = vpop.f32.mrb[0].mxu0
        %v7506 = vadd.f32 0.0, %v7505
        %v7507 = vpop.f32.mrb[0].mxu0
        %7508 = vdwg.mxu0
        %v7510 = vsel %vm1285, %v6566, 0
        %v7513 = vsel %vm1285, %v6571, 0
        %v7516 = vsel %vm1285, %v6576, 0
        %v7519 = vsel %vm1285, %v6581, 0
        %v7522 = vsel %vm1285, %v6586, 0
        %v7525 = vsel %vm1285, %v6591, 0
        %v7528 = vsel %vm1285, %v6596, 0
        %v7531 = vsel %vm1285, %v6601, 0
        %v7534 = vsel %vm1285, %v6606, 0
        %v7537 = vsel %vm1285, %v6611, 0
        %v7540 = vsel %vm1285, %v6616, 0
        %v7543 = vsel %vm1285, %v6621, 0
        %v7546 = vsel %vm1285, %v6626, 0
        %v7549 = vsel %vm1285, %v6631, 0
        %v7552 = vsel %vm1285, %v6636, 0
        %7554 = vmatprep.subr.mxu0 0.0
        %7555 = vmatpush1.msra.mxu0 %v5581
        %7556 = vmatprep.subr.mxu0 0.0
        %7557 = vmatpush1.msra.mxu0 %v5582
        %7558 = vmatprep.subr.mxu0 0.0
        %7559 = vmatpush1.msra.mxu0 %v5583
        %7560 = vmatprep.subr.mxu0 0.0
        %7561 = vmatpush1.msra.mxu0 %v5584
        %7562 = vmatprep.subr.mxu0 0.0
        %7563 = vmatpush1.msra.mxu0 0.0
        %7564 = vmatprep.subr.mxu0 0.0
        %7565 = vmatpush1.msra.mxu0 0.0
        %7566 = vmatprep.subr.mxu0 0.0
        %7567 = vmatpush1.msra.mxu0 0.0
        %7568 = vmatprep.subr.mxu0 0.0
        %7569 = vmatpush1.msra.mxu0 0.0
        %7570 = vmatprep.subr.mxu0 0.0
        %7571 = vmatpush1.msra.mxu0 0.0
        %7572 = vmatprep.subr.mxu0 0.0
        %7573 = vmatpush1.msra.mxu0 0.0
        %7574 = vmatprep.subr.mxu0 0.0
        %7575 = vmatpush1.msra.mxu0 0.0
        %7576 = vmatprep.subr.mxu0 0.0
        %7577 = vmatpush1.msra.mxu0 0.0
        %7578 = vmatprep.subr.mxu0 0.0
        %7579 = vmatpush1.msra.mxu0 0.0
        %7580 = vmatprep.subr.mxu0 0.0
        %7581 = vmatpush1.msra.mxu0 0.0
        %7582 = vmatprep.subr.mxu0 0.0
        %7583 = vmatpush1.msra.mxu0 0.0
        %7584 = vmatprep.subr.mxu0 0.0
        %7585 = vmatpush1.msra.mxu0 0.0
        %7586 = vmatprep.subr.mxu0 0.0
        %7587 = vmatpush1.msra.mxu0 0.0
        %7588 = vmatprep.subr.mxu0 0.0
        %7589 = vmatpush1.msra.mxu0 0.0
        %7590 = vmatprep.subr.mxu0 0.0
        %7591 = vmatpush1.msra.mxu0 0.0
        %7592 = vmatprep.subr.mxu0 0.0
        %7593 = vmatpush1.msra.mxu0 0.0
        %7594 = vmatprep.subr.mxu0 0.0
        %7595 = vmatpush1.msra.mxu0 0.0
        %7596 = vmatprep.subr.mxu0 0.0
        %7597 = vmatpush1.msra.mxu0 0.0
        %7598 = vmatprep.subr.mxu0 0.0
        %7599 = vmatpush1.msra.mxu0 0.0
        %7600 = vmatprep.subr.mxu0 0.0
        %7601 = vmatpush1.msra.mxu0 0.0
        %7602 = vmatprep.subr.mxu0 0.0
        %7603 = vmatpush1.msra.mxu0 0.0
        %7604 = vmatprep.subr.mxu0 0.0
        %7605 = vmatpush1.msra.mxu0 0.0
        %7606 = vmatprep.subr.mxu0 0.0
        %7607 = vmatpush1.msra.mxu0 0.0
        %7608 = vmatprep.subr.mxu0 0.0
        %7609 = vmatpush1.msra.mxu0 0.0
        %7610 = vmatprep.subr.mxu0 0.0
        %7611 = vmatpush1.msra.mxu0 0.0
        %7612 = vmatprep.subr.mxu0 0.0
        %7613 = vmatpush1.msra.mxu0 0.0
        %7614 = vmatprep.subr.mxu0 0.0
        %7615 = vmatpush1.msra.mxu0 0.0
        %7616 = vmatprep.subr.mxu0 0.0
        %7617 = vmatpush1.msra.mxu0 0.0
        %7618 = vmatprep.mubr.f32.mxu0 0.0
        %7619 = vmatmul.mubr.f32.gmra.mrb[0].mxu0 %v7510
        %v7620 = vpop.f32.mrb[0].mxu0
        %v7621 = vadd.f32 %v7436, %v7620
        %v7622 = vpop.f32.mrb[0].mxu0
        %7623 = vmatprep.mubr.f32.mxu0 0.0
        %7624 = vmatmul.mubr.f32.gmra.mrb[0].mxu0 %v7513
        %v7625 = vpop.f32.mrb[0].mxu0
        %v7626 = vadd.f32 %v7441, %v7625
        %v7627 = vpop.f32.mrb[0].mxu0
        %7628 = vmatprep.mubr.f32.mxu0 0.0
        %7629 = vmatmul.mubr.f32.gmra.mrb[0].mxu0 %v7516
        %v7630 = vpop.f32.mrb[0].mxu0
        %v7631 = vadd.f32 %v7446, %v7630
        %v7632 = vpop.f32.mrb[0].mxu0
        %7633 = vmatprep.mubr.f32.mxu0 0.0
        %7634 = vmatmul.mubr.f32.gmra.mrb[0].mxu0 %v7519
        %v7635 = vpop.f32.mrb[0].mxu0
        %v7636 = vadd.f32 %v7451, %v7635
        %v7637 = vpop.f32.mrb[0].mxu0
        %7638 = vmatprep.mubr.f32.mxu0 0.0
        %7639 = vmatmul.mubr.f32.gmra.mrb[0].mxu0 %v7522
        %v7640 = vpop.f32.mrb[0].mxu0
        %v7641 = vadd.f32 %v7456, %v7640
        %v7642 = vpop.f32.mrb[0].mxu0
        %7643 = vmatprep.mubr.f32.mxu0 0.0
        %7644 = vmatmul.mubr.f32.gmra.mrb[0].mxu0 %v7525
        %v7645 = vpop.f32.mrb[0].mxu0
        %v7646 = vadd.f32 %v7461, %v7645
        %v7647 = vpop.f32.mrb[0].mxu0
        %7648 = vmatprep.mubr.f32.mxu0 0.0
        %7649 = vmatmul.mubr.f32.gmra.mrb[0].mxu0 %v7528
        %v7650 = vpop.f32.mrb[0].mxu0
        %v7651 = vadd.f32 %v7466, %v7650
        %v7652 = vpop.f32.mrb[0].mxu0
        %7653 = vmatprep.mubr.f32.mxu0 0.0
        %7654 = vmatmul.mubr.f32.gmra.mrb[0].mxu0 %v7531
        %v7655 = vpop.f32.mrb[0].mxu0
        %v7656 = vadd.f32 %v7471, %v7655
        %v7657 = vpop.f32.mrb[0].mxu0
        %7658 = vmatprep.mubr.f32.mxu0 0.0
        %7659 = vmatmul.mubr.f32.gmra.mrb[0].mxu0 %v7534
        %v7660 = vpop.f32.mrb[0].mxu0
        %v7661 = vadd.f32 %v7476, %v7660
        %v7662 = vpop.f32.mrb[0].mxu0
        %7663 = vmatprep.mubr.f32.mxu0 0.0
        %7664 = vmatmul.mubr.f32.gmra.mrb[0].mxu0 %v7537
        %v7665 = vpop.f32.mrb[0].mxu0
        %v7666 = vadd.f32 %v7481, %v7665
        %v7667 = vpop.f32.mrb[0].mxu0
        %7668 = vmatprep.mubr.f32.mxu0 0.0
        %7669 = vmatmul.mubr.f32.gmra.mrb[0].mxu0 %v7540
        %v7670 = vpop.f32.mrb[0].mxu0
        %v7671 = vadd.f32 %v7486, %v7670
        %v7672 = vpop.f32.mrb[0].mxu0
        %7673 = vmatprep.mubr.f32.mxu0 0.0
        %7674 = vmatmul.mubr.f32.gmra.mrb[0].mxu0 %v7543
        %v7675 = vpop.f32.mrb[0].mxu0
        %v7676 = vadd.f32 %v7491, %v7675
        %v7677 = vpop.f32.mrb[0].mxu0
        %7678 = vmatprep.mubr.f32.mxu0 0.0
        %7679 = vmatmul.mubr.f32.gmra.mrb[0].mxu0 %v7546
        %v7680 = vpop.f32.mrb[0].mxu0
        %v7681 = vadd.f32 %v7496, %v7680
        %v7682 = vpop.f32.mrb[0].mxu0
        %7683 = vmatprep.mubr.f32.mxu0 0.0
        %7684 = vmatmul.mubr.f32.gmra.mrb[0].mxu0 %v7549
        %v7685 = vpop.f32.mrb[0].mxu0
        %v7686 = vadd.f32 %v7501, %v7685
        %v7687 = vpop.f32.mrb[0].mxu0
        %7688 = vmatprep.mubr.f32.mxu0 0.0
        %7689 = vmatmul.mubr.f32.gmra.mrb[0].mxu0 %v7552
        %v7690 = vpop.f32.mrb[0].mxu0
        %v7691 = vadd.f32 %v7506, %v7690
        %v7692 = vpop.f32.mrb[0].mxu0
        %7693 = vdwg.mxu0
        %7694 = vrot.lane.b32.xlu0 %v5672, 64
        %v7695 = vpop.permute.xlu0 %7694
        %7696 = vrot.lane.b32.xlu0 %v5677, 64
        %v7697 = vpop.permute.xlu0 %7696
        %7698 = vrot.lane.b32.xlu0 %v5682, 64
        %v7699 = vpop.permute.xlu0 %7698
        %7700 = vrot.lane.b32.xlu0 %v5687, 64
        %v7701 = vpop.permute.xlu0 %7700
        %7702 = vrot.lane.b32.xlu0 %v5692, 64
        %v7703 = vpop.permute.xlu0 %7702
        %7704 = vrot.lane.b32.xlu0 %v5697, 64
        %v7705 = vpop.permute.xlu0 %7704
        %7706 = vrot.lane.b32.xlu0 %v5702, 64
        %v7707 = vpop.permute.xlu0 %7706
        %7708 = vrot.lane.b32.xlu0 %v5707, 64
        %v7709 = vpop.permute.xlu0 %7708
        %7710 = vrot.lane.b32.xlu0 %v5712, 64
        %v7711 = vpop.permute.xlu0 %7710
        %7712 = vrot.lane.b32.xlu0 %v5717, 64
        %v7713 = vpop.permute.xlu0 %7712
        %7714 = vrot.lane.b32.xlu0 %v5722, 64
        %v7715 = vpop.permute.xlu0 %7714
        %7716 = vrot.lane.b32.xlu0 %v5727, 64
        %v7717 = vpop.permute.xlu0 %7716
        %7718 = vrot.lane.b32.xlu0 %v5732, 64
        %v7719 = vpop.permute.xlu0 %7718
        %7720 = vrot.lane.b32.xlu0 %v5737, 64
        %v7721 = vpop.permute.xlu0 %7720
        %7722 = vrot.lane.b32.xlu0 %v5742, 64
        %v7723 = vpop.permute.xlu0 %7722
        %7724 = vrot.lane.b32.xlu0 %v5820, 64
        %v7725 = vpop.permute.xlu0 %7724
        %7726 = vrot.lane.b32.xlu0 %v5825, 64
        %v7727 = vpop.permute.xlu0 %7726
        %7728 = vrot.lane.b32.xlu0 %v5830, 64
        %v7729 = vpop.permute.xlu0 %7728
        %7730 = vrot.lane.b32.xlu0 %v5835, 64
        %v7731 = vpop.permute.xlu0 %7730
        %7732 = vrot.lane.b32.xlu0 %v5840, 64
        %v7733 = vpop.permute.xlu0 %7732
        %7734 = vrot.lane.b32.xlu0 %v5845, 64
        %v7735 = vpop.permute.xlu0 %7734
        %7736 = vrot.lane.b32.xlu0 %v5850, 64
        %v7737 = vpop.permute.xlu0 %7736
        %7738 = vrot.lane.b32.xlu0 %v5855, 64
        %v7739 = vpop.permute.xlu0 %7738
        %7740 = vrot.lane.b32.xlu0 %v5860, 64
        %v7741 = vpop.permute.xlu0 %7740
        %7742 = vrot.lane.b32.xlu0 %v5865, 64
        %v7743 = vpop.permute.xlu0 %7742
        %7744 = vrot.lane.b32.xlu0 %v5870, 64
        %v7745 = vpop.permute.xlu0 %7744
        %7746 = vrot.lane.b32.xlu0 %v5875, 64
        %v7747 = vpop.permute.xlu0 %7746
        %7748 = vrot.lane.b32.xlu0 %v5880, 64
        %v7749 = vpop.permute.xlu0 %7748
        %7750 = vrot.lane.b32.xlu0 %v5885, 64
        %v7751 = vpop.permute.xlu0 %7750
        %7752 = vrot.lane.b32.xlu0 %v5890, 64
        %v7753 = vpop.permute.xlu0 %7752
        %v7754 = vsel %vm1285, %v7695, 0
        %v7756 = vsel %vm1285, %v7697, 0
        %v7758 = vsel %vm1285, %v7699, 0
        %v7760 = vsel %vm1285, %v7701, 0
        %v7762 = vsel %vm1285, %v7703, 0
        %v7764 = vsel %vm1285, %v7705, 0
        %v7766 = vsel %vm1285, %v7707, 0
        %v7768 = vsel %vm1285, %v7709, 0
        %v7770 = vsel %vm1285, %v7711, 0
        %v7772 = vsel %vm1285, %v7713, 0
        %v7774 = vsel %vm1285, %v7715, 0
        %v7776 = vsel %vm1285, %v7717, 0
        %v7778 = vsel %vm1285, %v7719, 0
        %v7780 = vsel %vm1285, %v7721, 0
        %v7782 = vsel %vm1285, %v7723, 0
        %v7784 = vsel %vm1285, %v7725, 0
        %v7786 = vsel %vm1285, %v7727, 0
        %v7788 = vsel %vm1285, %v7729, 0
        %v7790 = vsel %vm1285, %v7731, 0
        %v7792 = vsel %vm1285, %v7733, 0
        %v7794 = vsel %vm1285, %v7735, 0
        %v7796 = vsel %vm1285, %v7737, 0
        %v7798 = vsel %vm1285, %v7739, 0
        %v7800 = vsel %vm1285, %v7741, 0
        %v7802 = vsel %vm1285, %v7743, 0
        %v7804 = vsel %vm1285, %v7745, 0
        %v7806 = vsel %vm1285, %v7747, 0
        %v7808 = vsel %vm1285, %v7749, 0
        %v7810 = vsel %vm1285, %v7751, 0
        %v7812 = vsel %vm1285, %v7753, 0
        %7814 = vmatprep.subr.mxu0 0.0
        %7815 = vmatpush1.xpose.msra.mxu0 %v7784
        %7816 = vmatprep.subr.mxu0 0.0
        %7817 = vmatpush1.xpose.msra.mxu0 %v7786
        %7818 = vmatprep.subr.mxu0 0.0
        %7819 = vmatpush1.xpose.msra.mxu0 %v7788
        %7820 = vmatprep.subr.mxu0 0.0
        %7821 = vmatpush1.xpose.msra.mxu0 %v7790
        %7822 = vmatprep.subr.mxu0 0.0
        %7823 = vmatpush1.xpose.msra.mxu0 %v7792
        %7824 = vmatprep.subr.mxu0 0.0
        %7825 = vmatpush1.xpose.msra.mxu0 %v7794
        %7826 = vmatprep.subr.mxu0 0.0
        %7827 = vmatpush1.xpose.msra.mxu0 %v7796
        %7828 = vmatprep.subr.mxu0 0.0
        %7829 = vmatpush1.xpose.msra.mxu0 %v7798
        %7830 = vmatprep.subr.mxu0 0.0
        %7831 = vmatpush1.xpose.msra.mxu0 %v7800
        %7832 = vmatprep.subr.mxu0 0.0
        %7833 = vmatpush1.xpose.msra.mxu0 %v7802
        %7834 = vmatprep.subr.mxu0 0.0
        %7835 = vmatpush1.xpose.msra.mxu0 %v7804
        %7836 = vmatprep.subr.mxu0 0.0
        %7837 = vmatpush1.xpose.msra.mxu0 %v7806
        %7838 = vmatprep.subr.mxu0 0.0
        %7839 = vmatpush1.xpose.msra.mxu0 %v7808
        %7840 = vmatprep.subr.mxu0 0.0
        %7841 = vmatpush1.xpose.msra.mxu0 %v7810
        %7842 = vmatprep.subr.mxu0 0.0
        %7843 = vmatpush1.xpose.msra.mxu0 %v7812
        %7844 = vmatprep.subr.mxu0 0.0
        %7845 = vmatpush1.xpose.msra.mxu0 0.0
        %7846 = vmatprep.subr.mxu0 0.0
        %7847 = vmatpush1.xpose.msra.mxu0 0.0
        %7848 = vmatprep.subr.mxu0 0.0
        %7849 = vmatpush1.xpose.msra.mxu0 0.0
        %7850 = vmatprep.subr.mxu0 0.0
        %7851 = vmatpush1.xpose.msra.mxu0 0.0
        %7852 = vmatprep.subr.mxu0 0.0
        %7853 = vmatpush1.xpose.msra.mxu0 0.0
        %7854 = vmatprep.subr.mxu0 0.0
        %7855 = vmatpush1.xpose.msra.mxu0 0.0
        %7856 = vmatprep.subr.mxu0 0.0
        %7857 = vmatpush1.xpose.msra.mxu0 0.0
        %7858 = vmatprep.subr.mxu0 0.0
        %7859 = vmatpush1.xpose.msra.mxu0 0.0
        %7860 = vmatprep.subr.mxu0 0.0
        %7861 = vmatpush1.xpose.msra.mxu0 0.0
        %7862 = vmatprep.subr.mxu0 0.0
        %7863 = vmatpush1.xpose.msra.mxu0 0.0
        %7864 = vmatprep.subr.mxu0 0.0
        %7865 = vmatpush1.xpose.msra.mxu0 0.0
        %7866 = vmatprep.subr.mxu0 0.0
        %7867 = vmatpush1.xpose.msra.mxu0 0.0
        %7868 = vmatprep.subr.mxu0 0.0
        %7869 = vmatpush1.xpose.msra.mxu0 0.0
        %7870 = vmatprep.subr.mxu0 0.0
        %7871 = vmatpush1.xpose.msra.mxu0 0.0
        %7872 = vmatprep.subr.mxu0 0.0
        %7873 = vmatpush1.xpose.msra.mxu0 0.0
        %7874 = vmatprep.subr.mxu0 0.0
        %7875 = vmatpush1.xpose.msra.mxu0 0.0
        %7876 = vmatprep.subr.mxu0 0.0
        %7877 = vmatpush1.xpose.msra.mxu0 0.0
        %7878 = vmatprep.mubr.f32.mxu0 0.0
        %7879 = vmatmul.mubr.f32.gmra.mrb[0].mxu0 %v7754
        %v7880 = vpop.f32.mrb[0].mxu0
        %v7881 = vadd.f32 0.0, %v7880
        %v7882 = vpop.f32.mrb[0].mxu0
        %7883 = vmatprep.mubr.f32.mxu0 0.0
        %7884 = vmatmul.mubr.f32.gmra.mrb[0].mxu0 %v7756
        %v7885 = vpop.f32.mrb[0].mxu0
        %v7886 = vadd.f32 0.0, %v7885
        %v7887 = vpop.f32.mrb[0].mxu0
        %7888 = vmatprep.mubr.f32.mxu0 0.0
        %7889 = vmatmul.mubr.f32.gmra.mrb[0].mxu0 %v7758
        %v7890 = vpop.f32.mrb[0].mxu0
        %v7891 = vadd.f32 0.0, %v7890
        %v7892 = vpop.f32.mrb[0].mxu0
        %7893 = vmatprep.mubr.f32.mxu0 0.0
        %7894 = vmatmul.mubr.f32.gmra.mrb[0].mxu0 %v7760
        %v7895 = vpop.f32.mrb[0].mxu0
        %v7896 = vadd.f32 0.0, %v7895
        %v7897 = vpop.f32.mrb[0].mxu0
        %7898 = vmatprep.mubr.f32.mxu0 0.0
        %7899 = vmatmul.mubr.f32.gmra.mrb[0].mxu0 %v7762
        %v7900 = vpop.f32.mrb[0].mxu0
        %v7901 = vadd.f32 0.0, %v7900
        %v7902 = vpop.f32.mrb[0].mxu0
        %7903 = vmatprep.mubr.f32.mxu0 0.0
        %7904 = vmatmul.mubr.f32.gmra.mrb[0].mxu0 %v7764
        %v7905 = vpop.f32.mrb[0].mxu0
        %v7906 = vadd.f32 0.0, %v7905
        %v7907 = vpop.f32.mrb[0].mxu0
        %7908 = vmatprep.mubr.f32.mxu0 0.0
        %7909 = vmatmul.mubr.f32.gmra.mrb[0].mxu0 %v7766
        %v7910 = vpop.f32.mrb[0].mxu0
        %v7911 = vadd.f32 0.0, %v7910
        %v7912 = vpop.f32.mrb[0].mxu0
        %7913 = vmatprep.mubr.f32.mxu0 0.0
        %7914 = vmatmul.mubr.f32.gmra.mrb[0].mxu0 %v7768
        %v7915 = vpop.f32.mrb[0].mxu0
        %v7916 = vadd.f32 0.0, %v7915
        %v7917 = vpop.f32.mrb[0].mxu0
        %7918 = vmatprep.mubr.f32.mxu0 0.0
        %7919 = vmatmul.mubr.f32.gmra.mrb[0].mxu0 %v7770
        %v7920 = vpop.f32.mrb[0].mxu0
        %v7921 = vadd.f32 0.0, %v7920
        %v7922 = vpop.f32.mrb[0].mxu0
        %7923 = vmatprep.mubr.f32.mxu0 0.0
        %7924 = vmatmul.mubr.f32.gmra.mrb[0].mxu0 %v7772
        %v7925 = vpop.f32.mrb[0].mxu0
        %v7926 = vadd.f32 0.0, %v7925
        %v7927 = vpop.f32.mrb[0].mxu0
        %7928 = vmatprep.mubr.f32.mxu0 0.0
        %7929 = vmatmul.mubr.f32.gmra.mrb[0].mxu0 %v7774
        %v7930 = vpop.f32.mrb[0].mxu0
        %v7931 = vadd.f32 0.0, %v7930
        %v7932 = vpop.f32.mrb[0].mxu0
        %7933 = vmatprep.mubr.f32.mxu0 0.0
        %7934 = vmatmul.mubr.f32.gmra.mrb[0].mxu0 %v7776
        %v7935 = vpop.f32.mrb[0].mxu0
        %v7936 = vadd.f32 0.0, %v7935
        %v7937 = vpop.f32.mrb[0].mxu0
        %7938 = vmatprep.mubr.f32.mxu0 0.0
        %7939 = vmatmul.mubr.f32.gmra.mrb[0].mxu0 %v7778
        %v7940 = vpop.f32.mrb[0].mxu0
        %v7941 = vadd.f32 0.0, %v7940
        %v7942 = vpop.f32.mrb[0].mxu0
        %7943 = vmatprep.mubr.f32.mxu0 0.0
        %7944 = vmatmul.mubr.f32.gmra.mrb[0].mxu0 %v7780
        %v7945 = vpop.f32.mrb[0].mxu0
        %v7946 = vadd.f32 0.0, %v7945
        %v7947 = vpop.f32.mrb[0].mxu0
        %7948 = vmatprep.mubr.f32.mxu0 0.0
        %7949 = vmatmul.mubr.f32.gmra.mrb[0].mxu0 %v7782
        %v7950 = vpop.f32.mrb[0].mxu0
        %v7951 = vadd.f32 0.0, %v7950
        %v7952 = vpop.f32.mrb[0].mxu0
        %7953 = vdwg.mxu0
        %v7954 = vmul.f32 %v7881, 0.17677669
        %v7955 = vmul.f32 %v7886, 0.17677669
        %v7956 = vmul.f32 %v7891, 0.17677669
        %v7957 = vmul.f32 %v7896, 0.17677669
        %v7958 = vmul.f32 %v7901, 0.17677669
        %v7959 = vmul.f32 %v7906, 0.17677669
        %v7960 = vmul.f32 %v7911, 0.17677669
        %v7961 = vmul.f32 %v7916, 0.17677669
        %v7962 = vmul.f32 %v7921, 0.17677669
        %v7963 = vmul.f32 %v7926, 0.17677669
        %v7964 = vmul.f32 %v7931, 0.17677669
        %v7965 = vmul.f32 %v7936, 0.17677669
        %v7966 = vmul.f32 %v7941, 0.17677669
        %v7967 = vmul.f32 %v7946, 0.17677669
        %v7968 = vmul.f32 %v7951, 0.17677669
        %v7969 = vsel %vm1531, %v7954, -inf
        %7970 = vmax.xlane.f32.xlu0 %v7969
        %v7971 = vpop.xlane.xlu0 %7970
        %v7972 = vsel %vm1531, %v7955, -inf
        %7973 = vmax.xlane.f32.xlu0 %v7972
        %v7974 = vpop.xlane.xlu0 %7973
        %v7975 = vsel %vm1531, %v7956, -inf
        %7976 = vmax.xlane.f32.xlu0 %v7975
        %v7977 = vpop.xlane.xlu0 %7976
        %v7978 = vsel %vm1531, %v7957, -inf
        %7979 = vmax.xlane.f32.xlu0 %v7978
        %v7980 = vpop.xlane.xlu0 %7979
        %v7981 = vsel %vm1531, %v7958, -inf
        %7982 = vmax.xlane.f32.xlu0 %v7981
        %v7983 = vpop.xlane.xlu0 %7982
        %v7984 = vsel %vm1531, %v7959, -inf
        %7985 = vmax.xlane.f32.xlu0 %v7984
        %v7986 = vpop.xlane.xlu0 %7985
        %v7987 = vsel %vm1531, %v7960, -inf
        %7988 = vmax.xlane.f32.xlu0 %v7987
        %v7989 = vpop.xlane.xlu0 %7988
        %v7990 = vsel %vm1531, %v7961, -inf
        %7991 = vmax.xlane.f32.xlu0 %v7990
        %v7992 = vpop.xlane.xlu0 %7991
        %v7993 = vsel %vm1531, %v7962, -inf
        %7994 = vmax.xlane.f32.xlu0 %v7993
        %v7995 = vpop.xlane.xlu0 %7994
        %v7996 = vsel %vm1531, %v7963, -inf
        %7997 = vmax.xlane.f32.xlu0 %v7996
        %v7998 = vpop.xlane.xlu0 %7997
        %v7999 = vsel %vm1531, %v7964, -inf
        %8000 = vmax.xlane.f32.xlu0 %v7999
        %v8001 = vpop.xlane.xlu0 %8000
        %v8002 = vsel %vm1531, %v7965, -inf
        %8003 = vmax.xlane.f32.xlu0 %v8002
        %v8004 = vpop.xlane.xlu0 %8003
        %v8005 = vsel %vm1531, %v7966, -inf
        %8006 = vmax.xlane.f32.xlu0 %v8005
        %v8007 = vpop.xlane.xlu0 %8006
        %v8008 = vsel %vm1531, %v7967, -inf
        %8009 = vmax.xlane.f32.xlu0 %v8008
        %v8010 = vpop.xlane.xlu0 %8009
        %v8011 = vsel %vm1574, %v7968, -inf
        %8012 = vmax.xlane.f32.xlu0 %v8011
        %v8013 = vpop.xlane.xlu0 %8012
        %v8014 = vsub.f32 %v7954, %v7971
        %v8015 = vsub.f32 %v7955, %v7974
        %v8016 = vsub.f32 %v7956, %v7977
        %v8017 = vsub.f32 %v7957, %v7980
        %v8018 = vsub.f32 %v7958, %v7983
        %v8019 = vsub.f32 %v7959, %v7986
        %v8020 = vsub.f32 %v7960, %v7989
        %v8021 = vsub.f32 %v7961, %v7992
        %v8022 = vsub.f32 %v7962, %v7995
        %v8023 = vsub.f32 %v7963, %v7998
        %v8024 = vsub.f32 %v7964, %v8001
        %v8025 = vsub.f32 %v7965, %v8004
        %v8026 = vsub.f32 %v7966, %v8007
        %v8027 = vsub.f32 %v7967, %v8010
        %v8028 = vsub.f32 %v7968, %v8013
        %v8029 = vmul.f32 %v8014, 1.442695
        %v8030 = vpow.pop %v8029
        %v8031 = vmul.f32 %v8015, 1.442695
        %v8032 = vpow.pop %v8031
        %v8033 = vmul.f32 %v8016, 1.442695
        %v8034 = vpow.pop %v8033
        %v8035 = vmul.f32 %v8017, 1.442695
        %v8036 = vpow.pop %v8035
        %v8037 = vmul.f32 %v8018, 1.442695
        %v8038 = vpow.pop %v8037
        %v8039 = vmul.f32 %v8019, 1.442695
        %v8040 = vpow.pop %v8039
        %v8041 = vmul.f32 %v8020, 1.442695
        %v8042 = vpow.pop %v8041
        %v8043 = vmul.f32 %v8021, 1.442695
        %v8044 = vpow.pop %v8043
        %v8045 = vmul.f32 %v8022, 1.442695
        %v8046 = vpow.pop %v8045
        %v8047 = vmul.f32 %v8023, 1.442695
        %v8048 = vpow.pop %v8047
        %v8049 = vmul.f32 %v8024, 1.442695
        %v8050 = vpow.pop %v8049
        %v8051 = vmul.f32 %v8025, 1.442695
        %v8052 = vpow.pop %v8051
        %v8053 = vmul.f32 %v8026, 1.442695
        %v8054 = vpow.pop %v8053
        %v8055 = vmul.f32 %v8027, 1.442695
        %v8056 = vpow.pop %v8055
        %v8057 = vmul.f32 %v8028, 1.442695
        %v8058 = vpow.pop %v8057
        %v8059 = vsel %vm1531, %v8030, 0.0
        %8060 = vadd.xlane.f32.xlu0 %v8059
        %v8061 = vpop.xlane.xlu0 %8060
        %v8062 = vsel %vm1531, %v8032, 0.0
        %8063 = vadd.xlane.f32.xlu0 %v8062
        %v8064 = vpop.xlane.xlu0 %8063
        %v8065 = vsel %vm1531, %v8034, 0.0
        %8066 = vadd.xlane.f32.xlu0 %v8065
        %v8067 = vpop.xlane.xlu0 %8066
        %v8068 = vsel %vm1531, %v8036, 0.0
        %8069 = vadd.xlane.f32.xlu0 %v8068
        %v8070 = vpop.xlane.xlu0 %8069
        %v8071 = vsel %vm1531, %v8038, 0.0
        %8072 = vadd.xlane.f32.xlu0 %v8071
        %v8073 = vpop.xlane.xlu0 %8072
        %v8074 = vsel %vm1531, %v8040, 0.0
        %8075 = vadd.xlane.f32.xlu0 %v8074
        %v8076 = vpop.xlane.xlu0 %8075
        %v8077 = vsel %vm1531, %v8042, 0.0
        %8078 = vadd.xlane.f32.xlu0 %v8077
        %v8079 = vpop.xlane.xlu0 %8078
        %v8080 = vsel %vm1531, %v8044, 0.0
        %8081 = vadd.xlane.f32.xlu0 %v8080
        %v8082 = vpop.xlane.xlu0 %8081
        %v8083 = vsel %vm1531, %v8046, 0.0
        %8084 = vadd.xlane.f32.xlu0 %v8083
        %v8085 = vpop.xlane.xlu0 %8084
        %v8086 = vsel %vm1531, %v8048, 0.0
        %8087 = vadd.xlane.f32.xlu0 %v8086
        %v8088 = vpop.xlane.xlu0 %8087
        %v8089 = vsel %vm1531, %v8050, 0.0
        %8090 = vadd.xlane.f32.xlu0 %v8089
        %v8091 = vpop.xlane.xlu0 %8090
        %v8092 = vsel %vm1531, %v8052, 0.0
        %8093 = vadd.xlane.f32.xlu0 %v8092
        %v8094 = vpop.xlane.xlu0 %8093
        %v8095 = vsel %vm1531, %v8054, 0.0
        %8096 = vadd.xlane.f32.xlu0 %v8095
        %v8097 = vpop.xlane.xlu0 %8096
        %v8098 = vsel %vm1531, %v8056, 0.0
        %8099 = vadd.xlane.f32.xlu0 %v8098
        %v8100 = vpop.xlane.xlu0 %8099
        %v8101 = vsel %vm1574, %v8058, 0.0
        %8102 = vadd.xlane.f32.xlu0 %v8101
        %v8103 = vpop.xlane.xlu0 %8102
        %v8104 = vrcp.pop %v8061
        %v8105 = vrcp.pop %v8064
        %v8106 = vrcp.pop %v8067
        %v8107 = vrcp.pop %v8070
        %v8108 = vrcp.pop %v8073
        %v8109 = vrcp.pop %v8076
        %v8110 = vrcp.pop %v8079
        %v8111 = vrcp.pop %v8082
        %v8112 = vrcp.pop %v8085
        %v8113 = vrcp.pop %v8088
        %v8114 = vrcp.pop %v8091
        %v8115 = vrcp.pop %v8094
        %v8116 = vrcp.pop %v8097
        %v8117 = vrcp.pop %v8100
        %v8118 = vrcp.pop %v8103
        %v8119 = vmul.f32 %v8030, %v8104
        %v8120 = vmul.f32 %v8032, %v8105
        %v8121 = vmul.f32 %v8034, %v8106
        %v8122 = vmul.f32 %v8036, %v8107
        %v8123 = vmul.f32 %v8038, %v8108
        %v8124 = vmul.f32 %v8040, %v8109
        %v8125 = vmul.f32 %v8042, %v8110
        %v8126 = vmul.f32 %v8044, %v8111
        %v8127 = vmul.f32 %v8046, %v8112
        %v8128 = vmul.f32 %v8048, %v8113
        %v8129 = vmul.f32 %v8050, %v8114
        %v8130 = vmul.f32 %v8052, %v8115
        %v8131 = vmul.f32 %v8054, %v8116
        %v8132 = vmul.f32 %v8056, %v8117
        %v8133 = vmul.f32 %v8058, %v8118
        %8134 = vrot.lane.b32.xlu0 %v5968, 64
        %v8135 = vpop.permute.xlu0 %8134
        %8136 = vrot.lane.b32.xlu0 %v5973, 64
        %v8137 = vpop.permute.xlu0 %8136
        %8138 = vrot.lane.b32.xlu0 %v5978, 64
        %v8139 = vpop.permute.xlu0 %8138
        %8140 = vrot.lane.b32.xlu0 %v5983, 64
        %v8141 = vpop.permute.xlu0 %8140
        %8142 = vrot.lane.b32.xlu0 %v5988, 64
        %v8143 = vpop.permute.xlu0 %8142
        %8144 = vrot.lane.b32.xlu0 %v5993, 64
        %v8145 = vpop.permute.xlu0 %8144
        %8146 = vrot.lane.b32.xlu0 %v5998, 64
        %v8147 = vpop.permute.xlu0 %8146
        %8148 = vrot.lane.b32.xlu0 %v6003, 64
        %v8149 = vpop.permute.xlu0 %8148
        %8150 = vrot.lane.b32.xlu0 %v6008, 64
        %v8151 = vpop.permute.xlu0 %8150
        %8152 = vrot.lane.b32.xlu0 %v6013, 64
        %v8153 = vpop.permute.xlu0 %8152
        %8154 = vrot.lane.b32.xlu0 %v6018, 64
        %v8155 = vpop.permute.xlu0 %8154
        %8156 = vrot.lane.b32.xlu0 %v6023, 64
        %v8157 = vpop.permute.xlu0 %8156
        %8158 = vrot.lane.b32.xlu0 %v6028, 64
        %v8159 = vpop.permute.xlu0 %8158
        %8160 = vrot.lane.b32.xlu0 %v6033, 64
        %v8161 = vpop.permute.xlu0 %8160
        %8162 = vrot.lane.b32.xlu0 %v6038, 64
        %v8163 = vpop.permute.xlu0 %8162
        %v8179 = vsel %vm1531, %v8119, 0
        %v8182 = vsel %vm1531, %v8120, 0
        %v8185 = vsel %vm1531, %v8121, 0
        %v8188 = vsel %vm1531, %v8122, 0
        %v8191 = vsel %vm1531, %v8123, 0
        %v8194 = vsel %vm1531, %v8124, 0
        %v8197 = vsel %vm1531, %v8125, 0
        %v8200 = vsel %vm1531, %v8126, 0
        %v8203 = vsel %vm1531, %v8127, 0
        %v8206 = vsel %vm1531, %v8128, 0
        %v8209 = vsel %vm1531, %v8129, 0
        %v8212 = vsel %vm1531, %v8130, 0
        %v8215 = vsel %vm1531, %v8131, 0
        %v8218 = vsel %vm1531, %v8132, 0
        %v8221 = vsel %vm1531, %v8133, 0
        %v8223 = vsel %vm1743, %v8163, 0
        %8225 = vmatprep.subr.mxu0 0.0
        %8226 = vmatpush1.msra.mxu0 %v8135
        %8227 = vmatprep.subr.mxu0 0.0
        %8228 = vmatpush1.msra.mxu0 %v8137
        %8229 = vmatprep.subr.mxu0 0.0
        %8230 = vmatpush1.msra.mxu0 %v8139
        %8231 = vmatprep.subr.mxu0 0.0
        %8232 = vmatpush1.msra.mxu0 %v8141
        %8233 = vmatprep.subr.mxu0 0.0
        %8234 = vmatpush1.msra.mxu0 %v8143
        %8235 = vmatprep.subr.mxu0 0.0
        %8236 = vmatpush1.msra.mxu0 %v8145
        %8237 = vmatprep.subr.mxu0 0.0
        %8238 = vmatpush1.msra.mxu0 %v8147
        %8239 = vmatprep.subr.mxu0 0.0
        %8240 = vmatpush1.msra.mxu0 %v8149
        %8241 = vmatprep.subr.mxu0 0.0
        %8242 = vmatpush1.msra.mxu0 %v8151
        %8243 = vmatprep.subr.mxu0 0.0
        %8244 = vmatpush1.msra.mxu0 %v8153
        %8245 = vmatprep.subr.mxu0 0.0
        %8246 = vmatpush1.msra.mxu0 %v8155
        %8247 = vmatprep.subr.mxu0 0.0
        %8248 = vmatpush1.msra.mxu0 %v8157
        %8249 = vmatprep.subr.mxu0 0.0
        %8250 = vmatpush1.msra.mxu0 %v8159
        %8251 = vmatprep.subr.mxu0 0.0
        %8252 = vmatpush1.msra.mxu0 %v8161
        %8253 = vmatprep.subr.mxu0 0.0
        %8254 = vmatpush1.msra.mxu0 %v8223
        %8255 = vmatprep.subr.mxu0 0.0
        %8256 = vmatpush1.msra.mxu0 0.0
        %8257 = vmatprep.subr.mxu0 0.0
        %8258 = vmatpush1.msra.mxu0 0.0
        %8259 = vmatprep.subr.mxu0 0.0
        %8260 = vmatpush1.msra.mxu0 0.0
        %8261 = vmatprep.subr.mxu0 0.0
        %8262 = vmatpush1.msra.mxu0 0.0
        %8263 = vmatprep.subr.mxu0 0.0
        %8264 = vmatpush1.msra.mxu0 0.0
        %8265 = vmatprep.subr.mxu0 0.0
        %8266 = vmatpush1.msra.mxu0 0.0
        %8267 = vmatprep.subr.mxu0 0.0
        %8268 = vmatpush1.msra.mxu0 0.0
        %8269 = vmatprep.subr.mxu0 0.0
        %8270 = vmatpush1.msra.mxu0 0.0
        %8271 = vmatprep.subr.mxu0 0.0
        %8272 = vmatpush1.msra.mxu0 0.0
        %8273 = vmatprep.subr.mxu0 0.0
        %8274 = vmatpush1.msra.mxu0 0.0
        %8275 = vmatprep.subr.mxu0 0.0
        %8276 = vmatpush1.msra.mxu0 0.0
        %8277 = vmatprep.subr.mxu0 0.0
        %8278 = vmatpush1.msra.mxu0 0.0
        %8279 = vmatprep.subr.mxu0 0.0
        %8280 = vmatpush1.msra.mxu0 0.0
        %8281 = vmatprep.subr.mxu0 0.0
        %8282 = vmatpush1.msra.mxu0 0.0
        %8283 = vmatprep.subr.mxu0 0.0
        %8284 = vmatpush1.msra.mxu0 0.0
        %8285 = vmatprep.subr.mxu0 0.0
        %8286 = vmatpush1.msra.mxu0 0.0
        %8287 = vmatprep.subr.mxu0 0.0
        %8288 = vmatpush1.msra.mxu0 0.0
        %8289 = vmatprep.mubr.f32.mxu0 0.0
        %8290 = vmatmul.mubr.f32.gmra.mrb[0].mxu0 %v8179
        %v8291 = vpop.f32.mrb[0].mxu0
        %v8292 = vadd.f32 0.0, %v8291
        %v8293 = vpop.f32.mrb[0].mxu0
        %8294 = vmatprep.mubr.f32.mxu0 0.0
        %8295 = vmatmul.mubr.f32.gmra.mrb[0].mxu0 %v8182
        %v8296 = vpop.f32.mrb[0].mxu0
        %v8297 = vadd.f32 0.0, %v8296
        %v8298 = vpop.f32.mrb[0].mxu0
        %8299 = vmatprep.mubr.f32.mxu0 0.0
        %8300 = vmatmul.mubr.f32.gmra.mrb[0].mxu0 %v8185
        %v8301 = vpop.f32.mrb[0].mxu0
        %v8302 = vadd.f32 0.0, %v8301
        %v8303 = vpop.f32.mrb[0].mxu0
        %8304 = vmatprep.mubr.f32.mxu0 0.0
        %8305 = vmatmul.mubr.f32.gmra.mrb[0].mxu0 %v8188
        %v8306 = vpop.f32.mrb[0].mxu0
        %v8307 = vadd.f32 0.0, %v8306
        %v8308 = vpop.f32.mrb[0].mxu0
        %8309 = vmatprep.mubr.f32.mxu0 0.0
        %8310 = vmatmul.mubr.f32.gmra.mrb[0].mxu0 %v8191
        %v8311 = vpop.f32.mrb[0].mxu0
        %v8312 = vadd.f32 0.0, %v8311
        %v8313 = vpop.f32.mrb[0].mxu0
        %8314 = vmatprep.mubr.f32.mxu0 0.0
        %8315 = vmatmul.mubr.f32.gmra.mrb[0].mxu0 %v8194
        %v8316 = vpop.f32.mrb[0].mxu0
        %v8317 = vadd.f32 0.0, %v8316
        %v8318 = vpop.f32.mrb[0].mxu0
        %8319 = vmatprep.mubr.f32.mxu0 0.0
        %8320 = vmatmul.mubr.f32.gmra.mrb[0].mxu0 %v8197
        %v8321 = vpop.f32.mrb[0].mxu0
        %v8322 = vadd.f32 0.0, %v8321
        %v8323 = vpop.f32.mrb[0].mxu0
        %8324 = vmatprep.mubr.f32.mxu0 0.0
        %8325 = vmatmul.mubr.f32.gmra.mrb[0].mxu0 %v8200
        %v8326 = vpop.f32.mrb[0].mxu0
        %v8327 = vadd.f32 0.0, %v8326
        %v8328 = vpop.f32.mrb[0].mxu0
        %8329 = vmatprep.mubr.f32.mxu0 0.0
        %8330 = vmatmul.mubr.f32.gmra.mrb[0].mxu0 %v8203
        %v8331 = vpop.f32.mrb[0].mxu0
        %v8332 = vadd.f32 0.0, %v8331
        %v8333 = vpop.f32.mrb[0].mxu0
        %8334 = vmatprep.mubr.f32.mxu0 0.0
        %8335 = vmatmul.mubr.f32.gmra.mrb[0].mxu0 %v8206
        %v8336 = vpop.f32.mrb[0].mxu0
        %v8337 = vadd.f32 0.0, %v8336
        %v8338 = vpop.f32.mrb[0].mxu0
        %8339 = vmatprep.mubr.f32.mxu0 0.0
        %8340 = vmatmul.mubr.f32.gmra.mrb[0].mxu0 %v8209
        %v8341 = vpop.f32.mrb[0].mxu0
        %v8342 = vadd.f32 0.0, %v8341
        %v8343 = vpop.f32.mrb[0].mxu0
        %8344 = vmatprep.mubr.f32.mxu0 0.0
        %8345 = vmatmul.mubr.f32.gmra.mrb[0].mxu0 %v8212
        %v8346 = vpop.f32.mrb[0].mxu0
        %v8347 = vadd.f32 0.0, %v8346
        %v8348 = vpop.f32.mrb[0].mxu0
        %8349 = vmatprep.mubr.f32.mxu0 0.0
        %8350 = vmatmul.mubr.f32.gmra.mrb[0].mxu0 %v8215
        %v8351 = vpop.f32.mrb[0].mxu0
        %v8352 = vadd.f32 0.0, %v8351
        %v8353 = vpop.f32.mrb[0].mxu0
        %8354 = vmatprep.mubr.f32.mxu0 0.0
        %8355 = vmatmul.mubr.f32.gmra.mrb[0].mxu0 %v8218
        %v8356 = vpop.f32.mrb[0].mxu0
        %v8357 = vadd.f32 0.0, %v8356
        %v8358 = vpop.f32.mrb[0].mxu0
        %8359 = vmatprep.mubr.f32.mxu0 0.0
        %8360 = vmatmul.mubr.f32.gmra.mrb[0].mxu0 %v8221
        %v8361 = vpop.f32.mrb[0].mxu0
        %v8362 = vadd.f32 0.0, %v8361
        %v8363 = vpop.f32.mrb[0].mxu0
        %8364 = vdwg.mxu0
        %v8366 = vsel %vm1285, %v8292, 0
        %v8369 = vsel %vm1285, %v8297, 0
        %v8372 = vsel %vm1285, %v8302, 0
        %v8375 = vsel %vm1285, %v8307, 0
        %v8378 = vsel %vm1285, %v8312, 0
        %v8381 = vsel %vm1285, %v8317, 0
        %v8384 = vsel %vm1285, %v8322, 0
        %v8387 = vsel %vm1285, %v8327, 0
        %v8390 = vsel %vm1285, %v8332, 0
        %v8393 = vsel %vm1285, %v8337, 0
        %v8396 = vsel %vm1285, %v8342, 0
        %v8399 = vsel %vm1285, %v8347, 0
        %v8402 = vsel %vm1285, %v8352, 0
        %v8405 = vsel %vm1285, %v8357, 0
        %v8408 = vsel %vm1285, %v8362, 0
        %8410 = vmatprep.subr.mxu0 0.0
        %8411 = vmatpush1.msra.mxu0 %v5589
        %8412 = vmatprep.subr.mxu0 0.0
        %8413 = vmatpush1.msra.mxu0 %v5590
        %8414 = vmatprep.subr.mxu0 0.0
        %8415 = vmatpush1.msra.mxu0 %v5591
        %8416 = vmatprep.subr.mxu0 0.0
        %8417 = vmatpush1.msra.mxu0 %v5592
        %8418 = vmatprep.subr.mxu0 0.0
        %8419 = vmatpush1.msra.mxu0 0.0
        %8420 = vmatprep.subr.mxu0 0.0
        %8421 = vmatpush1.msra.mxu0 0.0
        %8422 = vmatprep.subr.mxu0 0.0
        %8423 = vmatpush1.msra.mxu0 0.0
        %8424 = vmatprep.subr.mxu0 0.0
        %8425 = vmatpush1.msra.mxu0 0.0
        %8426 = vmatprep.subr.mxu0 0.0
        %8427 = vmatpush1.msra.mxu0 0.0
        %8428 = vmatprep.subr.mxu0 0.0
        %8429 = vmatpush1.msra.mxu0 0.0
        %8430 = vmatprep.subr.mxu0 0.0
        %8431 = vmatpush1.msra.mxu0 0.0
        %8432 = vmatprep.subr.mxu0 0.0
        %8433 = vmatpush1.msra.mxu0 0.0
        %8434 = vmatprep.subr.mxu0 0.0
        %8435 = vmatpush1.msra.mxu0 0.0
        %8436 = vmatprep.subr.mxu0 0.0
        %8437 = vmatpush1.msra.mxu0 0.0
        %8438 = vmatprep.subr.mxu0 0.0
        %8439 = vmatpush1.msra.mxu0 0.0
        %8440 = vmatprep.subr.mxu0 0.0
        %8441 = vmatpush1.msra.mxu0 0.0
        %8442 = vmatprep.subr.mxu0 0.0
        %8443 = vmatpush1.msra.mxu0 0.0
        %8444 = vmatprep.subr.mxu0 0.0
        %8445 = vmatpush1.msra.mxu0 0.0
        %8446 = vmatprep.subr.mxu0 0.0
        %8447 = vmatpush1.msra.mxu0 0.0
        %8448 = vmatprep.subr.mxu0 0.0
        %8449 = vmatpush1.msra.mxu0 0.0
        %8450 = vmatprep.subr.mxu0 0.0
        %8451 = vmatpush1.msra.mxu0 0.0
        %8452 = vmatprep.subr.mxu0 0.0
        %8453 = vmatpush1.msra.mxu0 0.0
        %8454 = vmatprep.subr.mxu0 0.0
        %8455 = vmatpush1.msra.mxu0 0.0
        %8456 = vmatprep.subr.mxu0 0.0
        %8457 = vmatpush1.msra.mxu0 0.0
        %8458 = vmatprep.subr.mxu0 0.0
        %8459 = vmatpush1.msra.mxu0 0.0
        %8460 = vmatprep.subr.mxu0 0.0
        %8461 = vmatpush1.msra.mxu0 0.0
        %8462 = vmatprep.subr.mxu0 0.0
        %8463 = vmatpush1.msra.mxu0 0.0
        %8464 = vmatprep.subr.mxu0 0.0
        %8465 = vmatpush1.msra.mxu0 0.0
        %8466 = vmatprep.subr.mxu0 0.0
        %8467 = vmatpush1.msra.mxu0 0.0
        %8468 = vmatprep.subr.mxu0 0.0
        %8469 = vmatpush1.msra.mxu0 0.0
        %8470 = vmatprep.subr.mxu0 0.0
        %8471 = vmatpush1.msra.mxu0 0.0
        %8472 = vmatprep.subr.mxu0 0.0
        %8473 = vmatpush1.msra.mxu0 0.0
        %8474 = vmatprep.mubr.f32.mxu0 0.0
        %8475 = vmatmul.mubr.f32.gmra.mrb[0].mxu0 %v8366
        %v8476 = vpop.f32.mrb[0].mxu0
        %v8477 = vadd.f32 0.0, %v8476
        %v8478 = vpop.f32.mrb[0].mxu0
        %8479 = vmatprep.mubr.f32.mxu0 0.0
        %8480 = vmatmul.mubr.f32.gmra.mrb[0].mxu0 %v8369
        %v8481 = vpop.f32.mrb[0].mxu0
        %v8482 = vadd.f32 0.0, %v8481
        %v8483 = vpop.f32.mrb[0].mxu0
        %8484 = vmatprep.mubr.f32.mxu0 0.0
        %8485 = vmatmul.mubr.f32.gmra.mrb[0].mxu0 %v8372
        %v8486 = vpop.f32.mrb[0].mxu0
        %v8487 = vadd.f32 0.0, %v8486
        %v8488 = vpop.f32.mrb[0].mxu0
        %8489 = vmatprep.mubr.f32.mxu0 0.0
        %8490 = vmatmul.mubr.f32.gmra.mrb[0].mxu0 %v8375
        %v8491 = vpop.f32.mrb[0].mxu0
        %v8492 = vadd.f32 0.0, %v8491
        %v8493 = vpop.f32.mrb[0].mxu0
        %8494 = vmatprep.mubr.f32.mxu0 0.0
        %8495 = vmatmul.mubr.f32.gmra.mrb[0].mxu0 %v8378
        %v8496 = vpop.f32.mrb[0].mxu0
        %v8497 = vadd.f32 0.0, %v8496
        %v8498 = vpop.f32.mrb[0].mxu0
        %8499 = vmatprep.mubr.f32.mxu0 0.0
        %8500 = vmatmul.mubr.f32.gmra.mrb[0].mxu0 %v8381
        %v8501 = vpop.f32.mrb[0].mxu0
        %v8502 = vadd.f32 0.0, %v8501
        %v8503 = vpop.f32.mrb[0].mxu0
        %8504 = vmatprep.mubr.f32.mxu0 0.0
        %8505 = vmatmul.mubr.f32.gmra.mrb[0].mxu0 %v8384
        %v8506 = vpop.f32.mrb[0].mxu0
        %v8507 = vadd.f32 0.0, %v8506
        %v8508 = vpop.f32.mrb[0].mxu0
        %8509 = vmatprep.mubr.f32.mxu0 0.0
        %8510 = vmatmul.mubr.f32.gmra.mrb[0].mxu0 %v8387
        %v8511 = vpop.f32.mrb[0].mxu0
        %v8512 = vadd.f32 0.0, %v8511
        %v8513 = vpop.f32.mrb[0].mxu0
        %8514 = vmatprep.mubr.f32.mxu0 0.0
        %8515 = vmatmul.mubr.f32.gmra.mrb[0].mxu0 %v8390
        %v8516 = vpop.f32.mrb[0].mxu0
        %v8517 = vadd.f32 0.0, %v8516
        %v8518 = vpop.f32.mrb[0].mxu0
        %8519 = vmatprep.mubr.f32.mxu0 0.0
        %8520 = vmatmul.mubr.f32.gmra.mrb[0].mxu0 %v8393
        %v8521 = vpop.f32.mrb[0].mxu0
        %v8522 = vadd.f32 0.0, %v8521
        %v8523 = vpop.f32.mrb[0].mxu0
        %8524 = vmatprep.mubr.f32.mxu0 0.0
        %8525 = vmatmul.mubr.f32.gmra.mrb[0].mxu0 %v8396
        %v8526 = vpop.f32.mrb[0].mxu0
        %v8527 = vadd.f32 0.0, %v8526
        %v8528 = vpop.f32.mrb[0].mxu0
        %8529 = vmatprep.mubr.f32.mxu0 0.0
        %8530 = vmatmul.mubr.f32.gmra.mrb[0].mxu0 %v8399
        %v8531 = vpop.f32.mrb[0].mxu0
        %v8532 = vadd.f32 0.0, %v8531
        %v8533 = vpop.f32.mrb[0].mxu0
        %8534 = vmatprep.mubr.f32.mxu0 0.0
        %8535 = vmatmul.mubr.f32.gmra.mrb[0].mxu0 %v8402
        %v8536 = vpop.f32.mrb[0].mxu0
        %v8537 = vadd.f32 0.0, %v8536
        %v8538 = vpop.f32.mrb[0].mxu0
        %8539 = vmatprep.mubr.f32.mxu0 0.0
        %8540 = vmatmul.mubr.f32.gmra.mrb[0].mxu0 %v8405
        %v8541 = vpop.f32.mrb[0].mxu0
        %v8542 = vadd.f32 0.0, %v8541
        %v8543 = vpop.f32.mrb[0].mxu0
        %8544 = vmatprep.mubr.f32.mxu0 0.0
        %8545 = vmatmul.mubr.f32.gmra.mrb[0].mxu0 %v8408
        %v8546 = vpop.f32.mrb[0].mxu0
        %v8547 = vadd.f32 0.0, %v8546
        %v8548 = vpop.f32.mrb[0].mxu0
        %8549 = vdwg.mxu0
        %v8550 = vadd.f32 %v7621, %v8477
        %v8551 = vadd.f32 %v7626, %v8482
        %v8552 = vadd.f32 %v7631, %v8487
        %v8553 = vadd.f32 %v7636, %v8492
        %v8554 = vadd.f32 %v7641, %v8497
        %v8555 = vadd.f32 %v7646, %v8502
        %v8556 = vadd.f32 %v7651, %v8507
        %v8557 = vadd.f32 %v7656, %v8512
        %v8558 = vadd.f32 %v7661, %v8517
        %v8559 = vadd.f32 %v7666, %v8522
        %v8560 = vadd.f32 %v7671, %v8527
        %v8561 = vadd.f32 %v7676, %v8532
        %v8562 = vadd.f32 %v7681, %v8537
        %v8563 = vadd.f32 %v7686, %v8542
        %v8564 = vadd.f32 %v7691, %v8547
        %8565 = vrot.lane.b32.xlu0 %v5672, 32
        %v8566 = vpop.permute.xlu0 %8565
        %8567 = vrot.lane.b32.xlu0 %v5677, 32
        %v8568 = vpop.permute.xlu0 %8567
        %8569 = vrot.lane.b32.xlu0 %v5682, 32
        %v8570 = vpop.permute.xlu0 %8569
        %8571 = vrot.lane.b32.xlu0 %v5687, 32
        %v8572 = vpop.permute.xlu0 %8571
        %8573 = vrot.lane.b32.xlu0 %v5692, 32
        %v8574 = vpop.permute.xlu0 %8573
        %8575 = vrot.lane.b32.xlu0 %v5697, 32
        %v8576 = vpop.permute.xlu0 %8575
        %8577 = vrot.lane.b32.xlu0 %v5702, 32
        %v8578 = vpop.permute.xlu0 %8577
        %8579 = vrot.lane.b32.xlu0 %v5707, 32
        %v8580 = vpop.permute.xlu0 %8579
        %8581 = vrot.lane.b32.xlu0 %v5712, 32
        %v8582 = vpop.permute.xlu0 %8581
        %8583 = vrot.lane.b32.xlu0 %v5717, 32
        %v8584 = vpop.permute.xlu0 %8583
        %8585 = vrot.lane.b32.xlu0 %v5722, 32
        %v8586 = vpop.permute.xlu0 %8585
        %8587 = vrot.lane.b32.xlu0 %v5727, 32
        %v8588 = vpop.permute.xlu0 %8587
        %8589 = vrot.lane.b32.xlu0 %v5732, 32
        %v8590 = vpop.permute.xlu0 %8589
        %8591 = vrot.lane.b32.xlu0 %v5737, 32
        %v8592 = vpop.permute.xlu0 %8591
        %8593 = vrot.lane.b32.xlu0 %v5742, 32
        %v8594 = vpop.permute.xlu0 %8593
        %8595 = vrot.lane.b32.xlu0 %v5820, 32
        %v8596 = vpop.permute.xlu0 %8595
        %8597 = vrot.lane.b32.xlu0 %v5825, 32
        %v8598 = vpop.permute.xlu0 %8597
        %8599 = vrot.lane.b32.xlu0 %v5830, 32
        %v8600 = vpop.permute.xlu0 %8599
        %8601 = vrot.lane.b32.xlu0 %v5835, 32
        %v8602 = vpop.permute.xlu0 %8601
        %8603 = vrot.lane.b32.xlu0 %v5840, 32
        %v8604 = vpop.permute.xlu0 %8603
        %8605 = vrot.lane.b32.xlu0 %v5845, 32
        %v8606 = vpop.permute.xlu0 %8605
        %8607 = vrot.lane.b32.xlu0 %v5850, 32
        %v8608 = vpop.permute.xlu0 %8607
        %8609 = vrot.lane.b32.xlu0 %v5855, 32
        %v8610 = vpop.permute.xlu0 %8609
        %8611 = vrot.lane.b32.xlu0 %v5860, 32
        %v8612 = vpop.permute.xlu0 %8611
        %8613 = vrot.lane.b32.xlu0 %v5865, 32
        %v8614 = vpop.permute.xlu0 %8613
        %8615 = vrot.lane.b32.xlu0 %v5870, 32
        %v8616 = vpop.permute.xlu0 %8615
        %8617 = vrot.lane.b32.xlu0 %v5875, 32
        %v8618 = vpop.permute.xlu0 %8617
        %8619 = vrot.lane.b32.xlu0 %v5880, 32
        %v8620 = vpop.permute.xlu0 %8619
        %8621 = vrot.lane.b32.xlu0 %v5885, 32
        %v8622 = vpop.permute.xlu0 %8621
        %8623 = vrot.lane.b32.xlu0 %v5890, 32
        %v8624 = vpop.permute.xlu0 %8623
        %v8625 = vsel %vm1285, %v8566, 0
        %v8627 = vsel %vm1285, %v8568, 0
        %v8629 = vsel %vm1285, %v8570, 0
        %v8631 = vsel %vm1285, %v8572, 0
        %v8633 = vsel %vm1285, %v8574, 0
        %v8635 = vsel %vm1285, %v8576, 0
        %v8637 = vsel %vm1285, %v8578, 0
        %v8639 = vsel %vm1285, %v8580, 0
        %v8641 = vsel %vm1285, %v8582, 0
        %v8643 = vsel %vm1285, %v8584, 0
        %v8645 = vsel %vm1285, %v8586, 0
        %v8647 = vsel %vm1285, %v8588, 0
        %v8649 = vsel %vm1285, %v8590, 0
        %v8651 = vsel %vm1285, %v8592, 0
        %v8653 = vsel %vm1285, %v8594, 0
        %v8655 = vsel %vm1285, %v8596, 0
        %v8657 = vsel %vm1285, %v8598, 0
        %v8659 = vsel %vm1285, %v8600, 0
        %v8661 = vsel %vm1285, %v8602, 0
        %v8663 = vsel %vm1285, %v8604, 0
        %v8665 = vsel %vm1285, %v8606, 0
        %v8667 = vsel %vm1285, %v8608, 0
        %v8669 = vsel %vm1285, %v8610, 0
        %v8671 = vsel %vm1285, %v8612, 0
        %v8673 = vsel %vm1285, %v8614, 0
        %v8675 = vsel %vm1285, %v8616, 0
        %v8677 = vsel %vm1285, %v8618, 0
        %v8679 = vsel %vm1285, %v8620, 0
        %v8681 = vsel %vm1285, %v8622, 0
        %v8683 = vsel %vm1285, %v8624, 0
        %8685 = vmatprep.subr.mxu0 0.0
        %8686 = vmatpush1.xpose.msra.mxu0 %v8655
        %8687 = vmatprep.subr.mxu0 0.0
        %8688 = vmatpush1.xpose.msra.mxu0 %v8657
        %8689 = vmatprep.subr.mxu0 0.0
        %8690 = vmatpush1.xpose.msra.mxu0 %v8659
        %8691 = vmatprep.subr.mxu0 0.0
        %8692 = vmatpush1.xpose.msra.mxu0 %v8661
        %8693 = vmatprep.subr.mxu0 0.0
        %8694 = vmatpush1.xpose.msra.mxu0 %v8663
        %8695 = vmatprep.subr.mxu0 0.0
        %8696 = vmatpush1.xpose.msra.mxu0 %v8665
        %8697 = vmatprep.subr.mxu0 0.0
        %8698 = vmatpush1.xpose.msra.mxu0 %v8667
        %8699 = vmatprep.subr.mxu0 0.0
        %8700 = vmatpush1.xpose.msra.mxu0 %v8669
        %8701 = vmatprep.subr.mxu0 0.0
        %8702 = vmatpush1.xpose.msra.mxu0 %v8671
        %8703 = vmatprep.subr.mxu0 0.0
        %8704 = vmatpush1.xpose.msra.mxu0 %v8673
        %8705 = vmatprep.subr.mxu0 0.0
        %8706 = vmatpush1.xpose.msra.mxu0 %v8675
        %8707 = vmatprep.subr.mxu0 0.0
        %8708 = vmatpush1.xpose.msra.mxu0 %v8677
        %8709 = vmatprep.subr.mxu0 0.0
        %8710 = vmatpush1.xpose.msra.mxu0 %v8679
        %8711 = vmatprep.subr.mxu0 0.0
        %8712 = vmatpush1.xpose.msra.mxu0 %v8681
        %8713 = vmatprep.subr.mxu0 0.0
        %8714 = vmatpush1.xpose.msra.mxu0 %v8683
        %8715 = vmatprep.subr.mxu0 0.0
        %8716 = vmatpush1.xpose.msra.mxu0 0.0
        %8717 = vmatprep.subr.mxu0 0.0
        %8718 = vmatpush1.xpose.msra.mxu0 0.0
        %8719 = vmatprep.subr.mxu0 0.0
        %8720 = vmatpush1.xpose.msra.mxu0 0.0
        %8721 = vmatprep.subr.mxu0 0.0
        %8722 = vmatpush1.xpose.msra.mxu0 0.0
        %8723 = vmatprep.subr.mxu0 0.0
        %8724 = vmatpush1.xpose.msra.mxu0 0.0
        %8725 = vmatprep.subr.mxu0 0.0
        %8726 = vmatpush1.xpose.msra.mxu0 0.0
        %8727 = vmatprep.subr.mxu0 0.0
        %8728 = vmatpush1.xpose.msra.mxu0 0.0
        %8729 = vmatprep.subr.mxu0 0.0
        %8730 = vmatpush1.xpose.msra.mxu0 0.0
        %8731 = vmatprep.subr.mxu0 0.0
        %8732 = vmatpush1.xpose.msra.mxu0 0.0
        %8733 = vmatprep.subr.mxu0 0.0
        %8734 = vmatpush1.xpose.msra.mxu0 0.0
        %8735 = vmatprep.subr.mxu0 0.0
        %8736 = vmatpush1.xpose.msra.mxu0 0.0
        %8737 = vmatprep.subr.mxu0 0.0
        %8738 = vmatpush1.xpose.msra.mxu0 0.0
        %8739 = vmatprep.subr.mxu0 0.0
        %8740 = vmatpush1.xpose.msra.mxu0 0.0
        %8741 = vmatprep.subr.mxu0 0.0
        %8742 = vmatpush1.xpose.msra.mxu0 0.0
        %8743 = vmatprep.subr.mxu0 0.0
        %8744 = vmatpush1.xpose.msra.mxu0 0.0
        %8745 = vmatprep.subr.mxu0 0.0
        %8746 = vmatpush1.xpose.msra.mxu0 0.0
        %8747 = vmatprep.subr.mxu0 0.0
        %8748 = vmatpush1.xpose.msra.mxu0 0.0
        %8749 = vmatprep.mubr.f32.mxu0 0.0
        %8750 = vmatmul.mubr.f32.gmra.mrb[0].mxu0 %v8625
        %v8751 = vpop.f32.mrb[0].mxu0
        %v8752 = vadd.f32 0.0, %v8751
        %v8753 = vpop.f32.mrb[0].mxu0
        %8754 = vmatprep.mubr.f32.mxu0 0.0
        %8755 = vmatmul.mubr.f32.gmra.mrb[0].mxu0 %v8627
        %v8756 = vpop.f32.mrb[0].mxu0
        %v8757 = vadd.f32 0.0, %v8756
        %v8758 = vpop.f32.mrb[0].mxu0
        %8759 = vmatprep.mubr.f32.mxu0 0.0
        %8760 = vmatmul.mubr.f32.gmra.mrb[0].mxu0 %v8629
        %v8761 = vpop.f32.mrb[0].mxu0
        %v8762 = vadd.f32 0.0, %v8761
        %v8763 = vpop.f32.mrb[0].mxu0
        %8764 = vmatprep.mubr.f32.mxu0 0.0
        %8765 = vmatmul.mubr.f32.gmra.mrb[0].mxu0 %v8631
        %v8766 = vpop.f32.mrb[0].mxu0
        %v8767 = vadd.f32 0.0, %v8766
        %v8768 = vpop.f32.mrb[0].mxu0
        %8769 = vmatprep.mubr.f32.mxu0 0.0
        %8770 = vmatmul.mubr.f32.gmra.mrb[0].mxu0 %v8633
        %v8771 = vpop.f32.mrb[0].mxu0
        %v8772 = vadd.f32 0.0, %v8771
        %v8773 = vpop.f32.mrb[0].mxu0
        %8774 = vmatprep.mubr.f32.mxu0 0.0
        %8775 = vmatmul.mubr.f32.gmra.mrb[0].mxu0 %v8635
        %v8776 = vpop.f32.mrb[0].mxu0
        %v8777 = vadd.f32 0.0, %v8776
        %v8778 = vpop.f32.mrb[0].mxu0
        %8779 = vmatprep.mubr.f32.mxu0 0.0
        %8780 = vmatmul.mubr.f32.gmra.mrb[0].mxu0 %v8637
        %v8781 = vpop.f32.mrb[0].mxu0
        %v8782 = vadd.f32 0.0, %v8781
        %v8783 = vpop.f32.mrb[0].mxu0
        %8784 = vmatprep.mubr.f32.mxu0 0.0
        %8785 = vmatmul.mubr.f32.gmra.mrb[0].mxu0 %v8639
        %v8786 = vpop.f32.mrb[0].mxu0
        %v8787 = vadd.f32 0.0, %v8786
        %v8788 = vpop.f32.mrb[0].mxu0
        %8789 = vmatprep.mubr.f32.mxu0 0.0
        %8790 = vmatmul.mubr.f32.gmra.mrb[0].mxu0 %v8641
        %v8791 = vpop.f32.mrb[0].mxu0
        %v8792 = vadd.f32 0.0, %v8791
        %v8793 = vpop.f32.mrb[0].mxu0
        %8794 = vmatprep.mubr.f32.mxu0 0.0
        %8795 = vmatmul.mubr.f32.gmra.mrb[0].mxu0 %v8643
        %v8796 = vpop.f32.mrb[0].mxu0
        %v8797 = vadd.f32 0.0, %v8796
        %v8798 = vpop.f32.mrb[0].mxu0
        %8799 = vmatprep.mubr.f32.mxu0 0.0
        %8800 = vmatmul.mubr.f32.gmra.mrb[0].mxu0 %v8645
        %v8801 = vpop.f32.mrb[0].mxu0
        %v8802 = vadd.f32 0.0, %v8801
        %v8803 = vpop.f32.mrb[0].mxu0
        %8804 = vmatprep.mubr.f32.mxu0 0.0
        %8805 = vmatmul.mubr.f32.gmra.mrb[0].mxu0 %v8647
        %v8806 = vpop.f32.mrb[0].mxu0
        %v8807 = vadd.f32 0.0, %v8806
        %v8808 = vpop.f32.mrb[0].mxu0
        %8809 = vmatprep.mubr.f32.mxu0 0.0
        %8810 = vmatmul.mubr.f32.gmra.mrb[0].mxu0 %v8649
        %v8811 = vpop.f32.mrb[0].mxu0
        %v8812 = vadd.f32 0.0, %v8811
        %v8813 = vpop.f32.mrb[0].mxu0
        %8814 = vmatprep.mubr.f32.mxu0 0.0
        %8815 = vmatmul.mubr.f32.gmra.mrb[0].mxu0 %v8651
        %v8816 = vpop.f32.mrb[0].mxu0
        %v8817 = vadd.f32 0.0, %v8816
        %v8818 = vpop.f32.mrb[0].mxu0
        %8819 = vmatprep.mubr.f32.mxu0 0.0
        %8820 = vmatmul.mubr.f32.gmra.mrb[0].mxu0 %v8653
        %v8821 = vpop.f32.mrb[0].mxu0
        %v8822 = vadd.f32 0.0, %v8821
        %v8823 = vpop.f32.mrb[0].mxu0
        %8824 = vdwg.mxu0
        %v8825 = vmul.f32 %v8752, 0.17677669
        %v8826 = vmul.f32 %v8757, 0.17677669
        %v8827 = vmul.f32 %v8762, 0.17677669
        %v8828 = vmul.f32 %v8767, 0.17677669
        %v8829 = vmul.f32 %v8772, 0.17677669
        %v8830 = vmul.f32 %v8777, 0.17677669
        %v8831 = vmul.f32 %v8782, 0.17677669
        %v8832 = vmul.f32 %v8787, 0.17677669
        %v8833 = vmul.f32 %v8792, 0.17677669
        %v8834 = vmul.f32 %v8797, 0.17677669
        %v8835 = vmul.f32 %v8802, 0.17677669
        %v8836 = vmul.f32 %v8807, 0.17677669
        %v8837 = vmul.f32 %v8812, 0.17677669
        %v8838 = vmul.f32 %v8817, 0.17677669
        %v8839 = vmul.f32 %v8822, 0.17677669
        %v8840 = vsel %vm1531, %v8825, -inf
        %8841 = vmax.xlane.f32.xlu0 %v8840
        %v8842 = vpop.xlane.xlu0 %8841
        %v8843 = vsel %vm1531, %v8826, -inf
        %8844 = vmax.xlane.f32.xlu0 %v8843
        %v8845 = vpop.xlane.xlu0 %8844
        %v8846 = vsel %vm1531, %v8827, -inf
        %8847 = vmax.xlane.f32.xlu0 %v8846
        %v8848 = vpop.xlane.xlu0 %8847
        %v8849 = vsel %vm1531, %v8828, -inf
        %8850 = vmax.xlane.f32.xlu0 %v8849
        %v8851 = vpop.xlane.xlu0 %8850
        %v8852 = vsel %vm1531, %v8829, -inf
        %8853 = vmax.xlane.f32.xlu0 %v8852
        %v8854 = vpop.xlane.xlu0 %8853
        %v8855 = vsel %vm1531, %v8830, -inf
        %8856 = vmax.xlane.f32.xlu0 %v8855
        %v8857 = vpop.xlane.xlu0 %8856
        %v8858 = vsel %vm1531, %v8831, -inf
        %8859 = vmax.xlane.f32.xlu0 %v8858
        %v8860 = vpop.xlane.xlu0 %8859
        %v8861 = vsel %vm1531, %v8832, -inf
        %8862 = vmax.xlane.f32.xlu0 %v8861
        %v8863 = vpop.xlane.xlu0 %8862
        %v8864 = vsel %vm1531, %v8833, -inf
        %8865 = vmax.xlane.f32.xlu0 %v8864
        %v8866 = vpop.xlane.xlu0 %8865
        %v8867 = vsel %vm1531, %v8834, -inf
        %8868 = vmax.xlane.f32.xlu0 %v8867
        %v8869 = vpop.xlane.xlu0 %8868
        %v8870 = vsel %vm1531, %v8835, -inf
        %8871 = vmax.xlane.f32.xlu0 %v8870
        %v8872 = vpop.xlane.xlu0 %8871
        %v8873 = vsel %vm1531, %v8836, -inf
        %8874 = vmax.xlane.f32.xlu0 %v8873
        %v8875 = vpop.xlane.xlu0 %8874
        %v8876 = vsel %vm1531, %v8837, -inf
        %8877 = vmax.xlane.f32.xlu0 %v8876
        %v8878 = vpop.xlane.xlu0 %8877
        %v8879 = vsel %vm1531, %v8838, -inf
        %8880 = vmax.xlane.f32.xlu0 %v8879
        %v8881 = vpop.xlane.xlu0 %8880
        %v8882 = vsel %vm1574, %v8839, -inf
        %8883 = vmax.xlane.f32.xlu0 %v8882
        %v8884 = vpop.xlane.xlu0 %8883
        %v8885 = vsub.f32 %v8825, %v8842
        %v8886 = vsub.f32 %v8826, %v8845
        %v8887 = vsub.f32 %v8827, %v8848
        %v8888 = vsub.f32 %v8828, %v8851
        %v8889 = vsub.f32 %v8829, %v8854
        %v8890 = vsub.f32 %v8830, %v8857
        %v8891 = vsub.f32 %v8831, %v8860
        %v8892 = vsub.f32 %v8832, %v8863
        %v8893 = vsub.f32 %v8833, %v8866
        %v8894 = vsub.f32 %v8834, %v8869
        %v8895 = vsub.f32 %v8835, %v8872
        %v8896 = vsub.f32 %v8836, %v8875
        %v8897 = vsub.f32 %v8837, %v8878
        %v8898 = vsub.f32 %v8838, %v8881
        %v8899 = vsub.f32 %v8839, %v8884
        %v8900 = vmul.f32 %v8885, 1.442695
        %v8901 = vpow.pop %v8900
        %v8902 = vmul.f32 %v8886, 1.442695
        %v8903 = vpow.pop %v8902
        %v8904 = vmul.f32 %v8887, 1.442695
        %v8905 = vpow.pop %v8904
        %v8906 = vmul.f32 %v8888, 1.442695
        %v8907 = vpow.pop %v8906
        %v8908 = vmul.f32 %v8889, 1.442695
        %v8909 = vpow.pop %v8908
        %v8910 = vmul.f32 %v8890, 1.442695
        %v8911 = vpow.pop %v8910
        %v8912 = vmul.f32 %v8891, 1.442695
        %v8913 = vpow.pop %v8912
        %v8914 = vmul.f32 %v8892, 1.442695
        %v8915 = vpow.pop %v8914
        %v8916 = vmul.f32 %v8893, 1.442695
        %v8917 = vpow.pop %v8916
        %v8918 = vmul.f32 %v8894, 1.442695
        %v8919 = vpow.pop %v8918
        %v8920 = vmul.f32 %v8895, 1.442695
        %v8921 = vpow.pop %v8920
        %v8922 = vmul.f32 %v8896, 1.442695
        %v8923 = vpow.pop %v8922
        %v8924 = vmul.f32 %v8897, 1.442695
        %v8925 = vpow.pop %v8924
        %v8926 = vmul.f32 %v8898, 1.442695
        %v8927 = vpow.pop %v8926
        %v8928 = vmul.f32 %v8899, 1.442695
        %v8929 = vpow.pop %v8928
        %v8930 = vsel %vm1531, %v8901, 0.0
        %8931 = vadd.xlane.f32.xlu0 %v8930
        %v8932 = vpop.xlane.xlu0 %8931
        %v8933 = vsel %vm1531, %v8903, 0.0
        %8934 = vadd.xlane.f32.xlu0 %v8933
        %v8935 = vpop.xlane.xlu0 %8934
        %v8936 = vsel %vm1531, %v8905, 0.0
        %8937 = vadd.xlane.f32.xlu0 %v8936
        %v8938 = vpop.xlane.xlu0 %8937
        %v8939 = vsel %vm1531, %v8907, 0.0
        %8940 = vadd.xlane.f32.xlu0 %v8939
        %v8941 = vpop.xlane.xlu0 %8940
        %v8942 = vsel %vm1531, %v8909, 0.0
        %8943 = vadd.xlane.f32.xlu0 %v8942
        %v8944 = vpop.xlane.xlu0 %8943
        %v8945 = vsel %vm1531, %v8911, 0.0
        %8946 = vadd.xlane.f32.xlu0 %v8945
        %v8947 = vpop.xlane.xlu0 %8946
        %v8948 = vsel %vm1531, %v8913, 0.0
        %8949 = vadd.xlane.f32.xlu0 %v8948
        %v8950 = vpop.xlane.xlu0 %8949
        %v8951 = vsel %vm1531, %v8915, 0.0
        %8952 = vadd.xlane.f32.xlu0 %v8951
        %v8953 = vpop.xlane.xlu0 %8952
        %v8954 = vsel %vm1531, %v8917, 0.0
        %8955 = vadd.xlane.f32.xlu0 %v8954
        %v8956 = vpop.xlane.xlu0 %8955
        %v8957 = vsel %vm1531, %v8919, 0.0
        %8958 = vadd.xlane.f32.xlu0 %v8957
        %v8959 = vpop.xlane.xlu0 %8958
        %v8960 = vsel %vm1531, %v8921, 0.0
        %8961 = vadd.xlane.f32.xlu0 %v8960
        %v8962 = vpop.xlane.xlu0 %8961
        %v8963 = vsel %vm1531, %v8923, 0.0
        %8964 = vadd.xlane.f32.xlu0 %v8963
        %v8965 = vpop.xlane.xlu0 %8964
        %v8966 = vsel %vm1531, %v8925, 0.0
        %8967 = vadd.xlane.f32.xlu0 %v8966
        %v8968 = vpop.xlane.xlu0 %8967
        %v8969 = vsel %vm1531, %v8927, 0.0
        %8970 = vadd.xlane.f32.xlu0 %v8969
        %v8971 = vpop.xlane.xlu0 %8970
        %v8972 = vsel %vm1574, %v8929, 0.0
        %8973 = vadd.xlane.f32.xlu0 %v8972
        %v8974 = vpop.xlane.xlu0 %8973
        %v8975 = vrcp.pop %v8932
        %v8976 = vrcp.pop %v8935
        %v8977 = vrcp.pop %v8938
        %v8978 = vrcp.pop %v8941
        %v8979 = vrcp.pop %v8944
        %v8980 = vrcp.pop %v8947
        %v8981 = vrcp.pop %v8950
        %v8982 = vrcp.pop %v8953
        %v8983 = vrcp.pop %v8956
        %v8984 = vrcp.pop %v8959
        %v8985 = vrcp.pop %v8962
        %v8986 = vrcp.pop %v8965
        %v8987 = vrcp.pop %v8968
        %v8988 = vrcp.pop %v8971
        %v8989 = vrcp.pop %v8974
        %v8990 = vmul.f32 %v8901, %v8975
        %v8991 = vmul.f32 %v8903, %v8976
        %v8992 = vmul.f32 %v8905, %v8977
        %v8993 = vmul.f32 %v8907, %v8978
        %v8994 = vmul.f32 %v8909, %v8979
        %v8995 = vmul.f32 %v8911, %v8980
        %v8996 = vmul.f32 %v8913, %v8981
        %v8997 = vmul.f32 %v8915, %v8982
        %v8998 = vmul.f32 %v8917, %v8983
        %v8999 = vmul.f32 %v8919, %v8984
        %v9000 = vmul.f32 %v8921, %v8985
        %v9001 = vmul.f32 %v8923, %v8986
        %v9002 = vmul.f32 %v8925, %v8987
        %v9003 = vmul.f32 %v8927, %v8988
        %v9004 = vmul.f32 %v8929, %v8989
        %9005 = vrot.lane.b32.xlu0 %v5968, 32
        %v9006 = vpop.permute.xlu0 %9005
        %9007 = vrot.lane.b32.xlu0 %v5973, 32
        %v9008 = vpop.permute.xlu0 %9007
        %9009 = vrot.lane.b32.xlu0 %v5978, 32
        %v9010 = vpop.permute.xlu0 %9009
        %9011 = vrot.lane.b32.xlu0 %v5983, 32
        %v9012 = vpop.permute.xlu0 %9011
        %9013 = vrot.lane.b32.xlu0 %v5988, 32
        %v9014 = vpop.permute.xlu0 %9013
        %9015 = vrot.lane.b32.xlu0 %v5993, 32
        %v9016 = vpop.permute.xlu0 %9015
        %9017 = vrot.lane.b32.xlu0 %v5998, 32
        %v9018 = vpop.permute.xlu0 %9017
        %9019 = vrot.lane.b32.xlu0 %v6003, 32
        %v9020 = vpop.permute.xlu0 %9019
        %9021 = vrot.lane.b32.xlu0 %v6008, 32
        %v9022 = vpop.permute.xlu0 %9021
        %9023 = vrot.lane.b32.xlu0 %v6013, 32
        %v9024 = vpop.permute.xlu0 %9023
        %9025 = vrot.lane.b32.xlu0 %v6018, 32
        %v9026 = vpop.permute.xlu0 %9025
        %9027 = vrot.lane.b32.xlu0 %v6023, 32
        %v9028 = vpop.permute.xlu0 %9027
        %9029 = vrot.lane.b32.xlu0 %v6028, 32
        %v9030 = vpop.permute.xlu0 %9029
        %9031 = vrot.lane.b32.xlu0 %v6033, 32
        %v9032 = vpop.permute.xlu0 %9031
        %9033 = vrot.lane.b32.xlu0 %v6038, 32
        %v9034 = vpop.permute.xlu0 %9033
        %v9050 = vsel %vm1531, %v8990, 0
        %v9053 = vsel %vm1531, %v8991, 0
        %v9056 = vsel %vm1531, %v8992, 0
        %v9059 = vsel %vm1531, %v8993, 0
        %v9062 = vsel %vm1531, %v8994, 0
        %v9065 = vsel %vm1531, %v8995, 0
        %v9068 = vsel %vm1531, %v8996, 0
        %v9071 = vsel %vm1531, %v8997, 0
        %v9074 = vsel %vm1531, %v8998, 0
        %v9077 = vsel %vm1531, %v8999, 0
        %v9080 = vsel %vm1531, %v9000, 0
        %v9083 = vsel %vm1531, %v9001, 0
        %v9086 = vsel %vm1531, %v9002, 0
        %v9089 = vsel %vm1531, %v9003, 0
        %v9092 = vsel %vm1531, %v9004, 0
        %v9094 = vsel %vm1743, %v9034, 0
        %9096 = vmatprep.subr.mxu0 0.0
        %9097 = vmatpush1.msra.mxu0 %v9006
        %9098 = vmatprep.subr.mxu0 0.0
        %9099 = vmatpush1.msra.mxu0 %v9008
        %9100 = vmatprep.subr.mxu0 0.0
        %9101 = vmatpush1.msra.mxu0 %v9010
        %9102 = vmatprep.subr.mxu0 0.0
        %9103 = vmatpush1.msra.mxu0 %v9012
        %9104 = vmatprep.subr.mxu0 0.0
        %9105 = vmatpush1.msra.mxu0 %v9014
        %9106 = vmatprep.subr.mxu0 0.0
        %9107 = vmatpush1.msra.mxu0 %v9016
        %9108 = vmatprep.subr.mxu0 0.0
        %9109 = vmatpush1.msra.mxu0 %v9018
        %9110 = vmatprep.subr.mxu0 0.0
        %9111 = vmatpush1.msra.mxu0 %v9020
        %9112 = vmatprep.subr.mxu0 0.0
        %9113 = vmatpush1.msra.mxu0 %v9022
        %9114 = vmatprep.subr.mxu0 0.0
        %9115 = vmatpush1.msra.mxu0 %v9024
        %9116 = vmatprep.subr.mxu0 0.0
        %9117 = vmatpush1.msra.mxu0 %v9026
        %9118 = vmatprep.subr.mxu0 0.0
        %9119 = vmatpush1.msra.mxu0 %v9028
        %9120 = vmatprep.subr.mxu0 0.0
        %9121 = vmatpush1.msra.mxu0 %v9030
        %9122 = vmatprep.subr.mxu0 0.0
        %9123 = vmatpush1.msra.mxu0 %v9032
        %9124 = vmatprep.subr.mxu0 0.0
        %9125 = vmatpush1.msra.mxu0 %v9094
        %9126 = vmatprep.subr.mxu0 0.0
        %9127 = vmatpush1.msra.mxu0 0.0
        %9128 = vmatprep.subr.mxu0 0.0
        %9129 = vmatpush1.msra.mxu0 0.0
        %9130 = vmatprep.subr.mxu0 0.0
        %9131 = vmatpush1.msra.mxu0 0.0
        %9132 = vmatprep.subr.mxu0 0.0
        %9133 = vmatpush1.msra.mxu0 0.0
        %9134 = vmatprep.subr.mxu0 0.0
        %9135 = vmatpush1.msra.mxu0 0.0
        %9136 = vmatprep.subr.mxu0 0.0
        %9137 = vmatpush1.msra.mxu0 0.0
        %9138 = vmatprep.subr.mxu0 0.0
        %9139 = vmatpush1.msra.mxu0 0.0
        %9140 = vmatprep.subr.mxu0 0.0
        %9141 = vmatpush1.msra.mxu0 0.0
        %9142 = vmatprep.subr.mxu0 0.0
        %9143 = vmatpush1.msra.mxu0 0.0
        %9144 = vmatprep.subr.mxu0 0.0
        %9145 = vmatpush1.msra.mxu0 0.0
        %9146 = vmatprep.subr.mxu0 0.0
        %9147 = vmatpush1.msra.mxu0 0.0
        %9148 = vmatprep.subr.mxu0 0.0
        %9149 = vmatpush1.msra.mxu0 0.0
        %9150 = vmatprep.subr.mxu0 0.0
        %9151 = vmatpush1.msra.mxu0 0.0
        %9152 = vmatprep.subr.mxu0 0.0
        %9153 = vmatpush1.msra.mxu0 0.0
        %9154 = vmatprep.subr.mxu0 0.0
        %9155 = vmatpush1.msra.mxu0 0.0
        %9156 = vmatprep.subr.mxu0 0.0
        %9157 = vmatpush1.msra.mxu0 0.0
        %9158 = vmatprep.subr.mxu0 0.0
        %9159 = vmatpush1.msra.mxu0 0.0
        %9160 = vmatprep.mubr.f32.mxu0 0.0
        %9161 = vmatmul.mubr.f32.gmra.mrb[0].mxu0 %v9050
        %v9162 = vpop.f32.mrb[0].mxu0
        %v9163 = vadd.f32 0.0, %v9162
        %v9164 = vpop.f32.mrb[0].mxu0
        %9165 = vmatprep.mubr.f32.mxu0 0.0
        %9166 = vmatmul.mubr.f32.gmra.mrb[0].mxu0 %v9053
        %v9167 = vpop.f32.mrb[0].mxu0
        %v9168 = vadd.f32 0.0, %v9167
        %v9169 = vpop.f32.mrb[0].mxu0
        %9170 = vmatprep.mubr.f32.mxu0 0.0
        %9171 = vmatmul.mubr.f32.gmra.mrb[0].mxu0 %v9056
        %v9172 = vpop.f32.mrb[0].mxu0
        %v9173 = vadd.f32 0.0, %v9172
        %v9174 = vpop.f32.mrb[0].mxu0
        %9175 = vmatprep.mubr.f32.mxu0 0.0
        %9176 = vmatmul.mubr.f32.gmra.mrb[0].mxu0 %v9059
        %v9177 = vpop.f32.mrb[0].mxu0
        %v9178 = vadd.f32 0.0, %v9177
        %v9179 = vpop.f32.mrb[0].mxu0
        %9180 = vmatprep.mubr.f32.mxu0 0.0
        %9181 = vmatmul.mubr.f32.gmra.mrb[0].mxu0 %v9062
        %v9182 = vpop.f32.mrb[0].mxu0
        %v9183 = vadd.f32 0.0, %v9182
        %v9184 = vpop.f32.mrb[0].mxu0
        %9185 = vmatprep.mubr.f32.mxu0 0.0
        %9186 = vmatmul.mubr.f32.gmra.mrb[0].mxu0 %v9065
        %v9187 = vpop.f32.mrb[0].mxu0
        %v9188 = vadd.f32 0.0, %v9187
        %v9189 = vpop.f32.mrb[0].mxu0
        %9190 = vmatprep.mubr.f32.mxu0 0.0
        %9191 = vmatmul.mubr.f32.gmra.mrb[0].mxu0 %v9068
        %v9192 = vpop.f32.mrb[0].mxu0
        %v9193 = vadd.f32 0.0, %v9192
        %v9194 = vpop.f32.mrb[0].mxu0
        %9195 = vmatprep.mubr.f32.mxu0 0.0
        %9196 = vmatmul.mubr.f32.gmra.mrb[0].mxu0 %v9071
        %v9197 = vpop.f32.mrb[0].mxu0
        %v9198 = vadd.f32 0.0, %v9197
        %v9199 = vpop.f32.mrb[0].mxu0
        %9200 = vmatprep.mubr.f32.mxu0 0.0
        %9201 = vmatmul.mubr.f32.gmra.mrb[0].mxu0 %v9074
        %v9202 = vpop.f32.mrb[0].mxu0
        %v9203 = vadd.f32 0.0, %v9202
        %v9204 = vpop.f32.mrb[0].mxu0
        %9205 = vmatprep.mubr.f32.mxu0 0.0
        %9206 = vmatmul.mubr.f32.gmra.mrb[0].mxu0 %v9077
        %v9207 = vpop.f32.mrb[0].mxu0
        %v9208 = vadd.f32 0.0, %v9207
        %v9209 = vpop.f32.mrb[0].mxu0
        %9210 = vmatprep.mubr.f32.mxu0 0.0
        %9211 = vmatmul.mubr.f32.gmra.mrb[0].mxu0 %v9080
        %v9212 = vpop.f32.mrb[0].mxu0
        %v9213 = vadd.f32 0.0, %v9212
        %v9214 = vpop.f32.mrb[0].mxu0
        %9215 = vmatprep.mubr.f32.mxu0 0.0
        %9216 = vmatmul.mubr.f32.gmra.mrb[0].mxu0 %v9083
        %v9217 = vpop.f32.mrb[0].mxu0
        %v9218 = vadd.f32 0.0, %v9217
        %v9219 = vpop.f32.mrb[0].mxu0
        %9220 = vmatprep.mubr.f32.mxu0 0.0
        %9221 = vmatmul.mubr.f32.gmra.mrb[0].mxu0 %v9086
        %v9222 = vpop.f32.mrb[0].mxu0
        %v9223 = vadd.f32 0.0, %v9222
        %v9224 = vpop.f32.mrb[0].mxu0
        %9225 = vmatprep.mubr.f32.mxu0 0.0
        %9226 = vmatmul.mubr.f32.gmra.mrb[0].mxu0 %v9089
        %v9227 = vpop.f32.mrb[0].mxu0
        %v9228 = vadd.f32 0.0, %v9227
        %v9229 = vpop.f32.mrb[0].mxu0
        %9230 = vmatprep.mubr.f32.mxu0 0.0
        %9231 = vmatmul.mubr.f32.gmra.mrb[0].mxu0 %v9092
        %v9232 = vpop.f32.mrb[0].mxu0
        %v9233 = vadd.f32 0.0, %v9232
        %v9234 = vpop.f32.mrb[0].mxu0
        %9235 = vdwg.mxu0
        %v9237 = vsel %vm1285, %v9163, 0
        %v9240 = vsel %vm1285, %v9168, 0
        %v9243 = vsel %vm1285, %v9173, 0
        %v9246 = vsel %vm1285, %v9178, 0
        %v9249 = vsel %vm1285, %v9183, 0
        %v9252 = vsel %vm1285, %v9188, 0
        %v9255 = vsel %vm1285, %v9193, 0
        %v9258 = vsel %vm1285, %v9198, 0
        %v9261 = vsel %vm1285, %v9203, 0
        %v9264 = vsel %vm1285, %v9208, 0
        %v9267 = vsel %vm1285, %v9213, 0
        %v9270 = vsel %vm1285, %v9218, 0
        %v9273 = vsel %vm1285, %v9223, 0
        %v9276 = vsel %vm1285, %v9228, 0
        %v9279 = vsel %vm1285, %v9233, 0
        %9281 = vmatprep.subr.mxu0 0.0
        %9282 = vmatpush1.msra.mxu0 %v5593
        %9283 = vmatprep.subr.mxu0 0.0
        %9284 = vmatpush1.msra.mxu0 %v5594
        %9285 = vmatprep.subr.mxu0 0.0
        %9286 = vmatpush1.msra.mxu0 %v5595
        %9287 = vmatprep.subr.mxu0 0.0
        %9288 = vmatpush1.msra.mxu0 %v5596
        %9289 = vmatprep.subr.mxu0 0.0
        %9290 = vmatpush1.msra.mxu0 0.0
        %9291 = vmatprep.subr.mxu0 0.0
        %9292 = vmatpush1.msra.mxu0 0.0
        %9293 = vmatprep.subr.mxu0 0.0
        %9294 = vmatpush1.msra.mxu0 0.0
        %9295 = vmatprep.subr.mxu0 0.0
        %9296 = vmatpush1.msra.mxu0 0.0
        %9297 = vmatprep.subr.mxu0 0.0
        %9298 = vmatpush1.msra.mxu0 0.0
        %9299 = vmatprep.subr.mxu0 0.0
        %9300 = vmatpush1.msra.mxu0 0.0
        %9301 = vmatprep.subr.mxu0 0.0
        %9302 = vmatpush1.msra.mxu0 0.0
        %9303 = vmatprep.subr.mxu0 0.0
        %9304 = vmatpush1.msra.mxu0 0.0
        %9305 = vmatprep.subr.mxu0 0.0
        %9306 = vmatpush1.msra.mxu0 0.0
        %9307 = vmatprep.subr.mxu0 0.0
        %9308 = vmatpush1.msra.mxu0 0.0
        %9309 = vmatprep.subr.mxu0 0.0
        %9310 = vmatpush1.msra.mxu0 0.0
        %9311 = vmatprep.subr.mxu0 0.0
        %9312 = vmatpush1.msra.mxu0 0.0
        %9313 = vmatprep.subr.mxu0 0.0
        %9314 = vmatpush1.msra.mxu0 0.0
        %9315 = vmatprep.subr.mxu0 0.0
        %9316 = vmatpush1.msra.mxu0 0.0
        %9317 = vmatprep.subr.mxu0 0.0
        %9318 = vmatpush1.msra.mxu0 0.0
        %9319 = vmatprep.subr.mxu0 0.0
        %9320 = vmatpush1.msra.mxu0 0.0
        %9321 = vmatprep.subr.mxu0 0.0
        %9322 = vmatpush1.msra.mxu0 0.0
        %9323 = vmatprep.subr.mxu0 0.0
        %9324 = vmatpush1.msra.mxu0 0.0
        %9325 = vmatprep.subr.mxu0 0.0
        %9326 = vmatpush1.msra.mxu0 0.0
        %9327 = vmatprep.subr.mxu0 0.0
        %9328 = vmatpush1.msra.mxu0 0.0
        %9329 = vmatprep.subr.mxu0 0.0
        %9330 = vmatpush1.msra.mxu0 0.0
        %9331 = vmatprep.subr.mxu0 0.0
        %9332 = vmatpush1.msra.mxu0 0.0
        %9333 = vmatprep.subr.mxu0 0.0
        %9334 = vmatpush1.msra.mxu0 0.0
        %9335 = vmatprep.subr.mxu0 0.0
        %9336 = vmatpush1.msra.mxu0 0.0
        %9337 = vmatprep.subr.mxu0 0.0
        %9338 = vmatpush1.msra.mxu0 0.0
        %9339 = vmatprep.subr.mxu0 0.0
        %9340 = vmatpush1.msra.mxu0 0.0
        %9341 = vmatprep.subr.mxu0 0.0
        %9342 = vmatpush1.msra.mxu0 0.0
        %9343 = vmatprep.subr.mxu0 0.0
        %9344 = vmatpush1.msra.mxu0 0.0
        %9345 = vmatprep.mubr.f32.mxu0 0.0
        %9346 = vmatmul.mubr.f32.gmra.mrb[0].mxu0 %v9237
        %v9347 = vpop.f32.mrb[0].mxu0
        %v9348 = vadd.f32 0.0, %v9347
        %v9349 = vpop.f32.mrb[0].mxu0
        %9350 = vmatprep.mubr.f32.mxu0 0.0
        %9351 = vmatmul.mubr.f32.gmra.mrb[0].mxu0 %v9240
        %v9352 = vpop.f32.mrb[0].mxu0
        %v9353 = vadd.f32 0.0, %v9352
        %v9354 = vpop.f32.mrb[0].mxu0
        %9355 = vmatprep.mubr.f32.mxu0 0.0
        %9356 = vmatmul.mubr.f32.gmra.mrb[0].mxu0 %v9243
        %v9357 = vpop.f32.mrb[0].mxu0
        %v9358 = vadd.f32 0.0, %v9357
        %v9359 = vpop.f32.mrb[0].mxu0
        %9360 = vmatprep.mubr.f32.mxu0 0.0
        %9361 = vmatmul.mubr.f32.gmra.mrb[0].mxu0 %v9246
        %v9362 = vpop.f32.mrb[0].mxu0
        %v9363 = vadd.f32 0.0, %v9362
        %v9364 = vpop.f32.mrb[0].mxu0
        %9365 = vmatprep.mubr.f32.mxu0 0.0
        %9366 = vmatmul.mubr.f32.gmra.mrb[0].mxu0 %v9249
        %v9367 = vpop.f32.mrb[0].mxu0
        %v9368 = vadd.f32 0.0, %v9367
        %v9369 = vpop.f32.mrb[0].mxu0
        %9370 = vmatprep.mubr.f32.mxu0 0.0
        %9371 = vmatmul.mubr.f32.gmra.mrb[0].mxu0 %v9252
        %v9372 = vpop.f32.mrb[0].mxu0
        %v9373 = vadd.f32 0.0, %v9372
        %v9374 = vpop.f32.mrb[0].mxu0
        %9375 = vmatprep.mubr.f32.mxu0 0.0
        %9376 = vmatmul.mubr.f32.gmra.mrb[0].mxu0 %v9255
        %v9377 = vpop.f32.mrb[0].mxu0
        %v9378 = vadd.f32 0.0, %v9377
        %v9379 = vpop.f32.mrb[0].mxu0
        %9380 = vmatprep.mubr.f32.mxu0 0.0
        %9381 = vmatmul.mubr.f32.gmra.mrb[0].mxu0 %v9258
        %v9382 = vpop.f32.mrb[0].mxu0
        %v9383 = vadd.f32 0.0, %v9382
        %v9384 = vpop.f32.mrb[0].mxu0
        %9385 = vmatprep.mubr.f32.mxu0 0.0
        %9386 = vmatmul.mubr.f32.gmra.mrb[0].mxu0 %v9261
        %v9387 = vpop.f32.mrb[0].mxu0
        %v9388 = vadd.f32 0.0, %v9387
        %v9389 = vpop.f32.mrb[0].mxu0
        %9390 = vmatprep.mubr.f32.mxu0 0.0
        %9391 = vmatmul.mubr.f32.gmra.mrb[0].mxu0 %v9264
        %v9392 = vpop.f32.mrb[0].mxu0
        %v9393 = vadd.f32 0.0, %v9392
        %v9394 = vpop.f32.mrb[0].mxu0
        %9395 = vmatprep.mubr.f32.mxu0 0.0
        %9396 = vmatmul.mubr.f32.gmra.mrb[0].mxu0 %v9267
        %v9397 = vpop.f32.mrb[0].mxu0
        %v9398 = vadd.f32 0.0, %v9397
        %v9399 = vpop.f32.mrb[0].mxu0
        %9400 = vmatprep.mubr.f32.mxu0 0.0
        %9401 = vmatmul.mubr.f32.gmra.mrb[0].mxu0 %v9270
        %v9402 = vpop.f32.mrb[0].mxu0
        %v9403 = vadd.f32 0.0, %v9402
        %v9404 = vpop.f32.mrb[0].mxu0
        %9405 = vmatprep.mubr.f32.mxu0 0.0
        %9406 = vmatmul.mubr.f32.gmra.mrb[0].mxu0 %v9273
        %v9407 = vpop.f32.mrb[0].mxu0
        %v9408 = vadd.f32 0.0, %v9407
        %v9409 = vpop.f32.mrb[0].mxu0
        %9410 = vmatprep.mubr.f32.mxu0 0.0
        %9411 = vmatmul.mubr.f32.gmra.mrb[0].mxu0 %v9276
        %v9412 = vpop.f32.mrb[0].mxu0
        %v9413 = vadd.f32 0.0, %v9412
        %v9414 = vpop.f32.mrb[0].mxu0
        %9415 = vmatprep.mubr.f32.mxu0 0.0
        %9416 = vmatmul.mubr.f32.gmra.mrb[0].mxu0 %v9279
        %v9417 = vpop.f32.mrb[0].mxu0
        %v9418 = vadd.f32 0.0, %v9417
        %v9419 = vpop.f32.mrb[0].mxu0
        %9420 = vdwg.mxu0
        %v9421 = vadd.f32 %v8550, %v9348
        %v9422 = vadd.f32 %v8551, %v9353
        %v9423 = vadd.f32 %v8552, %v9358
        %v9424 = vadd.f32 %v8553, %v9363
        %v9425 = vadd.f32 %v8554, %v9368
        %v9426 = vadd.f32 %v8555, %v9373
        %v9427 = vadd.f32 %v8556, %v9378
        %v9428 = vadd.f32 %v8557, %v9383
        %v9429 = vadd.f32 %v8558, %v9388
        %v9430 = vadd.f32 %v8559, %v9393
        %v9431 = vadd.f32 %v8560, %v9398
        %v9432 = vadd.f32 %v8561, %v9403
        %v9433 = vadd.f32 %v8562, %v9408
        %v9434 = vadd.f32 %v8563, %v9413
        %v9435 = vadd.f32 %v8564, %v9418
        %s9436 = scalar_lea.vmem [#allocation7], 1
        %v9437 = vld [vmem:[%s9436] sm:$0x1]
        %v9439 = vlaneseq
        %v9440 = vshrl.u32 %v9439, 7
        %v9441 = vsub.s32 0, %v9440
        %v9442 = vrot.slane %v9437, %v9441
        %v9444 = vadd.f32 %v9421, %v9442
        %v9445 = vadd.f32 %v9422, %v9442
        %v9446 = vadd.f32 %v9423, %v9442
        %v9447 = vadd.f32 %v9424, %v9442
        %v9448 = vadd.f32 %v9425, %v9442
        %v9449 = vadd.f32 %v9426, %v9442
        %v9450 = vadd.f32 %v9427, %v9442
        %v9451 = vadd.f32 %v9428, %v9442
        %v9452 = vadd.f32 %v9429, %v9442
        %v9453 = vadd.f32 %v9430, %v9442
        %v9454 = vadd.f32 %v9431, %v9442
        %v9455 = vadd.f32 %v9432, %v9442
        %v9456 = vadd.f32 %v9433, %v9442
        %v9457 = vadd.f32 %v9434, %v9442
        %v9458 = vadd.f32 %v9435, %v9442
        %v9459 = vadd.f32 %v9444, %v5514
        %v9460 = vadd.f32 %v9445, %v5515
        %v9461 = vadd.f32 %v9446, %v5516
        %v9462 = vadd.f32 %v9447, %v5517
        %v9463 = vadd.f32 %v9448, %v5518
        %v9464 = vadd.f32 %v9449, %v5519
        %v9465 = vadd.f32 %v9450, %v5520
        %v9466 = vadd.f32 %v9451, %v5521
        %v9467 = vadd.f32 %v9452, %v5522
        %v9468 = vadd.f32 %v9453, %v5523
        %v9469 = vadd.f32 %v9454, %v5524
        %v9470 = vadd.f32 %v9455, %v5525
        %v9471 = vadd.f32 %v9456, %v5526
        %v9472 = vadd.f32 %v9457, %v5527
        %v9473 = vadd.f32 %v9458, %v5528
        %s9474 = scalar_lea.vmem [#allocation8], 1
        %v9475 = vld [vmem:[%s9474] sm:$0x1]
        %s9476 = scalar_lea.vmem [#allocation10], 1
        %v9477 = vld [vmem:[%s9476] sm:$0x1]
        %9478 = vadd.xlane.f32.xlu0 %v9459
        %v9479 = vpop.xlane.xlu0 %9478
        %9480 = vadd.xlane.f32.xlu0 %v9460
        %v9481 = vpop.xlane.xlu0 %9480
        %9482 = vadd.xlane.f32.xlu0 %v9461
        %v9483 = vpop.xlane.xlu0 %9482
        %9484 = vadd.xlane.f32.xlu0 %v9462
        %v9485 = vpop.xlane.xlu0 %9484
        %9486 = vadd.xlane.f32.xlu0 %v9463
        %v9487 = vpop.xlane.xlu0 %9486
        %9488 = vadd.xlane.f32.xlu0 %v9464
        %v9489 = vpop.xlane.xlu0 %9488
        %9490 = vadd.xlane.f32.xlu0 %v9465
        %v9491 = vpop.xlane.xlu0 %9490
        %9492 = vadd.xlane.f32.xlu0 %v9466
        %v9493 = vpop.xlane.xlu0 %9492
        %9494 = vadd.xlane.f32.xlu0 %v9467
        %v9495 = vpop.xlane.xlu0 %9494
        %9496 = vadd.xlane.f32.xlu0 %v9468
        %v9497 = vpop.xlane.xlu0 %9496
        %9498 = vadd.xlane.f32.xlu0 %v9469
        %v9499 = vpop.xlane.xlu0 %9498
        %9500 = vadd.xlane.f32.xlu0 %v9470
        %v9501 = vpop.xlane.xlu0 %9500
        %9502 = vadd.xlane.f32.xlu0 %v9471
        %v9503 = vpop.xlane.xlu0 %9502
        %9504 = vadd.xlane.f32.xlu0 %v9472
        %v9505 = vpop.xlane.xlu0 %9504
        %v9506 = vsel %vm1743, %v9473, 0.0
        %9507 = vadd.xlane.f32.xlu0 %v9506
        %v9508 = vpop.xlane.xlu0 %9507
        %v9509 = vmul.f32 %v9479, 0.00862069
        %v9510 = vmul.f32 %v9481, 0.00862069
        %v9511 = vmul.f32 %v9483, 0.00862069
        %v9512 = vmul.f32 %v9485, 0.00862069
        %v9513 = vmul.f32 %v9487, 0.00862069
        %v9514 = vmul.f32 %v9489, 0.00862069
        %v9515 = vmul.f32 %v9491, 0.00862069
        %v9516 = vmul.f32 %v9493, 0.00862069
        %v9517 = vmul.f32 %v9495, 0.00862069
        %v9518 = vmul.f32 %v9497, 0.00862069
        %v9519 = vmul.f32 %v9499, 0.00862069
        %v9520 = vmul.f32 %v9501, 0.00862069
        %v9521 = vmul.f32 %v9503, 0.00862069
        %v9522 = vmul.f32 %v9505, 0.00862069
        %v9523 = vmul.f32 %v9508, 0.00862069
        %v9524 = vsub.f32 %v9459, %v9509
        %v9525 = vsub.f32 %v9460, %v9510
        %v9526 = vsub.f32 %v9461, %v9511
        %v9527 = vsub.f32 %v9462, %v9512
        %v9528 = vsub.f32 %v9463, %v9513
        %v9529 = vsub.f32 %v9464, %v9514
        %v9530 = vsub.f32 %v9465, %v9515
        %v9531 = vsub.f32 %v9466, %v9516
        %v9532 = vsub.f32 %v9467, %v9517
        %v9533 = vsub.f32 %v9468, %v9518
        %v9534 = vsub.f32 %v9469, %v9519
        %v9535 = vsub.f32 %v9470, %v9520
        %v9536 = vsub.f32 %v9471, %v9521
        %v9537 = vsub.f32 %v9472, %v9522
        %v9538 = vsub.f32 %v9473, %v9523
        %v9539 = vmul.f32 %v9524, %v779
        %v9540 = vmul.f32 %v9525, %v779
        %v9541 = vmul.f32 %v9526, %v779
        %v9542 = vmul.f32 %v9527, %v779
        %v9543 = vmul.f32 %v9528, %v779
        %v9544 = vmul.f32 %v9529, %v779
        %v9545 = vmul.f32 %v9530, %v779
        %v9546 = vmul.f32 %v9531, %v779
        %v9547 = vmul.f32 %v9532, %v779
        %v9548 = vmul.f32 %v9533, %v779
        %v9549 = vmul.f32 %v9534, %v779
        %v9550 = vmul.f32 %v9535, %v779
        %v9551 = vmul.f32 %v9536, %v779
        %v9552 = vmul.f32 %v9537, %v779
        %v9553 = vmul.f32 %v9538, %v779
        %v9554 = vmul.f32 %v9539, %v9539
        %v9555 = vmul.f32 %v9540, %v9540
        %v9556 = vmul.f32 %v9541, %v9541
        %v9557 = vmul.f32 %v9542, %v9542
        %v9558 = vmul.f32 %v9543, %v9543
        %v9559 = vmul.f32 %v9544, %v9544
        %v9560 = vmul.f32 %v9545, %v9545
        %v9561 = vmul.f32 %v9546, %v9546
        %v9562 = vmul.f32 %v9547, %v9547
        %v9563 = vmul.f32 %v9548, %v9548
        %v9564 = vmul.f32 %v9549, %v9549
        %v9565 = vmul.f32 %v9550, %v9550
        %v9566 = vmul.f32 %v9551, %v9551
        %v9567 = vmul.f32 %v9552, %v9552
        %v9568 = vmul.f32 %v9553, %v9553
        %9569 = vadd.xlane.f32.xlu0 %v9554
        %v9570 = vpop.xlane.xlu0 %9569
        %9571 = vadd.xlane.f32.xlu0 %v9555
        %v9572 = vpop.xlane.xlu0 %9571
        %9573 = vadd.xlane.f32.xlu0 %v9556
        %v9574 = vpop.xlane.xlu0 %9573
        %9575 = vadd.xlane.f32.xlu0 %v9557
        %v9576 = vpop.xlane.xlu0 %9575
        %9577 = vadd.xlane.f32.xlu0 %v9558
        %v9578 = vpop.xlane.xlu0 %9577
        %9579 = vadd.xlane.f32.xlu0 %v9559
        %v9580 = vpop.xlane.xlu0 %9579
        %9581 = vadd.xlane.f32.xlu0 %v9560
        %v9582 = vpop.xlane.xlu0 %9581
        %9583 = vadd.xlane.f32.xlu0 %v9561
        %v9584 = vpop.xlane.xlu0 %9583
        %9585 = vadd.xlane.f32.xlu0 %v9562
        %v9586 = vpop.xlane.xlu0 %9585
        %9587 = vadd.xlane.f32.xlu0 %v9563
        %v9588 = vpop.xlane.xlu0 %9587
        %9589 = vadd.xlane.f32.xlu0 %v9564
        %v9590 = vpop.xlane.xlu0 %9589
        %9591 = vadd.xlane.f32.xlu0 %v9565
        %v9592 = vpop.xlane.xlu0 %9591
        %9593 = vadd.xlane.f32.xlu0 %v9566
        %v9594 = vpop.xlane.xlu0 %9593
        %9595 = vadd.xlane.f32.xlu0 %v9567
        %v9596 = vpop.xlane.xlu0 %9595
        %v9597 = vsel %vm1743, %v9568, 0.0
        %9598 = vadd.xlane.f32.xlu0 %v9597
        %v9599 = vpop.xlane.xlu0 %9598
        %v9600 = vmul.f32 %v9570, 0.00862069
        %v9601 = vmul.f32 %v9572, 0.00862069
        %v9602 = vmul.f32 %v9574, 0.00862069
        %v9603 = vmul.f32 %v9576, 0.00862069
        %v9604 = vmul.f32 %v9578, 0.00862069
        %v9605 = vmul.f32 %v9580, 0.00862069
        %v9606 = vmul.f32 %v9582, 0.00862069
        %v9607 = vmul.f32 %v9584, 0.00862069
        %v9608 = vmul.f32 %v9586, 0.00862069
        %v9609 = vmul.f32 %v9588, 0.00862069
        %v9610 = vmul.f32 %v9590, 0.00862069
        %v9611 = vmul.f32 %v9592, 0.00862069
        %v9612 = vmul.f32 %v9594, 0.00862069
        %v9613 = vmul.f32 %v9596, 0.00862069
        %v9614 = vmul.f32 %v9599, 0.00862069
        %v9615 = vadd.f32 %v9600, 1e-05
        %v9616 = vadd.f32 %v9601, 1e-05
        %v9617 = vadd.f32 %v9602, 1e-05
        %v9618 = vadd.f32 %v9603, 1e-05
        %v9619 = vadd.f32 %v9604, 1e-05
        %v9620 = vadd.f32 %v9605, 1e-05
        %v9621 = vadd.f32 %v9606, 1e-05
        %v9622 = vadd.f32 %v9607, 1e-05
        %v9623 = vadd.f32 %v9608, 1e-05
        %v9624 = vadd.f32 %v9609, 1e-05
        %v9625 = vadd.f32 %v9610, 1e-05
        %v9626 = vadd.f32 %v9611, 1e-05
        %v9627 = vadd.f32 %v9612, 1e-05
        %v9628 = vadd.f32 %v9613, 1e-05
        %v9629 = vadd.f32 %v9614, 1e-05
        %v9630 = vrsqrt.pop %v9615
        %v9631 = vrsqrt.pop %v9616
        %v9632 = vrsqrt.pop %v9617
        %v9633 = vrsqrt.pop %v9618
        %v9634 = vrsqrt.pop %v9619
        %v9635 = vrsqrt.pop %v9620
        %v9636 = vrsqrt.pop %v9621
        %v9637 = vrsqrt.pop %v9622
        %v9638 = vrsqrt.pop %v9623
        %v9639 = vrsqrt.pop %v9624
        %v9640 = vrsqrt.pop %v9625
        %v9641 = vrsqrt.pop %v9626
        %v9642 = vrsqrt.pop %v9627
        %v9643 = vrsqrt.pop %v9628
        %v9644 = vrsqrt.pop %v9629
        %v9645 = vmul.f32 %v9539, %v9630
        %v9646 = vmul.f32 %v9540, %v9631
        %v9647 = vmul.f32 %v9541, %v9632
        %v9648 = vmul.f32 %v9542, %v9633
        %v9649 = vmul.f32 %v9543, %v9634
        %v9650 = vmul.f32 %v9544, %v9635
        %v9651 = vmul.f32 %v9545, %v9636
        %v9652 = vmul.f32 %v9546, %v9637
        %v9653 = vmul.f32 %v9547, %v9638
        %v9654 = vmul.f32 %v9548, %v9639
        %v9655 = vmul.f32 %v9549, %v9640
        %v9656 = vmul.f32 %v9550, %v9641
        %v9657 = vmul.f32 %v9551, %v9642
        %v9658 = vmul.f32 %v9552, %v9643
        %v9659 = vmul.f32 %v9553, %v9644
        %v9661 = vlaneseq
        %v9662 = vshrl.u32 %v9661, 7
        %v9663 = vsub.s32 0, %v9662
        %v9664 = vrot.slane %v9475, %v9663
        %v9666 = vmul.f32 %v9645, %v9664
        %v9667 = vmul.f32 %v9646, %v9664
        %v9668 = vmul.f32 %v9647, %v9664
        %v9669 = vmul.f32 %v9648, %v9664
        %v9670 = vmul.f32 %v9649, %v9664
        %v9671 = vmul.f32 %v9650, %v9664
        %v9672 = vmul.f32 %v9651, %v9664
        %v9673 = vmul.f32 %v9652, %v9664
        %v9674 = vmul.f32 %v9653, %v9664
        %v9675 = vmul.f32 %v9654, %v9664
        %v9676 = vmul.f32 %v9655, %v9664
        %v9677 = vmul.f32 %v9656, %v9664
        %v9678 = vmul.f32 %v9657, %v9664
        %v9679 = vmul.f32 %v9658, %v9664
        %v9680 = vmul.f32 %v9659, %v9664
        %v9682 = vlaneseq
        %v9683 = vshrl.u32 %v9682, 7
        %v9684 = vsub.s32 0, %v9683
        %v9685 = vrot.slane %v9477, %v9684
        %v9687 = vadd.f32 %v9666, %v9685
        %v9688 = vadd.f32 %v9667, %v9685
        %v9689 = vadd.f32 %v9668, %v9685
        %v9690 = vadd.f32 %v9669, %v9685
        %v9691 = vadd.f32 %v9670, %v9685
        %v9692 = vadd.f32 %v9671, %v9685
        %v9693 = vadd.f32 %v9672, %v9685
        %v9694 = vadd.f32 %v9673, %v9685
        %v9695 = vadd.f32 %v9674, %v9685
        %v9696 = vadd.f32 %v9675, %v9685
        %v9697 = vadd.f32 %v9676, %v9685
        %v9698 = vadd.f32 %v9677, %v9685
        %v9699 = vadd.f32 %v9678, %v9685
        %v9700 = vadd.f32 %v9679, %v9685
        %v9701 = vadd.f32 %v9680, %v9685
        %s9702 = scalar_lea.vmem [#allocation11], 128
        %v9703 = vld [vmem:[%s9702] sm:$0xff]
        %v9704 = vld [vmem:[%s9702 + $0x8] sm:$0xff]
        %v9705 = vld [vmem:[%s9702 + $0x10] sm:$0xff]
        %v9706 = vld [vmem:[%s9702 + $0x18] sm:$0xff]
        %v9707 = vld [vmem:[%s9702 + $0x20] sm:$0xff]
        %v9708 = vld [vmem:[%s9702 + $0x28] sm:$0xff]
        %v9709 = vld [vmem:[%s9702 + $0x30] sm:$0xff]
        %v9710 = vld [vmem:[%s9702 + $0x38] sm:$0xff]
        %v9711 = vld [vmem:[%s9702 + $0x40] sm:$0xff]
        %v9712 = vld [vmem:[%s9702 + $0x48] sm:$0xff]
        %v9713 = vld [vmem:[%s9702 + $0x50] sm:$0xff]
        %v9714 = vld [vmem:[%s9702 + $0x58] sm:$0xff]
        %v9715 = vld [vmem:[%s9702 + $0x60] sm:$0xff]
        %v9716 = vld [vmem:[%s9702 + $0x68] sm:$0xff]
        %v9717 = vld [vmem:[%s9702 + $0x70] sm:$0xff]
        %v9718 = vld [vmem:[%s9702 + $0x78] sm:$0xff]
        %s9719 = scalar_lea.vmem [#allocation13], 1
        %v9720 = vld [vmem:[%s9719] sm:$0x1]
        %v9722 = vlaneseq
        %v9723 = vshrl.u32 %v9722, 7
        %v9724 = vsub.s32 0, %v9723
        %v9725 = vrot.slane %v9720, %v9724
        %9727 = vmatprep.subr.mxu0 0.0
        %9728 = vmatpush1.msra.mxu0 %v9703
        %9729 = vmatprep.subr.mxu0 0.0
        %9730 = vmatpush1.msra.mxu0 %v9704
        %9731 = vmatprep.subr.mxu0 0.0
        %9732 = vmatpush1.msra.mxu0 %v9705
        %9733 = vmatprep.subr.mxu0 0.0
        %9734 = vmatpush1.msra.mxu0 %v9706
        %9735 = vmatprep.subr.mxu0 0.0
        %9736 = vmatpush1.msra.mxu0 %v9707
        %9737 = vmatprep.subr.mxu0 0.0
        %9738 = vmatpush1.msra.mxu0 %v9708
        %9739 = vmatprep.subr.mxu0 0.0
        %9740 = vmatpush1.msra.mxu0 %v9709
        %9741 = vmatprep.subr.mxu0 0.0
        %9742 = vmatpush1.msra.mxu0 %v9710
        %9743 = vmatprep.subr.mxu0 0.0
        %9744 = vmatpush1.msra.mxu0 %v9711
        %9745 = vmatprep.subr.mxu0 0.0
        %9746 = vmatpush1.msra.mxu0 %v9712
        %9747 = vmatprep.subr.mxu0 0.0
        %9748 = vmatpush1.msra.mxu0 %v9713
        %9749 = vmatprep.subr.mxu0 0.0
        %9750 = vmatpush1.msra.mxu0 %v9714
        %9751 = vmatprep.subr.mxu0 0.0
        %9752 = vmatpush1.msra.mxu0 %v9715
        %9753 = vmatprep.subr.mxu0 0.0
        %9754 = vmatpush1.msra.mxu0 %v9716
        %9755 = vmatprep.subr.mxu0 0.0
        %9756 = vmatpush1.msra.mxu0 %v9717
        %9757 = vmatprep.subr.mxu0 0.0
        %9758 = vmatpush1.msra.mxu0 %v9718
        %9759 = vmatprep.subr.mxu0 0.0
        %9760 = vmatpush1.msra.mxu0 0.0
        %9761 = vmatprep.subr.mxu0 0.0
        %9762 = vmatpush1.msra.mxu0 0.0
        %9763 = vmatprep.subr.mxu0 0.0
        %9764 = vmatpush1.msra.mxu0 0.0
        %9765 = vmatprep.subr.mxu0 0.0
        %9766 = vmatpush1.msra.mxu0 0.0
        %9767 = vmatprep.subr.mxu0 0.0
        %9768 = vmatpush1.msra.mxu0 0.0
        %9769 = vmatprep.subr.mxu0 0.0
        %9770 = vmatpush1.msra.mxu0 0.0
        %9771 = vmatprep.subr.mxu0 0.0
        %9772 = vmatpush1.msra.mxu0 0.0
        %9773 = vmatprep.subr.mxu0 0.0
        %9774 = vmatpush1.msra.mxu0 0.0
        %9775 = vmatprep.subr.mxu0 0.0
        %9776 = vmatpush1.msra.mxu0 0.0
        %9777 = vmatprep.subr.mxu0 0.0
        %9778 = vmatpush1.msra.mxu0 0.0
        %9779 = vmatprep.subr.mxu0 0.0
        %9780 = vmatpush1.msra.mxu0 0.0
        %9781 = vmatprep.subr.mxu0 0.0
        %9782 = vmatpush1.msra.mxu0 0.0
        %9783 = vmatprep.subr.mxu0 0.0
        %9784 = vmatpush1.msra.mxu0 0.0
        %9785 = vmatprep.subr.mxu0 0.0
        %9786 = vmatpush1.msra.mxu0 0.0
        %9787 = vmatprep.subr.mxu0 0.0
        %9788 = vmatpush1.msra.mxu0 0.0
        %9789 = vmatprep.subr.mxu0 0.0
        %9790 = vmatpush1.msra.mxu0 0.0
        %9791 = vmatprep.mubr.f32.mxu0 0.0
        %9792 = vmatmul.mubr.f32.gmra.mrb[0].mxu0 %v9687
        %v9793 = vpop.f32.mrb[0].mxu0
        %v9794 = vadd.f32 %v9725, %v9793
        %v9795 = vpop.f32.mrb[0].mxu0
        %9796 = vmatprep.mubr.f32.mxu0 0.0
        %9797 = vmatmul.mubr.f32.gmra.mrb[0].mxu0 %v9688
        %v9798 = vpop.f32.mrb[0].mxu0
        %v9799 = vadd.f32 %v9725, %v9798
        %v9800 = vpop.f32.mrb[0].mxu0
        %9801 = vmatprep.mubr.f32.mxu0 0.0
        %9802 = vmatmul.mubr.f32.gmra.mrb[0].mxu0 %v9689
        %v9803 = vpop.f32.mrb[0].mxu0
        %v9804 = vadd.f32 %v9725, %v9803
        %v9805 = vpop.f32.mrb[0].mxu0
        %9806 = vmatprep.mubr.f32.mxu0 0.0
        %9807 = vmatmul.mubr.f32.gmra.mrb[0].mxu0 %v9690
        %v9808 = vpop.f32.mrb[0].mxu0
        %v9809 = vadd.f32 %v9725, %v9808
        %v9810 = vpop.f32.mrb[0].mxu0
        %9811 = vmatprep.mubr.f32.mxu0 0.0
        %9812 = vmatmul.mubr.f32.gmra.mrb[0].mxu0 %v9691
        %v9813 = vpop.f32.mrb[0].mxu0
        %v9814 = vadd.f32 %v9725, %v9813
        %v9815 = vpop.f32.mrb[0].mxu0
        %9816 = vmatprep.mubr.f32.mxu0 0.0
        %9817 = vmatmul.mubr.f32.gmra.mrb[0].mxu0 %v9692
        %v9818 = vpop.f32.mrb[0].mxu0
        %v9819 = vadd.f32 %v9725, %v9818
        %v9820 = vpop.f32.mrb[0].mxu0
        %9821 = vmatprep.mubr.f32.mxu0 0.0
        %9822 = vmatmul.mubr.f32.gmra.mrb[0].mxu0 %v9693
        %v9823 = vpop.f32.mrb[0].mxu0
        %v9824 = vadd.f32 %v9725, %v9823
        %v9825 = vpop.f32.mrb[0].mxu0
        %9826 = vmatprep.mubr.f32.mxu0 0.0
        %9827 = vmatmul.mubr.f32.gmra.mrb[0].mxu0 %v9694
        %v9828 = vpop.f32.mrb[0].mxu0
        %v9829 = vadd.f32 %v9725, %v9828
        %v9830 = vpop.f32.mrb[0].mxu0
        %9831 = vmatprep.mubr.f32.mxu0 0.0
        %9832 = vmatmul.mubr.f32.gmra.mrb[0].mxu0 %v9695
        %v9833 = vpop.f32.mrb[0].mxu0
        %v9834 = vadd.f32 %v9725, %v9833
        %v9835 = vpop.f32.mrb[0].mxu0
        %9836 = vmatprep.mubr.f32.mxu0 0.0
        %9837 = vmatmul.mubr.f32.gmra.mrb[0].mxu0 %v9696
        %v9838 = vpop.f32.mrb[0].mxu0
        %v9839 = vadd.f32 %v9725, %v9838
        %v9840 = vpop.f32.mrb[0].mxu0
        %9841 = vmatprep.mubr.f32.mxu0 0.0
        %9842 = vmatmul.mubr.f32.gmra.mrb[0].mxu0 %v9697
        %v9843 = vpop.f32.mrb[0].mxu0
        %v9844 = vadd.f32 %v9725, %v9843
        %v9845 = vpop.f32.mrb[0].mxu0
        %9846 = vmatprep.mubr.f32.mxu0 0.0
        %9847 = vmatmul.mubr.f32.gmra.mrb[0].mxu0 %v9698
        %v9848 = vpop.f32.mrb[0].mxu0
        %v9849 = vadd.f32 %v9725, %v9848
        %v9850 = vpop.f32.mrb[0].mxu0
        %9851 = vmatprep.mubr.f32.mxu0 0.0
        %9852 = vmatmul.mubr.f32.gmra.mrb[0].mxu0 %v9699
        %v9853 = vpop.f32.mrb[0].mxu0
        %v9854 = vadd.f32 %v9725, %v9853
        %v9855 = vpop.f32.mrb[0].mxu0
        %9856 = vmatprep.mubr.f32.mxu0 0.0
        %9857 = vmatmul.mubr.f32.gmra.mrb[0].mxu0 %v9700
        %v9858 = vpop.f32.mrb[0].mxu0
        %v9859 = vadd.f32 %v9725, %v9858
        %v9860 = vpop.f32.mrb[0].mxu0
        %9861 = vmatprep.mubr.f32.mxu0 0.0
        %9862 = vmatmul.mubr.f32.gmra.mrb[0].mxu0 %v9701
        %v9863 = vpop.f32.mrb[0].mxu0
        %v9864 = vadd.f32 %v9725, %v9863
        %v9865 = vpop.f32.mrb[0].mxu0
        %9866 = vdwg.mxu0
        %v9867 = vmax.f32 %v9794, 0.0
        %v9868 = vmax.f32 %v9799, 0.0
        %v9869 = vmax.f32 %v9804, 0.0
        %v9870 = vmax.f32 %v9809, 0.0
        %v9871 = vmax.f32 %v9814, 0.0
        %v9872 = vmax.f32 %v9819, 0.0
        %v9873 = vmax.f32 %v9824, 0.0
        %v9874 = vmax.f32 %v9829, 0.0
        %v9875 = vmax.f32 %v9834, 0.0
        %v9876 = vmax.f32 %v9839, 0.0
        %v9877 = vmax.f32 %v9844, 0.0
        %v9878 = vmax.f32 %v9849, 0.0
        %v9879 = vmax.f32 %v9854, 0.0
        %v9880 = vmax.f32 %v9859, 0.0
        %v9881 = vmax.f32 %v9864, 0.0
        %s9882 = scalar_lea.vmem [#allocation14], 128
        %v9883 = vld [vmem:[%s9882] sm:$0xff]
        %v9884 = vld [vmem:[%s9882 + $0x8] sm:$0xff]
        %v9885 = vld [vmem:[%s9882 + $0x10] sm:$0xff]
        %v9886 = vld [vmem:[%s9882 + $0x18] sm:$0xff]
        %v9887 = vld [vmem:[%s9882 + $0x20] sm:$0xff]
        %v9888 = vld [vmem:[%s9882 + $0x28] sm:$0xff]
        %v9889 = vld [vmem:[%s9882 + $0x30] sm:$0xff]
        %v9890 = vld [vmem:[%s9882 + $0x38] sm:$0xff]
        %v9891 = vld [vmem:[%s9882 + $0x40] sm:$0xff]
        %v9892 = vld [vmem:[%s9882 + $0x48] sm:$0xff]
        %v9893 = vld [vmem:[%s9882 + $0x50] sm:$0xff]
        %v9894 = vld [vmem:[%s9882 + $0x58] sm:$0xff]
        %v9895 = vld [vmem:[%s9882 + $0x60] sm:$0xff]
        %v9896 = vld [vmem:[%s9882 + $0x68] sm:$0xff]
        %v9897 = vld [vmem:[%s9882 + $0x70] sm:$0xff]
        %v9898 = vld [vmem:[%s9882 + $0x78] sm:$0xff]
        %s9899 = scalar_lea.vmem [#allocation16], 1
        %v9900 = vld [vmem:[%s9899] sm:$0x1]
        %v9902 = vlaneseq
        %v9903 = vshrl.u32 %v9902, 7
        %v9904 = vsub.s32 0, %v9903
        %v9905 = vrot.slane %v9900, %v9904
        %9907 = vmatprep.subr.mxu0 0.0
        %9908 = vmatpush1.msra.mxu0 %v9883
        %9909 = vmatprep.subr.mxu0 0.0
        %9910 = vmatpush1.msra.mxu0 %v9884
        %9911 = vmatprep.subr.mxu0 0.0
        %9912 = vmatpush1.msra.mxu0 %v9885
        %9913 = vmatprep.subr.mxu0 0.0
        %9914 = vmatpush1.msra.mxu0 %v9886
        %9915 = vmatprep.subr.mxu0 0.0
        %9916 = vmatpush1.msra.mxu0 %v9887
        %9917 = vmatprep.subr.mxu0 0.0
        %9918 = vmatpush1.msra.mxu0 %v9888
        %9919 = vmatprep.subr.mxu0 0.0
        %9920 = vmatpush1.msra.mxu0 %v9889
        %9921 = vmatprep.subr.mxu0 0.0
        %9922 = vmatpush1.msra.mxu0 %v9890
        %9923 = vmatprep.subr.mxu0 0.0
        %9924 = vmatpush1.msra.mxu0 %v9891
        %9925 = vmatprep.subr.mxu0 0.0
        %9926 = vmatpush1.msra.mxu0 %v9892
        %9927 = vmatprep.subr.mxu0 0.0
        %9928 = vmatpush1.msra.mxu0 %v9893
        %9929 = vmatprep.subr.mxu0 0.0
        %9930 = vmatpush1.msra.mxu0 %v9894
        %9931 = vmatprep.subr.mxu0 0.0
        %9932 = vmatpush1.msra.mxu0 %v9895
        %9933 = vmatprep.subr.mxu0 0.0
        %9934 = vmatpush1.msra.mxu0 %v9896
        %9935 = vmatprep.subr.mxu0 0.0
        %9936 = vmatpush1.msra.mxu0 %v9897
        %9937 = vmatprep.subr.mxu0 0.0
        %9938 = vmatpush1.msra.mxu0 %v9898
        %9939 = vmatprep.subr.mxu0 0.0
        %9940 = vmatpush1.msra.mxu0 0.0
        %9941 = vmatprep.subr.mxu0 0.0
        %9942 = vmatpush1.msra.mxu0 0.0
        %9943 = vmatprep.subr.mxu0 0.0
        %9944 = vmatpush1.msra.mxu0 0.0
        %9945 = vmatprep.subr.mxu0 0.0
        %9946 = vmatpush1.msra.mxu0 0.0
        %9947 = vmatprep.subr.mxu0 0.0
        %9948 = vmatpush1.msra.mxu0 0.0
        %9949 = vmatprep.subr.mxu0 0.0
        %9950 = vmatpush1.msra.mxu0 0.0
        %9951 = vmatprep.subr.mxu0 0.0
        %9952 = vmatpush1.msra.mxu0 0.0
        %9953 = vmatprep.subr.mxu0 0.0
        %9954 = vmatpush1.msra.mxu0 0.0
        %9955 = vmatprep.subr.mxu0 0.0
        %9956 = vmatpush1.msra.mxu0 0.0
        %9957 = vmatprep.subr.mxu0 0.0
        %9958 = vmatpush1.msra.mxu0 0.0
        %9959 = vmatprep.subr.mxu0 0.0
        %9960 = vmatpush1.msra.mxu0 0.0
        %9961 = vmatprep.subr.mxu0 0.0
        %9962 = vmatpush1.msra.mxu0 0.0
        %9963 = vmatprep.subr.mxu0 0.0
        %9964 = vmatpush1.msra.mxu0 0.0
        %9965 = vmatprep.subr.mxu0 0.0
        %9966 = vmatpush1.msra.mxu0 0.0
        %9967 = vmatprep.subr.mxu0 0.0
        %9968 = vmatpush1.msra.mxu0 0.0
        %9969 = vmatprep.subr.mxu0 0.0
        %9970 = vmatpush1.msra.mxu0 0.0
        %9971 = vmatprep.mubr.f32.mxu0 0.0
        %9972 = vmatmul.mubr.f32.gmra.mrb[0].mxu0 %v9867
        %v9973 = vpop.f32.mrb[0].mxu0
        %v9974 = vadd.f32 %v9905, %v9973
        %v9975 = vpop.f32.mrb[0].mxu0
        %9976 = vmatprep.mubr.f32.mxu0 0.0
        %9977 = vmatmul.mubr.f32.gmra.mrb[0].mxu0 %v9868
        %v9978 = vpop.f32.mrb[0].mxu0
        %v9979 = vadd.f32 %v9905, %v9978
        %v9980 = vpop.f32.mrb[0].mxu0
        %9981 = vmatprep.mubr.f32.mxu0 0.0
        %9982 = vmatmul.mubr.f32.gmra.mrb[0].mxu0 %v9869
        %v9983 = vpop.f32.mrb[0].mxu0
        %v9984 = vadd.f32 %v9905, %v9983
        %v9985 = vpop.f32.mrb[0].mxu0
        %9986 = vmatprep.mubr.f32.mxu0 0.0
        %9987 = vmatmul.mubr.f32.gmra.mrb[0].mxu0 %v9870
        %v9988 = vpop.f32.mrb[0].mxu0
        %v9989 = vadd.f32 %v9905, %v9988
        %v9990 = vpop.f32.mrb[0].mxu0
        %9991 = vmatprep.mubr.f32.mxu0 0.0
        %9992 = vmatmul.mubr.f32.gmra.mrb[0].mxu0 %v9871
        %v9993 = vpop.f32.mrb[0].mxu0
        %v9994 = vadd.f32 %v9905, %v9993
        %v9995 = vpop.f32.mrb[0].mxu0
        %9996 = vmatprep.mubr.f32.mxu0 0.0
        %9997 = vmatmul.mubr.f32.gmra.mrb[0].mxu0 %v9872
        %v9998 = vpop.f32.mrb[0].mxu0
        %v9999 = vadd.f32 %v9905, %v9998
        %v10000 = vpop.f32.mrb[0].mxu0
        %10001 = vmatprep.mubr.f32.mxu0 0.0
        %10002 = vmatmul.mubr.f32.gmra.mrb[0].mxu0 %v9873
        %v10003 = vpop.f32.mrb[0].mxu0
        %v10004 = vadd.f32 %v9905, %v10003
        %v10005 = vpop.f32.mrb[0].mxu0
        %10006 = vmatprep.mubr.f32.mxu0 0.0
        %10007 = vmatmul.mubr.f32.gmra.mrb[0].mxu0 %v9874
        %v10008 = vpop.f32.mrb[0].mxu0
        %v10009 = vadd.f32 %v9905, %v10008
        %v10010 = vpop.f32.mrb[0].mxu0
        %10011 = vmatprep.mubr.f32.mxu0 0.0
        %10012 = vmatmul.mubr.f32.gmra.mrb[0].mxu0 %v9875
        %v10013 = vpop.f32.mrb[0].mxu0
        %v10014 = vadd.f32 %v9905, %v10013
        %v10015 = vpop.f32.mrb[0].mxu0
        %10016 = vmatprep.mubr.f32.mxu0 0.0
        %10017 = vmatmul.mubr.f32.gmra.mrb[0].mxu0 %v9876
        %v10018 = vpop.f32.mrb[0].mxu0
        %v10019 = vadd.f32 %v9905, %v10018
        %v10020 = vpop.f32.mrb[0].mxu0
        %10021 = vmatprep.mubr.f32.mxu0 0.0
        %10022 = vmatmul.mubr.f32.gmra.mrb[0].mxu0 %v9877
        %v10023 = vpop.f32.mrb[0].mxu0
        %v10024 = vadd.f32 %v9905, %v10023
        %v10025 = vpop.f32.mrb[0].mxu0
        %10026 = vmatprep.mubr.f32.mxu0 0.0
        %10027 = vmatmul.mubr.f32.gmra.mrb[0].mxu0 %v9878
        %v10028 = vpop.f32.mrb[0].mxu0
        %v10029 = vadd.f32 %v9905, %v10028
        %v10030 = vpop.f32.mrb[0].mxu0
        %10031 = vmatprep.mubr.f32.mxu0 0.0
        %10032 = vmatmul.mubr.f32.gmra.mrb[0].mxu0 %v9879
        %v10033 = vpop.f32.mrb[0].mxu0
        %v10034 = vadd.f32 %v9905, %v10033
        %v10035 = vpop.f32.mrb[0].mxu0
        %10036 = vmatprep.mubr.f32.mxu0 0.0
        %10037 = vmatmul.mubr.f32.gmra.mrb[0].mxu0 %v9880
        %v10038 = vpop.f32.mrb[0].mxu0
        %v10039 = vadd.f32 %v9905, %v10038
        %v10040 = vpop.f32.mrb[0].mxu0
        %10041 = vmatprep.mubr.f32.mxu0 0.0
        %10042 = vmatmul.mubr.f32.gmra.mrb[0].mxu0 %v9881
        %v10043 = vpop.f32.mrb[0].mxu0
        %v10044 = vadd.f32 %v9905, %v10043
        %v10045 = vpop.f32.mrb[0].mxu0
        %10046 = vdwg.mxu0
        %v10047 = vadd.f32 %v9974, %v9687
        %v10048 = vadd.f32 %v9979, %v9688
        %v10049 = vadd.f32 %v9984, %v9689
        %v10050 = vadd.f32 %v9989, %v9690
        %v10051 = vadd.f32 %v9994, %v9691
        %v10052 = vadd.f32 %v9999, %v9692
        %v10053 = vadd.f32 %v10004, %v9693
        %v10054 = vadd.f32 %v10009, %v9694
        %v10055 = vadd.f32 %v10014, %v9695
        %v10056 = vadd.f32 %v10019, %v9696
        %v10057 = vadd.f32 %v10024, %v9697
        %v10058 = vadd.f32 %v10029, %v9698
        %v10059 = vadd.f32 %v10034, %v9699
        %v10060 = vadd.f32 %v10039, %v9700
        %v10061 = vadd.f32 %v10044, %v9701
        %s10062 = scalar_lea.vmem [#allocation17], 1
        %v10063 = vld [vmem:[%s10062] sm:$0x1]
        %s10064 = scalar_lea.vmem [#allocation19], 1
        %v10065 = vld [vmem:[%s10064] sm:$0x1]
        %10066 = vadd.xlane.f32.xlu0 %v10047
        %v10067 = vpop.xlane.xlu0 %10066
        %10068 = vadd.xlane.f32.xlu0 %v10048
        %v10069 = vpop.xlane.xlu0 %10068
        %10070 = vadd.xlane.f32.xlu0 %v10049
        %v10071 = vpop.xlane.xlu0 %10070
        %10072 = vadd.xlane.f32.xlu0 %v10050
        %v10073 = vpop.xlane.xlu0 %10072
        %10074 = vadd.xlane.f32.xlu0 %v10051
        %v10075 = vpop.xlane.xlu0 %10074
        %10076 = vadd.xlane.f32.xlu0 %v10052
        %v10077 = vpop.xlane.xlu0 %10076
        %10078 = vadd.xlane.f32.xlu0 %v10053
        %v10079 = vpop.xlane.xlu0 %10078
        %10080 = vadd.xlane.f32.xlu0 %v10054
        %v10081 = vpop.xlane.xlu0 %10080
        %10082 = vadd.xlane.f32.xlu0 %v10055
        %v10083 = vpop.xlane.xlu0 %10082
        %10084 = vadd.xlane.f32.xlu0 %v10056
        %v10085 = vpop.xlane.xlu0 %10084
        %10086 = vadd.xlane.f32.xlu0 %v10057
        %v10087 = vpop.xlane.xlu0 %10086
        %10088 = vadd.xlane.f32.xlu0 %v10058
        %v10089 = vpop.xlane.xlu0 %10088
        %10090 = vadd.xlane.f32.xlu0 %v10059
        %v10091 = vpop.xlane.xlu0 %10090
        %10092 = vadd.xlane.f32.xlu0 %v10060
        %v10093 = vpop.xlane.xlu0 %10092
        %v10094 = vsel %vm1743, %v10061, 0.0
        %10095 = vadd.xlane.f32.xlu0 %v10094
        %v10096 = vpop.xlane.xlu0 %10095
        %v10097 = vmul.f32 %v10067, 0.00862069
        %v10098 = vmul.f32 %v10069, 0.00862069
        %v10099 = vmul.f32 %v10071, 0.00862069
        %v10100 = vmul.f32 %v10073, 0.00862069
        %v10101 = vmul.f32 %v10075, 0.00862069
        %v10102 = vmul.f32 %v10077, 0.00862069
        %v10103 = vmul.f32 %v10079, 0.00862069
        %v10104 = vmul.f32 %v10081, 0.00862069
        %v10105 = vmul.f32 %v10083, 0.00862069
        %v10106 = vmul.f32 %v10085, 0.00862069
        %v10107 = vmul.f32 %v10087, 0.00862069
        %v10108 = vmul.f32 %v10089, 0.00862069
        %v10109 = vmul.f32 %v10091, 0.00862069
        %v10110 = vmul.f32 %v10093, 0.00862069
        %v10111 = vmul.f32 %v10096, 0.00862069
        %v10112 = vsub.f32 %v10047, %v10097
        %v10113 = vsub.f32 %v10048, %v10098
        %v10114 = vsub.f32 %v10049, %v10099
        %v10115 = vsub.f32 %v10050, %v10100
        %v10116 = vsub.f32 %v10051, %v10101
        %v10117 = vsub.f32 %v10052, %v10102
        %v10118 = vsub.f32 %v10053, %v10103
        %v10119 = vsub.f32 %v10054, %v10104
        %v10120 = vsub.f32 %v10055, %v10105
        %v10121 = vsub.f32 %v10056, %v10106
        %v10122 = vsub.f32 %v10057, %v10107
        %v10123 = vsub.f32 %v10058, %v10108
        %v10124 = vsub.f32 %v10059, %v10109
        %v10125 = vsub.f32 %v10060, %v10110
        %v10126 = vsub.f32 %v10061, %v10111
        %v10127 = vmul.f32 %v10112, %v779
        %v10128 = vmul.f32 %v10113, %v779
        %v10129 = vmul.f32 %v10114, %v779
        %v10130 = vmul.f32 %v10115, %v779
        %v10131 = vmul.f32 %v10116, %v779
        %v10132 = vmul.f32 %v10117, %v779
        %v10133 = vmul.f32 %v10118, %v779
        %v10134 = vmul.f32 %v10119, %v779
        %v10135 = vmul.f32 %v10120, %v779
        %v10136 = vmul.f32 %v10121, %v779
        %v10137 = vmul.f32 %v10122, %v779
        %v10138 = vmul.f32 %v10123, %v779
        %v10139 = vmul.f32 %v10124, %v779
        %v10140 = vmul.f32 %v10125, %v779
        %v10141 = vmul.f32 %v10126, %v779
        %v10142 = vmul.f32 %v10127, %v10127
        %v10143 = vmul.f32 %v10128, %v10128
        %v10144 = vmul.f32 %v10129, %v10129
        %v10145 = vmul.f32 %v10130, %v10130
        %v10146 = vmul.f32 %v10131, %v10131
        %v10147 = vmul.f32 %v10132, %v10132
        %v10148 = vmul.f32 %v10133, %v10133
        %v10149 = vmul.f32 %v10134, %v10134
        %v10150 = vmul.f32 %v10135, %v10135
        %v10151 = vmul.f32 %v10136, %v10136
        %v10152 = vmul.f32 %v10137, %v10137
        %v10153 = vmul.f32 %v10138, %v10138
        %v10154 = vmul.f32 %v10139, %v10139
        %v10155 = vmul.f32 %v10140, %v10140
        %v10156 = vmul.f32 %v10141, %v10141
        %10157 = vadd.xlane.f32.xlu0 %v10142
        %v10158 = vpop.xlane.xlu0 %10157
        %10159 = vadd.xlane.f32.xlu0 %v10143
        %v10160 = vpop.xlane.xlu0 %10159
        %10161 = vadd.xlane.f32.xlu0 %v10144
        %v10162 = vpop.xlane.xlu0 %10161
        %10163 = vadd.xlane.f32.xlu0 %v10145
        %v10164 = vpop.xlane.xlu0 %10163
        %10165 = vadd.xlane.f32.xlu0 %v10146
        %v10166 = vpop.xlane.xlu0 %10165
        %10167 = vadd.xlane.f32.xlu0 %v10147
        %v10168 = vpop.xlane.xlu0 %10167
        %10169 = vadd.xlane.f32.xlu0 %v10148
        %v10170 = vpop.xlane.xlu0 %10169
        %10171 = vadd.xlane.f32.xlu0 %v10149
        %v10172 = vpop.xlane.xlu0 %10171
        %10173 = vadd.xlane.f32.xlu0 %v10150
        %v10174 = vpop.xlane.xlu0 %10173
        %10175 = vadd.xlane.f32.xlu0 %v10151
        %v10176 = vpop.xlane.xlu0 %10175
        %10177 = vadd.xlane.f32.xlu0 %v10152
        %v10178 = vpop.xlane.xlu0 %10177
        %10179 = vadd.xlane.f32.xlu0 %v10153
        %v10180 = vpop.xlane.xlu0 %10179
        %10181 = vadd.xlane.f32.xlu0 %v10154
        %v10182 = vpop.xlane.xlu0 %10181
        %10183 = vadd.xlane.f32.xlu0 %v10155
        %v10184 = vpop.xlane.xlu0 %10183
        %v10185 = vsel %vm1743, %v10156, 0.0
        %10186 = vadd.xlane.f32.xlu0 %v10185
        %v10187 = vpop.xlane.xlu0 %10186
        %v10188 = vmul.f32 %v10158, 0.00862069
        %v10189 = vmul.f32 %v10160, 0.00862069
        %v10190 = vmul.f32 %v10162, 0.00862069
        %v10191 = vmul.f32 %v10164, 0.00862069
        %v10192 = vmul.f32 %v10166, 0.00862069
        %v10193 = vmul.f32 %v10168, 0.00862069
        %v10194 = vmul.f32 %v10170, 0.00862069
        %v10195 = vmul.f32 %v10172, 0.00862069
        %v10196 = vmul.f32 %v10174, 0.00862069
        %v10197 = vmul.f32 %v10176, 0.00862069
        %v10198 = vmul.f32 %v10178, 0.00862069
        %v10199 = vmul.f32 %v10180, 0.00862069
        %v10200 = vmul.f32 %v10182, 0.00862069
        %v10201 = vmul.f32 %v10184, 0.00862069
        %v10202 = vmul.f32 %v10187, 0.00862069
        %v10203 = vadd.f32 %v10188, 1e-05
        %v10204 = vadd.f32 %v10189, 1e-05
        %v10205 = vadd.f32 %v10190, 1e-05
        %v10206 = vadd.f32 %v10191, 1e-05
        %v10207 = vadd.f32 %v10192, 1e-05
        %v10208 = vadd.f32 %v10193, 1e-05
        %v10209 = vadd.f32 %v10194, 1e-05
        %v10210 = vadd.f32 %v10195, 1e-05
        %v10211 = vadd.f32 %v10196, 1e-05
        %v10212 = vadd.f32 %v10197, 1e-05
        %v10213 = vadd.f32 %v10198, 1e-05
        %v10214 = vadd.f32 %v10199, 1e-05
        %v10215 = vadd.f32 %v10200, 1e-05
        %v10216 = vadd.f32 %v10201, 1e-05
        %v10217 = vadd.f32 %v10202, 1e-05
        %v10218 = vrsqrt.pop %v10203
        %v10219 = vrsqrt.pop %v10204
        %v10220 = vrsqrt.pop %v10205
        %v10221 = vrsqrt.pop %v10206
        %v10222 = vrsqrt.pop %v10207
        %v10223 = vrsqrt.pop %v10208
        %v10224 = vrsqrt.pop %v10209
        %v10225 = vrsqrt.pop %v10210
        %v10226 = vrsqrt.pop %v10211
        %v10227 = vrsqrt.pop %v10212
        %v10228 = vrsqrt.pop %v10213
        %v10229 = vrsqrt.pop %v10214
        %v10230 = vrsqrt.pop %v10215
        %v10231 = vrsqrt.pop %v10216
        %v10232 = vrsqrt.pop %v10217
        %v10233 = vmul.f32 %v10127, %v10218
        %v10234 = vmul.f32 %v10128, %v10219
        %v10235 = vmul.f32 %v10129, %v10220
        %v10236 = vmul.f32 %v10130, %v10221
        %v10237 = vmul.f32 %v10131, %v10222
        %v10238 = vmul.f32 %v10132, %v10223
        %v10239 = vmul.f32 %v10133, %v10224
        %v10240 = vmul.f32 %v10134, %v10225
        %v10241 = vmul.f32 %v10135, %v10226
        %v10242 = vmul.f32 %v10136, %v10227
        %v10243 = vmul.f32 %v10137, %v10228
        %v10244 = vmul.f32 %v10138, %v10229
        %v10245 = vmul.f32 %v10139, %v10230
        %v10246 = vmul.f32 %v10140, %v10231
        %v10247 = vmul.f32 %v10141, %v10232
        %v10249 = vlaneseq
        %v10250 = vshrl.u32 %v10249, 7
        %v10251 = vsub.s32 0, %v10250
        %v10252 = vrot.slane %v10063, %v10251
        %v10254 = vmul.f32 %v10233, %v10252
        %v10255 = vmul.f32 %v10234, %v10252
        %v10256 = vmul.f32 %v10235, %v10252
        %v10257 = vmul.f32 %v10236, %v10252
        %v10258 = vmul.f32 %v10237, %v10252
        %v10259 = vmul.f32 %v10238, %v10252
        %v10260 = vmul.f32 %v10239, %v10252
        %v10261 = vmul.f32 %v10240, %v10252
        %v10262 = vmul.f32 %v10241, %v10252
        %v10263 = vmul.f32 %v10242, %v10252
        %v10264 = vmul.f32 %v10243, %v10252
        %v10265 = vmul.f32 %v10244, %v10252
        %v10266 = vmul.f32 %v10245, %v10252
        %v10267 = vmul.f32 %v10246, %v10252
        %v10268 = vmul.f32 %v10247, %v10252
        %v10270 = vlaneseq
        %v10271 = vshrl.u32 %v10270, 7
        %v10272 = vsub.s32 0, %v10271
        %v10273 = vrot.slane %v10065, %v10272
        %v10275 = vadd.f32 %v10254, %v10273
        %v10276 = vadd.f32 %v10255, %v10273
        %v10277 = vadd.f32 %v10256, %v10273
        %v10278 = vadd.f32 %v10257, %v10273
        %v10279 = vadd.f32 %v10258, %v10273
        %v10280 = vadd.f32 %v10259, %v10273
        %v10281 = vadd.f32 %v10260, %v10273
        %v10282 = vadd.f32 %v10261, %v10273
        %v10283 = vadd.f32 %v10262, %v10273
        %v10284 = vadd.f32 %v10263, %v10273
        %v10285 = vadd.f32 %v10264, %v10273
        %v10286 = vadd.f32 %v10265, %v10273
        %v10287 = vadd.f32 %v10266, %v10273
        %v10288 = vadd.f32 %v10267, %v10273
        %v10289 = vadd.f32 %v10268, %v10273
        %v10290 = vld [vmem:[%s17] sm:$0xff]
        %v10291 = vld [vmem:[%s17 + $0x8] sm:$0xff]
        %v10292 = vld [vmem:[%s17 + $0x10] sm:$0xff]
        %v10293 = vld [vmem:[%s17 + $0x18] sm:$0xff]
        %v10294 = vld [vmem:[%s17 + $0x20] sm:$0xff]
        %v10295 = vld [vmem:[%s17 + $0x28] sm:$0xff]
        %v10296 = vld [vmem:[%s17 + $0x30] sm:$0xff]
        %v10297 = vld [vmem:[%s17 + $0x38] sm:$0xff]
        %v10298 = vld [vmem:[%s17 + $0x40] sm:$0xff]
        %v10299 = vld [vmem:[%s17 + $0x48] sm:$0xff]
        %v10300 = vld [vmem:[%s17 + $0x50] sm:$0xff]
        %v10301 = vld [vmem:[%s17 + $0x58] sm:$0xff]
        %v10302 = vld [vmem:[%s17 + $0x60] sm:$0xff]
        %v10303 = vld [vmem:[%s17 + $0x68] sm:$0xff]
        %v10304 = vld [vmem:[%s17 + $0x70] sm:$0xf]
        %v10305 = vmul.f32 %v10275, %v10290
        %v10306 = vmul.f32 %v10276, %v10291
        %v10307 = vmul.f32 %v10277, %v10292
        %v10308 = vmul.f32 %v10278, %v10293
        %v10309 = vmul.f32 %v10279, %v10294
        %v10310 = vmul.f32 %v10280, %v10295
        %v10311 = vmul.f32 %v10281, %v10296
        %v10312 = vmul.f32 %v10282, %v10297
        %v10313 = vmul.f32 %v10283, %v10298
        %v10314 = vmul.f32 %v10284, %v10299
        %v10315 = vmul.f32 %v10285, %v10300
        %v10316 = vmul.f32 %v10286, %v10301
        %v10317 = vmul.f32 %v10287, %v10302
        %v10318 = vmul.f32 %v10288, %v10303
        %v10319 = vmul.f32 %v10289, %v10304
        %10320 = vadd.xlane.f32.xlu0 %v10305
        %v10321 = vpop.xlane.xlu0 %10320
        %10322 = vadd.xlane.f32.xlu0 %v10306
        %v10323 = vpop.xlane.xlu0 %10322
        %10324 = vadd.xlane.f32.xlu0 %v10307
        %v10325 = vpop.xlane.xlu0 %10324
        %10326 = vadd.xlane.f32.xlu0 %v10308
        %v10327 = vpop.xlane.xlu0 %10326
        %10328 = vadd.xlane.f32.xlu0 %v10309
        %v10329 = vpop.xlane.xlu0 %10328
        %10330 = vadd.xlane.f32.xlu0 %v10310
        %v10331 = vpop.xlane.xlu0 %10330
        %10332 = vadd.xlane.f32.xlu0 %v10311
        %v10333 = vpop.xlane.xlu0 %10332
        %10334 = vadd.xlane.f32.xlu0 %v10312
        %v10335 = vpop.xlane.xlu0 %10334
        %10336 = vadd.xlane.f32.xlu0 %v10313
        %v10337 = vpop.xlane.xlu0 %10336
        %10338 = vadd.xlane.f32.xlu0 %v10314
        %v10339 = vpop.xlane.xlu0 %10338
        %10340 = vadd.xlane.f32.xlu0 %v10315
        %v10341 = vpop.xlane.xlu0 %10340
        %10342 = vadd.xlane.f32.xlu0 %v10316
        %v10343 = vpop.xlane.xlu0 %10342
        %10344 = vadd.xlane.f32.xlu0 %v10317
        %v10345 = vpop.xlane.xlu0 %10344
        %10346 = vadd.xlane.f32.xlu0 %v10318
        %v10347 = vpop.xlane.xlu0 %10346
        %v10348 = vsel %vm1743, %v10319, 0.0
        %10349 = vadd.xlane.f32.xlu0 %v10348
        %v10350 = vpop.xlane.xlu0 %10349
        %v10351 = vadd.f32 %v10321, %v10323
        %v10352 = vadd.f32 %v10351, %v10325
        %v10353 = vadd.f32 %v10352, %v10327
        %v10354 = vadd.f32 %v10353, %v10329
        %v10355 = vadd.f32 %v10354, %v10331
        %v10356 = vadd.f32 %v10355, %v10333
        %v10357 = vadd.f32 %v10356, %v10335
        %v10358 = vadd.f32 %v10357, %v10337
        %v10359 = vadd.f32 %v10358, %v10339
        %v10360 = vadd.f32 %v10359, %v10341
        %v10361 = vadd.f32 %v10360, %v10343
        %v10362 = vadd.f32 %v10361, %v10345
        %v10363 = vadd.f32 %v10362, %v10347
        %v10364 = vsel %vm1743, %v10350, 0.0
        %v10365 = vadd.f32 %v10363, %v10364
        %v10366 = vrot.slane %v10365, 4
        %v10367 = vadd.f32 %v10365, %v10366
        %v10368 = vrot.slane %v10367, 2
        %v10369 = vadd.f32 %v10367, %v10368
        %v10370 = vrot.slane %v10369, 1
        %v10371 = vadd.f32 %v10369, %v10370
        %s10372 = scalar_lea.vmem %s17, 120
        %v10373 = vld [vmem:[%s10372] sm:$0xff]
        %v10374 = vld [vmem:[%s10372 + $0x8] sm:$0xff]
        %v10375 = vld [vmem:[%s10372 + $0x10] sm:$0xff]
        %v10376 = vld [vmem:[%s10372 + $0x18] sm:$0xff]
        %v10377 = vld [vmem:[%s10372 + $0x20] sm:$0xff]
        %v10378 = vld [vmem:[%s10372 + $0x28] sm:$0xff]
        %v10379 = vld [vmem:[%s10372 + $0x30] sm:$0xff]
        %v10380 = vld [vmem:[%s10372 + $0x38] sm:$0xff]
        %v10381 = vld [vmem:[%s10372 + $0x40] sm:$0xff]
        %v10382 = vld [vmem:[%s10372 + $0x48] sm:$0xff]
        %v10383 = vld [vmem:[%s10372 + $0x50] sm:$0xff]
        %v10384 = vld [vmem:[%s10372 + $0x58] sm:$0xff]
        %v10385 = vld [vmem:[%s10372 + $0x60] sm:$0xff]
        %v10386 = vld [vmem:[%s10372 + $0x68] sm:$0xff]
        %v10387 = vld [vmem:[%s10372 + $0x70] sm:$0xf]
        %v10388 = vmul.f32 %v10275, %v10373
        %v10389 = vmul.f32 %v10276, %v10374
        %v10390 = vmul.f32 %v10277, %v10375
        %v10391 = vmul.f32 %v10278, %v10376
        %v10392 = vmul.f32 %v10279, %v10377
        %v10393 = vmul.f32 %v10280, %v10378
        %v10394 = vmul.f32 %v10281, %v10379
        %v10395 = vmul.f32 %v10282, %v10380
        %v10396 = vmul.f32 %v10283, %v10381
        %v10397 = vmul.f32 %v10284, %v10382
        %v10398 = vmul.f32 %v10285, %v10383
        %v10399 = vmul.f32 %v10286, %v10384
        %v10400 = vmul.f32 %v10287, %v10385
        %v10401 = vmul.f32 %v10288, %v10386
        %v10402 = vmul.f32 %v10289, %v10387
        %10403 = vadd.xlane.f32.xlu0 %v10388
        %v10404 = vpop.xlane.xlu0 %10403
        %10405 = vadd.xlane.f32.xlu0 %v10389
        %v10406 = vpop.xlane.xlu0 %10405
        %10407 = vadd.xlane.f32.xlu0 %v10390
        %v10408 = vpop.xlane.xlu0 %10407
        %10409 = vadd.xlane.f32.xlu0 %v10391
        %v10410 = vpop.xlane.xlu0 %10409
        %10411 = vadd.xlane.f32.xlu0 %v10392
        %v10412 = vpop.xlane.xlu0 %10411
        %10413 = vadd.xlane.f32.xlu0 %v10393
        %v10414 = vpop.xlane.xlu0 %10413
        %10415 = vadd.xlane.f32.xlu0 %v10394
        %v10416 = vpop.xlane.xlu0 %10415
        %10417 = vadd.xlane.f32.xlu0 %v10395
        %v10418 = vpop.xlane.xlu0 %10417
        %10419 = vadd.xlane.f32.xlu0 %v10396
        %v10420 = vpop.xlane.xlu0 %10419
        %10421 = vadd.xlane.f32.xlu0 %v10397
        %v10422 = vpop.xlane.xlu0 %10421
        %10423 = vadd.xlane.f32.xlu0 %v10398
        %v10424 = vpop.xlane.xlu0 %10423
        %10425 = vadd.xlane.f32.xlu0 %v10399
        %v10426 = vpop.xlane.xlu0 %10425
        %10427 = vadd.xlane.f32.xlu0 %v10400
        %v10428 = vpop.xlane.xlu0 %10427
        %10429 = vadd.xlane.f32.xlu0 %v10401
        %v10430 = vpop.xlane.xlu0 %10429
        %v10431 = vsel %vm1743, %v10402, 0.0
        %10432 = vadd.xlane.f32.xlu0 %v10431
        %v10433 = vpop.xlane.xlu0 %10432
        %v10434 = vadd.f32 %v10404, %v10406
        %v10435 = vadd.f32 %v10434, %v10408
        %v10436 = vadd.f32 %v10435, %v10410
        %v10437 = vadd.f32 %v10436, %v10412
        %v10438 = vadd.f32 %v10437, %v10414
        %v10439 = vadd.f32 %v10438, %v10416
        %v10440 = vadd.f32 %v10439, %v10418
        %v10441 = vadd.f32 %v10440, %v10420
        %v10442 = vadd.f32 %v10441, %v10422
        %v10443 = vadd.f32 %v10442, %v10424
        %v10444 = vadd.f32 %v10443, %v10426
        %v10445 = vadd.f32 %v10444, %v10428
        %v10446 = vadd.f32 %v10445, %v10430
        %v10447 = vsel %vm1743, %v10433, 0.0
        %v10448 = vadd.f32 %v10446, %v10447
        %v10449 = vrot.slane %v10448, 4
        %v10450 = vadd.f32 %v10448, %v10449
        %v10451 = vrot.slane %v10450, 2
        %v10452 = vadd.f32 %v10450, %v10451
        %v10453 = vrot.slane %v10452, 1
        %v10454 = vadd.f32 %v10452, %v10453
        %vm10455 = vcmp.eq.s32.totalorder %v776, 0
        %v10456 = vsel %vm10455, %v10371, 0.0
        %vm10457 = vcmp.eq.s32.totalorder %v776, 1
        %v10458 = vsel %vm10457, %v10454, 0.0
        %v10459 = vadd.f32 %v10456, %v10458
        %v10460 = vld [vmem:[%s18] sm:$0x1]
        %v10461 = vadd.f32 %v10459, %v10460
        %10462 = vst [vmem:[%s754] sm:$0x1] %v10461
        %s10463 = sand.u32 %s451, 1
        %s10464 = scalar_lea.sflag [#allocation4], %s10463
        %s10465 = sand.u32 %s451, 1
        %s10466 = scalar_lea.vmem [#allocation20], %s10465
        // Predicated region
        $region141: #{tpu_custom_call.1} parent=95 // pred_check
          %p10467 = pneg %p461
        $region142: #{tpu_custom_call.1} parent=95 // pred_check_branch
          %10469 = sbr.rel (%p10467) target = $region144
        $region143: #{tpu_custom_call.1} parent=95 // pred_region
          %s10471 = ssub.s32 16, 16
          %10472 = vsyncadd %s10464, %s10471
          %s10473 = smul.addr %s39, 16
          %s10474 = scalar_lea.hbm %s19, %s10473
          %s10476 = sshll.u32 %s10466, 4
          %s10477 = int_to_ptr.vmem [resolvable:$true] %s10476
          %10479 = dma.vmem_to_hbm [thread:$0]  %s10477, 16, %s10474, %s10464
        $region144: #{tpu_custom_call.1} parent=95 // pred_fallthru
          _
      $region96: #{tpu_custom_call.1} parent=5 // pred_fallthru
        _
      %p10480 = scmp.le.s32.totalorder 2, %s34
      // Predicated region
      $region145: #{tpu_custom_call.1} parent=5 // pred_check
        %p10481 = pneg %p10480
      $region146: #{tpu_custom_call.1} parent=5 // pred_check_branch
        %10483 = sbr.rel (%p10481) target = $region148
      $region147: #{tpu_custom_call.1} parent=5 // pred_region
        %s10484 = ssub.s32 %s34, 2
        // Predicated region
        $region149: #{tpu_custom_call.1} parent=147 // pred_check
          %p10485 = pneg %p467
        $region150: #{tpu_custom_call.1} parent=147 // pred_check_branch
          %10487 = sbr.rel (%p10485) target = $region152
        $region151: #{tpu_custom_call.1} parent=147 // pred_region
          %s10488 = sand.u32 %s452, 1
          %s10489 = scalar_lea.sflag [#allocation4], %s10488
          %s10490 = sand.u32 %s452, 1
          %s10491 = scalar_lea.vmem [#allocation20], %s10490
          %10492 = dma.done %s10489, 16
        $region152: #{tpu_custom_call.1} parent=147 // pred_fallthru
          _
      $region148: #{tpu_custom_call.1} parent=5 // pred_fallthru
        _
    $region6: #{tpu_custom_call.1} parent=1 // loop_footer
      %s38 = sadd.s32 1, %s34
    $region7: #{tpu_custom_call.1} parent=1 // loop_footer_branch
      %33 = sbr.rel target = $region3
    $region8: #{tpu_custom_call.1} parent=1 // loop_exit
      _
    %10493 = vsyncpa [#allocation3], 1
    %s10494 = scalar_lea.sflag [#allocation3], 1
    %10495 = vsyncpa %s10494, 1
    %10496 = vsyncpa [#allocation6], 1
    %10497 = vsyncpa [#allocation9], 1
    %10498 = vsyncpa [#allocation12], 1
    %10499 = vsyncpa [#allocation15], 1
    %10500 = vsyncpa [#allocation18], 1
    %10501 = vsyncpa [#allocation4], 1
    %s10502 = scalar_lea.sflag [#allocation4], 1
    %10503 = vsyncpa %s10502, 1

</llo_original>
